<compile_context>
chip_gen: v7x
topology: tpu7x:2x2x1
jax: 0.10.0
libtpu: 0.0.40
codegen_flags: <defaults>
</compile_context>

<pallas_src>
import functools

import numpy as np
import jax
import jax.numpy as jnp
from jax import lax
from jax.experimental import pallas as pl
from jax.experimental.pallas import tpu as pltpu

# Hyper-parameters hard-coded inside the PyTorch RDB module
G0 = 32            # base channels (input / output channels of the block)
G = 16             # growth rate per dense conv layer
C = 6              # number of dense conv layers
K = 3              # conv kernel size
CTOT = G0 + C * G  # 128 channels after the full dense concatenation


def _round_up(x, m):
    return (x + m - 1) // m * m


def rdb_kernel(x_ref, cw_ref, cb_ref, lw_ref, lb_ref, mask_ref,
               out_ref, feat_ref, *, width, ppad):
    nb, g0, hw = x_ref.shape           # (B, 32, H*W)
    ctot, L = feat_ref.shape           # (128, B*ppad)

    # ---- init (only what must be zero / finite) ----------------------------------
    # Rows >= G0 must be finite before the first matmul (they only ever hit zero
    # weight columns); every channel row must be exactly zero on the per-image slack
    # lanes [hw, ppad) (they are the conv's top/bottom zero padding and the landing
    # zone of the circular roll wrap).  The image lanes of rows [0, G0) are simply x.
    feat_ref[g0:, :] = jnp.zeros((ctot - g0, L), jnp.float32)
    for b in range(nb):
        feat_ref[:g0, b * ppad + hw:(b + 1) * ppad] = jnp.zeros(
            (g0, ppad - hw), jnp.float32)
        feat_ref[:g0, b * ppad:b * ppad + hw] = x_ref[b]

    # ---- host-precomputed 0/1 masks over the global lane axis ---------------------
    m_left = mask_ref[0:1, :]    # 0 where w == 0      (kills the dw = -1 row wrap)
    m_right = mask_ref[1:2, :]   # 0 where w == W-1    (kills the dw = +1 row wrap)
    m_img = mask_ref[2:3, :]     # 0 on slack lanes    (keeps the zero padding zero)

    # ---- dense stack: 6 x (3x3 conv + bias + ReLU), appending 16 channels/layer ---
    for c in range(C):
        # One MXU matmul gives all 9 taps x 16 output channels at every pixel.
        z = jnp.dot(cw_ref[c], feat_ref[...],
                    preferred_element_type=jnp.float32)            # (144, L)
        acc = None
        for dh in (-1, 0, 1):
            for dw in (-1, 0, 1):
                t = (dh + 1) * K + (dw + 1)
                zt = z[t * G:(t + 1) * G, :]                        # (16, L)
                off = dh * width + dw                               # lane offset of tap
                if off != 0:
                    # out[:, p] = zt[:, (p + off) % L] -- XLU lane rotation; any wrap
                    # lands on all-zero slack columns of z.
                    zt = pltpu.roll(zt, (-off) % L, axis=1)
                if dw == -1:
                    zt = zt * m_left
                elif dw == 1:
                    zt = zt * m_right
                acc = zt if acc is None else acc + zt
        y = jnp.maximum(acc + cb_ref[c], 0.0) * m_img               # bias + ReLU
        feat_ref[g0 + c * G:g0 + (c + 1) * G, :] = y                # torch.cat((x, out), 1)

    # ---- LFF: 1x1 conv over the 128-channel concat, then residual add -------------
    lff = jnp.dot(lw_ref[...], feat_ref[...],
                  preferred_element_type=jnp.float32) + lb_ref[...]  # (32, L)
    for b in range(nb):
        out_ref[b] = lff[:, b * ppad:b * ppad + hw] + x_ref[b]       # lane-dense store


def rdb_forward(x_nchw, conv_ws, conv_bs, lff_w, lff_b, *, images_per_step=None):
    """x_nchw: (N, 32, H, W) f32; conv_ws[c]: (3, 3, 32+16c, 16) HWIO;
    conv_bs[c]: (16,); lff_w: (128, 32); lff_b: (32,)."""
    N, cin0, H, W = x_nchw.shape
    assert cin0 == G0
    hw = H * W

    # Images per grid step: largest divisor of N up to 4 (amortizes per-step pipeline
    # overhead, widens matmul N, keeps the f32 accumulator register-resident).
    if images_per_step is None:
        images_per_step = max(b for b in range(1, min(N, 4) + 1) if N % b == 0)
    B = images_per_step
    assert N % B == 0

    # Per-image lane frame: H*W image lanes + >= W+1 zero slack lanes, 128-rounded.
    ppad = _round_up(hw + W + 1, 128)
    L = B * ppad

    x_flat = x_nchw.reshape(N, G0, hw)                    # free reshape, stays NCHW

    # Conv weights -> lane-dense (C, 9*G, 128): row t*G+o of layer c holds tap
    # t = kh*3 + kw, output channel o; columns are input channels zero-padded to 128.
    cw = jnp.zeros((C, K * K * G, CTOT), jnp.float32)
    for c in range(C):
        cin = G0 + c * G
        wt = jnp.transpose(conv_ws[c], (0, 1, 3, 2)).reshape(K * K * G, cin)
        cw = cw.at[c, :, :cin].set(wt)
    cb = jnp.stack(conv_bs, axis=0).reshape(C, G, 1)       # (C, 16, 1)
    lw = jnp.asarray(lff_w).T                              # (32, 128) lane-dense
    lb = jnp.asarray(lff_b).reshape(G0, 1)                 # (32, 1)

    # Host-built 0/1 masks over the global lane axis (avoids in-kernel int div/mod).
    p = np.arange(L, dtype=np.int64) % ppad
    wcol = p % W
    masks = jnp.asarray(np.stack([
        (wcol != 0).astype(np.float32),        # valid lanes for dw = -1 taps
        (wcol != W - 1).astype(np.float32),    # valid lanes for dw = +1 taps
        (p < hw).astype(np.float32),           # real image lanes (not slack)
    ], axis=0))

    # TODO(synk): for very large H*W, add a second "parallel" grid axis over row strips
    # (1-row halo) so the per-image slab never exceeds v7x's 64 MiB VMEM and both v7x
    # TensorCores are used at batch 1.
    # TODO(synk): on v6e/v7x the 256-deep MXU is only half filled (K=128); packing two
    # channel-shifted feat copies (K=256) and/or bf16 operands would raise MXU
    # throughput further but needs a generation gate and a numerics re-check.
    kernel = functools.partial(rdb_kernel, width=W, ppad=ppad)
    out = pl.pallas_call(
        kernel,
        out_shape=jax.ShapeDtypeStruct((N, G0, hw), jnp.float32),
        grid=(N // B,),
        in_specs=[
            pl.BlockSpec((B, G0, hw), lambda n: (n, 0, 0)),
            pl.BlockSpec((C, K * K * G, CTOT), lambda n: (0, 0, 0)),
            pl.BlockSpec((C, G, 1), lambda n: (0, 0, 0)),
            pl.BlockSpec((G0, CTOT), lambda n: (0, 0)),
            pl.BlockSpec((G0, 1), lambda n: (0, 0)),
            pl.BlockSpec((3, L), lambda n: (0, 0)),
        ],
        out_specs=pl.BlockSpec((B, G0, hw), lambda n: (n, 0, 0)),
        scratch_shapes=[pltpu.VMEM((CTOT, L), jnp.float32)],
        compiler_params=pltpu.CompilerParams(
            dimension_semantics=("parallel",),
            vmem_limit_bytes=32 * 1024 * 1024),
    )(x_flat, cw, cb, lw, lb, masks)
    return out.reshape(N, G0, H, W)


def rdb_reference(x_nchw, conv_ws, conv_bs, lff_w, lff_b):
    """Pure-JAX reference matching the PyTorch RDB forward semantics."""
    x = jnp.transpose(x_nchw, (0, 2, 3, 1))               # NHWC
    feat = x
    for c in range(C):
        y = lax.conv_general_dilated(
            feat, conv_ws[c], window_strides=(1, 1), padding="SAME",
            dimension_numbers=("NHWC", "HWIO", "NHWC"))
        y = jnp.maximum(y + conv_bs[c][None, None, None, :], 0.0)
        feat = jnp.concatenate([feat, y], axis=-1)
    lff = jnp.einsum("nhwc,co->nhwo", feat, lff_w) + lff_b[None, None, None, :]
    out = lff + x
    return jnp.transpose(out, (0, 3, 1, 2))


if __name__ == "__main__":
    key = jax.random.PRNGKey(0)
    keys = jax.random.split(key, 2 * C + 3)
    N, H, W = 2, 16, 16

    x = jax.random.normal(keys[0], (N, G0, H, W), jnp.float32)
    conv_ws, conv_bs = [], []
    for c in range(C):
        cin = G0 + c * G
        conv_ws.append(
            0.05 * jax.random.normal(keys[1 + 2 * c], (K, K, cin, G), jnp.float32))
        conv_bs.append(
            0.05 * jax.random.normal(keys[2 + 2 * c], (G,), jnp.float32))
    lff_w = 0.05 * jax.random.normal(keys[1 + 2 * C], (CTOT, G0), jnp.float32)
    lff_b = 0.05 * jax.random.normal(keys[2 + 2 * C], (G0,), jnp.float32)

    out = jax.block_until_ready(rdb_forward(x, conv_ws, conv_bs, lff_w, lff_b))
    ref = jax.block_until_ready(rdb_reference(x, conv_ws, conv_bs, lff_w, lff_b))

    assert out.shape == (N, G0, H, W) and out.dtype == jnp.float32
    max_err = float(jnp.max(jnp.abs(out - ref)))
    if not jnp.allclose(out, ref, rtol=2e-2, atol=2e-2):
        raise AssertionError(f"Pallas RDB mismatch vs reference, max abs err={max_err:e}")
    print("KERNEL_OK")
</pallas_src>

<mosaic_0001>
module attributes {stable_mosaic.version = 11 : i64} {
  func.func @rdb_kernel(%arg0: i32, %arg1: memref<2x32x256xf32, #tpu.memory_space<vmem>>, %arg2: memref<6x144x128xf32, #tpu.memory_space<vmem>>, %arg3: memref<6x16x1xf32, #tpu.memory_space<vmem>>, %arg4: memref<32x128xf32, #tpu.memory_space<vmem>>, %arg5: memref<32x1xf32, #tpu.memory_space<vmem>>, %arg6: memref<3x768xf32, #tpu.memory_space<vmem>>, %arg7: memref<2x32x256xf32, #tpu.memory_space<vmem>>, %arg8: memref<128x768xf32, #tpu.memory_space<vmem>>) attributes {dimension_semantics = [#tpu.dimension_semantics<parallel>], iteration_bounds = array<i64: 1>, scalar_prefetch = 0 : i64, scratch_operands = 1 : i64, tpu.core_type = #tpu.core_type<tc>, window_params = [{transform_indices = @transform_0, window_bounds = array<i64: 2, 32, 256>}, {pipeline_mode = #tpu.pipeline_mode<synchronous>, transform_indices = @transform_1, window_bounds = array<i64: 6, 144, 128>}, {pipeline_mode = #tpu.pipeline_mode<synchronous>, transform_indices = @transform_2, window_bounds = array<i64: 6, 16, 1>}, {pipeline_mode = #tpu.pipeline_mode<synchronous>, transform_indices = @transform_3, window_bounds = array<i64: 32, 128>}, {pipeline_mode = #tpu.pipeline_mode<synchronous>, transform_indices = @transform_4, window_bounds = array<i64: 32, 1>}, {pipeline_mode = #tpu.pipeline_mode<synchronous>, transform_indices = @transform_5, window_bounds = array<i64: 3, 768>}, {transform_indices = @transform_6, window_bounds = array<i64: 2, 32, 256>}]} {
    %cst = arith.constant 0.000000e+00 : f32
    %0 = vector.broadcast %cst : f32 to vector<96x768xf32>
    %c32 = arith.constant 32 : index
    %c0 = arith.constant 0 : index
    %1 = vector.load %arg8[%c32, %c0] : memref<128x768xf32, #tpu.memory_space<vmem>>, vector<96x768xf32>
    tpu.vector_store %arg8[%c32, %c0], %0 {strides = array<i32>} : memref<128x768xf32, #tpu.memory_space<vmem>>, vector<96x768xf32>,
    %cst_0 = arith.constant 0.000000e+00 : f32
    %2 = vector.broadcast %cst_0 : f32 to vector<32x128xf32>
    %c0_1 = arith.constant 0 : index
    %c256 = arith.constant 256 : index
    %3 = vector.load %arg8[%c0_1, %c256] : memref<128x768xf32, #tpu.memory_space<vmem>>, vector<32x128xf32>
    tpu.vector_store %arg8[%c0_1, %c256], %2 {strides = array<i32>} : memref<128x768xf32, #tpu.memory_space<vmem>>, vector<32x128xf32>,
    %c0_2 = arith.constant 0 : index
    %c0_3 = arith.constant 0 : index
    %c0_4 = arith.constant 0 : index
    %4 = vector.load %arg1[%c0_2, %c0_3, %c0_4] : memref<2x32x256xf32, #tpu.memory_space<vmem>>, vector<1x32x256xf32>
    %5 = vector.shape_cast %4 : vector<1x32x256xf32> to vector<32x256xf32>
    %c0_5 = arith.constant 0 : index
    %c0_6 = arith.constant 0 : index
    %6 = vector.load %arg8[%c0_5, %c0_6] : memref<128x768xf32, #tpu.memory_space<vmem>>, vector<32x256xf32>
    tpu.vector_store %arg8[%c0_5, %c0_6], %5 {strides = array<i32>} : memref<128x768xf32, #tpu.memory_space<vmem>>, vector<32x256xf32>,
    %cst_7 = arith.constant 0.000000e+00 : f32
    %7 = vector.broadcast %cst_7 : f32 to vector<32x128xf32>
    %c0_8 = arith.constant 0 : index
    %c640 = arith.constant 640 : index
    %8 = vector.load %arg8[%c0_8, %c640] : memref<128x768xf32, #tpu.memory_space<vmem>>, vector<32x128xf32>
    tpu.vector_store %arg8[%c0_8, %c640], %7 {strides = array<i32>} : memref<128x768xf32, #tpu.memory_space<vmem>>, vector<32x128xf32>,
    %c1 = arith.constant 1 : index
    %c0_9 = arith.constant 0 : index
    %c0_10 = arith.constant 0 : index
    %9 = vector.load %arg1[%c1, %c0_9, %c0_10] : memref<2x32x256xf32, #tpu.memory_space<vmem>>, vector<1x32x256xf32>
    %10 = vector.shape_cast %9 : vector<1x32x256xf32> to vector<32x256xf32>
    %c0_11 = arith.constant 0 : index
    %c384 = arith.constant 384 : index
    %11 = vector.load %arg8[%c0_11, %c384] : memref<128x768xf32, #tpu.memory_space<vmem>>, vector<32x256xf32>
    tpu.vector_store %arg8[%c0_11, %c384], %10 {strides = array<i32>} : memref<128x768xf32, #tpu.memory_space<vmem>>, vector<32x256xf32>,
    %c0_12 = arith.constant 0 : index
    %c0_13 = arith.constant 0 : index
    %12 = vector.load %arg6[%c0_12, %c0_13] : memref<3x768xf32, #tpu.memory_space<vmem>>, vector<1x768xf32>
    %c1_14 = arith.constant 1 : index
    %c0_15 = arith.constant 0 : index
    %13 = vector.load %arg6[%c1_14, %c0_15] : memref<3x768xf32, #tpu.memory_space<vmem>>, vector<1x768xf32>
    %c2 = arith.constant 2 : index
    %c0_16 = arith.constant 0 : index
    %14 = vector.load %arg6[%c2, %c0_16] : memref<3x768xf32, #tpu.memory_space<vmem>>, vector<1x768xf32>
    %c0_17 = arith.constant 0 : index
    %c0_18 = arith.constant 0 : index
    %c0_19 = arith.constant 0 : index
    %15 = vector.load %arg2[%c0_17, %c0_18, %c0_19] : memref<6x144x128xf32, #tpu.memory_space<vmem>>, vector<1x144x128xf32>
    %16 = vector.shape_cast %15 : vector<1x144x128xf32> to vector<144x128xf32>
    %c0_20 = arith.constant 0 : index
    %c0_21 = arith.constant 0 : index
    %17 = vector.load %arg8[%c0_20, %c0_21] : memref<128x768xf32, #tpu.memory_space<vmem>>, vector<128x768xf32>
    %cst_22 = arith.constant dense<0.000000e+00> : vector<144x768xf32>
    %18 = tpu.matmul %16, %17, %cst_22 {dimension_numbers = #tpu.dot_dimension_numbers<[1], [0], [0], [1], [0, 0, 1, 1], [], []>} : vector<144x128xf32>, vector<128x768xf32>, vector<144x768xf32> -> vector<144x768xf32>
    %19 = vector.extract_strided_slice %18 {offsets = [0, 0], sizes = [16, 768], strides = [1, 1]} : vector<144x768xf32> to vector<16x768xf32>
    %c17_i32 = arith.constant 17 : i32
    %20 = tpu.dynamic_rotate %19 by %c17_i32 dim 1 : vector<16x768xf32>, i32 -> vector<16x768xf32>
    %21 = vector.broadcast %12 : vector<1x768xf32> to vector<16x768xf32>
    %22 = arith.mulf %20, %21 : vector<16x768xf32>
    %23 = vector.extract_strided_slice %18 {offsets = [16, 0], sizes = [16, 768], strides = [1, 1]} : vector<144x768xf32> to vector<16x768xf32>
    %c16_i32 = arith.constant 16 : i32
    %24 = tpu.dynamic_rotate %23 by %c16_i32 dim 1 : vector<16x768xf32>, i32 -> vector<16x768xf32>
    %25 = arith.addf %22, %24 : vector<16x768xf32>
    %26 = vector.extract_strided_slice %18 {offsets = [32, 0], sizes = [16, 768], strides = [1, 1]} : vector<144x768xf32> to vector<16x768xf32>
    %c15_i32 = arith.constant 15 : i32
    %27 = tpu.dynamic_rotate %26 by %c15_i32 dim 1 : vector<16x768xf32>, i32 -> vector<16x768xf32>
    %28 = vector.broadcast %13 : vector<1x768xf32> to vector<16x768xf32>
    %29 = arith.mulf %27, %28 : vector<16x768xf32>
    %30 = arith.addf %25, %29 : vector<16x768xf32>
    %31 = vector.extract_strided_slice %18 {offsets = [48, 0], sizes = [16, 768], strides = [1, 1]} : vector<144x768xf32> to vector<16x768xf32>
    %c1_i32 = arith.constant 1 : i32
    %32 = tpu.dynamic_rotate %31 by %c1_i32 dim 1 : vector<16x768xf32>, i32 -> vector<16x768xf32>
    %33 = vector.broadcast %12 : vector<1x768xf32> to vector<16x768xf32>
    %34 = arith.mulf %32, %33 : vector<16x768xf32>
    %35 = arith.addf %30, %34 : vector<16x768xf32>
    %36 = vector.extract_strided_slice %18 {offsets = [64, 0], sizes = [16, 768], strides = [1, 1]} : vector<144x768xf32> to vector<16x768xf32>
    %37 = arith.addf %35, %36 : vector<16x768xf32>
    %38 = vector.extract_strided_slice %18 {offsets = [80, 0], sizes = [16, 768], strides = [1, 1]} : vector<144x768xf32> to vector<16x768xf32>
    %c767_i32 = arith.constant 767 : i32
    %39 = tpu.dynamic_rotate %38 by %c767_i32 dim 1 : vector<16x768xf32>, i32 -> vector<16x768xf32>
    %40 = vector.broadcast %13 : vector<1x768xf32> to vector<16x768xf32>
    %41 = arith.mulf %39, %40 : vector<16x768xf32>
    %42 = arith.addf %37, %41 : vector<16x768xf32>
    %43 = vector.extract_strided_slice %18 {offsets = [96, 0], sizes = [16, 768], strides = [1, 1]} : vector<144x768xf32> to vector<16x768xf32>
    %c753_i32 = arith.constant 753 : i32
    %44 = tpu.dynamic_rotate %43 by %c753_i32 dim 1 : vector<16x768xf32>, i32 -> vector<16x768xf32>
    %45 = vector.broadcast %12 : vector<1x768xf32> to vector<16x768xf32>
    %46 = arith.mulf %44, %45 : vector<16x768xf32>
    %47 = arith.addf %42, %46 : vector<16x768xf32>
    %48 = vector.extract_strided_slice %18 {offsets = [112, 0], sizes = [16, 768], strides = [1, 1]} : vector<144x768xf32> to vector<16x768xf32>
    %c752_i32 = arith.constant 752 : i32
    %49 = tpu.dynamic_rotate %48 by %c752_i32 dim 1 : vector<16x768xf32>, i32 -> vector<16x768xf32>
    %50 = arith.addf %47, %49 : vector<16x768xf32>
    %51 = vector.extract_strided_slice %18 {offsets = [128, 0], sizes = [16, 768], strides = [1, 1]} : vector<144x768xf32> to vector<16x768xf32>
    %c751_i32 = arith.constant 751 : i32
    %52 = tpu.dynamic_rotate %51 by %c751_i32 dim 1 : vector<16x768xf32>, i32 -> vector<16x768xf32>
    %53 = vector.broadcast %13 : vector<1x768xf32> to vector<16x768xf32>
    %54 = arith.mulf %52, %53 : vector<16x768xf32>
    %55 = arith.addf %50, %54 : vector<16x768xf32>
    %c0_23 = arith.constant 0 : index
    %c0_24 = arith.constant 0 : index
    %c0_25 = arith.constant 0 : index
    %56 = vector.load %arg3[%c0_23, %c0_24, %c0_25] : memref<6x16x1xf32, #tpu.memory_space<vmem>>, vector<1x16x1xf32>
    %57 = vector.shape_cast %56 : vector<1x16x1xf32> to vector<16x1xf32>
    %58 = vector.broadcast %57 : vector<16x1xf32> to vector<16x768xf32>
    %59 = arith.addf %55, %58 : vector<16x768xf32>
    %cst_26 = arith.constant 0.000000e+00 : f32
    %60 = vector.broadcast %cst_26 : f32 to vector<16x768xf32>
    %61 = arith.maximumf %59, %60 : vector<16x768xf32>
    %62 = vector.broadcast %14 : vector<1x768xf32> to vector<16x768xf32>
    %63 = arith.mulf %61, %62 : vector<16x768xf32>
    %c32_27 = arith.constant 32 : index
    %c0_28 = arith.constant 0 : index
    %64 = vector.load %arg8[%c32_27, %c0_28] : memref<128x768xf32, #tpu.memory_space<vmem>>, vector<16x768xf32>
    tpu.vector_store %arg8[%c32_27, %c0_28], %63 {strides = array<i32>} : memref<128x768xf32, #tpu.memory_space<vmem>>, vector<16x768xf32>,
    %c1_29 = arith.constant 1 : index
    %c0_30 = arith.constant 0 : index
    %c0_31 = arith.constant 0 : index
    %65 = vector.load %arg2[%c1_29, %c0_30, %c0_31] : memref<6x144x128xf32, #tpu.memory_space<vmem>>, vector<1x144x128xf32>
    %66 = vector.shape_cast %65 : vector<1x144x128xf32> to vector<144x128xf32>
    %c0_32 = arith.constant 0 : index
    %c0_33 = arith.constant 0 : index
    %67 = vector.load %arg8[%c0_32, %c0_33] : memref<128x768xf32, #tpu.memory_space<vmem>>, vector<128x768xf32>
    %cst_34 = arith.constant dense<0.000000e+00> : vector<144x768xf32>
    %68 = tpu.matmul %66, %67, %cst_34 {dimension_numbers = #tpu.dot_dimension_numbers<[1], [0], [0], [1], [0, 0, 1, 1], [], []>} : vector<144x128xf32>, vector<128x768xf32>, vector<144x768xf32> -> vector<144x768xf32>
    %69 = vector.extract_strided_slice %68 {offsets = [0, 0], sizes = [16, 768], strides = [1, 1]} : vector<144x768xf32> to vector<16x768xf32>
    %c17_i32_35 = arith.constant 17 : i32
    %70 = tpu.dynamic_rotate %69 by %c17_i32_35 dim 1 : vector<16x768xf32>, i32 -> vector<16x768xf32>
    %71 = vector.broadcast %12 : vector<1x768xf32> to vector<16x768xf32>
    %72 = arith.mulf %70, %71 : vector<16x768xf32>
    %73 = vector.extract_strided_slice %68 {offsets = [16, 0], sizes = [16, 768], strides = [1, 1]} : vector<144x768xf32> to vector<16x768xf32>
    %c16_i32_36 = arith.constant 16 : i32
    %74 = tpu.dynamic_rotate %73 by %c16_i32_36 dim 1 : vector<16x768xf32>, i32 -> vector<16x768xf32>
    %75 = arith.addf %72, %74 : vector<16x768xf32>
    %76 = vector.extract_strided_slice %68 {offsets = [32, 0], sizes = [16, 768], strides = [1, 1]} : vector<144x768xf32> to vector<16x768xf32>
    %c15_i32_37 = arith.constant 15 : i32
    %77 = tpu.dynamic_rotate %76 by %c15_i32_37 dim 1 : vector<16x768xf32>, i32 -> vector<16x768xf32>
    %78 = vector.broadcast %13 : vector<1x768xf32> to vector<16x768xf32>
    %79 = arith.mulf %77, %78 : vector<16x768xf32>
    %80 = arith.addf %75, %79 : vector<16x768xf32>
    %81 = vector.extract_strided_slice %68 {offsets = [48, 0], sizes = [16, 768], strides = [1, 1]} : vector<144x768xf32> to vector<16x768xf32>
    %c1_i32_38 = arith.constant 1 : i32
    %82 = tpu.dynamic_rotate %81 by %c1_i32_38 dim 1 : vector<16x768xf32>, i32 -> vector<16x768xf32>
    %83 = vector.broadcast %12 : vector<1x768xf32> to vector<16x768xf32>
    %84 = arith.mulf %82, %83 : vector<16x768xf32>
    %85 = arith.addf %80, %84 : vector<16x768xf32>
    %86 = vector.extract_strided_slice %68 {offsets = [64, 0], sizes = [16, 768], strides = [1, 1]} : vector<144x768xf32> to vector<16x768xf32>
    %87 = arith.addf %85, %86 : vector<16x768xf32>
    %88 = vector.extract_strided_slice %68 {offsets = [80, 0], sizes = [16, 768], strides = [1, 1]} : vector<144x768xf32> to vector<16x768xf32>
    %c767_i32_39 = arith.constant 767 : i32
    %89 = tpu.dynamic_rotate %88 by %c767_i32_39 dim 1 : vector<16x768xf32>, i32 -> vector<16x768xf32>
    %90 = vector.broadcast %13 : vector<1x768xf32> to vector<16x768xf32>
    %91 = arith.mulf %89, %90 : vector<16x768xf32>
    %92 = arith.addf %87, %91 : vector<16x768xf32>
    %93 = vector.extract_strided_slice %68 {offsets = [96, 0], sizes = [16, 768], strides = [1, 1]} : vector<144x768xf32> to vector<16x768xf32>
    %c753_i32_40 = arith.constant 753 : i32
    %94 = tpu.dynamic_rotate %93 by %c753_i32_40 dim 1 : vector<16x768xf32>, i32 -> vector<16x768xf32>
    %95 = vector.broadcast %12 : vector<1x768xf32> to vector<16x768xf32>
    %96 = arith.mulf %94, %95 : vector<16x768xf32>
    %97 = arith.addf %92, %96 : vector<16x768xf32>
    %98 = vector.extract_strided_slice %68 {offsets = [112, 0], sizes = [16, 768], strides = [1, 1]} : vector<144x768xf32> to vector<16x768xf32>
    %c752_i32_41 = arith.constant 752 : i32
    %99 = tpu.dynamic_rotate %98 by %c752_i32_41 dim 1 : vector<16x768xf32>, i32 -> vector<16x768xf32>
    %100 = arith.addf %97, %99 : vector<16x768xf32>
    %101 = vector.extract_strided_slice %68 {offsets = [128, 0], sizes = [16, 768], strides = [1, 1]} : vector<144x768xf32> to vector<16x768xf32>
    %c751_i32_42 = arith.constant 751 : i32
    %102 = tpu.dynamic_rotate %101 by %c751_i32_42 dim 1 : vector<16x768xf32>, i32 -> vector<16x768xf32>
    %103 = vector.broadcast %13 : vector<1x768xf32> to vector<16x768xf32>
    %104 = arith.mulf %102, %103 : vector<16x768xf32>
    %105 = arith.addf %100, %104 : vector<16x768xf32>
    %c1_43 = arith.constant 1 : index
    %c0_44 = arith.constant 0 : index
    %c0_45 = arith.constant 0 : index
    %106 = vector.load %arg3[%c1_43, %c0_44, %c0_45] : memref<6x16x1xf32, #tpu.memory_space<vmem>>, vector<1x16x1xf32>
    %107 = vector.shape_cast %106 : vector<1x16x1xf32> to vector<16x1xf32>
    %108 = vector.broadcast %107 : vector<16x1xf32> to vector<16x768xf32>
    %109 = arith.addf %105, %108 : vector<16x768xf32>
    %cst_46 = arith.constant 0.000000e+00 : f32
    %110 = vector.broadcast %cst_46 : f32 to vector<16x768xf32>
    %111 = arith.maximumf %109, %110 : vector<16x768xf32>
    %112 = vector.broadcast %14 : vector<1x768xf32> to vector<16x768xf32>
    %113 = arith.mulf %111, %112 : vector<16x768xf32>
    %c48 = arith.constant 48 : index
    %c0_47 = arith.constant 0 : index
    %114 = vector.load %arg8[%c48, %c0_47] : memref<128x768xf32, #tpu.memory_space<vmem>>, vector<16x768xf32>
    tpu.vector_store %arg8[%c48, %c0_47], %113 {strides = array<i32>} : memref<128x768xf32, #tpu.memory_space<vmem>>, vector<16x768xf32>,
    %c2_48 = arith.constant 2 : index
    %c0_49 = arith.constant 0 : index
    %c0_50 = arith.constant 0 : index
    %115 = vector.load %arg2[%c2_48, %c0_49, %c0_50] : memref<6x144x128xf32, #tpu.memory_space<vmem>>, vector<1x144x128xf32>
    %116 = vector.shape_cast %115 : vector<1x144x128xf32> to vector<144x128xf32>
    %c0_51 = arith.constant 0 : index
    %c0_52 = arith.constant 0 : index
    %117 = vector.load %arg8[%c0_51, %c0_52] : memref<128x768xf32, #tpu.memory_space<vmem>>, vector<128x768xf32>
    %cst_53 = arith.constant dense<0.000000e+00> : vector<144x768xf32>
    %118 = tpu.matmul %116, %117, %cst_53 {dimension_numbers = #tpu.dot_dimension_numbers<[1], [0], [0], [1], [0, 0, 1, 1], [], []>} : vector<144x128xf32>, vector<128x768xf32>, vector<144x768xf32> -> vector<144x768xf32>
    %119 = vector.extract_strided_slice %118 {offsets = [0, 0], sizes = [16, 768], strides = [1, 1]} : vector<144x768xf32> to vector<16x768xf32>
    %c17_i32_54 = arith.constant 17 : i32
    %120 = tpu.dynamic_rotate %119 by %c17_i32_54 dim 1 : vector<16x768xf32>, i32 -> vector<16x768xf32>
    %121 = vector.broadcast %12 : vector<1x768xf32> to vector<16x768xf32>
    %122 = arith.mulf %120, %121 : vector<16x768xf32>
    %123 = vector.extract_strided_slice %118 {offsets = [16, 0], sizes = [16, 768], strides = [1, 1]} : vector<144x768xf32> to vector<16x768xf32>
    %c16_i32_55 = arith.constant 16 : i32
    %124 = tpu.dynamic_rotate %123 by %c16_i32_55 dim 1 : vector<16x768xf32>, i32 -> vector<16x768xf32>
    %125 = arith.addf %122, %124 : vector<16x768xf32>
    %126 = vector.extract_strided_slice %118 {offsets = [32, 0], sizes = [16, 768], strides = [1, 1]} : vector<144x768xf32> to vector<16x768xf32>
    %c15_i32_56 = arith.constant 15 : i32
    %127 = tpu.dynamic_rotate %126 by %c15_i32_56 dim 1 : vector<16x768xf32>, i32 -> vector<16x768xf32>
    %128 = vector.broadcast %13 : vector<1x768xf32> to vector<16x768xf32>
    %129 = arith.mulf %127, %128 : vector<16x768xf32>
    %130 = arith.addf %125, %129 : vector<16x768xf32>
    %131 = vector.extract_strided_slice %118 {offsets = [48, 0], sizes = [16, 768], strides = [1, 1]} : vector<144x768xf32> to vector<16x768xf32>
    %c1_i32_57 = arith.constant 1 : i32
    %132 = tpu.dynamic_rotate %131 by %c1_i32_57 dim 1 : vector<16x768xf32>, i32 -> vector<16x768xf32>
    %133 = vector.broadcast %12 : vector<1x768xf32> to vector<16x768xf32>
    %134 = arith.mulf %132, %133 : vector<16x768xf32>
    %135 = arith.addf %130, %134 : vector<16x768xf32>
    %136 = vector.extract_strided_slice %118 {offsets = [64, 0], sizes = [16, 768], strides = [1, 1]} : vector<144x768xf32> to vector<16x768xf32>
    %137 = arith.addf %135, %136 : vector<16x768xf32>
    %138 = vector.extract_strided_slice %118 {offsets = [80, 0], sizes = [16, 768], strides = [1, 1]} : vector<144x768xf32> to vector<16x768xf32>
    %c767_i32_58 = arith.constant 767 : i32
    %139 = tpu.dynamic_rotate %138 by %c767_i32_58 dim 1 : vector<16x768xf32>, i32 -> vector<16x768xf32>
    %140 = vector.broadcast %13 : vector<1x768xf32> to vector<16x768xf32>
    %141 = arith.mulf %139, %140 : vector<16x768xf32>
    %142 = arith.addf %137, %141 : vector<16x768xf32>
    %143 = vector.extract_strided_slice %118 {offsets = [96, 0], sizes = [16, 768], strides = [1, 1]} : vector<144x768xf32> to vector<16x768xf32>
    %c753_i32_59 = arith.constant 753 : i32
    %144 = tpu.dynamic_rotate %143 by %c753_i32_59 dim 1 : vector<16x768xf32>, i32 -> vector<16x768xf32>
    %145 = vector.broadcast %12 : vector<1x768xf32> to vector<16x768xf32>
    %146 = arith.mulf %144, %145 : vector<16x768xf32>
    %147 = arith.addf %142, %146 : vector<16x768xf32>
    %148 = vector.extract_strided_slice %118 {offsets = [112, 0], sizes = [16, 768], strides = [1, 1]} : vector<144x768xf32> to vector<16x768xf32>
    %c752_i32_60 = arith.constant 752 : i32
    %149 = tpu.dynamic_rotate %148 by %c752_i32_60 dim 1 : vector<16x768xf32>, i32 -> vector<16x768xf32>
    %150 = arith.addf %147, %149 : vector<16x768xf32>
    %151 = vector.extract_strided_slice %118 {offsets = [128, 0], sizes = [16, 768], strides = [1, 1]} : vector<144x768xf32> to vector<16x768xf32>
    %c751_i32_61 = arith.constant 751 : i32
    %152 = tpu.dynamic_rotate %151 by %c751_i32_61 dim 1 : vector<16x768xf32>, i32 -> vector<16x768xf32>
    %153 = vector.broadcast %13 : vector<1x768xf32> to vector<16x768xf32>
    %154 = arith.mulf %152, %153 : vector<16x768xf32>
    %155 = arith.addf %150, %154 : vector<16x768xf32>
    %c2_62 = arith.constant 2 : index
    %c0_63 = arith.constant 0 : index
    %c0_64 = arith.constant 0 : index
    %156 = vector.load %arg3[%c2_62, %c0_63, %c0_64] : memref<6x16x1xf32, #tpu.memory_space<vmem>>, vector<1x16x1xf32>
    %157 = vector.shape_cast %156 : vector<1x16x1xf32> to vector<16x1xf32>
    %158 = vector.broadcast %157 : vector<16x1xf32> to vector<16x768xf32>
    %159 = arith.addf %155, %158 : vector<16x768xf32>
    %cst_65 = arith.constant 0.000000e+00 : f32
    %160 = vector.broadcast %cst_65 : f32 to vector<16x768xf32>
    %161 = arith.maximumf %159, %160 : vector<16x768xf32>
    %162 = vector.broadcast %14 : vector<1x768xf32> to vector<16x768xf32>
    %163 = arith.mulf %161, %162 : vector<16x768xf32>
    %c64 = arith.constant 64 : index
    %c0_66 = arith.constant 0 : index
    %164 = vector.load %arg8[%c64, %c0_66] : memref<128x768xf32, #tpu.memory_space<vmem>>, vector<16x768xf32>
    tpu.vector_store %arg8[%c64, %c0_66], %163 {strides = array<i32>} : memref<128x768xf32, #tpu.memory_space<vmem>>, vector<16x768xf32>,
    %c3 = arith.constant 3 : index
    %c0_67 = arith.constant 0 : index
    %c0_68 = arith.constant 0 : index
    %165 = vector.load %arg2[%c3, %c0_67, %c0_68] : memref<6x144x128xf32, #tpu.memory_space<vmem>>, vector<1x144x128xf32>
    %166 = vector.shape_cast %165 : vector<1x144x128xf32> to vector<144x128xf32>
    %c0_69 = arith.constant 0 : index
    %c0_70 = arith.constant 0 : index
    %167 = vector.load %arg8[%c0_69, %c0_70] : memref<128x768xf32, #tpu.memory_space<vmem>>, vector<128x768xf32>
    %cst_71 = arith.constant dense<0.000000e+00> : vector<144x768xf32>
    %168 = tpu.matmul %166, %167, %cst_71 {dimension_numbers = #tpu.dot_dimension_numbers<[1], [0], [0], [1], [0, 0, 1, 1], [], []>} : vector<144x128xf32>, vector<128x768xf32>, vector<144x768xf32> -> vector<144x768xf32>
    %169 = vector.extract_strided_slice %168 {offsets = [0, 0], sizes = [16, 768], strides = [1, 1]} : vector<144x768xf32> to vector<16x768xf32>
    %c17_i32_72 = arith.constant 17 : i32
    %170 = tpu.dynamic_rotate %169 by %c17_i32_72 dim 1 : vector<16x768xf32>, i32 -> vector<16x768xf32>
    %171 = vector.broadcast %12 : vector<1x768xf32> to vector<16x768xf32>
    %172 = arith.mulf %170, %171 : vector<16x768xf32>
    %173 = vector.extract_strided_slice %168 {offsets = [16, 0], sizes = [16, 768], strides = [1, 1]} : vector<144x768xf32> to vector<16x768xf32>
    %c16_i32_73 = arith.constant 16 : i32
    %174 = tpu.dynamic_rotate %173 by %c16_i32_73 dim 1 : vector<16x768xf32>, i32 -> vector<16x768xf32>
    %175 = arith.addf %172, %174 : vector<16x768xf32>
    %176 = vector.extract_strided_slice %168 {offsets = [32, 0], sizes = [16, 768], strides = [1, 1]} : vector<144x768xf32> to vector<16x768xf32>
    %c15_i32_74 = arith.constant 15 : i32
    %177 = tpu.dynamic_rotate %176 by %c15_i32_74 dim 1 : vector<16x768xf32>, i32 -> vector<16x768xf32>
    %178 = vector.broadcast %13 : vector<1x768xf32> to vector<16x768xf32>
    %179 = arith.mulf %177, %178 : vector<16x768xf32>
    %180 = arith.addf %175, %179 : vector<16x768xf32>
    %181 = vector.extract_strided_slice %168 {offsets = [48, 0], sizes = [16, 768], strides = [1, 1]} : vector<144x768xf32> to vector<16x768xf32>
    %c1_i32_75 = arith.constant 1 : i32
    %182 = tpu.dynamic_rotate %181 by %c1_i32_75 dim 1 : vector<16x768xf32>, i32 -> vector<16x768xf32>
    %183 = vector.broadcast %12 : vector<1x768xf32> to vector<16x768xf32>
    %184 = arith.mulf %182, %183 : vector<16x768xf32>
    %185 = arith.addf %180, %184 : vector<16x768xf32>
    %186 = vector.extract_strided_slice %168 {offsets = [64, 0], sizes = [16, 768], strides = [1, 1]} : vector<144x768xf32> to vector<16x768xf32>
    %187 = arith.addf %185, %186 : vector<16x768xf32>
    %188 = vector.extract_strided_slice %168 {offsets = [80, 0], sizes = [16, 768], strides = [1, 1]} : vector<144x768xf32> to vector<16x768xf32>
    %c767_i32_76 = arith.constant 767 : i32
    %189 = tpu.dynamic_rotate %188 by %c767_i32_76 dim 1 : vector<16x768xf32>, i32 -> vector<16x768xf32>
    %190 = vector.broadcast %13 : vector<1x768xf32> to vector<16x768xf32>
    %191 = arith.mulf %189, %190 : vector<16x768xf32>
    %192 = arith.addf %187, %191 : vector<16x768xf32>
    %193 = vector.extract_strided_slice %168 {offsets = [96, 0], sizes = [16, 768], strides = [1, 1]} : vector<144x768xf32> to vector<16x768xf32>
    %c753_i32_77 = arith.constant 753 : i32
    %194 = tpu.dynamic_rotate %193 by %c753_i32_77 dim 1 : vector<16x768xf32>, i32 -> vector<16x768xf32>
    %195 = vector.broadcast %12 : vector<1x768xf32> to vector<16x768xf32>
    %196 = arith.mulf %194, %195 : vector<16x768xf32>
    %197 = arith.addf %192, %196 : vector<16x768xf32>
    %198 = vector.extract_strided_slice %168 {offsets = [112, 0], sizes = [16, 768], strides = [1, 1]} : vector<144x768xf32> to vector<16x768xf32>
    %c752_i32_78 = arith.constant 752 : i32
    %199 = tpu.dynamic_rotate %198 by %c752_i32_78 dim 1 : vector<16x768xf32>, i32 -> vector<16x768xf32>
    %200 = arith.addf %197, %199 : vector<16x768xf32>
    %201 = vector.extract_strided_slice %168 {offsets = [128, 0], sizes = [16, 768], strides = [1, 1]} : vector<144x768xf32> to vector<16x768xf32>
    %c751_i32_79 = arith.constant 751 : i32
    %202 = tpu.dynamic_rotate %201 by %c751_i32_79 dim 1 : vector<16x768xf32>, i32 -> vector<16x768xf32>
    %203 = vector.broadcast %13 : vector<1x768xf32> to vector<16x768xf32>
    %204 = arith.mulf %202, %203 : vector<16x768xf32>
    %205 = arith.addf %200, %204 : vector<16x768xf32>
    %c3_80 = arith.constant 3 : index
    %c0_81 = arith.constant 0 : index
    %c0_82 = arith.constant 0 : index
    %206 = vector.load %arg3[%c3_80, %c0_81, %c0_82] : memref<6x16x1xf32, #tpu.memory_space<vmem>>, vector<1x16x1xf32>
    %207 = vector.shape_cast %206 : vector<1x16x1xf32> to vector<16x1xf32>
    %208 = vector.broadcast %207 : vector<16x1xf32> to vector<16x768xf32>
    %209 = arith.addf %205, %208 : vector<16x768xf32>
    %cst_83 = arith.constant 0.000000e+00 : f32
    %210 = vector.broadcast %cst_83 : f32 to vector<16x768xf32>
    %211 = arith.maximumf %209, %210 : vector<16x768xf32>
    %212 = vector.broadcast %14 : vector<1x768xf32> to vector<16x768xf32>
    %213 = arith.mulf %211, %212 : vector<16x768xf32>
    %c80 = arith.constant 80 : index
    %c0_84 = arith.constant 0 : index
    %214 = vector.load %arg8[%c80, %c0_84] : memref<128x768xf32, #tpu.memory_space<vmem>>, vector<16x768xf32>
    tpu.vector_store %arg8[%c80, %c0_84], %213 {strides = array<i32>} : memref<128x768xf32, #tpu.memory_space<vmem>>, vector<16x768xf32>,
    %c4 = arith.constant 4 : index
    %c0_85 = arith.constant 0 : index
    %c0_86 = arith.constant 0 : index
    %215 = vector.load %arg2[%c4, %c0_85, %c0_86] : memref<6x144x128xf32, #tpu.memory_space<vmem>>, vector<1x144x128xf32>
    %216 = vector.shape_cast %215 : vector<1x144x128xf32> to vector<144x128xf32>
    %c0_87 = arith.constant 0 : index
    %c0_88 = arith.constant 0 : index
    %217 = vector.load %arg8[%c0_87, %c0_88] : memref<128x768xf32, #tpu.memory_space<vmem>>, vector<128x768xf32>
    %cst_89 = arith.constant dense<0.000000e+00> : vector<144x768xf32>
    %218 = tpu.matmul %216, %217, %cst_89 {dimension_numbers = #tpu.dot_dimension_numbers<[1], [0], [0], [1], [0, 0, 1, 1], [], []>} : vector<144x128xf32>, vector<128x768xf32>, vector<144x768xf32> -> vector<144x768xf32>
    %219 = vector.extract_strided_slice %218 {offsets = [0, 0], sizes = [16, 768], strides = [1, 1]} : vector<144x768xf32> to vector<16x768xf32>
    %c17_i32_90 = arith.constant 17 : i32
    %220 = tpu.dynamic_rotate %219 by %c17_i32_90 dim 1 : vector<16x768xf32>, i32 -> vector<16x768xf32>
    %221 = vector.broadcast %12 : vector<1x768xf32> to vector<16x768xf32>
    %222 = arith.mulf %220, %221 : vector<16x768xf32>
    %223 = vector.extract_strided_slice %218 {offsets = [16, 0], sizes = [16, 768], strides = [1, 1]} : vector<144x768xf32> to vector<16x768xf32>
    %c16_i32_91 = arith.constant 16 : i32
    %224 = tpu.dynamic_rotate %223 by %c16_i32_91 dim 1 : vector<16x768xf32>, i32 -> vector<16x768xf32>
    %225 = arith.addf %222, %224 : vector<16x768xf32>
    %226 = vector.extract_strided_slice %218 {offsets = [32, 0], sizes = [16, 768], strides = [1, 1]} : vector<144x768xf32> to vector<16x768xf32>
    %c15_i32_92 = arith.constant 15 : i32
    %227 = tpu.dynamic_rotate %226 by %c15_i32_92 dim 1 : vector<16x768xf32>, i32 -> vector<16x768xf32>
    %228 = vector.broadcast %13 : vector<1x768xf32> to vector<16x768xf32>
    %229 = arith.mulf %227, %228 : vector<16x768xf32>
    %230 = arith.addf %225, %229 : vector<16x768xf32>
    %231 = vector.extract_strided_slice %218 {offsets = [48, 0], sizes = [16, 768], strides = [1, 1]} : vector<144x768xf32> to vector<16x768xf32>
    %c1_i32_93 = arith.constant 1 : i32
    %232 = tpu.dynamic_rotate %231 by %c1_i32_93 dim 1 : vector<16x768xf32>, i32 -> vector<16x768xf32>
    %233 = vector.broadcast %12 : vector<1x768xf32> to vector<16x768xf32>
    %234 = arith.mulf %232, %233 : vector<16x768xf32>
    %235 = arith.addf %230, %234 : vector<16x768xf32>
    %236 = vector.extract_strided_slice %218 {offsets = [64, 0], sizes = [16, 768], strides = [1, 1]} : vector<144x768xf32> to vector<16x768xf32>
    %237 = arith.addf %235, %236 : vector<16x768xf32>
    %238 = vector.extract_strided_slice %218 {offsets = [80, 0], sizes = [16, 768], strides = [1, 1]} : vector<144x768xf32> to vector<16x768xf32>
    %c767_i32_94 = arith.constant 767 : i32
    %239 = tpu.dynamic_rotate %238 by %c767_i32_94 dim 1 : vector<16x768xf32>, i32 -> vector<16x768xf32>
    %240 = vector.broadcast %13 : vector<1x768xf32> to vector<16x768xf32>
    %241 = arith.mulf %239, %240 : vector<16x768xf32>
    %242 = arith.addf %237, %241 : vector<16x768xf32>
    %243 = vector.extract_strided_slice %218 {offsets = [96, 0], sizes = [16, 768], strides = [1, 1]} : vector<144x768xf32> to vector<16x768xf32>
    %c753_i32_95 = arith.constant 753 : i32
    %244 = tpu.dynamic_rotate %243 by %c753_i32_95 dim 1 : vector<16x768xf32>, i32 -> vector<16x768xf32>
    %245 = vector.broadcast %12 : vector<1x768xf32> to vector<16x768xf32>
    %246 = arith.mulf %244, %245 : vector<16x768xf32>
    %247 = arith.addf %242, %246 : vector<16x768xf32>
    %248 = vector.extract_strided_slice %218 {offsets = [112, 0], sizes = [16, 768], strides = [1, 1]} : vector<144x768xf32> to vector<16x768xf32>
    %c752_i32_96 = arith.constant 752 : i32
    %249 = tpu.dynamic_rotate %248 by %c752_i32_96 dim 1 : vector<16x768xf32>, i32 -> vector<16x768xf32>
    %250 = arith.addf %247, %249 : vector<16x768xf32>
    %251 = vector.extract_strided_slice %218 {offsets = [128, 0], sizes = [16, 768], strides = [1, 1]} : vector<144x768xf32> to vector<16x768xf32>
    %c751_i32_97 = arith.constant 751 : i32
    %252 = tpu.dynamic_rotate %251 by %c751_i32_97 dim 1 : vector<16x768xf32>, i32 -> vector<16x768xf32>
    %253 = vector.broadcast %13 : vector<1x768xf32> to vector<16x768xf32>
    %254 = arith.mulf %252, %253 : vector<16x768xf32>
    %255 = arith.addf %250, %254 : vector<16x768xf32>
    %c4_98 = arith.constant 4 : index
    %c0_99 = arith.constant 0 : index
    %c0_100 = arith.constant 0 : index
    %256 = vector.load %arg3[%c4_98, %c0_99, %c0_100] : memref<6x16x1xf32, #tpu.memory_space<vmem>>, vector<1x16x1xf32>
    %257 = vector.shape_cast %256 : vector<1x16x1xf32> to vector<16x1xf32>
    %258 = vector.broadcast %257 : vector<16x1xf32> to vector<16x768xf32>
    %259 = arith.addf %255, %258 : vector<16x768xf32>
    %cst_101 = arith.constant 0.000000e+00 : f32
    %260 = vector.broadcast %cst_101 : f32 to vector<16x768xf32>
    %261 = arith.maximumf %259, %260 : vector<16x768xf32>
    %262 = vector.broadcast %14 : vector<1x768xf32> to vector<16x768xf32>
    %263 = arith.mulf %261, %262 : vector<16x768xf32>
    %c96 = arith.constant 96 : index
    %c0_102 = arith.constant 0 : index
    %264 = vector.load %arg8[%c96, %c0_102] : memref<128x768xf32, #tpu.memory_space<vmem>>, vector<16x768xf32>
    tpu.vector_store %arg8[%c96, %c0_102], %263 {strides = array<i32>} : memref<128x768xf32, #tpu.memory_space<vmem>>, vector<16x768xf32>,
    %c5 = arith.constant 5 : index
    %c0_103 = arith.constant 0 : index
    %c0_104 = arith.constant 0 : index
    %265 = vector.load %arg2[%c5, %c0_103, %c0_104] : memref<6x144x128xf32, #tpu.memory_space<vmem>>, vector<1x144x128xf32>
    %266 = vector.shape_cast %265 : vector<1x144x128xf32> to vector<144x128xf32>
    %c0_105 = arith.constant 0 : index
    %c0_106 = arith.constant 0 : index
    %267 = vector.load %arg8[%c0_105, %c0_106] : memref<128x768xf32, #tpu.memory_space<vmem>>, vector<128x768xf32>
    %cst_107 = arith.constant dense<0.000000e+00> : vector<144x768xf32>
    %268 = tpu.matmul %266, %267, %cst_107 {dimension_numbers = #tpu.dot_dimension_numbers<[1], [0], [0], [1], [0, 0, 1, 1], [], []>} : vector<144x128xf32>, vector<128x768xf32>, vector<144x768xf32> -> vector<144x768xf32>
    %269 = vector.extract_strided_slice %268 {offsets = [0, 0], sizes = [16, 768], strides = [1, 1]} : vector<144x768xf32> to vector<16x768xf32>
    %c17_i32_108 = arith.constant 17 : i32
    %270 = tpu.dynamic_rotate %269 by %c17_i32_108 dim 1 : vector<16x768xf32>, i32 -> vector<16x768xf32>
    %271 = vector.broadcast %12 : vector<1x768xf32> to vector<16x768xf32>
    %272 = arith.mulf %270, %271 : vector<16x768xf32>
    %273 = vector.extract_strided_slice %268 {offsets = [16, 0], sizes = [16, 768], strides = [1, 1]} : vector<144x768xf32> to vector<16x768xf32>
    %c16_i32_109 = arith.constant 16 : i32
    %274 = tpu.dynamic_rotate %273 by %c16_i32_109 dim 1 : vector<16x768xf32>, i32 -> vector<16x768xf32>
    %275 = arith.addf %272, %274 : vector<16x768xf32>
    %276 = vector.extract_strided_slice %268 {offsets = [32, 0], sizes = [16, 768], strides = [1, 1]} : vector<144x768xf32> to vector<16x768xf32>
    %c15_i32_110 = arith.constant 15 : i32
    %277 = tpu.dynamic_rotate %276 by %c15_i32_110 dim 1 : vector<16x768xf32>, i32 -> vector<16x768xf32>
    %278 = vector.broadcast %13 : vector<1x768xf32> to vector<16x768xf32>
    %279 = arith.mulf %277, %278 : vector<16x768xf32>
    %280 = arith.addf %275, %279 : vector<16x768xf32>
    %281 = vector.extract_strided_slice %268 {offsets = [48, 0], sizes = [16, 768], strides = [1, 1]} : vector<144x768xf32> to vector<16x768xf32>
    %c1_i32_111 = arith.constant 1 : i32
    %282 = tpu.dynamic_rotate %281 by %c1_i32_111 dim 1 : vector<16x768xf32>, i32 -> vector<16x768xf32>
    %283 = vector.broadcast %12 : vector<1x768xf32> to vector<16x768xf32>
    %284 = arith.mulf %282, %283 : vector<16x768xf32>
    %285 = arith.addf %280, %284 : vector<16x768xf32>
    %286 = vector.extract_strided_slice %268 {offsets = [64, 0], sizes = [16, 768], strides = [1, 1]} : vector<144x768xf32> to vector<16x768xf32>
    %287 = arith.addf %285, %286 : vector<16x768xf32>
    %288 = vector.extract_strided_slice %268 {offsets = [80, 0], sizes = [16, 768], strides = [1, 1]} : vector<144x768xf32> to vector<16x768xf32>
    %c767_i32_112 = arith.constant 767 : i32
    %289 = tpu.dynamic_rotate %288 by %c767_i32_112 dim 1 : vector<16x768xf32>, i32 -> vector<16x768xf32>
    %290 = vector.broadcast %13 : vector<1x768xf32> to vector<16x768xf32>
    %291 = arith.mulf %289, %290 : vector<16x768xf32>
    %292 = arith.addf %287, %291 : vector<16x768xf32>
    %293 = vector.extract_strided_slice %268 {offsets = [96, 0], sizes = [16, 768], strides = [1, 1]} : vector<144x768xf32> to vector<16x768xf32>
    %c753_i32_113 = arith.constant 753 : i32
    %294 = tpu.dynamic_rotate %293 by %c753_i32_113 dim 1 : vector<16x768xf32>, i32 -> vector<16x768xf32>
    %295 = vector.broadcast %12 : vector<1x768xf32> to vector<16x768xf32>
    %296 = arith.mulf %294, %295 : vector<16x768xf32>
    %297 = arith.addf %292, %296 : vector<16x768xf32>
    %298 = vector.extract_strided_slice %268 {offsets = [112, 0], sizes = [16, 768], strides = [1, 1]} : vector<144x768xf32> to vector<16x768xf32>
    %c752_i32_114 = arith.constant 752 : i32
    %299 = tpu.dynamic_rotate %298 by %c752_i32_114 dim 1 : vector<16x768xf32>, i32 -> vector<16x768xf32>
    %300 = arith.addf %297, %299 : vector<16x768xf32>
    %301 = vector.extract_strided_slice %268 {offsets = [128, 0], sizes = [16, 768], strides = [1, 1]} : vector<144x768xf32> to vector<16x768xf32>
    %c751_i32_115 = arith.constant 751 : i32
    %302 = tpu.dynamic_rotate %301 by %c751_i32_115 dim 1 : vector<16x768xf32>, i32 -> vector<16x768xf32>
    %303 = vector.broadcast %13 : vector<1x768xf32> to vector<16x768xf32>
    %304 = arith.mulf %302, %303 : vector<16x768xf32>
    %305 = arith.addf %300, %304 : vector<16x768xf32>
    %c5_116 = arith.constant 5 : index
    %c0_117 = arith.constant 0 : index
    %c0_118 = arith.constant 0 : index
    %306 = vector.load %arg3[%c5_116, %c0_117, %c0_118] : memref<6x16x1xf32, #tpu.memory_space<vmem>>, vector<1x16x1xf32>
    %307 = vector.shape_cast %306 : vector<1x16x1xf32> to vector<16x1xf32>
    %308 = vector.broadcast %307 : vector<16x1xf32> to vector<16x768xf32>
    %309 = arith.addf %305, %308 : vector<16x768xf32>
    %cst_119 = arith.constant 0.000000e+00 : f32
    %310 = vector.broadcast %cst_119 : f32 to vector<16x768xf32>
    %311 = arith.maximumf %309, %310 : vector<16x768xf32>
    %312 = vector.broadcast %14 : vector<1x768xf32> to vector<16x768xf32>
    %313 = arith.mulf %311, %312 : vector<16x768xf32>
    %c112 = arith.constant 112 : index
    %c0_120 = arith.constant 0 : index
    %314 = vector.load %arg8[%c112, %c0_120] : memref<128x768xf32, #tpu.memory_space<vmem>>, vector<16x768xf32>
    tpu.vector_store %arg8[%c112, %c0_120], %313 {strides = array<i32>} : memref<128x768xf32, #tpu.memory_space<vmem>>, vector<16x768xf32>,
    %c0_121 = arith.constant 0 : index
    %c0_122 = arith.constant 0 : index
    %315 = vector.load %arg4[%c0_121, %c0_122] : memref<32x128xf32, #tpu.memory_space<vmem>>, vector<32x128xf32>
    %c0_123 = arith.constant 0 : index
    %c0_124 = arith.constant 0 : index
    %316 = vector.load %arg8[%c0_123, %c0_124] : memref<128x768xf32, #tpu.memory_space<vmem>>, vector<128x768xf32>
    %cst_125 = arith.constant dense<0.000000e+00> : vector<32x768xf32>
    %317 = tpu.matmul %315, %316, %cst_125 {dimension_numbers = #tpu.dot_dimension_numbers<[1], [0], [0], [1], [0, 0, 1, 1], [], []>} : vector<32x128xf32>, vector<128x768xf32>, vector<32x768xf32> -> vector<32x768xf32>
    %c0_126 = arith.constant 0 : index
    %c0_127 = arith.constant 0 : index
    %318 = vector.load %arg5[%c0_126, %c0_127] : memref<32x1xf32, #tpu.memory_space<vmem>>, vector<32x1xf32>
    %319 = vector.broadcast %318 : vector<32x1xf32> to vector<32x768xf32>
    %320 = arith.addf %317, %319 : vector<32x768xf32>
    %321 = vector.extract_strided_slice %320 {offsets = [0, 0], sizes = [32, 256], strides = [1, 1]} : vector<32x768xf32> to vector<32x256xf32>
    %c0_128 = arith.constant 0 : index
    %c0_129 = arith.constant 0 : index
    %c0_130 = arith.constant 0 : index
    %322 = vector.load %arg1[%c0_128, %c0_129, %c0_130] : memref<2x32x256xf32, #tpu.memory_space<vmem>>, vector<1x32x256xf32>
    %323 = vector.shape_cast %322 : vector<1x32x256xf32> to vector<32x256xf32>
    %324 = arith.addf %321, %323 : vector<32x256xf32>
    %c0_131 = arith.constant 0 : index
    %c0_132 = arith.constant 0 : index
    %c0_133 = arith.constant 0 : index
    %325 = vector.load %arg7[%c0_131, %c0_132, %c0_133] : memref<2x32x256xf32, #tpu.memory_space<vmem>>, vector<1x32x256xf32>
    %326 = vector.shape_cast %325 : vector<1x32x256xf32> to vector<32x256xf32>
    %327 = vector.shape_cast %324 : vector<32x256xf32> to vector<1x32x256xf32>
    tpu.vector_store %arg7[%c0_131, %c0_132, %c0_133], %327 {strides = array<i32>} : memref<2x32x256xf32, #tpu.memory_space<vmem>>, vector<1x32x256xf32>,
    %328 = vector.extract_strided_slice %320 {offsets = [0, 384], sizes = [32, 256], strides = [1, 1]} : vector<32x768xf32> to vector<32x256xf32>
    %c1_134 = arith.constant 1 : index
    %c0_135 = arith.constant 0 : index
    %c0_136 = arith.constant 0 : index
    %329 = vector.load %arg1[%c1_134, %c0_135, %c0_136] : memref<2x32x256xf32, #tpu.memory_space<vmem>>, vector<1x32x256xf32>
    %330 = vector.shape_cast %329 : vector<1x32x256xf32> to vector<32x256xf32>
    %331 = arith.addf %328, %330 : vector<32x256xf32>
    %c1_137 = arith.constant 1 : index
    %c0_138 = arith.constant 0 : index
    %c0_139 = arith.constant 0 : index
    %332 = vector.load %arg7[%c1_137, %c0_138, %c0_139] : memref<2x32x256xf32, #tpu.memory_space<vmem>>, vector<1x32x256xf32>
    %333 = vector.shape_cast %332 : vector<1x32x256xf32> to vector<32x256xf32>
    %334 = vector.shape_cast %331 : vector<32x256xf32> to vector<1x32x256xf32>
    tpu.vector_store %arg7[%c1_137, %c0_138, %c0_139], %334 {strides = array<i32>} : memref<2x32x256xf32, #tpu.memory_space<vmem>>, vector<1x32x256xf32>,
    return
  }
  func.func @transform_0(%arg0: i32) -> (i32, i32, i32) {
    %c0_i32 = arith.constant 0 : i32
    %c0_i32_0 = arith.constant 0 : i32
    %c0_i32_1 = arith.constant 0 : i32
    return %arg0, %c0_i32, %c0_i32_0 : i32, i32, i32
  }
  func.func @transform_1(%arg0: i32) -> (i32, i32, i32) {
    %c0_i32 = arith.constant 0 : i32
    %c0_i32_0 = arith.constant 0 : i32
    %c0_i32_1 = arith.constant 0 : i32
    %c0_i32_2 = arith.constant 0 : i32
    return %c0_i32, %c0_i32_0, %c0_i32_1 : i32, i32, i32
  }
  func.func @transform_2(%arg0: i32) -> (i32, i32, i32) {
    %c0_i32 = arith.constant 0 : i32
    %c0_i32_0 = arith.constant 0 : i32
    %c0_i32_1 = arith.constant 0 : i32
    %c0_i32_2 = arith.constant 0 : i32
    return %c0_i32, %c0_i32_0, %c0_i32_1 : i32, i32, i32
  }
  func.func @transform_3(%arg0: i32) -> (i32, i32) {
    %c0_i32 = arith.constant 0 : i32
    %c0_i32_0 = arith.constant 0 : i32
    %c0_i32_1 = arith.constant 0 : i32
    return %c0_i32, %c0_i32_0 : i32, i32
  }
  func.func @transform_4(%arg0: i32) -> (i32, i32) {
    %c0_i32 = arith.constant 0 : i32
    %c0_i32_0 = arith.constant 0 : i32
    %c0_i32_1 = arith.constant 0 : i32
    return %c0_i32, %c0_i32_0 : i32, i32
  }
  func.func @transform_5(%arg0: i32) -> (i32, i32) {
    %c0_i32 = arith.constant 0 : i32
    %c0_i32_0 = arith.constant 0 : i32
    %c0_i32_1 = arith.constant 0 : i32
    return %c0_i32, %c0_i32_0 : i32, i32
  }
  func.func @transform_6(%arg0: i32) -> (i32, i32, i32) {
    %c0_i32 = arith.constant 0 : i32
    %c0_i32_0 = arith.constant 0 : i32
    %c0_i32_1 = arith.constant 0 : i32
    return %arg0, %c0_i32, %c0_i32_0 : i32, i32, i32
  }
}

</mosaic_0001>

<llo_original>
// kernel: tpu_custom_call.1
$region0: #{tpu_custom_call.1}
  #allocation0 [shape = 'u32[]', space=smem, size = 0x4, offset = 0x4, fixed_abs, tag = 'smem constant byte address 0x4 - core index']
  #allocation1 [shape = 'u32[144,128]{1,0:T(1,128)}', space=vmem, size = 0x12000, scoped, tag = 'internal scratch']
  #allocation2 [shape = 'f32[128,768]{1,0:T(8,128)}', space=vmem, size = 0x60000, scoped, tag = 'scratch operand']
  %s0 = inlined_call_operand.vmem [shape: f32[2,32,256], index: 0, kind: input, shape index: {}]
  %s1 = inlined_call_operand.hbm [shape: f32[6,144,128], index: 1, kind: input, shape index: {}]
  %s2 = inlined_call_operand.vmem [shape: f32[6,16,1], index: 2, kind: input, shape index: {}]
  %s3 = inlined_call_operand.hbm [shape: f32[32,128], index: 3, kind: input, shape index: {}]
  %s4 = inlined_call_operand.vmem [shape: f32[32,1], index: 4, kind: input, shape index: {}]
  %s5 = inlined_call_operand.vmem [shape: f32[3,768], index: 5, kind: input, shape index: {}]
  %s6 = inlined_call_operand.hbm [shape: f32[2,32,256], index: 6, kind: output, shape index: {}]
  %s7 = sld [smem:[#allocation0]]
  $region42: #{tpu_custom_call.1} parent=0
    _
  %s9 = ssub.s32 1, %s7
  %s10 = scalar_select 0, %s9, %s7
  $region1: #{tpu_custom_call.1} parent=0
    #allocation3 [shape = 'u8[442368]{0}', space=vmem, size = 0x6c000, scoped, tag = 'input window, operand 1, single buffered']
    #allocation4 [shape = 's32[1]{0}', space=sflag, size = 0x4, scoped, tag = 'scoped memory for tpu_custom_call.1']
    #allocation5 [shape = 's32[1]{0}', space=sflag, size = 0x4, scoped, tag = 'scoped memory for tpu_custom_call.1']
    #allocation6 [shape = 'u8[16384]{0}', space=vmem, size = 0x4000, scoped, tag = 'input window, operand 3, single buffered']
    #allocation7 [shape = 's32[1]{0}', space=sflag, size = 0x4, scoped, tag = 'scoped memory for tpu_custom_call.1']
    #allocation8 [shape = 'u8[65536]{0}', space=vmem, size = 0x10000, scoped, tag = 'output window, operand 0, single buffered']
    %11 = vsyncpa [#allocation4], 0
    %12 = vsyncpa [#allocation7], 0
    %13 = vsyncpa [#allocation5], 0
    // Predicated region
    $region2: #{tpu_custom_call.1} parent=1 // pred_check
      _
    $region3: #{tpu_custom_call.1} parent=1 // pred_check_branch
      %15 = sbr.rel (0) target = $region5
    $region4: #{tpu_custom_call.1} parent=1 // pred_region
      _
    $region5: #{tpu_custom_call.1} parent=1 // pred_fallthru
      _
    // Predicated region
    $region6: #{tpu_custom_call.1} parent=1 // pred_check
      _
    $region7: #{tpu_custom_call.1} parent=1 // pred_check_branch
      %17 = sbr.rel (0) target = $region9
    $region8: #{tpu_custom_call.1} parent=1 // pred_region
      %s19 = ssub.s32 13824, 13824
      %20 = vsyncadd [#allocation4], %s19
      %s21 = sshll.u32 [#allocation3], 4
      %s22 = int_to_ptr.vmem [resolvable:$true] %s21
      %27 = dma.hbm_to_vmem [thread:$0]  %s1, 13824, %s22, [#allocation4], 128, 128, 8
    $region9: #{tpu_custom_call.1} parent=1 // pred_fallthru
      _
    // Predicated region
    $region10: #{tpu_custom_call.1} parent=1 // pred_check
      _
    $region11: #{tpu_custom_call.1} parent=1 // pred_check_branch
      %29 = sbr.rel (0) target = $region13
    $region12: #{tpu_custom_call.1} parent=1 // pred_region
      _
    $region13: #{tpu_custom_call.1} parent=1 // pred_fallthru
      _
    // Predicated region
    $region14: #{tpu_custom_call.1} parent=1 // pred_check
      _
    $region15: #{tpu_custom_call.1} parent=1 // pred_check_branch
      %31 = sbr.rel (0) target = $region17
    $region16: #{tpu_custom_call.1} parent=1 // pred_region
      %s33 = ssub.s32 512, 512
      %34 = vsyncadd [#allocation7], %s33
      %s35 = sshll.u32 [#allocation6], 4
      %s36 = int_to_ptr.vmem [resolvable:$true] %s35
      %41 = dma.hbm_to_vmem [thread:$0]  %s3, 512, %s36, [#allocation7], 128, 128, 8
    $region17: #{tpu_custom_call.1} parent=1 // pred_fallthru
      _
    // Predicated region
    $region18: #{tpu_custom_call.1} parent=1 // pred_check
      _
    $region19: #{tpu_custom_call.1} parent=1 // pred_check_branch
      %43 = sbr.rel (0) target = $region21
    $region20: #{tpu_custom_call.1} parent=1 // pred_region
      _
    $region21: #{tpu_custom_call.1} parent=1 // pred_fallthru
      _
    // Predicated region
    $region22: #{tpu_custom_call.1} parent=1 // pred_check
      _
    $region23: #{tpu_custom_call.1} parent=1 // pred_check_branch
      %45 = sbr.rel (0) target = $region25
    $region24: #{tpu_custom_call.1} parent=1 // pred_region
      _
    $region25: #{tpu_custom_call.1} parent=1 // pred_fallthru
      _
    // Predicated region
    $region26: #{tpu_custom_call.1} parent=1 // pred_check
      _
    $region27: #{tpu_custom_call.1} parent=1 // pred_check_branch
      %47 = sbr.rel (0) target = $region29
    $region28: #{tpu_custom_call.1} parent=1 // pred_region
      %48 = dma.done [#allocation4], 13824
    $region29: #{tpu_custom_call.1} parent=1 // pred_fallthru
      _
    // Predicated region
    $region30: #{tpu_custom_call.1} parent=1 // pred_check
      _
    $region31: #{tpu_custom_call.1} parent=1 // pred_check_branch
      %50 = sbr.rel (0) target = $region33
    $region32: #{tpu_custom_call.1} parent=1 // pred_region
      %51 = dma.done [#allocation7], 512
    $region33: #{tpu_custom_call.1} parent=1 // pred_fallthru
      _
    %52 = vst [vmem:[#allocation2 + $0xc0] sm:$0xff] 0.0
    %53 = vst [vmem:[#allocation2 + $0xc8] sm:$0xff] 0.0
    %54 = vst [vmem:[#allocation2 + $0xd0] sm:$0xff] 0.0
    %55 = vst [vmem:[#allocation2 + $0xd8] sm:$0xff] 0.0
    %56 = vst [vmem:[#allocation2 + $0xe0] sm:$0xff] 0.0
    %57 = vst [vmem:[#allocation2 + $0xe8] sm:$0xff] 0.0
    %58 = vst [vmem:[#allocation2 + $0xf0] sm:$0xff] 0.0
    %59 = vst [vmem:[#allocation2 + $0xf8] sm:$0xff] 0.0
    %60 = vst [vmem:[#allocation2 + $0x100] sm:$0xff] 0.0
    %61 = vst [vmem:[#allocation2 + $0x108] sm:$0xff] 0.0
    %62 = vst [vmem:[#allocation2 + $0x110] sm:$0xff] 0.0
    %63 = vst [vmem:[#allocation2 + $0x118] sm:$0xff] 0.0
    %64 = vst [vmem:[#allocation2 + $0x120] sm:$0xff] 0.0
    %65 = vst [vmem:[#allocation2 + $0x128] sm:$0xff] 0.0
    %66 = vst [vmem:[#allocation2 + $0x130] sm:$0xff] 0.0
    %67 = vst [vmem:[#allocation2 + $0x138] sm:$0xff] 0.0
    %68 = vst [vmem:[#allocation2 + $0x140] sm:$0xff] 0.0
    %69 = vst [vmem:[#allocation2 + $0x148] sm:$0xff] 0.0
    %70 = vst [vmem:[#allocation2 + $0x150] sm:$0xff] 0.0
    %71 = vst [vmem:[#allocation2 + $0x158] sm:$0xff] 0.0
    %72 = vst [vmem:[#allocation2 + $0x160] sm:$0xff] 0.0
    %73 = vst [vmem:[#allocation2 + $0x168] sm:$0xff] 0.0
    %74 = vst [vmem:[#allocation2 + $0x170] sm:$0xff] 0.0
    %75 = vst [vmem:[#allocation2 + $0x178] sm:$0xff] 0.0
    %76 = vst [vmem:[#allocation2 + $0x180] sm:$0xff] 0.0
    %77 = vst [vmem:[#allocation2 + $0x188] sm:$0xff] 0.0
    %78 = vst [vmem:[#allocation2 + $0x190] sm:$0xff] 0.0
    %79 = vst [vmem:[#allocation2 + $0x198] sm:$0xff] 0.0
    %80 = vst [vmem:[#allocation2 + $0x1a0] sm:$0xff] 0.0
    %81 = vst [vmem:[#allocation2 + $0x1a8] sm:$0xff] 0.0
    %82 = vst [vmem:[#allocation2 + $0x1b0] sm:$0xff] 0.0
    %83 = vst [vmem:[#allocation2 + $0x1b8] sm:$0xff] 0.0
    %84 = vst [vmem:[#allocation2 + $0x1c0] sm:$0xff] 0.0
    %85 = vst [vmem:[#allocation2 + $0x1c8] sm:$0xff] 0.0
    %86 = vst [vmem:[#allocation2 + $0x1d0] sm:$0xff] 0.0
    %87 = vst [vmem:[#allocation2 + $0x1d8] sm:$0xff] 0.0
    %88 = vst [vmem:[#allocation2 + $0x1e0] sm:$0xff] 0.0
    %89 = vst [vmem:[#allocation2 + $0x1e8] sm:$0xff] 0.0
    %90 = vst [vmem:[#allocation2 + $0x1f0] sm:$0xff] 0.0
    %91 = vst [vmem:[#allocation2 + $0x1f8] sm:$0xff] 0.0
    %92 = vst [vmem:[#allocation2 + $0x200] sm:$0xff] 0.0
    %93 = vst [vmem:[#allocation2 + $0x208] sm:$0xff] 0.0
    %94 = vst [vmem:[#allocation2 + $0x210] sm:$0xff] 0.0
    %95 = vst [vmem:[#allocation2 + $0x218] sm:$0xff] 0.0
    %96 = vst [vmem:[#allocation2 + $0x220] sm:$0xff] 0.0
    %97 = vst [vmem:[#allocation2 + $0x228] sm:$0xff] 0.0
    %98 = vst [vmem:[#allocation2 + $0x230] sm:$0xff] 0.0
    %99 = vst [vmem:[#allocation2 + $0x238] sm:$0xff] 0.0
    %100 = vst [vmem:[#allocation2 + $0x240] sm:$0xff] 0.0
    %101 = vst [vmem:[#allocation2 + $0x248] sm:$0xff] 0.0
    %102 = vst [vmem:[#allocation2 + $0x250] sm:$0xff] 0.0
    %103 = vst [vmem:[#allocation2 + $0x258] sm:$0xff] 0.0
    %104 = vst [vmem:[#allocation2 + $0x260] sm:$0xff] 0.0
    %105 = vst [vmem:[#allocation2 + $0x268] sm:$0xff] 0.0
    %106 = vst [vmem:[#allocation2 + $0x270] sm:$0xff] 0.0
    %107 = vst [vmem:[#allocation2 + $0x278] sm:$0xff] 0.0
    %108 = vst [vmem:[#allocation2 + $0x280] sm:$0xff] 0.0
    %109 = vst [vmem:[#allocation2 + $0x288] sm:$0xff] 0.0
    %110 = vst [vmem:[#allocation2 + $0x290] sm:$0xff] 0.0
    %111 = vst [vmem:[#allocation2 + $0x298] sm:$0xff] 0.0
    %112 = vst [vmem:[#allocation2 + $0x2a0] sm:$0xff] 0.0
    %113 = vst [vmem:[#allocation2 + $0x2a8] sm:$0xff] 0.0
    %114 = vst [vmem:[#allocation2 + $0x2b0] sm:$0xff] 0.0
    %115 = vst [vmem:[#allocation2 + $0x2b8] sm:$0xff] 0.0
    %116 = vst [vmem:[#allocation2 + $0x2c0] sm:$0xff] 0.0
    %117 = vst [vmem:[#allocation2 + $0x2c8] sm:$0xff] 0.0
    %118 = vst [vmem:[#allocation2 + $0x2d0] sm:$0xff] 0.0
    %119 = vst [vmem:[#allocation2 + $0x2d8] sm:$0xff] 0.0
    %120 = vst [vmem:[#allocation2 + $0x2e0] sm:$0xff] 0.0
    %121 = vst [vmem:[#allocation2 + $0x2e8] sm:$0xff] 0.0
    %122 = vst [vmem:[#allocation2 + $0x2f0] sm:$0xff] 0.0
    %123 = vst [vmem:[#allocation2 + $0x2f8] sm:$0xff] 0.0
    %124 = vst [vmem:[#allocation2 + $0x10] sm:$0xff] 0.0
    %125 = vst [vmem:[#allocation2 + $0x40] sm:$0xff] 0.0
    %126 = vst [vmem:[#allocation2 + $0x70] sm:$0xff] 0.0
    %127 = vst [vmem:[#allocation2 + $0xa0] sm:$0xff] 0.0
    %v128 = vld [vmem:[%s0] sm:$0xff]
    %v129 = vld [vmem:[%s0 + $0x8] sm:$0xff]
    %v130 = vld [vmem:[%s0 + $0x10] sm:$0xff]
    %v131 = vld [vmem:[%s0 + $0x18] sm:$0xff]
    %v132 = vld [vmem:[%s0 + $0x20] sm:$0xff]
    %v133 = vld [vmem:[%s0 + $0x28] sm:$0xff]
    %v134 = vld [vmem:[%s0 + $0x30] sm:$0xff]
    %v135 = vld [vmem:[%s0 + $0x38] sm:$0xff]
    %136 = vst [vmem:[#allocation2] sm:$0xff] %v128
    %137 = vst [vmem:[#allocation2 + $0x8] sm:$0xff] %v129
    %138 = vst [vmem:[#allocation2 + $0x30] sm:$0xff] %v130
    %139 = vst [vmem:[#allocation2 + $0x38] sm:$0xff] %v131
    %140 = vst [vmem:[#allocation2 + $0x60] sm:$0xff] %v132
    %141 = vst [vmem:[#allocation2 + $0x68] sm:$0xff] %v133
    %142 = vst [vmem:[#allocation2 + $0x90] sm:$0xff] %v134
    %143 = vst [vmem:[#allocation2 + $0x98] sm:$0xff] %v135
    %144 = vst [vmem:[#allocation2 + $0x28] sm:$0xff] 0.0
    %145 = vst [vmem:[#allocation2 + $0x58] sm:$0xff] 0.0
    %146 = vst [vmem:[#allocation2 + $0x88] sm:$0xff] 0.0
    %147 = vst [vmem:[#allocation2 + $0xb8] sm:$0xff] 0.0
    %s148 = scalar_lea.vmem %s0, 64
    %v149 = vld [vmem:[%s148] sm:$0xff]
    %v150 = vld [vmem:[%s148 + $0x8] sm:$0xff]
    %v151 = vld [vmem:[%s148 + $0x10] sm:$0xff]
    %v152 = vld [vmem:[%s148 + $0x18] sm:$0xff]
    %v153 = vld [vmem:[%s148 + $0x20] sm:$0xff]
    %v154 = vld [vmem:[%s148 + $0x28] sm:$0xff]
    %v155 = vld [vmem:[%s148 + $0x30] sm:$0xff]
    %v156 = vld [vmem:[%s148 + $0x38] sm:$0xff]
    %157 = vst [vmem:[#allocation2 + $0x18] sm:$0xff] %v149
    %158 = vst [vmem:[#allocation2 + $0x20] sm:$0xff] %v150
    %159 = vst [vmem:[#allocation2 + $0x48] sm:$0xff] %v151
    %160 = vst [vmem:[#allocation2 + $0x50] sm:$0xff] %v152
    %161 = vst [vmem:[#allocation2 + $0x78] sm:$0xff] %v153
    %162 = vst [vmem:[#allocation2 + $0x80] sm:$0xff] %v154
    %163 = vst [vmem:[#allocation2 + $0xa8] sm:$0xff] %v155
    %164 = vst [vmem:[#allocation2 + $0xb0] sm:$0xff] %v156
    %v165 = vld [vmem:[%s5] ss:$4 sm:$0x3f]
    %s166 = scalar_lea.vmem %s5, 1
    %v167 = vld [vmem:[%s166] ss:$4 sm:$0x3f]
    %s168 = scalar_lea.vmem %s5, 2
    %v169 = vld [vmem:[%s168] ss:$4 sm:$0x3f]
    %v170 = vld [vmem:[#allocation3] sm:$0xff]
    %v171 = vld [vmem:[#allocation3 + $0x8] sm:$0xff]
    %v172 = vld [vmem:[#allocation3 + $0x10] sm:$0xff]
    %v173 = vld [vmem:[#allocation3 + $0x18] sm:$0xff]
    %v174 = vld [vmem:[#allocation3 + $0x20] sm:$0xff]
    %v175 = vld [vmem:[#allocation3 + $0x28] sm:$0xff]
    %v176 = vld [vmem:[#allocation3 + $0x30] sm:$0xff]
    %v177 = vld [vmem:[#allocation3 + $0x38] sm:$0xff]
    %v178 = vld [vmem:[#allocation3 + $0x40] sm:$0xff]
    %v179 = vld [vmem:[#allocation3 + $0x48] sm:$0xff]
    %v180 = vld [vmem:[#allocation3 + $0x50] sm:$0xff]
    %v181 = vld [vmem:[#allocation3 + $0x58] sm:$0xff]
    %v182 = vld [vmem:[#allocation3 + $0x60] sm:$0xff]
    %v183 = vld [vmem:[#allocation3 + $0x68] sm:$0xff]
    %v184 = vld [vmem:[#allocation3 + $0x70] sm:$0xff]
    %v185 = vld [vmem:[#allocation3 + $0x78] sm:$0xff]
    %v186 = vld [vmem:[#allocation3 + $0x80] sm:$0xff]
    %v187 = vld [vmem:[#allocation3 + $0x88] sm:$0xff]
    %v188 = vld [vmem:[#allocation2] sm:$0xff]
    %v189 = vld [vmem:[#allocation2 + $0x8] sm:$0xff]
    %v190 = vld [vmem:[#allocation2 + $0x10] sm:$0xff]
    %v191 = vld [vmem:[#allocation2 + $0x18] sm:$0xff]
    %v192 = vld [vmem:[#allocation2 + $0x20] sm:$0xff]
    %v193 = vld [vmem:[#allocation2 + $0x28] sm:$0xff]
    %v194 = vld [vmem:[#allocation2 + $0x30] sm:$0xff]
    %v195 = vld [vmem:[#allocation2 + $0x38] sm:$0xff]
    %v196 = vld [vmem:[#allocation2 + $0x40] sm:$0xff]
    %v197 = vld [vmem:[#allocation2 + $0x48] sm:$0xff]
    %v198 = vld [vmem:[#allocation2 + $0x50] sm:$0xff]
    %v199 = vld [vmem:[#allocation2 + $0x58] sm:$0xff]
    %v200 = vld [vmem:[#allocation2 + $0x60] sm:$0xff]
    %v201 = vld [vmem:[#allocation2 + $0x68] sm:$0xff]
    %v202 = vld [vmem:[#allocation2 + $0x70] sm:$0xff]
    %v203 = vld [vmem:[#allocation2 + $0x78] sm:$0xff]
    %v204 = vld [vmem:[#allocation2 + $0x80] sm:$0xff]
    %v205 = vld [vmem:[#allocation2 + $0x88] sm:$0xff]
    %v206 = vld [vmem:[#allocation2 + $0x90] sm:$0xff]
    %v207 = vld [vmem:[#allocation2 + $0x98] sm:$0xff]
    %v208 = vld [vmem:[#allocation2 + $0xa0] sm:$0xff]
    %v209 = vld [vmem:[#allocation2 + $0xa8] sm:$0xff]
    %v210 = vld [vmem:[#allocation2 + $0xb0] sm:$0xff]
    %v211 = vld [vmem:[#allocation2 + $0xb8] sm:$0xff]
    %v212 = vld [vmem:[#allocation2 + $0xc0] sm:$0xff]
    %v213 = vld [vmem:[#allocation2 + $0xc8] sm:$0xff]
    %v214 = vld [vmem:[#allocation2 + $0xd0] sm:$0xff]
    %v215 = vld [vmem:[#allocation2 + $0xd8] sm:$0xff]
    %v216 = vld [vmem:[#allocation2 + $0xe0] sm:$0xff]
    %v217 = vld [vmem:[#allocation2 + $0xe8] sm:$0xff]
    %v218 = vld [vmem:[#allocation2 + $0xf0] sm:$0xff]
    %v219 = vld [vmem:[#allocation2 + $0xf8] sm:$0xff]
    %v220 = vld [vmem:[#allocation2 + $0x100] sm:$0xff]
    %v221 = vld [vmem:[#allocation2 + $0x108] sm:$0xff]
    %v222 = vld [vmem:[#allocation2 + $0x110] sm:$0xff]
    %v223 = vld [vmem:[#allocation2 + $0x118] sm:$0xff]
    %v224 = vld [vmem:[#allocation2 + $0x120] sm:$0xff]
    %v225 = vld [vmem:[#allocation2 + $0x128] sm:$0xff]
    %v226 = vld [vmem:[#allocation2 + $0x130] sm:$0xff]
    %v227 = vld [vmem:[#allocation2 + $0x138] sm:$0xff]
    %v228 = vld [vmem:[#allocation2 + $0x140] sm:$0xff]
    %v229 = vld [vmem:[#allocation2 + $0x148] sm:$0xff]
    %v230 = vld [vmem:[#allocation2 + $0x150] sm:$0xff]
    %v231 = vld [vmem:[#allocation2 + $0x158] sm:$0xff]
    %v232 = vld [vmem:[#allocation2 + $0x160] sm:$0xff]
    %v233 = vld [vmem:[#allocation2 + $0x168] sm:$0xff]
    %v234 = vld [vmem:[#allocation2 + $0x170] sm:$0xff]
    %v235 = vld [vmem:[#allocation2 + $0x178] sm:$0xff]
    %v236 = vld [vmem:[#allocation2 + $0x180] sm:$0xff]
    %v237 = vld [vmem:[#allocation2 + $0x188] sm:$0xff]
    %v238 = vld [vmem:[#allocation2 + $0x190] sm:$0xff]
    %v239 = vld [vmem:[#allocation2 + $0x198] sm:$0xff]
    %v240 = vld [vmem:[#allocation2 + $0x1a0] sm:$0xff]
    %v241 = vld [vmem:[#allocation2 + $0x1a8] sm:$0xff]
    %v242 = vld [vmem:[#allocation2 + $0x1b0] sm:$0xff]
    %v243 = vld [vmem:[#allocation2 + $0x1b8] sm:$0xff]
    %v244 = vld [vmem:[#allocation2 + $0x1c0] sm:$0xff]
    %v245 = vld [vmem:[#allocation2 + $0x1c8] sm:$0xff]
    %v246 = vld [vmem:[#allocation2 + $0x1d0] sm:$0xff]
    %v247 = vld [vmem:[#allocation2 + $0x1d8] sm:$0xff]
    %v248 = vld [vmem:[#allocation2 + $0x1e0] sm:$0xff]
    %v249 = vld [vmem:[#allocation2 + $0x1e8] sm:$0xff]
    %v250 = vld [vmem:[#allocation2 + $0x1f0] sm:$0xff]
    %v251 = vld [vmem:[#allocation2 + $0x1f8] sm:$0xff]
    %v252 = vld [vmem:[#allocation2 + $0x200] sm:$0xff]
    %v253 = vld [vmem:[#allocation2 + $0x208] sm:$0xff]
    %v254 = vld [vmem:[#allocation2 + $0x210] sm:$0xff]
    %v255 = vld [vmem:[#allocation2 + $0x218] sm:$0xff]
    %v256 = vld [vmem:[#allocation2 + $0x220] sm:$0xff]
    %v257 = vld [vmem:[#allocation2 + $0x228] sm:$0xff]
    %v258 = vld [vmem:[#allocation2 + $0x230] sm:$0xff]
    %v259 = vld [vmem:[#allocation2 + $0x238] sm:$0xff]
    %v260 = vld [vmem:[#allocation2 + $0x240] sm:$0xff]
    %v261 = vld [vmem:[#allocation2 + $0x248] sm:$0xff]
    %v262 = vld [vmem:[#allocation2 + $0x250] sm:$0xff]
    %v263 = vld [vmem:[#allocation2 + $0x258] sm:$0xff]
    %v264 = vld [vmem:[#allocation2 + $0x260] sm:$0xff]
    %v265 = vld [vmem:[#allocation2 + $0x268] sm:$0xff]
    %v266 = vld [vmem:[#allocation2 + $0x270] sm:$0xff]
    %v267 = vld [vmem:[#allocation2 + $0x278] sm:$0xff]
    %v268 = vld [vmem:[#allocation2 + $0x280] sm:$0xff]
    %v269 = vld [vmem:[#allocation2 + $0x288] sm:$0xff]
    %v270 = vld [vmem:[#allocation2 + $0x290] sm:$0xff]
    %v271 = vld [vmem:[#allocation2 + $0x298] sm:$0xff]
    %v272 = vld [vmem:[#allocation2 + $0x2a0] sm:$0xff]
    %v273 = vld [vmem:[#allocation2 + $0x2a8] sm:$0xff]
    %v274 = vld [vmem:[#allocation2 + $0x2b0] sm:$0xff]
    %v275 = vld [vmem:[#allocation2 + $0x2b8] sm:$0xff]
    %v276 = vld [vmem:[#allocation2 + $0x2c0] sm:$0xff]
    %v277 = vld [vmem:[#allocation2 + $0x2c8] sm:$0xff]
    %v278 = vld [vmem:[#allocation2 + $0x2d0] sm:$0xff]
    %v279 = vld [vmem:[#allocation2 + $0x2d8] sm:$0xff]
    %v280 = vld [vmem:[#allocation2 + $0x2e0] sm:$0xff]
    %v281 = vld [vmem:[#allocation2 + $0x2e8] sm:$0xff]
    %v282 = vld [vmem:[#allocation2 + $0x2f0] sm:$0xff]
    %v283 = vld [vmem:[#allocation2 + $0x2f8] sm:$0xff]
    %284 = vmatprep.subr.mxu0 %v189
    %285 = vmatpush1.msra.mxu0 %v188
    %286 = vmatprep.subr.mxu0 %v195
    %287 = vmatpush1.msra.mxu0 %v194
    %288 = vmatprep.subr.mxu0 %v201
    %289 = vmatpush1.msra.mxu0 %v200
    %290 = vmatprep.subr.mxu0 %v207
    %291 = vmatpush1.msra.mxu0 %v206
    %292 = vmatprep.subr.mxu0 %v213
    %293 = vmatpush1.msra.mxu0 %v212
    %294 = vmatprep.subr.mxu0 %v219
    %295 = vmatpush1.msra.mxu0 %v218
    %296 = vmatprep.subr.mxu0 %v225
    %297 = vmatpush1.msra.mxu0 %v224
    %298 = vmatprep.subr.mxu0 %v231
    %299 = vmatpush1.msra.mxu0 %v230
    %300 = vmatprep.subr.mxu0 %v237
    %301 = vmatpush1.msra.mxu0 %v236
    %302 = vmatprep.subr.mxu0 %v243
    %303 = vmatpush1.msra.mxu0 %v242
    %304 = vmatprep.subr.mxu0 %v249
    %305 = vmatpush1.msra.mxu0 %v248
    %306 = vmatprep.subr.mxu0 %v255
    %307 = vmatpush1.msra.mxu0 %v254
    %308 = vmatprep.subr.mxu0 %v261
    %309 = vmatpush1.msra.mxu0 %v260
    %310 = vmatprep.subr.mxu0 %v267
    %311 = vmatpush1.msra.mxu0 %v266
    %312 = vmatprep.subr.mxu0 %v273
    %313 = vmatpush1.msra.mxu0 %v272
    %314 = vmatprep.subr.mxu0 %v279
    %315 = vmatpush1.msra.mxu0 %v278
    %316 = vmatprep.subr.mxu0 0.0
    %317 = vmatpush1.msra.mxu0 0.0
    %318 = vmatprep.subr.mxu0 0.0
    %319 = vmatpush1.msra.mxu0 0.0
    %320 = vmatprep.subr.mxu0 0.0
    %321 = vmatpush1.msra.mxu0 0.0
    %322 = vmatprep.subr.mxu0 0.0
    %323 = vmatpush1.msra.mxu0 0.0
    %324 = vmatprep.subr.mxu0 0.0
    %325 = vmatpush1.msra.mxu0 0.0
    %326 = vmatprep.subr.mxu0 0.0
    %327 = vmatpush1.msra.mxu0 0.0
    %328 = vmatprep.subr.mxu0 0.0
    %329 = vmatpush1.msra.mxu0 0.0
    %330 = vmatprep.subr.mxu0 0.0
    %331 = vmatpush1.msra.mxu0 0.0
    %332 = vmatprep.subr.mxu0 0.0
    %333 = vmatpush1.msra.mxu0 0.0
    %334 = vmatprep.subr.mxu0 0.0
    %335 = vmatpush1.msra.mxu0 0.0
    %336 = vmatprep.subr.mxu0 0.0
    %337 = vmatpush1.msra.mxu0 0.0
    %338 = vmatprep.subr.mxu0 0.0
    %339 = vmatpush1.msra.mxu0 0.0
    %340 = vmatprep.subr.mxu0 0.0
    %341 = vmatpush1.msra.mxu0 0.0
    %342 = vmatprep.subr.mxu0 0.0
    %343 = vmatpush1.msra.mxu0 0.0
    %344 = vmatprep.subr.mxu0 0.0
    %345 = vmatpush1.msra.mxu0 0.0
    %346 = vmatprep.subr.mxu0 0.0
    %347 = vmatpush1.msra.mxu0 0.0
    %348 = vmatprep.mubr.f32.mxu0 0.0
    %349 = vmatmul.mubr.f32.gmra.mrb[0].mxu0 %v170
    %v350 = vpop.f32.mrb[0].mxu0
    %v351 = vadd.f32 0.0, %v350
    %v352 = vpop.f32.mrb[0].mxu0
    %v353 = vadd.f32 0.0, %v352
    %354 = vmatprep.mubr.f32.mxu0 0.0
    %355 = vmatmul.mubr.f32.gmra.mrb[0].mxu0 %v171
    %v356 = vpop.f32.mrb[0].mxu0
    %v357 = vadd.f32 0.0, %v356
    %v358 = vpop.f32.mrb[0].mxu0
    %v359 = vadd.f32 0.0, %v358
    %360 = vmatprep.mubr.f32.mxu0 0.0
    %361 = vmatmul.mubr.f32.gmra.mrb[0].mxu0 %v172
    %v362 = vpop.f32.mrb[0].mxu0
    %v363 = vadd.f32 0.0, %v362
    %v364 = vpop.f32.mrb[0].mxu0
    %v365 = vadd.f32 0.0, %v364
    %366 = vmatprep.mubr.f32.mxu0 0.0
    %367 = vmatmul.mubr.f32.gmra.mrb[0].mxu0 %v173
    %v368 = vpop.f32.mrb[0].mxu0
    %v369 = vadd.f32 0.0, %v368
    %v370 = vpop.f32.mrb[0].mxu0
    %v371 = vadd.f32 0.0, %v370
    %372 = vmatprep.mubr.f32.mxu0 0.0
    %373 = vmatmul.mubr.f32.gmra.mrb[0].mxu0 %v174
    %v374 = vpop.f32.mrb[0].mxu0
    %v375 = vadd.f32 0.0, %v374
    %v376 = vpop.f32.mrb[0].mxu0
    %v377 = vadd.f32 0.0, %v376
    %378 = vmatprep.mubr.f32.mxu0 0.0
    %379 = vmatmul.mubr.f32.gmra.mrb[0].mxu0 %v175
    %v380 = vpop.f32.mrb[0].mxu0
    %v381 = vadd.f32 0.0, %v380
    %v382 = vpop.f32.mrb[0].mxu0
    %v383 = vadd.f32 0.0, %v382
    %384 = vmatprep.mubr.f32.mxu0 0.0
    %385 = vmatmul.mubr.f32.gmra.mrb[0].mxu0 %v176
    %v386 = vpop.f32.mrb[0].mxu0
    %v387 = vadd.f32 0.0, %v386
    %v388 = vpop.f32.mrb[0].mxu0
    %v389 = vadd.f32 0.0, %v388
    %390 = vmatprep.mubr.f32.mxu0 0.0
    %391 = vmatmul.mubr.f32.gmra.mrb[0].mxu0 %v177
    %v392 = vpop.f32.mrb[0].mxu0
    %v393 = vadd.f32 0.0, %v392
    %v394 = vpop.f32.mrb[0].mxu0
    %v395 = vadd.f32 0.0, %v394
    %396 = vmatprep.mubr.f32.mxu0 0.0
    %397 = vmatmul.mubr.f32.gmra.mrb[0].mxu0 %v178
    %v398 = vpop.f32.mrb[0].mxu0
    %v399 = vadd.f32 0.0, %v398
    %v400 = vpop.f32.mrb[0].mxu0
    %v401 = vadd.f32 0.0, %v400
    %402 = vmatprep.mubr.f32.mxu0 0.0
    %403 = vmatmul.mubr.f32.gmra.mrb[0].mxu0 %v179
    %v404 = vpop.f32.mrb[0].mxu0
    %v405 = vadd.f32 0.0, %v404
    %v406 = vpop.f32.mrb[0].mxu0
    %v407 = vadd.f32 0.0, %v406
    %408 = vmatprep.mubr.f32.mxu0 0.0
    %409 = vmatmul.mubr.f32.gmra.mrb[0].mxu0 %v180
    %v410 = vpop.f32.mrb[0].mxu0
    %v411 = vadd.f32 0.0, %v410
    %v412 = vpop.f32.mrb[0].mxu0
    %v413 = vadd.f32 0.0, %v412
    %414 = vmatprep.mubr.f32.mxu0 0.0
    %415 = vmatmul.mubr.f32.gmra.mrb[0].mxu0 %v181
    %v416 = vpop.f32.mrb[0].mxu0
    %v417 = vadd.f32 0.0, %v416
    %v418 = vpop.f32.mrb[0].mxu0
    %v419 = vadd.f32 0.0, %v418
    %420 = vmatprep.mubr.f32.mxu0 0.0
    %421 = vmatmul.mubr.f32.gmra.mrb[0].mxu0 %v182
    %v422 = vpop.f32.mrb[0].mxu0
    %v423 = vadd.f32 0.0, %v422
    %v424 = vpop.f32.mrb[0].mxu0
    %v425 = vadd.f32 0.0, %v424
    %426 = vmatprep.mubr.f32.mxu0 0.0
    %427 = vmatmul.mubr.f32.gmra.mrb[0].mxu0 %v183
    %v428 = vpop.f32.mrb[0].mxu0
    %v429 = vadd.f32 0.0, %v428
    %v430 = vpop.f32.mrb[0].mxu0
    %v431 = vadd.f32 0.0, %v430
    %432 = vmatprep.mubr.f32.mxu0 0.0
    %433 = vmatmul.mubr.f32.gmra.mrb[0].mxu0 %v184
    %v434 = vpop.f32.mrb[0].mxu0
    %v435 = vadd.f32 0.0, %v434
    %v436 = vpop.f32.mrb[0].mxu0
    %v437 = vadd.f32 0.0, %v436
    %438 = vmatprep.mubr.f32.mxu0 0.0
    %439 = vmatmul.mubr.f32.gmra.mrb[0].mxu0 %v185
    %v440 = vpop.f32.mrb[0].mxu0
    %v441 = vadd.f32 0.0, %v440
    %v442 = vpop.f32.mrb[0].mxu0
    %v443 = vadd.f32 0.0, %v442
    %444 = vmatprep.mubr.f32.mxu0 0.0
    %445 = vmatmul.mubr.f32.gmra.mrb[0].mxu0 %v186
    %v446 = vpop.f32.mrb[0].mxu0
    %v447 = vadd.f32 0.0, %v446
    %v448 = vpop.f32.mrb[0].mxu0
    %v449 = vadd.f32 0.0, %v448
    %450 = vmatprep.mubr.f32.mxu0 0.0
    %451 = vmatmul.mubr.f32.gmra.mrb[0].mxu0 %v187
    %v452 = vpop.f32.mrb[0].mxu0
    %v453 = vadd.f32 0.0, %v452
    %v454 = vpop.f32.mrb[0].mxu0
    %v455 = vadd.f32 0.0, %v454
    %456 = vdwg.mxu0
    %457 = vmatprep.subr.mxu0 %v191
    %458 = vmatpush1.msra.mxu0 %v190
    %459 = vmatprep.subr.mxu0 %v197
    %460 = vmatpush1.msra.mxu0 %v196
    %461 = vmatprep.subr.mxu0 %v203
    %462 = vmatpush1.msra.mxu0 %v202
    %463 = vmatprep.subr.mxu0 %v209
    %464 = vmatpush1.msra.mxu0 %v208
    %465 = vmatprep.subr.mxu0 %v215
    %466 = vmatpush1.msra.mxu0 %v214
    %467 = vmatprep.subr.mxu0 %v221
    %468 = vmatpush1.msra.mxu0 %v220
    %469 = vmatprep.subr.mxu0 %v227
    %470 = vmatpush1.msra.mxu0 %v226
    %471 = vmatprep.subr.mxu0 %v233
    %472 = vmatpush1.msra.mxu0 %v232
    %473 = vmatprep.subr.mxu0 %v239
    %474 = vmatpush1.msra.mxu0 %v238
    %475 = vmatprep.subr.mxu0 %v245
    %476 = vmatpush1.msra.mxu0 %v244
    %477 = vmatprep.subr.mxu0 %v251
    %478 = vmatpush1.msra.mxu0 %v250
    %479 = vmatprep.subr.mxu0 %v257
    %480 = vmatpush1.msra.mxu0 %v256
    %481 = vmatprep.subr.mxu0 %v263
    %482 = vmatpush1.msra.mxu0 %v262
    %483 = vmatprep.subr.mxu0 %v269
    %484 = vmatpush1.msra.mxu0 %v268
    %485 = vmatprep.subr.mxu0 %v275
    %486 = vmatpush1.msra.mxu0 %v274
    %487 = vmatprep.subr.mxu0 %v281
    %488 = vmatpush1.msra.mxu0 %v280
    %489 = vmatprep.subr.mxu0 0.0
    %490 = vmatpush1.msra.mxu0 0.0
    %491 = vmatprep.subr.mxu0 0.0
    %492 = vmatpush1.msra.mxu0 0.0
    %493 = vmatprep.subr.mxu0 0.0
    %494 = vmatpush1.msra.mxu0 0.0
    %495 = vmatprep.subr.mxu0 0.0
    %496 = vmatpush1.msra.mxu0 0.0
    %497 = vmatprep.subr.mxu0 0.0
    %498 = vmatpush1.msra.mxu0 0.0
    %499 = vmatprep.subr.mxu0 0.0
    %500 = vmatpush1.msra.mxu0 0.0
    %501 = vmatprep.subr.mxu0 0.0
    %502 = vmatpush1.msra.mxu0 0.0
    %503 = vmatprep.subr.mxu0 0.0
    %504 = vmatpush1.msra.mxu0 0.0
    %505 = vmatprep.subr.mxu0 0.0
    %506 = vmatpush1.msra.mxu0 0.0
    %507 = vmatprep.subr.mxu0 0.0
    %508 = vmatpush1.msra.mxu0 0.0
    %509 = vmatprep.subr.mxu0 0.0
    %510 = vmatpush1.msra.mxu0 0.0
    %511 = vmatprep.subr.mxu0 0.0
    %512 = vmatpush1.msra.mxu0 0.0
    %513 = vmatprep.subr.mxu0 0.0
    %514 = vmatpush1.msra.mxu0 0.0
    %515 = vmatprep.subr.mxu0 0.0
    %516 = vmatpush1.msra.mxu0 0.0
    %517 = vmatprep.subr.mxu0 0.0
    %518 = vmatpush1.msra.mxu0 0.0
    %519 = vmatprep.subr.mxu0 0.0
    %520 = vmatpush1.msra.mxu0 0.0
    %521 = vmatprep.mubr.f32.mxu0 0.0
    %522 = vmatmul.mubr.f32.gmra.mrb[0].mxu0 %v170
    %v523 = vpop.f32.mrb[0].mxu0
    %v524 = vadd.f32 0.0, %v523
    %v525 = vpop.f32.mrb[0].mxu0
    %v526 = vadd.f32 0.0, %v525
    %527 = vmatprep.mubr.f32.mxu0 0.0
    %528 = vmatmul.mubr.f32.gmra.mrb[0].mxu0 %v171
    %v529 = vpop.f32.mrb[0].mxu0
    %v530 = vadd.f32 0.0, %v529
    %v531 = vpop.f32.mrb[0].mxu0
    %v532 = vadd.f32 0.0, %v531
    %533 = vmatprep.mubr.f32.mxu0 0.0
    %534 = vmatmul.mubr.f32.gmra.mrb[0].mxu0 %v172
    %v535 = vpop.f32.mrb[0].mxu0
    %v536 = vadd.f32 0.0, %v535
    %v537 = vpop.f32.mrb[0].mxu0
    %v538 = vadd.f32 0.0, %v537
    %539 = vmatprep.mubr.f32.mxu0 0.0
    %540 = vmatmul.mubr.f32.gmra.mrb[0].mxu0 %v173
    %v541 = vpop.f32.mrb[0].mxu0
    %v542 = vadd.f32 0.0, %v541
    %v543 = vpop.f32.mrb[0].mxu0
    %v544 = vadd.f32 0.0, %v543
    %545 = vmatprep.mubr.f32.mxu0 0.0
    %546 = vmatmul.mubr.f32.gmra.mrb[0].mxu0 %v174
    %v547 = vpop.f32.mrb[0].mxu0
    %v548 = vadd.f32 0.0, %v547
    %v549 = vpop.f32.mrb[0].mxu0
    %v550 = vadd.f32 0.0, %v549
    %551 = vmatprep.mubr.f32.mxu0 0.0
    %552 = vmatmul.mubr.f32.gmra.mrb[0].mxu0 %v175
    %v553 = vpop.f32.mrb[0].mxu0
    %v554 = vadd.f32 0.0, %v553
    %v555 = vpop.f32.mrb[0].mxu0
    %v556 = vadd.f32 0.0, %v555
    %557 = vmatprep.mubr.f32.mxu0 0.0
    %558 = vmatmul.mubr.f32.gmra.mrb[0].mxu0 %v176
    %v559 = vpop.f32.mrb[0].mxu0
    %v560 = vadd.f32 0.0, %v559
    %v561 = vpop.f32.mrb[0].mxu0
    %v562 = vadd.f32 0.0, %v561
    %563 = vmatprep.mubr.f32.mxu0 0.0
    %564 = vmatmul.mubr.f32.gmra.mrb[0].mxu0 %v177
    %v565 = vpop.f32.mrb[0].mxu0
    %v566 = vadd.f32 0.0, %v565
    %v567 = vpop.f32.mrb[0].mxu0
    %v568 = vadd.f32 0.0, %v567
    %569 = vmatprep.mubr.f32.mxu0 0.0
    %570 = vmatmul.mubr.f32.gmra.mrb[0].mxu0 %v178
    %v571 = vpop.f32.mrb[0].mxu0
    %v572 = vadd.f32 0.0, %v571
    %v573 = vpop.f32.mrb[0].mxu0
    %v574 = vadd.f32 0.0, %v573
    %575 = vmatprep.mubr.f32.mxu0 0.0
    %576 = vmatmul.mubr.f32.gmra.mrb[0].mxu0 %v179
    %v577 = vpop.f32.mrb[0].mxu0
    %v578 = vadd.f32 0.0, %v577
    %v579 = vpop.f32.mrb[0].mxu0
    %v580 = vadd.f32 0.0, %v579
    %581 = vmatprep.mubr.f32.mxu0 0.0
    %582 = vmatmul.mubr.f32.gmra.mrb[0].mxu0 %v180
    %v583 = vpop.f32.mrb[0].mxu0
    %v584 = vadd.f32 0.0, %v583
    %v585 = vpop.f32.mrb[0].mxu0
    %v586 = vadd.f32 0.0, %v585
    %587 = vmatprep.mubr.f32.mxu0 0.0
    %588 = vmatmul.mubr.f32.gmra.mrb[0].mxu0 %v181
    %v589 = vpop.f32.mrb[0].mxu0
    %v590 = vadd.f32 0.0, %v589
    %v591 = vpop.f32.mrb[0].mxu0
    %v592 = vadd.f32 0.0, %v591
    %593 = vmatprep.mubr.f32.mxu0 0.0
    %594 = vmatmul.mubr.f32.gmra.mrb[0].mxu0 %v182
    %v595 = vpop.f32.mrb[0].mxu0
    %v596 = vadd.f32 0.0, %v595
    %v597 = vpop.f32.mrb[0].mxu0
    %v598 = vadd.f32 0.0, %v597
    %599 = vmatprep.mubr.f32.mxu0 0.0
    %600 = vmatmul.mubr.f32.gmra.mrb[0].mxu0 %v183
    %v601 = vpop.f32.mrb[0].mxu0
    %v602 = vadd.f32 0.0, %v601
    %v603 = vpop.f32.mrb[0].mxu0
    %v604 = vadd.f32 0.0, %v603
    %605 = vmatprep.mubr.f32.mxu0 0.0
    %606 = vmatmul.mubr.f32.gmra.mrb[0].mxu0 %v184
    %v607 = vpop.f32.mrb[0].mxu0
    %v608 = vadd.f32 0.0, %v607
    %v609 = vpop.f32.mrb[0].mxu0
    %v610 = vadd.f32 0.0, %v609
    %611 = vmatprep.mubr.f32.mxu0 0.0
    %612 = vmatmul.mubr.f32.gmra.mrb[0].mxu0 %v185
    %v613 = vpop.f32.mrb[0].mxu0
    %v614 = vadd.f32 0.0, %v613
    %v615 = vpop.f32.mrb[0].mxu0
    %v616 = vadd.f32 0.0, %v615
    %617 = vmatprep.mubr.f32.mxu0 0.0
    %618 = vmatmul.mubr.f32.gmra.mrb[0].mxu0 %v186
    %v619 = vpop.f32.mrb[0].mxu0
    %v620 = vadd.f32 0.0, %v619
    %v621 = vpop.f32.mrb[0].mxu0
    %v622 = vadd.f32 0.0, %v621
    %623 = vmatprep.mubr.f32.mxu0 0.0
    %624 = vmatmul.mubr.f32.gmra.mrb[0].mxu0 %v187
    %v625 = vpop.f32.mrb[0].mxu0
    %v626 = vadd.f32 0.0, %v625
    %v627 = vpop.f32.mrb[0].mxu0
    %v628 = vadd.f32 0.0, %v627
    %629 = vdwg.mxu0
    %630 = vmatprep.subr.mxu0 %v193
    %631 = vmatpush1.msra.mxu0 %v192
    %632 = vmatprep.subr.mxu0 %v199
    %633 = vmatpush1.msra.mxu0 %v198
    %634 = vmatprep.subr.mxu0 %v205
    %635 = vmatpush1.msra.mxu0 %v204
    %636 = vmatprep.subr.mxu0 %v211
    %637 = vmatpush1.msra.mxu0 %v210
    %638 = vmatprep.subr.mxu0 %v217
    %639 = vmatpush1.msra.mxu0 %v216
    %640 = vmatprep.subr.mxu0 %v223
    %641 = vmatpush1.msra.mxu0 %v222
    %642 = vmatprep.subr.mxu0 %v229
    %643 = vmatpush1.msra.mxu0 %v228
    %644 = vmatprep.subr.mxu0 %v235
    %645 = vmatpush1.msra.mxu0 %v234
    %646 = vmatprep.subr.mxu0 %v241
    %647 = vmatpush1.msra.mxu0 %v240
    %648 = vmatprep.subr.mxu0 %v247
    %649 = vmatpush1.msra.mxu0 %v246
    %650 = vmatprep.subr.mxu0 %v253
    %651 = vmatpush1.msra.mxu0 %v252
    %652 = vmatprep.subr.mxu0 %v259
    %653 = vmatpush1.msra.mxu0 %v258
    %654 = vmatprep.subr.mxu0 %v265
    %655 = vmatpush1.msra.mxu0 %v264
    %656 = vmatprep.subr.mxu0 %v271
    %657 = vmatpush1.msra.mxu0 %v270
    %658 = vmatprep.subr.mxu0 %v277
    %659 = vmatpush1.msra.mxu0 %v276
    %660 = vmatprep.subr.mxu0 %v283
    %661 = vmatpush1.msra.mxu0 %v282
    %662 = vmatprep.subr.mxu0 0.0
    %663 = vmatpush1.msra.mxu0 0.0
    %664 = vmatprep.subr.mxu0 0.0
    %665 = vmatpush1.msra.mxu0 0.0
    %666 = vmatprep.subr.mxu0 0.0
    %667 = vmatpush1.msra.mxu0 0.0
    %668 = vmatprep.subr.mxu0 0.0
    %669 = vmatpush1.msra.mxu0 0.0
    %670 = vmatprep.subr.mxu0 0.0
    %671 = vmatpush1.msra.mxu0 0.0
    %672 = vmatprep.subr.mxu0 0.0
    %673 = vmatpush1.msra.mxu0 0.0
    %674 = vmatprep.subr.mxu0 0.0
    %675 = vmatpush1.msra.mxu0 0.0
    %676 = vmatprep.subr.mxu0 0.0
    %677 = vmatpush1.msra.mxu0 0.0
    %678 = vmatprep.subr.mxu0 0.0
    %679 = vmatpush1.msra.mxu0 0.0
    %680 = vmatprep.subr.mxu0 0.0
    %681 = vmatpush1.msra.mxu0 0.0
    %682 = vmatprep.subr.mxu0 0.0
    %683 = vmatpush1.msra.mxu0 0.0
    %684 = vmatprep.subr.mxu0 0.0
    %685 = vmatpush1.msra.mxu0 0.0
    %686 = vmatprep.subr.mxu0 0.0
    %687 = vmatpush1.msra.mxu0 0.0
    %688 = vmatprep.subr.mxu0 0.0
    %689 = vmatpush1.msra.mxu0 0.0
    %690 = vmatprep.subr.mxu0 0.0
    %691 = vmatpush1.msra.mxu0 0.0
    %692 = vmatprep.subr.mxu0 0.0
    %693 = vmatpush1.msra.mxu0 0.0
    %694 = vmatprep.mubr.f32.mxu0 0.0
    %695 = vmatmul.mubr.f32.gmra.mrb[0].mxu0 %v170
    %v696 = vpop.f32.mrb[0].mxu0
    %v697 = vadd.f32 0.0, %v696
    %v698 = vpop.f32.mrb[0].mxu0
    %v699 = vadd.f32 0.0, %v698
    %700 = vmatprep.mubr.f32.mxu0 0.0
    %701 = vmatmul.mubr.f32.gmra.mrb[0].mxu0 %v171
    %v702 = vpop.f32.mrb[0].mxu0
    %v703 = vadd.f32 0.0, %v702
    %v704 = vpop.f32.mrb[0].mxu0
    %v705 = vadd.f32 0.0, %v704
    %706 = vmatprep.mubr.f32.mxu0 0.0
    %707 = vmatmul.mubr.f32.gmra.mrb[0].mxu0 %v172
    %v708 = vpop.f32.mrb[0].mxu0
    %v709 = vadd.f32 0.0, %v708
    %v710 = vpop.f32.mrb[0].mxu0
    %v711 = vadd.f32 0.0, %v710
    %712 = vmatprep.mubr.f32.mxu0 0.0
    %713 = vmatmul.mubr.f32.gmra.mrb[0].mxu0 %v173
    %v714 = vpop.f32.mrb[0].mxu0
    %v715 = vadd.f32 0.0, %v714
    %v716 = vpop.f32.mrb[0].mxu0
    %v717 = vadd.f32 0.0, %v716
    %718 = vmatprep.mubr.f32.mxu0 0.0
    %719 = vmatmul.mubr.f32.gmra.mrb[0].mxu0 %v174
    %v720 = vpop.f32.mrb[0].mxu0
    %v721 = vadd.f32 0.0, %v720
    %v722 = vpop.f32.mrb[0].mxu0
    %v723 = vadd.f32 0.0, %v722
    %724 = vmatprep.mubr.f32.mxu0 0.0
    %725 = vmatmul.mubr.f32.gmra.mrb[0].mxu0 %v175
    %v726 = vpop.f32.mrb[0].mxu0
    %v727 = vadd.f32 0.0, %v726
    %v728 = vpop.f32.mrb[0].mxu0
    %v729 = vadd.f32 0.0, %v728
    %730 = vmatprep.mubr.f32.mxu0 0.0
    %731 = vmatmul.mubr.f32.gmra.mrb[0].mxu0 %v176
    %v732 = vpop.f32.mrb[0].mxu0
    %v733 = vadd.f32 0.0, %v732
    %v734 = vpop.f32.mrb[0].mxu0
    %v735 = vadd.f32 0.0, %v734
    %736 = vmatprep.mubr.f32.mxu0 0.0
    %737 = vmatmul.mubr.f32.gmra.mrb[0].mxu0 %v177
    %v738 = vpop.f32.mrb[0].mxu0
    %v739 = vadd.f32 0.0, %v738
    %v740 = vpop.f32.mrb[0].mxu0
    %v741 = vadd.f32 0.0, %v740
    %742 = vmatprep.mubr.f32.mxu0 0.0
    %743 = vmatmul.mubr.f32.gmra.mrb[0].mxu0 %v178
    %v744 = vpop.f32.mrb[0].mxu0
    %v745 = vadd.f32 0.0, %v744
    %v746 = vpop.f32.mrb[0].mxu0
    %v747 = vadd.f32 0.0, %v746
    %748 = vmatprep.mubr.f32.mxu0 0.0
    %749 = vmatmul.mubr.f32.gmra.mrb[0].mxu0 %v179
    %v750 = vpop.f32.mrb[0].mxu0
    %v751 = vadd.f32 0.0, %v750
    %v752 = vpop.f32.mrb[0].mxu0
    %v753 = vadd.f32 0.0, %v752
    %754 = vmatprep.mubr.f32.mxu0 0.0
    %755 = vmatmul.mubr.f32.gmra.mrb[0].mxu0 %v180
    %v756 = vpop.f32.mrb[0].mxu0
    %v757 = vadd.f32 0.0, %v756
    %v758 = vpop.f32.mrb[0].mxu0
    %v759 = vadd.f32 0.0, %v758
    %760 = vmatprep.mubr.f32.mxu0 0.0
    %761 = vmatmul.mubr.f32.gmra.mrb[0].mxu0 %v181
    %v762 = vpop.f32.mrb[0].mxu0
    %v763 = vadd.f32 0.0, %v762
    %v764 = vpop.f32.mrb[0].mxu0
    %v765 = vadd.f32 0.0, %v764
    %766 = vmatprep.mubr.f32.mxu0 0.0
    %767 = vmatmul.mubr.f32.gmra.mrb[0].mxu0 %v182
    %v768 = vpop.f32.mrb[0].mxu0
    %v769 = vadd.f32 0.0, %v768
    %v770 = vpop.f32.mrb[0].mxu0
    %v771 = vadd.f32 0.0, %v770
    %772 = vmatprep.mubr.f32.mxu0 0.0
    %773 = vmatmul.mubr.f32.gmra.mrb[0].mxu0 %v183
    %v774 = vpop.f32.mrb[0].mxu0
    %v775 = vadd.f32 0.0, %v774
    %v776 = vpop.f32.mrb[0].mxu0
    %v777 = vadd.f32 0.0, %v776
    %778 = vmatprep.mubr.f32.mxu0 0.0
    %779 = vmatmul.mubr.f32.gmra.mrb[0].mxu0 %v184
    %v780 = vpop.f32.mrb[0].mxu0
    %v781 = vadd.f32 0.0, %v780
    %v782 = vpop.f32.mrb[0].mxu0
    %v783 = vadd.f32 0.0, %v782
    %784 = vmatprep.mubr.f32.mxu0 0.0
    %785 = vmatmul.mubr.f32.gmra.mrb[0].mxu0 %v185
    %v786 = vpop.f32.mrb[0].mxu0
    %v787 = vadd.f32 0.0, %v786
    %v788 = vpop.f32.mrb[0].mxu0
    %v789 = vadd.f32 0.0, %v788
    %790 = vmatprep.mubr.f32.mxu0 0.0
    %791 = vmatmul.mubr.f32.gmra.mrb[0].mxu0 %v186
    %v792 = vpop.f32.mrb[0].mxu0
    %v793 = vadd.f32 0.0, %v792
    %v794 = vpop.f32.mrb[0].mxu0
    %v795 = vadd.f32 0.0, %v794
    %796 = vmatprep.mubr.f32.mxu0 0.0
    %797 = vmatmul.mubr.f32.gmra.mrb[0].mxu0 %v187
    %v798 = vpop.f32.mrb[0].mxu0
    %v799 = vadd.f32 0.0, %v798
    %v800 = vpop.f32.mrb[0].mxu0
    %v801 = vadd.f32 0.0, %v800
    %802 = vdwg.mxu0
    %803 = vrot.lane.b32.xlu0 %v351, 17
    %v804 = vpop.permute.xlu0 %803
    %805 = vrot.lane.b32.xlu0 %v357, 17
    %v806 = vpop.permute.xlu0 %805
    %807 = vrot.lane.b32.xlu0 %v353, 17
    %v808 = vpop.permute.xlu0 %807
    %809 = vrot.lane.b32.xlu0 %v359, 17
    %v810 = vpop.permute.xlu0 %809
    %811 = vrot.lane.b32.xlu0 %v524, 17
    %v812 = vpop.permute.xlu0 %811
    %813 = vrot.lane.b32.xlu0 %v530, 17
    %v814 = vpop.permute.xlu0 %813
    %815 = vrot.lane.b32.xlu0 %v526, 17
    %v816 = vpop.permute.xlu0 %815
    %817 = vrot.lane.b32.xlu0 %v532, 17
    %v818 = vpop.permute.xlu0 %817
    %819 = vrot.lane.b32.xlu0 %v697, 17
    %v820 = vpop.permute.xlu0 %819
    %821 = vrot.lane.b32.xlu0 %v703, 17
    %v822 = vpop.permute.xlu0 %821
    %823 = vrot.lane.b32.xlu0 %v699, 17
    %v824 = vpop.permute.xlu0 %823
    %825 = vrot.lane.b32.xlu0 %v705, 17
    %v826 = vpop.permute.xlu0 %825
    %v827 = vlaneseq
    %v828 = vand.u32 %v827, 127
    %vm829 = vcmp.lt.s32.totalorder %v828, 17
    %v830 = vsel %vm829, %v820, %v824
    %v831 = vsel %vm829, %v822, %v826
    %v832 = vsel %vm829, %v816, %v820
    %v833 = vsel %vm829, %v818, %v822
    %v834 = vsel %vm829, %v812, %v816
    %v835 = vsel %vm829, %v814, %v818
    %v836 = vsel %vm829, %v808, %v812
    %v837 = vsel %vm829, %v810, %v814
    %v838 = vsel %vm829, %v804, %v808
    %v839 = vsel %vm829, %v806, %v810
    %v840 = vsel %vm829, %v824, %v804
    %v841 = vsel %vm829, %v826, %v806
    %v843 = vlaneseq
    %v844 = vshrl.u32 %v843, 7
    %v845 = vsub.s32 0, %v844
    %v846 = vrot.slane %v165, %v845
    %v847 = vlaneseq
    %v848 = vshrl.u32 %v847, 7
    %v849 = vsub.s32 1, %v848
    %v850 = vrot.slane %v165, %v849
    %v851 = vlaneseq
    %v852 = vshrl.u32 %v851, 7
    %v853 = vsub.s32 2, %v852
    %v854 = vrot.slane %v165, %v853
    %v855 = vlaneseq
    %v856 = vshrl.u32 %v855, 7
    %v857 = vsub.s32 3, %v856
    %v858 = vrot.slane %v165, %v857
    %v859 = vlaneseq
    %v860 = vshrl.u32 %v859, 7
    %v861 = vsub.s32 4, %v860
    %v862 = vrot.slane %v165, %v861
    %v863 = vlaneseq
    %v864 = vshrl.u32 %v863, 7
    %v865 = vsub.s32 5, %v864
    %v866 = vrot.slane %v165, %v865
    %v873 = vmul.f32 %v840, %v846
    %v874 = vmul.f32 %v838, %v850
    %v875 = vmul.f32 %v836, %v854
    %v876 = vmul.f32 %v834, %v858
    %v877 = vmul.f32 %v832, %v862
    %v878 = vmul.f32 %v830, %v866
    %v879 = vmul.f32 %v841, %v846
    %v880 = vmul.f32 %v839, %v850
    %v881 = vmul.f32 %v837, %v854
    %v882 = vmul.f32 %v835, %v858
    %v883 = vmul.f32 %v833, %v862
    %v884 = vmul.f32 %v831, %v866
    %885 = vrot.lane.b32.xlu0 %v363, 16
    %v886 = vpop.permute.xlu0 %885
    %887 = vrot.lane.b32.xlu0 %v369, 16
    %v888 = vpop.permute.xlu0 %887
    %889 = vrot.lane.b32.xlu0 %v365, 16
    %v890 = vpop.permute.xlu0 %889
    %891 = vrot.lane.b32.xlu0 %v371, 16
    %v892 = vpop.permute.xlu0 %891
    %893 = vrot.lane.b32.xlu0 %v536, 16
    %v894 = vpop.permute.xlu0 %893
    %895 = vrot.lane.b32.xlu0 %v542, 16
    %v896 = vpop.permute.xlu0 %895
    %897 = vrot.lane.b32.xlu0 %v538, 16
    %v898 = vpop.permute.xlu0 %897
    %899 = vrot.lane.b32.xlu0 %v544, 16
    %v900 = vpop.permute.xlu0 %899
    %901 = vrot.lane.b32.xlu0 %v709, 16
    %v902 = vpop.permute.xlu0 %901
    %903 = vrot.lane.b32.xlu0 %v715, 16
    %v904 = vpop.permute.xlu0 %903
    %905 = vrot.lane.b32.xlu0 %v711, 16
    %v906 = vpop.permute.xlu0 %905
    %907 = vrot.lane.b32.xlu0 %v717, 16
    %v908 = vpop.permute.xlu0 %907
    %vm909 = vcmp.lt.s32.totalorder %v828, 16
    %v910 = vsel %vm909, %v902, %v906
    %v911 = vsel %vm909, %v904, %v908
    %v912 = vsel %vm909, %v898, %v902
    %v913 = vsel %vm909, %v900, %v904
    %v914 = vsel %vm909, %v894, %v898
    %v915 = vsel %vm909, %v896, %v900
    %v916 = vsel %vm909, %v890, %v894
    %v917 = vsel %vm909, %v892, %v896
    %v918 = vsel %vm909, %v886, %v890
    %v919 = vsel %vm909, %v888, %v892
    %v920 = vsel %vm909, %v906, %v886
    %v921 = vsel %vm909, %v908, %v888
    %v922 = vadd.f32 %v873, %v920
    %v923 = vadd.f32 %v874, %v918
    %v924 = vadd.f32 %v875, %v916
    %v925 = vadd.f32 %v876, %v914
    %v926 = vadd.f32 %v877, %v912
    %v927 = vadd.f32 %v878, %v910
    %v928 = vadd.f32 %v879, %v921
    %v929 = vadd.f32 %v880, %v919
    %v930 = vadd.f32 %v881, %v917
    %v931 = vadd.f32 %v882, %v915
    %v932 = vadd.f32 %v883, %v913
    %v933 = vadd.f32 %v884, %v911
    %934 = vrot.lane.b32.xlu0 %v375, 15
    %v935 = vpop.permute.xlu0 %934
    %936 = vrot.lane.b32.xlu0 %v381, 15
    %v937 = vpop.permute.xlu0 %936
    %938 = vrot.lane.b32.xlu0 %v377, 15
    %v939 = vpop.permute.xlu0 %938
    %940 = vrot.lane.b32.xlu0 %v383, 15
    %v941 = vpop.permute.xlu0 %940
    %942 = vrot.lane.b32.xlu0 %v548, 15
    %v943 = vpop.permute.xlu0 %942
    %944 = vrot.lane.b32.xlu0 %v554, 15
    %v945 = vpop.permute.xlu0 %944
    %946 = vrot.lane.b32.xlu0 %v550, 15
    %v947 = vpop.permute.xlu0 %946
    %948 = vrot.lane.b32.xlu0 %v556, 15
    %v949 = vpop.permute.xlu0 %948
    %950 = vrot.lane.b32.xlu0 %v721, 15
    %v951 = vpop.permute.xlu0 %950
    %952 = vrot.lane.b32.xlu0 %v727, 15
    %v953 = vpop.permute.xlu0 %952
    %954 = vrot.lane.b32.xlu0 %v723, 15
    %v955 = vpop.permute.xlu0 %954
    %956 = vrot.lane.b32.xlu0 %v729, 15
    %v957 = vpop.permute.xlu0 %956
    %vm958 = vcmp.lt.s32.totalorder %v828, 15
    %v959 = vsel %vm958, %v951, %v955
    %v960 = vsel %vm958, %v953, %v957
    %v961 = vsel %vm958, %v947, %v951
    %v962 = vsel %vm958, %v949, %v953
    %v963 = vsel %vm958, %v943, %v947
    %v964 = vsel %vm958, %v945, %v949
    %v965 = vsel %vm958, %v939, %v943
    %v966 = vsel %vm958, %v941, %v945
    %v967 = vsel %vm958, %v935, %v939
    %v968 = vsel %vm958, %v937, %v941
    %v969 = vsel %vm958, %v955, %v935
    %v970 = vsel %vm958, %v957, %v937
    %v972 = vlaneseq
    %v973 = vshrl.u32 %v972, 7
    %v974 = vsub.s32 0, %v973
    %v975 = vrot.slane %v167, %v974
    %v976 = vlaneseq
    %v977 = vshrl.u32 %v976, 7
    %v978 = vsub.s32 1, %v977
    %v979 = vrot.slane %v167, %v978
    %v980 = vlaneseq
    %v981 = vshrl.u32 %v980, 7
    %v982 = vsub.s32 2, %v981
    %v983 = vrot.slane %v167, %v982
    %v984 = vlaneseq
    %v985 = vshrl.u32 %v984, 7
    %v986 = vsub.s32 3, %v985
    %v987 = vrot.slane %v167, %v986
    %v988 = vlaneseq
    %v989 = vshrl.u32 %v988, 7
    %v990 = vsub.s32 4, %v989
    %v991 = vrot.slane %v167, %v990
    %v992 = vlaneseq
    %v993 = vshrl.u32 %v992, 7
    %v994 = vsub.s32 5, %v993
    %v995 = vrot.slane %v167, %v994
    %v1002 = vmul.f32 %v969, %v975
    %v1003 = vmul.f32 %v967, %v979
    %v1004 = vmul.f32 %v965, %v983
    %v1005 = vmul.f32 %v963, %v987
    %v1006 = vmul.f32 %v961, %v991
    %v1007 = vmul.f32 %v959, %v995
    %v1008 = vmul.f32 %v970, %v975
    %v1009 = vmul.f32 %v968, %v979
    %v1010 = vmul.f32 %v966, %v983
    %v1011 = vmul.f32 %v964, %v987
    %v1012 = vmul.f32 %v962, %v991
    %v1013 = vmul.f32 %v960, %v995
    %v1014 = vadd.f32 %v922, %v1002
    %v1015 = vadd.f32 %v923, %v1003
    %v1016 = vadd.f32 %v924, %v1004
    %v1017 = vadd.f32 %v925, %v1005
    %v1018 = vadd.f32 %v926, %v1006
    %v1019 = vadd.f32 %v927, %v1007
    %v1020 = vadd.f32 %v928, %v1008
    %v1021 = vadd.f32 %v929, %v1009
    %v1022 = vadd.f32 %v930, %v1010
    %v1023 = vadd.f32 %v931, %v1011
    %v1024 = vadd.f32 %v932, %v1012
    %v1025 = vadd.f32 %v933, %v1013
    %1026 = vrot.lane.b32.xlu0 %v387, 1
    %v1027 = vpop.permute.xlu0 %1026
    %1028 = vrot.lane.b32.xlu0 %v393, 1
    %v1029 = vpop.permute.xlu0 %1028
    %1030 = vrot.lane.b32.xlu0 %v389, 1
    %v1031 = vpop.permute.xlu0 %1030
    %1032 = vrot.lane.b32.xlu0 %v395, 1
    %v1033 = vpop.permute.xlu0 %1032
    %1034 = vrot.lane.b32.xlu0 %v560, 1
    %v1035 = vpop.permute.xlu0 %1034
    %1036 = vrot.lane.b32.xlu0 %v566, 1
    %v1037 = vpop.permute.xlu0 %1036
    %1038 = vrot.lane.b32.xlu0 %v562, 1
    %v1039 = vpop.permute.xlu0 %1038
    %1040 = vrot.lane.b32.xlu0 %v568, 1
    %v1041 = vpop.permute.xlu0 %1040
    %1042 = vrot.lane.b32.xlu0 %v733, 1
    %v1043 = vpop.permute.xlu0 %1042
    %1044 = vrot.lane.b32.xlu0 %v739, 1
    %v1045 = vpop.permute.xlu0 %1044
    %1046 = vrot.lane.b32.xlu0 %v735, 1
    %v1047 = vpop.permute.xlu0 %1046
    %1048 = vrot.lane.b32.xlu0 %v741, 1
    %v1049 = vpop.permute.xlu0 %1048
    %vm1050 = vcmp.lt.s32.totalorder %v828, 1
    %v1051 = vsel %vm1050, %v1043, %v1047
    %v1052 = vsel %vm1050, %v1045, %v1049
    %v1053 = vsel %vm1050, %v1039, %v1043
    %v1054 = vsel %vm1050, %v1041, %v1045
    %v1055 = vsel %vm1050, %v1035, %v1039
    %v1056 = vsel %vm1050, %v1037, %v1041
    %v1057 = vsel %vm1050, %v1031, %v1035
    %v1058 = vsel %vm1050, %v1033, %v1037
    %v1059 = vsel %vm1050, %v1027, %v1031
    %v1060 = vsel %vm1050, %v1029, %v1033
    %v1061 = vsel %vm1050, %v1047, %v1027
    %v1062 = vsel %vm1050, %v1049, %v1029
    %v1063 = vmul.f32 %v1061, %v846
    %v1064 = vmul.f32 %v1059, %v850
    %v1065 = vmul.f32 %v1057, %v854
    %v1066 = vmul.f32 %v1055, %v858
    %v1067 = vmul.f32 %v1053, %v862
    %v1068 = vmul.f32 %v1051, %v866
    %v1069 = vmul.f32 %v1062, %v846
    %v1070 = vmul.f32 %v1060, %v850
    %v1071 = vmul.f32 %v1058, %v854
    %v1072 = vmul.f32 %v1056, %v858
    %v1073 = vmul.f32 %v1054, %v862
    %v1074 = vmul.f32 %v1052, %v866
    %v1075 = vadd.f32 %v1014, %v1063
    %v1076 = vadd.f32 %v1015, %v1064
    %v1077 = vadd.f32 %v1016, %v1065
    %v1078 = vadd.f32 %v1017, %v1066
    %v1079 = vadd.f32 %v1018, %v1067
    %v1080 = vadd.f32 %v1019, %v1068
    %v1081 = vadd.f32 %v1020, %v1069
    %v1082 = vadd.f32 %v1021, %v1070
    %v1083 = vadd.f32 %v1022, %v1071
    %v1084 = vadd.f32 %v1023, %v1072
    %v1085 = vadd.f32 %v1024, %v1073
    %v1086 = vadd.f32 %v1025, %v1074
    %v1087 = vadd.f32 %v1075, %v399
    %v1088 = vadd.f32 %v1076, %v401
    %v1089 = vadd.f32 %v1077, %v572
    %v1090 = vadd.f32 %v1078, %v574
    %v1091 = vadd.f32 %v1079, %v745
    %v1092 = vadd.f32 %v1080, %v747
    %v1093 = vadd.f32 %v1081, %v405
    %v1094 = vadd.f32 %v1082, %v407
    %v1095 = vadd.f32 %v1083, %v578
    %v1096 = vadd.f32 %v1084, %v580
    %v1097 = vadd.f32 %v1085, %v751
    %v1098 = vadd.f32 %v1086, %v753
    %1099 = vrot.lane.b32.xlu0 %v411, 127
    %v1100 = vpop.permute.xlu0 %1099
    %1101 = vrot.lane.b32.xlu0 %v417, 127
    %v1102 = vpop.permute.xlu0 %1101
    %1103 = vrot.lane.b32.xlu0 %v413, 127
    %v1104 = vpop.permute.xlu0 %1103
    %1105 = vrot.lane.b32.xlu0 %v419, 127
    %v1106 = vpop.permute.xlu0 %1105
    %1107 = vrot.lane.b32.xlu0 %v584, 127
    %v1108 = vpop.permute.xlu0 %1107
    %1109 = vrot.lane.b32.xlu0 %v590, 127
    %v1110 = vpop.permute.xlu0 %1109
    %1111 = vrot.lane.b32.xlu0 %v586, 127
    %v1112 = vpop.permute.xlu0 %1111
    %1113 = vrot.lane.b32.xlu0 %v592, 127
    %v1114 = vpop.permute.xlu0 %1113
    %1115 = vrot.lane.b32.xlu0 %v757, 127
    %v1116 = vpop.permute.xlu0 %1115
    %1117 = vrot.lane.b32.xlu0 %v763, 127
    %v1118 = vpop.permute.xlu0 %1117
    %1119 = vrot.lane.b32.xlu0 %v759, 127
    %v1120 = vpop.permute.xlu0 %1119
    %1121 = vrot.lane.b32.xlu0 %v765, 127
    %v1122 = vpop.permute.xlu0 %1121
    %vm1123 = vcmp.lt.s32.totalorder %v828, 127
    %v1124 = vsel %vm1123, %v1116, %v1120
    %v1125 = vsel %vm1123, %v1118, %v1122
    %v1126 = vsel %vm1123, %v1112, %v1116
    %v1127 = vsel %vm1123, %v1114, %v1118
    %v1128 = vsel %vm1123, %v1108, %v1112
    %v1129 = vsel %vm1123, %v1110, %v1114
    %v1130 = vsel %vm1123, %v1104, %v1108
    %v1131 = vsel %vm1123, %v1106, %v1110
    %v1132 = vsel %vm1123, %v1100, %v1104
    %v1133 = vsel %vm1123, %v1102, %v1106
    %v1134 = vsel %vm1123, %v1120, %v1100
    %v1135 = vsel %vm1123, %v1122, %v1102
    %v1136 = vmul.f32 %v1132, %v975
    %v1137 = vmul.f32 %v1130, %v979
    %v1138 = vmul.f32 %v1128, %v983
    %v1139 = vmul.f32 %v1126, %v987
    %v1140 = vmul.f32 %v1124, %v991
    %v1141 = vmul.f32 %v1134, %v995
    %v1142 = vmul.f32 %v1133, %v975
    %v1143 = vmul.f32 %v1131, %v979
    %v1144 = vmul.f32 %v1129, %v983
    %v1145 = vmul.f32 %v1127, %v987
    %v1146 = vmul.f32 %v1125, %v991
    %v1147 = vmul.f32 %v1135, %v995
    %v1148 = vadd.f32 %v1087, %v1136
    %v1149 = vadd.f32 %v1088, %v1137
    %v1150 = vadd.f32 %v1089, %v1138
    %v1151 = vadd.f32 %v1090, %v1139
    %v1152 = vadd.f32 %v1091, %v1140
    %v1153 = vadd.f32 %v1092, %v1141
    %v1154 = vadd.f32 %v1093, %v1142
    %v1155 = vadd.f32 %v1094, %v1143
    %v1156 = vadd.f32 %v1095, %v1144
    %v1157 = vadd.f32 %v1096, %v1145
    %v1158 = vadd.f32 %v1097, %v1146
    %v1159 = vadd.f32 %v1098, %v1147
    %1160 = vrot.lane.b32.xlu0 %v423, 113
    %v1161 = vpop.permute.xlu0 %1160
    %1162 = vrot.lane.b32.xlu0 %v429, 113
    %v1163 = vpop.permute.xlu0 %1162
    %1164 = vrot.lane.b32.xlu0 %v425, 113
    %v1165 = vpop.permute.xlu0 %1164
    %1166 = vrot.lane.b32.xlu0 %v431, 113
    %v1167 = vpop.permute.xlu0 %1166
    %1168 = vrot.lane.b32.xlu0 %v596, 113
    %v1169 = vpop.permute.xlu0 %1168
    %1170 = vrot.lane.b32.xlu0 %v602, 113
    %v1171 = vpop.permute.xlu0 %1170
    %1172 = vrot.lane.b32.xlu0 %v598, 113
    %v1173 = vpop.permute.xlu0 %1172
    %1174 = vrot.lane.b32.xlu0 %v604, 113
    %v1175 = vpop.permute.xlu0 %1174
    %1176 = vrot.lane.b32.xlu0 %v769, 113
    %v1177 = vpop.permute.xlu0 %1176
    %1178 = vrot.lane.b32.xlu0 %v775, 113
    %v1179 = vpop.permute.xlu0 %1178
    %1180 = vrot.lane.b32.xlu0 %v771, 113
    %v1181 = vpop.permute.xlu0 %1180
    %1182 = vrot.lane.b32.xlu0 %v777, 113
    %v1183 = vpop.permute.xlu0 %1182
    %vm1184 = vcmp.lt.s32.totalorder %v828, 113
    %v1185 = vsel %vm1184, %v1177, %v1181
    %v1186 = vsel %vm1184, %v1179, %v1183
    %v1187 = vsel %vm1184, %v1173, %v1177
    %v1188 = vsel %vm1184, %v1175, %v1179
    %v1189 = vsel %vm1184, %v1169, %v1173
    %v1190 = vsel %vm1184, %v1171, %v1175
    %v1191 = vsel %vm1184, %v1165, %v1169
    %v1192 = vsel %vm1184, %v1167, %v1171
    %v1193 = vsel %vm1184, %v1161, %v1165
    %v1194 = vsel %vm1184, %v1163, %v1167
    %v1195 = vsel %vm1184, %v1181, %v1161
    %v1196 = vsel %vm1184, %v1183, %v1163
    %v1197 = vmul.f32 %v1193, %v846
    %v1198 = vmul.f32 %v1191, %v850
    %v1199 = vmul.f32 %v1189, %v854
    %v1200 = vmul.f32 %v1187, %v858
    %v1201 = vmul.f32 %v1185, %v862
    %v1202 = vmul.f32 %v1195, %v866
    %v1203 = vmul.f32 %v1194, %v846
    %v1204 = vmul.f32 %v1192, %v850
    %v1205 = vmul.f32 %v1190, %v854
    %v1206 = vmul.f32 %v1188, %v858
    %v1207 = vmul.f32 %v1186, %v862
    %v1208 = vmul.f32 %v1196, %v866
    %v1209 = vadd.f32 %v1148, %v1197
    %v1210 = vadd.f32 %v1149, %v1198
    %v1211 = vadd.f32 %v1150, %v1199
    %v1212 = vadd.f32 %v1151, %v1200
    %v1213 = vadd.f32 %v1152, %v1201
    %v1214 = vadd.f32 %v1153, %v1202
    %v1215 = vadd.f32 %v1154, %v1203
    %v1216 = vadd.f32 %v1155, %v1204
    %v1217 = vadd.f32 %v1156, %v1205
    %v1218 = vadd.f32 %v1157, %v1206
    %v1219 = vadd.f32 %v1158, %v1207
    %v1220 = vadd.f32 %v1159, %v1208
    %1221 = vrot.lane.b32.xlu0 %v435, 112
    %v1222 = vpop.permute.xlu0 %1221
    %1223 = vrot.lane.b32.xlu0 %v441, 112
    %v1224 = vpop.permute.xlu0 %1223
    %1225 = vrot.lane.b32.xlu0 %v437, 112
    %v1226 = vpop.permute.xlu0 %1225
    %1227 = vrot.lane.b32.xlu0 %v443, 112
    %v1228 = vpop.permute.xlu0 %1227
    %1229 = vrot.lane.b32.xlu0 %v608, 112
    %v1230 = vpop.permute.xlu0 %1229
    %1231 = vrot.lane.b32.xlu0 %v614, 112
    %v1232 = vpop.permute.xlu0 %1231
    %1233 = vrot.lane.b32.xlu0 %v610, 112
    %v1234 = vpop.permute.xlu0 %1233
    %1235 = vrot.lane.b32.xlu0 %v616, 112
    %v1236 = vpop.permute.xlu0 %1235
    %1237 = vrot.lane.b32.xlu0 %v781, 112
    %v1238 = vpop.permute.xlu0 %1237
    %1239 = vrot.lane.b32.xlu0 %v787, 112
    %v1240 = vpop.permute.xlu0 %1239
    %1241 = vrot.lane.b32.xlu0 %v783, 112
    %v1242 = vpop.permute.xlu0 %1241
    %1243 = vrot.lane.b32.xlu0 %v789, 112
    %v1244 = vpop.permute.xlu0 %1243
    %vm1245 = vcmp.lt.s32.totalorder %v828, 112
    %v1246 = vsel %vm1245, %v1238, %v1242
    %v1247 = vsel %vm1245, %v1240, %v1244
    %v1248 = vsel %vm1245, %v1234, %v1238
    %v1249 = vsel %vm1245, %v1236, %v1240
    %v1250 = vsel %vm1245, %v1230, %v1234
    %v1251 = vsel %vm1245, %v1232, %v1236
    %v1252 = vsel %vm1245, %v1226, %v1230
    %v1253 = vsel %vm1245, %v1228, %v1232
    %v1254 = vsel %vm1245, %v1222, %v1226
    %v1255 = vsel %vm1245, %v1224, %v1228
    %v1256 = vsel %vm1245, %v1242, %v1222
    %v1257 = vsel %vm1245, %v1244, %v1224
    %v1258 = vadd.f32 %v1209, %v1254
    %v1259 = vadd.f32 %v1210, %v1252
    %v1260 = vadd.f32 %v1211, %v1250
    %v1261 = vadd.f32 %v1212, %v1248
    %v1262 = vadd.f32 %v1213, %v1246
    %v1263 = vadd.f32 %v1214, %v1256
    %v1264 = vadd.f32 %v1215, %v1255
    %v1265 = vadd.f32 %v1216, %v1253
    %v1266 = vadd.f32 %v1217, %v1251
    %v1267 = vadd.f32 %v1218, %v1249
    %v1268 = vadd.f32 %v1219, %v1247
    %v1269 = vadd.f32 %v1220, %v1257
    %1270 = vrot.lane.b32.xlu0 %v447, 111
    %v1271 = vpop.permute.xlu0 %1270
    %1272 = vrot.lane.b32.xlu0 %v453, 111
    %v1273 = vpop.permute.xlu0 %1272
    %1274 = vrot.lane.b32.xlu0 %v449, 111
    %v1275 = vpop.permute.xlu0 %1274
    %1276 = vrot.lane.b32.xlu0 %v455, 111
    %v1277 = vpop.permute.xlu0 %1276
    %1278 = vrot.lane.b32.xlu0 %v620, 111
    %v1279 = vpop.permute.xlu0 %1278
    %1280 = vrot.lane.b32.xlu0 %v626, 111
    %v1281 = vpop.permute.xlu0 %1280
    %1282 = vrot.lane.b32.xlu0 %v622, 111
    %v1283 = vpop.permute.xlu0 %1282
    %1284 = vrot.lane.b32.xlu0 %v628, 111
    %v1285 = vpop.permute.xlu0 %1284
    %1286 = vrot.lane.b32.xlu0 %v793, 111
    %v1287 = vpop.permute.xlu0 %1286
    %1288 = vrot.lane.b32.xlu0 %v799, 111
    %v1289 = vpop.permute.xlu0 %1288
    %1290 = vrot.lane.b32.xlu0 %v795, 111
    %v1291 = vpop.permute.xlu0 %1290
    %1292 = vrot.lane.b32.xlu0 %v801, 111
    %v1293 = vpop.permute.xlu0 %1292
    %vm1294 = vcmp.lt.s32.totalorder %v828, 111
    %v1295 = vsel %vm1294, %v1287, %v1291
    %v1296 = vsel %vm1294, %v1289, %v1293
    %v1297 = vsel %vm1294, %v1283, %v1287
    %v1298 = vsel %vm1294, %v1285, %v1289
    %v1299 = vsel %vm1294, %v1279, %v1283
    %v1300 = vsel %vm1294, %v1281, %v1285
    %v1301 = vsel %vm1294, %v1275, %v1279
    %v1302 = vsel %vm1294, %v1277, %v1281
    %v1303 = vsel %vm1294, %v1271, %v1275
    %v1304 = vsel %vm1294, %v1273, %v1277
    %v1305 = vsel %vm1294, %v1291, %v1271
    %v1306 = vsel %vm1294, %v1293, %v1273
    %v1307 = vmul.f32 %v1303, %v975
    %v1308 = vmul.f32 %v1301, %v979
    %v1309 = vmul.f32 %v1299, %v983
    %v1310 = vmul.f32 %v1297, %v987
    %v1311 = vmul.f32 %v1295, %v991
    %v1312 = vmul.f32 %v1305, %v995
    %v1313 = vmul.f32 %v1304, %v975
    %v1314 = vmul.f32 %v1302, %v979
    %v1315 = vmul.f32 %v1300, %v983
    %v1316 = vmul.f32 %v1298, %v987
    %v1317 = vmul.f32 %v1296, %v991
    %v1318 = vmul.f32 %v1306, %v995
    %v1319 = vadd.f32 %v1258, %v1307
    %v1320 = vadd.f32 %v1259, %v1308
    %v1321 = vadd.f32 %v1260, %v1309
    %v1322 = vadd.f32 %v1261, %v1310
    %v1323 = vadd.f32 %v1262, %v1311
    %v1324 = vadd.f32 %v1263, %v1312
    %v1325 = vadd.f32 %v1264, %v1313
    %v1326 = vadd.f32 %v1265, %v1314
    %v1327 = vadd.f32 %v1266, %v1315
    %v1328 = vadd.f32 %v1267, %v1316
    %v1329 = vadd.f32 %v1268, %v1317
    %v1330 = vadd.f32 %v1269, %v1318
    %v1331 = vld [vmem:[%s2] sm:$0xff]
    %v1332 = vld [vmem:[%s2 + $0x8] sm:$0xff]
    %1334 = vset.pattern.permute.xlu0 0
    %1335 = vperm.xlu0 %1334, %v1331
    %v1336 = vpop.permute.xlu0 %1335
    %1339 = vset.pattern.permute.xlu0 0
    %1340 = vperm.xlu0 %1339, %v1332
    %v1341 = vpop.permute.xlu0 %1340
    %v1343 = vadd.f32 %v1319, %v1336
    %v1344 = vadd.f32 %v1320, %v1336
    %v1345 = vadd.f32 %v1321, %v1336
    %v1346 = vadd.f32 %v1322, %v1336
    %v1347 = vadd.f32 %v1323, %v1336
    %v1348 = vadd.f32 %v1324, %v1336
    %v1349 = vadd.f32 %v1325, %v1341
    %v1350 = vadd.f32 %v1326, %v1341
    %v1351 = vadd.f32 %v1327, %v1341
    %v1352 = vadd.f32 %v1328, %v1341
    %v1353 = vadd.f32 %v1329, %v1341
    %v1354 = vadd.f32 %v1330, %v1341
    %v1355 = vmax.f32 %v1343, 0.0
    %v1356 = vmax.f32 %v1344, 0.0
    %v1357 = vmax.f32 %v1345, 0.0
    %v1358 = vmax.f32 %v1346, 0.0
    %v1359 = vmax.f32 %v1347, 0.0
    %v1360 = vmax.f32 %v1348, 0.0
    %v1361 = vmax.f32 %v1349, 0.0
    %v1362 = vmax.f32 %v1350, 0.0
    %v1363 = vmax.f32 %v1351, 0.0
    %v1364 = vmax.f32 %v1352, 0.0
    %v1365 = vmax.f32 %v1353, 0.0
    %v1366 = vmax.f32 %v1354, 0.0
    %v1368 = vlaneseq
    %v1369 = vshrl.u32 %v1368, 7
    %v1370 = vsub.s32 0, %v1369
    %v1371 = vrot.slane %v169, %v1370
    %v1372 = vlaneseq
    %v1373 = vshrl.u32 %v1372, 7
    %v1374 = vsub.s32 1, %v1373
    %v1375 = vrot.slane %v169, %v1374
    %v1376 = vlaneseq
    %v1377 = vshrl.u32 %v1376, 7
    %v1378 = vsub.s32 2, %v1377
    %v1379 = vrot.slane %v169, %v1378
    %v1380 = vlaneseq
    %v1381 = vshrl.u32 %v1380, 7
    %v1382 = vsub.s32 3, %v1381
    %v1383 = vrot.slane %v169, %v1382
    %v1384 = vlaneseq
    %v1385 = vshrl.u32 %v1384, 7
    %v1386 = vsub.s32 4, %v1385
    %v1387 = vrot.slane %v169, %v1386
    %v1388 = vlaneseq
    %v1389 = vshrl.u32 %v1388, 7
    %v1390 = vsub.s32 5, %v1389
    %v1391 = vrot.slane %v169, %v1390
    %v1398 = vmul.f32 %v1355, %v1371
    %v1399 = vmul.f32 %v1356, %v1375
    %v1400 = vmul.f32 %v1357, %v1379
    %v1401 = vmul.f32 %v1358, %v1383
    %v1402 = vmul.f32 %v1359, %v1387
    %v1403 = vmul.f32 %v1360, %v1391
    %v1404 = vmul.f32 %v1361, %v1371
    %v1405 = vmul.f32 %v1362, %v1375
    %v1406 = vmul.f32 %v1363, %v1379
    %v1407 = vmul.f32 %v1364, %v1383
    %v1408 = vmul.f32 %v1365, %v1387
    %v1409 = vmul.f32 %v1366, %v1391
    %1410 = vst [vmem:[#allocation2 + $0xc0] sm:$0xff] %v1398
    %1411 = vst [vmem:[#allocation2 + $0xc8] sm:$0xff] %v1399
    %1412 = vst [vmem:[#allocation2 + $0xd0] sm:$0xff] %v1400
    %1413 = vst [vmem:[#allocation2 + $0xd8] sm:$0xff] %v1401
    %1414 = vst [vmem:[#allocation2 + $0xe0] sm:$0xff] %v1402
    %1415 = vst [vmem:[#allocation2 + $0xe8] sm:$0xff] %v1403
    %1416 = vst [vmem:[#allocation2 + $0xf0] sm:$0xff] %v1404
    %1417 = vst [vmem:[#allocation2 + $0xf8] sm:$0xff] %v1405
    %1418 = vst [vmem:[#allocation2 + $0x100] sm:$0xff] %v1406
    %1419 = vst [vmem:[#allocation2 + $0x108] sm:$0xff] %v1407
    %1420 = vst [vmem:[#allocation2 + $0x110] sm:$0xff] %v1408
    %1421 = vst [vmem:[#allocation2 + $0x118] sm:$0xff] %v1409
    %s1422 = scalar_lea.vmem [#allocation3], 144
    %v1423 = vld [vmem:[%s1422] sm:$0xff]
    %v1424 = vld [vmem:[%s1422 + $0x8] sm:$0xff]
    %v1425 = vld [vmem:[%s1422 + $0x10] sm:$0xff]
    %v1426 = vld [vmem:[%s1422 + $0x18] sm:$0xff]
    %v1427 = vld [vmem:[%s1422 + $0x20] sm:$0xff]
    %v1428 = vld [vmem:[%s1422 + $0x28] sm:$0xff]
    %v1429 = vld [vmem:[%s1422 + $0x30] sm:$0xff]
    %v1430 = vld [vmem:[%s1422 + $0x38] sm:$0xff]
    %v1431 = vld [vmem:[%s1422 + $0x40] sm:$0xff]
    %v1432 = vld [vmem:[%s1422 + $0x48] sm:$0xff]
    %v1433 = vld [vmem:[%s1422 + $0x50] sm:$0xff]
    %v1434 = vld [vmem:[%s1422 + $0x58] sm:$0xff]
    %v1435 = vld [vmem:[%s1422 + $0x60] sm:$0xff]
    %v1436 = vld [vmem:[%s1422 + $0x68] sm:$0xff]
    %v1437 = vld [vmem:[%s1422 + $0x70] sm:$0xff]
    %v1438 = vld [vmem:[%s1422 + $0x78] sm:$0xff]
    %v1439 = vld [vmem:[%s1422 + $0x80] sm:$0xff]
    %v1440 = vld [vmem:[%s1422 + $0x88] sm:$0xff]
    %v1441 = vld [vmem:[#allocation2] sm:$0xff]
    %v1442 = vld [vmem:[#allocation2 + $0x8] sm:$0xff]
    %v1443 = vld [vmem:[#allocation2 + $0x10] sm:$0xff]
    %v1444 = vld [vmem:[#allocation2 + $0x18] sm:$0xff]
    %v1445 = vld [vmem:[#allocation2 + $0x20] sm:$0xff]
    %v1446 = vld [vmem:[#allocation2 + $0x28] sm:$0xff]
    %v1447 = vld [vmem:[#allocation2 + $0x30] sm:$0xff]
    %v1448 = vld [vmem:[#allocation2 + $0x38] sm:$0xff]
    %v1449 = vld [vmem:[#allocation2 + $0x40] sm:$0xff]
    %v1450 = vld [vmem:[#allocation2 + $0x48] sm:$0xff]
    %v1451 = vld [vmem:[#allocation2 + $0x50] sm:$0xff]
    %v1452 = vld [vmem:[#allocation2 + $0x58] sm:$0xff]
    %v1453 = vld [vmem:[#allocation2 + $0x60] sm:$0xff]
    %v1454 = vld [vmem:[#allocation2 + $0x68] sm:$0xff]
    %v1455 = vld [vmem:[#allocation2 + $0x70] sm:$0xff]
    %v1456 = vld [vmem:[#allocation2 + $0x78] sm:$0xff]
    %v1457 = vld [vmem:[#allocation2 + $0x80] sm:$0xff]
    %v1458 = vld [vmem:[#allocation2 + $0x88] sm:$0xff]
    %v1459 = vld [vmem:[#allocation2 + $0x90] sm:$0xff]
    %v1460 = vld [vmem:[#allocation2 + $0x98] sm:$0xff]
    %v1461 = vld [vmem:[#allocation2 + $0xa0] sm:$0xff]
    %v1462 = vld [vmem:[#allocation2 + $0xa8] sm:$0xff]
    %v1463 = vld [vmem:[#allocation2 + $0xb0] sm:$0xff]
    %v1464 = vld [vmem:[#allocation2 + $0xb8] sm:$0xff]
    %v1465 = vld [vmem:[#allocation2 + $0xc0] sm:$0xff]
    %v1466 = vld [vmem:[#allocation2 + $0xc8] sm:$0xff]
    %v1467 = vld [vmem:[#allocation2 + $0xd0] sm:$0xff]
    %v1468 = vld [vmem:[#allocation2 + $0xd8] sm:$0xff]
    %v1469 = vld [vmem:[#allocation2 + $0xe0] sm:$0xff]
    %v1470 = vld [vmem:[#allocation2 + $0xe8] sm:$0xff]
    %v1471 = vld [vmem:[#allocation2 + $0xf0] sm:$0xff]
    %v1472 = vld [vmem:[#allocation2 + $0xf8] sm:$0xff]
    %v1473 = vld [vmem:[#allocation2 + $0x100] sm:$0xff]
    %v1474 = vld [vmem:[#allocation2 + $0x108] sm:$0xff]
    %v1475 = vld [vmem:[#allocation2 + $0x110] sm:$0xff]
    %v1476 = vld [vmem:[#allocation2 + $0x118] sm:$0xff]
    %v1477 = vld [vmem:[#allocation2 + $0x120] sm:$0xff]
    %v1478 = vld [vmem:[#allocation2 + $0x128] sm:$0xff]
    %v1479 = vld [vmem:[#allocation2 + $0x130] sm:$0xff]
    %v1480 = vld [vmem:[#allocation2 + $0x138] sm:$0xff]
    %v1481 = vld [vmem:[#allocation2 + $0x140] sm:$0xff]
    %v1482 = vld [vmem:[#allocation2 + $0x148] sm:$0xff]
    %v1483 = vld [vmem:[#allocation2 + $0x150] sm:$0xff]
    %v1484 = vld [vmem:[#allocation2 + $0x158] sm:$0xff]
    %v1485 = vld [vmem:[#allocation2 + $0x160] sm:$0xff]
    %v1486 = vld [vmem:[#allocation2 + $0x168] sm:$0xff]
    %v1487 = vld [vmem:[#allocation2 + $0x170] sm:$0xff]
    %v1488 = vld [vmem:[#allocation2 + $0x178] sm:$0xff]
    %v1489 = vld [vmem:[#allocation2 + $0x180] sm:$0xff]
    %v1490 = vld [vmem:[#allocation2 + $0x188] sm:$0xff]
    %v1491 = vld [vmem:[#allocation2 + $0x190] sm:$0xff]
    %v1492 = vld [vmem:[#allocation2 + $0x198] sm:$0xff]
    %v1493 = vld [vmem:[#allocation2 + $0x1a0] sm:$0xff]
    %v1494 = vld [vmem:[#allocation2 + $0x1a8] sm:$0xff]
    %v1495 = vld [vmem:[#allocation2 + $0x1b0] sm:$0xff]
    %v1496 = vld [vmem:[#allocation2 + $0x1b8] sm:$0xff]
    %v1497 = vld [vmem:[#allocation2 + $0x1c0] sm:$0xff]
    %v1498 = vld [vmem:[#allocation2 + $0x1c8] sm:$0xff]
    %v1499 = vld [vmem:[#allocation2 + $0x1d0] sm:$0xff]
    %v1500 = vld [vmem:[#allocation2 + $0x1d8] sm:$0xff]
    %v1501 = vld [vmem:[#allocation2 + $0x1e0] sm:$0xff]
    %v1502 = vld [vmem:[#allocation2 + $0x1e8] sm:$0xff]
    %v1503 = vld [vmem:[#allocation2 + $0x1f0] sm:$0xff]
    %v1504 = vld [vmem:[#allocation2 + $0x1f8] sm:$0xff]
    %v1505 = vld [vmem:[#allocation2 + $0x200] sm:$0xff]
    %v1506 = vld [vmem:[#allocation2 + $0x208] sm:$0xff]
    %v1507 = vld [vmem:[#allocation2 + $0x210] sm:$0xff]
    %v1508 = vld [vmem:[#allocation2 + $0x218] sm:$0xff]
    %v1509 = vld [vmem:[#allocation2 + $0x220] sm:$0xff]
    %v1510 = vld [vmem:[#allocation2 + $0x228] sm:$0xff]
    %v1511 = vld [vmem:[#allocation2 + $0x230] sm:$0xff]
    %v1512 = vld [vmem:[#allocation2 + $0x238] sm:$0xff]
    %v1513 = vld [vmem:[#allocation2 + $0x240] sm:$0xff]
    %v1514 = vld [vmem:[#allocation2 + $0x248] sm:$0xff]
    %v1515 = vld [vmem:[#allocation2 + $0x250] sm:$0xff]
    %v1516 = vld [vmem:[#allocation2 + $0x258] sm:$0xff]
    %v1517 = vld [vmem:[#allocation2 + $0x260] sm:$0xff]
    %v1518 = vld [vmem:[#allocation2 + $0x268] sm:$0xff]
    %v1519 = vld [vmem:[#allocation2 + $0x270] sm:$0xff]
    %v1520 = vld [vmem:[#allocation2 + $0x278] sm:$0xff]
    %v1521 = vld [vmem:[#allocation2 + $0x280] sm:$0xff]
    %v1522 = vld [vmem:[#allocation2 + $0x288] sm:$0xff]
    %v1523 = vld [vmem:[#allocation2 + $0x290] sm:$0xff]
    %v1524 = vld [vmem:[#allocation2 + $0x298] sm:$0xff]
    %v1525 = vld [vmem:[#allocation2 + $0x2a0] sm:$0xff]
    %v1526 = vld [vmem:[#allocation2 + $0x2a8] sm:$0xff]
    %v1527 = vld [vmem:[#allocation2 + $0x2b0] sm:$0xff]
    %v1528 = vld [vmem:[#allocation2 + $0x2b8] sm:$0xff]
    %v1529 = vld [vmem:[#allocation2 + $0x2c0] sm:$0xff]
    %v1530 = vld [vmem:[#allocation2 + $0x2c8] sm:$0xff]
    %v1531 = vld [vmem:[#allocation2 + $0x2d0] sm:$0xff]
    %v1532 = vld [vmem:[#allocation2 + $0x2d8] sm:$0xff]
    %v1533 = vld [vmem:[#allocation2 + $0x2e0] sm:$0xff]
    %v1534 = vld [vmem:[#allocation2 + $0x2e8] sm:$0xff]
    %v1535 = vld [vmem:[#allocation2 + $0x2f0] sm:$0xff]
    %v1536 = vld [vmem:[#allocation2 + $0x2f8] sm:$0xff]
    %1537 = vmatprep.subr.mxu0 %v1442
    %1538 = vmatpush1.msra.mxu0 %v1441
    %1539 = vmatprep.subr.mxu0 %v1448
    %1540 = vmatpush1.msra.mxu0 %v1447
    %1541 = vmatprep.subr.mxu0 %v1454
    %1542 = vmatpush1.msra.mxu0 %v1453
    %1543 = vmatprep.subr.mxu0 %v1460
    %1544 = vmatpush1.msra.mxu0 %v1459
    %1545 = vmatprep.subr.mxu0 %v1466
    %1546 = vmatpush1.msra.mxu0 %v1465
    %1547 = vmatprep.subr.mxu0 %v1472
    %1548 = vmatpush1.msra.mxu0 %v1471
    %1549 = vmatprep.subr.mxu0 %v1478
    %1550 = vmatpush1.msra.mxu0 %v1477
    %1551 = vmatprep.subr.mxu0 %v1484
    %1552 = vmatpush1.msra.mxu0 %v1483
    %1553 = vmatprep.subr.mxu0 %v1490
    %1554 = vmatpush1.msra.mxu0 %v1489
    %1555 = vmatprep.subr.mxu0 %v1496
    %1556 = vmatpush1.msra.mxu0 %v1495
    %1557 = vmatprep.subr.mxu0 %v1502
    %1558 = vmatpush1.msra.mxu0 %v1501
    %1559 = vmatprep.subr.mxu0 %v1508
    %1560 = vmatpush1.msra.mxu0 %v1507
    %1561 = vmatprep.subr.mxu0 %v1514
    %1562 = vmatpush1.msra.mxu0 %v1513
    %1563 = vmatprep.subr.mxu0 %v1520
    %1564 = vmatpush1.msra.mxu0 %v1519
    %1565 = vmatprep.subr.mxu0 %v1526
    %1566 = vmatpush1.msra.mxu0 %v1525
    %1567 = vmatprep.subr.mxu0 %v1532
    %1568 = vmatpush1.msra.mxu0 %v1531
    %1569 = vmatprep.subr.mxu0 0.0
    %1570 = vmatpush1.msra.mxu0 0.0
    %1571 = vmatprep.subr.mxu0 0.0
    %1572 = vmatpush1.msra.mxu0 0.0
    %1573 = vmatprep.subr.mxu0 0.0
    %1574 = vmatpush1.msra.mxu0 0.0
    %1575 = vmatprep.subr.mxu0 0.0
    %1576 = vmatpush1.msra.mxu0 0.0
    %1577 = vmatprep.subr.mxu0 0.0
    %1578 = vmatpush1.msra.mxu0 0.0
    %1579 = vmatprep.subr.mxu0 0.0
    %1580 = vmatpush1.msra.mxu0 0.0
    %1581 = vmatprep.subr.mxu0 0.0
    %1582 = vmatpush1.msra.mxu0 0.0
    %1583 = vmatprep.subr.mxu0 0.0
    %1584 = vmatpush1.msra.mxu0 0.0
    %1585 = vmatprep.subr.mxu0 0.0
    %1586 = vmatpush1.msra.mxu0 0.0
    %1587 = vmatprep.subr.mxu0 0.0
    %1588 = vmatpush1.msra.mxu0 0.0
    %1589 = vmatprep.subr.mxu0 0.0
    %1590 = vmatpush1.msra.mxu0 0.0
    %1591 = vmatprep.subr.mxu0 0.0
    %1592 = vmatpush1.msra.mxu0 0.0
    %1593 = vmatprep.subr.mxu0 0.0
    %1594 = vmatpush1.msra.mxu0 0.0
    %1595 = vmatprep.subr.mxu0 0.0
    %1596 = vmatpush1.msra.mxu0 0.0
    %1597 = vmatprep.subr.mxu0 0.0
    %1598 = vmatpush1.msra.mxu0 0.0
    %1599 = vmatprep.subr.mxu0 0.0
    %1600 = vmatpush1.msra.mxu0 0.0
    %1601 = vmatprep.mubr.f32.mxu0 0.0
    %1602 = vmatmul.mubr.f32.gmra.mrb[0].mxu0 %v1423
    %v1603 = vpop.f32.mrb[0].mxu0
    %v1604 = vadd.f32 0.0, %v1603
    %v1605 = vpop.f32.mrb[0].mxu0
    %v1606 = vadd.f32 0.0, %v1605
    %1607 = vmatprep.mubr.f32.mxu0 0.0
    %1608 = vmatmul.mubr.f32.gmra.mrb[0].mxu0 %v1424
    %v1609 = vpop.f32.mrb[0].mxu0
    %v1610 = vadd.f32 0.0, %v1609
    %v1611 = vpop.f32.mrb[0].mxu0
    %v1612 = vadd.f32 0.0, %v1611
    %1613 = vmatprep.mubr.f32.mxu0 0.0
    %1614 = vmatmul.mubr.f32.gmra.mrb[0].mxu0 %v1425
    %v1615 = vpop.f32.mrb[0].mxu0
    %v1616 = vadd.f32 0.0, %v1615
    %v1617 = vpop.f32.mrb[0].mxu0
    %v1618 = vadd.f32 0.0, %v1617
    %1619 = vmatprep.mubr.f32.mxu0 0.0
    %1620 = vmatmul.mubr.f32.gmra.mrb[0].mxu0 %v1426
    %v1621 = vpop.f32.mrb[0].mxu0
    %v1622 = vadd.f32 0.0, %v1621
    %v1623 = vpop.f32.mrb[0].mxu0
    %v1624 = vadd.f32 0.0, %v1623
    %1625 = vmatprep.mubr.f32.mxu0 0.0
    %1626 = vmatmul.mubr.f32.gmra.mrb[0].mxu0 %v1427
    %v1627 = vpop.f32.mrb[0].mxu0
    %v1628 = vadd.f32 0.0, %v1627
    %v1629 = vpop.f32.mrb[0].mxu0
    %v1630 = vadd.f32 0.0, %v1629
    %1631 = vmatprep.mubr.f32.mxu0 0.0
    %1632 = vmatmul.mubr.f32.gmra.mrb[0].mxu0 %v1428
    %v1633 = vpop.f32.mrb[0].mxu0
    %v1634 = vadd.f32 0.0, %v1633
    %v1635 = vpop.f32.mrb[0].mxu0
    %v1636 = vadd.f32 0.0, %v1635
    %1637 = vmatprep.mubr.f32.mxu0 0.0
    %1638 = vmatmul.mubr.f32.gmra.mrb[0].mxu0 %v1429
    %v1639 = vpop.f32.mrb[0].mxu0
    %v1640 = vadd.f32 0.0, %v1639
    %v1641 = vpop.f32.mrb[0].mxu0
    %v1642 = vadd.f32 0.0, %v1641
    %1643 = vmatprep.mubr.f32.mxu0 0.0
    %1644 = vmatmul.mubr.f32.gmra.mrb[0].mxu0 %v1430
    %v1645 = vpop.f32.mrb[0].mxu0
    %v1646 = vadd.f32 0.0, %v1645
    %v1647 = vpop.f32.mrb[0].mxu0
    %v1648 = vadd.f32 0.0, %v1647
    %1649 = vmatprep.mubr.f32.mxu0 0.0
    %1650 = vmatmul.mubr.f32.gmra.mrb[0].mxu0 %v1431
    %v1651 = vpop.f32.mrb[0].mxu0
    %v1652 = vadd.f32 0.0, %v1651
    %v1653 = vpop.f32.mrb[0].mxu0
    %v1654 = vadd.f32 0.0, %v1653
    %1655 = vmatprep.mubr.f32.mxu0 0.0
    %1656 = vmatmul.mubr.f32.gmra.mrb[0].mxu0 %v1432
    %v1657 = vpop.f32.mrb[0].mxu0
    %v1658 = vadd.f32 0.0, %v1657
    %v1659 = vpop.f32.mrb[0].mxu0
    %v1660 = vadd.f32 0.0, %v1659
    %1661 = vmatprep.mubr.f32.mxu0 0.0
    %1662 = vmatmul.mubr.f32.gmra.mrb[0].mxu0 %v1433
    %v1663 = vpop.f32.mrb[0].mxu0
    %v1664 = vadd.f32 0.0, %v1663
    %v1665 = vpop.f32.mrb[0].mxu0
    %v1666 = vadd.f32 0.0, %v1665
    %1667 = vmatprep.mubr.f32.mxu0 0.0
    %1668 = vmatmul.mubr.f32.gmra.mrb[0].mxu0 %v1434
    %v1669 = vpop.f32.mrb[0].mxu0
    %v1670 = vadd.f32 0.0, %v1669
    %v1671 = vpop.f32.mrb[0].mxu0
    %v1672 = vadd.f32 0.0, %v1671
    %1673 = vmatprep.mubr.f32.mxu0 0.0
    %1674 = vmatmul.mubr.f32.gmra.mrb[0].mxu0 %v1435
    %v1675 = vpop.f32.mrb[0].mxu0
    %v1676 = vadd.f32 0.0, %v1675
    %v1677 = vpop.f32.mrb[0].mxu0
    %v1678 = vadd.f32 0.0, %v1677
    %1679 = vmatprep.mubr.f32.mxu0 0.0
    %1680 = vmatmul.mubr.f32.gmra.mrb[0].mxu0 %v1436
    %v1681 = vpop.f32.mrb[0].mxu0
    %v1682 = vadd.f32 0.0, %v1681
    %v1683 = vpop.f32.mrb[0].mxu0
    %v1684 = vadd.f32 0.0, %v1683
    %1685 = vmatprep.mubr.f32.mxu0 0.0
    %1686 = vmatmul.mubr.f32.gmra.mrb[0].mxu0 %v1437
    %v1687 = vpop.f32.mrb[0].mxu0
    %v1688 = vadd.f32 0.0, %v1687
    %v1689 = vpop.f32.mrb[0].mxu0
    %v1690 = vadd.f32 0.0, %v1689
    %1691 = vmatprep.mubr.f32.mxu0 0.0
    %1692 = vmatmul.mubr.f32.gmra.mrb[0].mxu0 %v1438
    %v1693 = vpop.f32.mrb[0].mxu0
    %v1694 = vadd.f32 0.0, %v1693
    %v1695 = vpop.f32.mrb[0].mxu0
    %v1696 = vadd.f32 0.0, %v1695
    %1697 = vmatprep.mubr.f32.mxu0 0.0
    %1698 = vmatmul.mubr.f32.gmra.mrb[0].mxu0 %v1439
    %v1699 = vpop.f32.mrb[0].mxu0
    %v1700 = vadd.f32 0.0, %v1699
    %v1701 = vpop.f32.mrb[0].mxu0
    %v1702 = vadd.f32 0.0, %v1701
    %1703 = vmatprep.mubr.f32.mxu0 0.0
    %1704 = vmatmul.mubr.f32.gmra.mrb[0].mxu0 %v1440
    %v1705 = vpop.f32.mrb[0].mxu0
    %v1706 = vadd.f32 0.0, %v1705
    %v1707 = vpop.f32.mrb[0].mxu0
    %v1708 = vadd.f32 0.0, %v1707
    %1709 = vdwg.mxu0
    %1710 = vmatprep.subr.mxu0 %v1444
    %1711 = vmatpush1.msra.mxu0 %v1443
    %1712 = vmatprep.subr.mxu0 %v1450
    %1713 = vmatpush1.msra.mxu0 %v1449
    %1714 = vmatprep.subr.mxu0 %v1456
    %1715 = vmatpush1.msra.mxu0 %v1455
    %1716 = vmatprep.subr.mxu0 %v1462
    %1717 = vmatpush1.msra.mxu0 %v1461
    %1718 = vmatprep.subr.mxu0 %v1468
    %1719 = vmatpush1.msra.mxu0 %v1467
    %1720 = vmatprep.subr.mxu0 %v1474
    %1721 = vmatpush1.msra.mxu0 %v1473
    %1722 = vmatprep.subr.mxu0 %v1480
    %1723 = vmatpush1.msra.mxu0 %v1479
    %1724 = vmatprep.subr.mxu0 %v1486
    %1725 = vmatpush1.msra.mxu0 %v1485
    %1726 = vmatprep.subr.mxu0 %v1492
    %1727 = vmatpush1.msra.mxu0 %v1491
    %1728 = vmatprep.subr.mxu0 %v1498
    %1729 = vmatpush1.msra.mxu0 %v1497
    %1730 = vmatprep.subr.mxu0 %v1504
    %1731 = vmatpush1.msra.mxu0 %v1503
    %1732 = vmatprep.subr.mxu0 %v1510
    %1733 = vmatpush1.msra.mxu0 %v1509
    %1734 = vmatprep.subr.mxu0 %v1516
    %1735 = vmatpush1.msra.mxu0 %v1515
    %1736 = vmatprep.subr.mxu0 %v1522
    %1737 = vmatpush1.msra.mxu0 %v1521
    %1738 = vmatprep.subr.mxu0 %v1528
    %1739 = vmatpush1.msra.mxu0 %v1527
    %1740 = vmatprep.subr.mxu0 %v1534
    %1741 = vmatpush1.msra.mxu0 %v1533
    %1742 = vmatprep.subr.mxu0 0.0
    %1743 = vmatpush1.msra.mxu0 0.0
    %1744 = vmatprep.subr.mxu0 0.0
    %1745 = vmatpush1.msra.mxu0 0.0
    %1746 = vmatprep.subr.mxu0 0.0
    %1747 = vmatpush1.msra.mxu0 0.0
    %1748 = vmatprep.subr.mxu0 0.0
    %1749 = vmatpush1.msra.mxu0 0.0
    %1750 = vmatprep.subr.mxu0 0.0
    %1751 = vmatpush1.msra.mxu0 0.0
    %1752 = vmatprep.subr.mxu0 0.0
    %1753 = vmatpush1.msra.mxu0 0.0
    %1754 = vmatprep.subr.mxu0 0.0
    %1755 = vmatpush1.msra.mxu0 0.0
    %1756 = vmatprep.subr.mxu0 0.0
    %1757 = vmatpush1.msra.mxu0 0.0
    %1758 = vmatprep.subr.mxu0 0.0
    %1759 = vmatpush1.msra.mxu0 0.0
    %1760 = vmatprep.subr.mxu0 0.0
    %1761 = vmatpush1.msra.mxu0 0.0
    %1762 = vmatprep.subr.mxu0 0.0
    %1763 = vmatpush1.msra.mxu0 0.0
    %1764 = vmatprep.subr.mxu0 0.0
    %1765 = vmatpush1.msra.mxu0 0.0
    %1766 = vmatprep.subr.mxu0 0.0
    %1767 = vmatpush1.msra.mxu0 0.0
    %1768 = vmatprep.subr.mxu0 0.0
    %1769 = vmatpush1.msra.mxu0 0.0
    %1770 = vmatprep.subr.mxu0 0.0
    %1771 = vmatpush1.msra.mxu0 0.0
    %1772 = vmatprep.subr.mxu0 0.0
    %1773 = vmatpush1.msra.mxu0 0.0
    %1774 = vmatprep.mubr.f32.mxu0 0.0
    %1775 = vmatmul.mubr.f32.gmra.mrb[0].mxu0 %v1423
    %v1776 = vpop.f32.mrb[0].mxu0
    %v1777 = vadd.f32 0.0, %v1776
    %v1778 = vpop.f32.mrb[0].mxu0
    %v1779 = vadd.f32 0.0, %v1778
    %1780 = vmatprep.mubr.f32.mxu0 0.0
    %1781 = vmatmul.mubr.f32.gmra.mrb[0].mxu0 %v1424
    %v1782 = vpop.f32.mrb[0].mxu0
    %v1783 = vadd.f32 0.0, %v1782
    %v1784 = vpop.f32.mrb[0].mxu0
    %v1785 = vadd.f32 0.0, %v1784
    %1786 = vmatprep.mubr.f32.mxu0 0.0
    %1787 = vmatmul.mubr.f32.gmra.mrb[0].mxu0 %v1425
    %v1788 = vpop.f32.mrb[0].mxu0
    %v1789 = vadd.f32 0.0, %v1788
    %v1790 = vpop.f32.mrb[0].mxu0
    %v1791 = vadd.f32 0.0, %v1790
    %1792 = vmatprep.mubr.f32.mxu0 0.0
    %1793 = vmatmul.mubr.f32.gmra.mrb[0].mxu0 %v1426
    %v1794 = vpop.f32.mrb[0].mxu0
    %v1795 = vadd.f32 0.0, %v1794
    %v1796 = vpop.f32.mrb[0].mxu0
    %v1797 = vadd.f32 0.0, %v1796
    %1798 = vmatprep.mubr.f32.mxu0 0.0
    %1799 = vmatmul.mubr.f32.gmra.mrb[0].mxu0 %v1427
    %v1800 = vpop.f32.mrb[0].mxu0
    %v1801 = vadd.f32 0.0, %v1800
    %v1802 = vpop.f32.mrb[0].mxu0
    %v1803 = vadd.f32 0.0, %v1802
    %1804 = vmatprep.mubr.f32.mxu0 0.0
    %1805 = vmatmul.mubr.f32.gmra.mrb[0].mxu0 %v1428
    %v1806 = vpop.f32.mrb[0].mxu0
    %v1807 = vadd.f32 0.0, %v1806
    %v1808 = vpop.f32.mrb[0].mxu0
    %v1809 = vadd.f32 0.0, %v1808
    %1810 = vmatprep.mubr.f32.mxu0 0.0
    %1811 = vmatmul.mubr.f32.gmra.mrb[0].mxu0 %v1429
    %v1812 = vpop.f32.mrb[0].mxu0
    %v1813 = vadd.f32 0.0, %v1812
    %v1814 = vpop.f32.mrb[0].mxu0
    %v1815 = vadd.f32 0.0, %v1814
    %1816 = vmatprep.mubr.f32.mxu0 0.0
    %1817 = vmatmul.mubr.f32.gmra.mrb[0].mxu0 %v1430
    %v1818 = vpop.f32.mrb[0].mxu0
    %v1819 = vadd.f32 0.0, %v1818
    %v1820 = vpop.f32.mrb[0].mxu0
    %v1821 = vadd.f32 0.0, %v1820
    %1822 = vmatprep.mubr.f32.mxu0 0.0
    %1823 = vmatmul.mubr.f32.gmra.mrb[0].mxu0 %v1431
    %v1824 = vpop.f32.mrb[0].mxu0
    %v1825 = vadd.f32 0.0, %v1824
    %v1826 = vpop.f32.mrb[0].mxu0
    %v1827 = vadd.f32 0.0, %v1826
    %1828 = vmatprep.mubr.f32.mxu0 0.0
    %1829 = vmatmul.mubr.f32.gmra.mrb[0].mxu0 %v1432
    %v1830 = vpop.f32.mrb[0].mxu0
    %v1831 = vadd.f32 0.0, %v1830
    %v1832 = vpop.f32.mrb[0].mxu0
    %v1833 = vadd.f32 0.0, %v1832
    %1834 = vmatprep.mubr.f32.mxu0 0.0
    %1835 = vmatmul.mubr.f32.gmra.mrb[0].mxu0 %v1433
    %v1836 = vpop.f32.mrb[0].mxu0
    %v1837 = vadd.f32 0.0, %v1836
    %v1838 = vpop.f32.mrb[0].mxu0
    %v1839 = vadd.f32 0.0, %v1838
    %1840 = vmatprep.mubr.f32.mxu0 0.0
    %1841 = vmatmul.mubr.f32.gmra.mrb[0].mxu0 %v1434
    %v1842 = vpop.f32.mrb[0].mxu0
    %v1843 = vadd.f32 0.0, %v1842
    %v1844 = vpop.f32.mrb[0].mxu0
    %v1845 = vadd.f32 0.0, %v1844
    %1846 = vmatprep.mubr.f32.mxu0 0.0
    %1847 = vmatmul.mubr.f32.gmra.mrb[0].mxu0 %v1435
    %v1848 = vpop.f32.mrb[0].mxu0
    %v1849 = vadd.f32 0.0, %v1848
    %v1850 = vpop.f32.mrb[0].mxu0
    %v1851 = vadd.f32 0.0, %v1850
    %1852 = vmatprep.mubr.f32.mxu0 0.0
    %1853 = vmatmul.mubr.f32.gmra.mrb[0].mxu0 %v1436
    %v1854 = vpop.f32.mrb[0].mxu0
    %v1855 = vadd.f32 0.0, %v1854
    %v1856 = vpop.f32.mrb[0].mxu0
    %v1857 = vadd.f32 0.0, %v1856
    %1858 = vmatprep.mubr.f32.mxu0 0.0
    %1859 = vmatmul.mubr.f32.gmra.mrb[0].mxu0 %v1437
    %v1860 = vpop.f32.mrb[0].mxu0
    %v1861 = vadd.f32 0.0, %v1860
    %v1862 = vpop.f32.mrb[0].mxu0
    %v1863 = vadd.f32 0.0, %v1862
    %1864 = vmatprep.mubr.f32.mxu0 0.0
    %1865 = vmatmul.mubr.f32.gmra.mrb[0].mxu0 %v1438
    %v1866 = vpop.f32.mrb[0].mxu0
    %v1867 = vadd.f32 0.0, %v1866
    %v1868 = vpop.f32.mrb[0].mxu0
    %v1869 = vadd.f32 0.0, %v1868
    %1870 = vmatprep.mubr.f32.mxu0 0.0
    %1871 = vmatmul.mubr.f32.gmra.mrb[0].mxu0 %v1439
    %v1872 = vpop.f32.mrb[0].mxu0
    %v1873 = vadd.f32 0.0, %v1872
    %v1874 = vpop.f32.mrb[0].mxu0
    %v1875 = vadd.f32 0.0, %v1874
    %1876 = vmatprep.mubr.f32.mxu0 0.0
    %1877 = vmatmul.mubr.f32.gmra.mrb[0].mxu0 %v1440
    %v1878 = vpop.f32.mrb[0].mxu0
    %v1879 = vadd.f32 0.0, %v1878
    %v1880 = vpop.f32.mrb[0].mxu0
    %v1881 = vadd.f32 0.0, %v1880
    %1882 = vdwg.mxu0
    %1883 = vmatprep.subr.mxu0 %v1446
    %1884 = vmatpush1.msra.mxu0 %v1445
    %1885 = vmatprep.subr.mxu0 %v1452
    %1886 = vmatpush1.msra.mxu0 %v1451
    %1887 = vmatprep.subr.mxu0 %v1458
    %1888 = vmatpush1.msra.mxu0 %v1457
    %1889 = vmatprep.subr.mxu0 %v1464
    %1890 = vmatpush1.msra.mxu0 %v1463
    %1891 = vmatprep.subr.mxu0 %v1470
    %1892 = vmatpush1.msra.mxu0 %v1469
    %1893 = vmatprep.subr.mxu0 %v1476
    %1894 = vmatpush1.msra.mxu0 %v1475
    %1895 = vmatprep.subr.mxu0 %v1482
    %1896 = vmatpush1.msra.mxu0 %v1481
    %1897 = vmatprep.subr.mxu0 %v1488
    %1898 = vmatpush1.msra.mxu0 %v1487
    %1899 = vmatprep.subr.mxu0 %v1494
    %1900 = vmatpush1.msra.mxu0 %v1493
    %1901 = vmatprep.subr.mxu0 %v1500
    %1902 = vmatpush1.msra.mxu0 %v1499
    %1903 = vmatprep.subr.mxu0 %v1506
    %1904 = vmatpush1.msra.mxu0 %v1505
    %1905 = vmatprep.subr.mxu0 %v1512
    %1906 = vmatpush1.msra.mxu0 %v1511
    %1907 = vmatprep.subr.mxu0 %v1518
    %1908 = vmatpush1.msra.mxu0 %v1517
    %1909 = vmatprep.subr.mxu0 %v1524
    %1910 = vmatpush1.msra.mxu0 %v1523
    %1911 = vmatprep.subr.mxu0 %v1530
    %1912 = vmatpush1.msra.mxu0 %v1529
    %1913 = vmatprep.subr.mxu0 %v1536
    %1914 = vmatpush1.msra.mxu0 %v1535
    %1915 = vmatprep.subr.mxu0 0.0
    %1916 = vmatpush1.msra.mxu0 0.0
    %1917 = vmatprep.subr.mxu0 0.0
    %1918 = vmatpush1.msra.mxu0 0.0
    %1919 = vmatprep.subr.mxu0 0.0
    %1920 = vmatpush1.msra.mxu0 0.0
    %1921 = vmatprep.subr.mxu0 0.0
    %1922 = vmatpush1.msra.mxu0 0.0
    %1923 = vmatprep.subr.mxu0 0.0
    %1924 = vmatpush1.msra.mxu0 0.0
    %1925 = vmatprep.subr.mxu0 0.0
    %1926 = vmatpush1.msra.mxu0 0.0
    %1927 = vmatprep.subr.mxu0 0.0
    %1928 = vmatpush1.msra.mxu0 0.0
    %1929 = vmatprep.subr.mxu0 0.0
    %1930 = vmatpush1.msra.mxu0 0.0
    %1931 = vmatprep.subr.mxu0 0.0
    %1932 = vmatpush1.msra.mxu0 0.0
    %1933 = vmatprep.subr.mxu0 0.0
    %1934 = vmatpush1.msra.mxu0 0.0
    %1935 = vmatprep.subr.mxu0 0.0
    %1936 = vmatpush1.msra.mxu0 0.0
    %1937 = vmatprep.subr.mxu0 0.0
    %1938 = vmatpush1.msra.mxu0 0.0
    %1939 = vmatprep.subr.mxu0 0.0
    %1940 = vmatpush1.msra.mxu0 0.0
    %1941 = vmatprep.subr.mxu0 0.0
    %1942 = vmatpush1.msra.mxu0 0.0
    %1943 = vmatprep.subr.mxu0 0.0
    %1944 = vmatpush1.msra.mxu0 0.0
    %1945 = vmatprep.subr.mxu0 0.0
    %1946 = vmatpush1.msra.mxu0 0.0
    %1947 = vmatprep.mubr.f32.mxu0 0.0
    %1948 = vmatmul.mubr.f32.gmra.mrb[0].mxu0 %v1423
    %v1949 = vpop.f32.mrb[0].mxu0
    %v1950 = vadd.f32 0.0, %v1949
    %v1951 = vpop.f32.mrb[0].mxu0
    %v1952 = vadd.f32 0.0, %v1951
    %1953 = vmatprep.mubr.f32.mxu0 0.0
    %1954 = vmatmul.mubr.f32.gmra.mrb[0].mxu0 %v1424
    %v1955 = vpop.f32.mrb[0].mxu0
    %v1956 = vadd.f32 0.0, %v1955
    %v1957 = vpop.f32.mrb[0].mxu0
    %v1958 = vadd.f32 0.0, %v1957
    %1959 = vmatprep.mubr.f32.mxu0 0.0
    %1960 = vmatmul.mubr.f32.gmra.mrb[0].mxu0 %v1425
    %v1961 = vpop.f32.mrb[0].mxu0
    %v1962 = vadd.f32 0.0, %v1961
    %v1963 = vpop.f32.mrb[0].mxu0
    %v1964 = vadd.f32 0.0, %v1963
    %1965 = vmatprep.mubr.f32.mxu0 0.0
    %1966 = vmatmul.mubr.f32.gmra.mrb[0].mxu0 %v1426
    %v1967 = vpop.f32.mrb[0].mxu0
    %v1968 = vadd.f32 0.0, %v1967
    %v1969 = vpop.f32.mrb[0].mxu0
    %v1970 = vadd.f32 0.0, %v1969
    %1971 = vmatprep.mubr.f32.mxu0 0.0
    %1972 = vmatmul.mubr.f32.gmra.mrb[0].mxu0 %v1427
    %v1973 = vpop.f32.mrb[0].mxu0
    %v1974 = vadd.f32 0.0, %v1973
    %v1975 = vpop.f32.mrb[0].mxu0
    %v1976 = vadd.f32 0.0, %v1975
    %1977 = vmatprep.mubr.f32.mxu0 0.0
    %1978 = vmatmul.mubr.f32.gmra.mrb[0].mxu0 %v1428
    %v1979 = vpop.f32.mrb[0].mxu0
    %v1980 = vadd.f32 0.0, %v1979
    %v1981 = vpop.f32.mrb[0].mxu0
    %v1982 = vadd.f32 0.0, %v1981
    %1983 = vmatprep.mubr.f32.mxu0 0.0
    %1984 = vmatmul.mubr.f32.gmra.mrb[0].mxu0 %v1429
    %v1985 = vpop.f32.mrb[0].mxu0
    %v1986 = vadd.f32 0.0, %v1985
    %v1987 = vpop.f32.mrb[0].mxu0
    %v1988 = vadd.f32 0.0, %v1987
    %1989 = vmatprep.mubr.f32.mxu0 0.0
    %1990 = vmatmul.mubr.f32.gmra.mrb[0].mxu0 %v1430
    %v1991 = vpop.f32.mrb[0].mxu0
    %v1992 = vadd.f32 0.0, %v1991
    %v1993 = vpop.f32.mrb[0].mxu0
    %v1994 = vadd.f32 0.0, %v1993
    %1995 = vmatprep.mubr.f32.mxu0 0.0
    %1996 = vmatmul.mubr.f32.gmra.mrb[0].mxu0 %v1431
    %v1997 = vpop.f32.mrb[0].mxu0
    %v1998 = vadd.f32 0.0, %v1997
    %v1999 = vpop.f32.mrb[0].mxu0
    %v2000 = vadd.f32 0.0, %v1999
    %2001 = vmatprep.mubr.f32.mxu0 0.0
    %2002 = vmatmul.mubr.f32.gmra.mrb[0].mxu0 %v1432
    %v2003 = vpop.f32.mrb[0].mxu0
    %v2004 = vadd.f32 0.0, %v2003
    %v2005 = vpop.f32.mrb[0].mxu0
    %v2006 = vadd.f32 0.0, %v2005
    %2007 = vmatprep.mubr.f32.mxu0 0.0
    %2008 = vmatmul.mubr.f32.gmra.mrb[0].mxu0 %v1433
    %v2009 = vpop.f32.mrb[0].mxu0
    %v2010 = vadd.f32 0.0, %v2009
    %v2011 = vpop.f32.mrb[0].mxu0
    %v2012 = vadd.f32 0.0, %v2011
    %2013 = vmatprep.mubr.f32.mxu0 0.0
    %2014 = vmatmul.mubr.f32.gmra.mrb[0].mxu0 %v1434
    %v2015 = vpop.f32.mrb[0].mxu0
    %v2016 = vadd.f32 0.0, %v2015
    %v2017 = vpop.f32.mrb[0].mxu0
    %v2018 = vadd.f32 0.0, %v2017
    %2019 = vmatprep.mubr.f32.mxu0 0.0
    %2020 = vmatmul.mubr.f32.gmra.mrb[0].mxu0 %v1435
    %v2021 = vpop.f32.mrb[0].mxu0
    %v2022 = vadd.f32 0.0, %v2021
    %v2023 = vpop.f32.mrb[0].mxu0
    %v2024 = vadd.f32 0.0, %v2023
    %2025 = vmatprep.mubr.f32.mxu0 0.0
    %2026 = vmatmul.mubr.f32.gmra.mrb[0].mxu0 %v1436
    %v2027 = vpop.f32.mrb[0].mxu0
    %v2028 = vadd.f32 0.0, %v2027
    %v2029 = vpop.f32.mrb[0].mxu0
    %v2030 = vadd.f32 0.0, %v2029
    %2031 = vmatprep.mubr.f32.mxu0 0.0
    %2032 = vmatmul.mubr.f32.gmra.mrb[0].mxu0 %v1437
    %v2033 = vpop.f32.mrb[0].mxu0
    %v2034 = vadd.f32 0.0, %v2033
    %v2035 = vpop.f32.mrb[0].mxu0
    %v2036 = vadd.f32 0.0, %v2035
    %2037 = vmatprep.mubr.f32.mxu0 0.0
    %2038 = vmatmul.mubr.f32.gmra.mrb[0].mxu0 %v1438
    %v2039 = vpop.f32.mrb[0].mxu0
    %v2040 = vadd.f32 0.0, %v2039
    %v2041 = vpop.f32.mrb[0].mxu0
    %v2042 = vadd.f32 0.0, %v2041
    %2043 = vmatprep.mubr.f32.mxu0 0.0
    %2044 = vmatmul.mubr.f32.gmra.mrb[0].mxu0 %v1439
    %v2045 = vpop.f32.mrb[0].mxu0
    %v2046 = vadd.f32 0.0, %v2045
    %v2047 = vpop.f32.mrb[0].mxu0
    %v2048 = vadd.f32 0.0, %v2047
    %2049 = vmatprep.mubr.f32.mxu0 0.0
    %2050 = vmatmul.mubr.f32.gmra.mrb[0].mxu0 %v1440
    %v2051 = vpop.f32.mrb[0].mxu0
    %v2052 = vadd.f32 0.0, %v2051
    %v2053 = vpop.f32.mrb[0].mxu0
    %v2054 = vadd.f32 0.0, %v2053
    %2055 = vdwg.mxu0
    %2056 = vrot.lane.b32.xlu0 %v1604, 17
    %v2057 = vpop.permute.xlu0 %2056
    %2058 = vrot.lane.b32.xlu0 %v1610, 17
    %v2059 = vpop.permute.xlu0 %2058
    %2060 = vrot.lane.b32.xlu0 %v1606, 17
    %v2061 = vpop.permute.xlu0 %2060
    %2062 = vrot.lane.b32.xlu0 %v1612, 17
    %v2063 = vpop.permute.xlu0 %2062
    %2064 = vrot.lane.b32.xlu0 %v1777, 17
    %v2065 = vpop.permute.xlu0 %2064
    %2066 = vrot.lane.b32.xlu0 %v1783, 17
    %v2067 = vpop.permute.xlu0 %2066
    %2068 = vrot.lane.b32.xlu0 %v1779, 17
    %v2069 = vpop.permute.xlu0 %2068
    %2070 = vrot.lane.b32.xlu0 %v1785, 17
    %v2071 = vpop.permute.xlu0 %2070
    %2072 = vrot.lane.b32.xlu0 %v1950, 17
    %v2073 = vpop.permute.xlu0 %2072
    %2074 = vrot.lane.b32.xlu0 %v1956, 17
    %v2075 = vpop.permute.xlu0 %2074
    %2076 = vrot.lane.b32.xlu0 %v1952, 17
    %v2077 = vpop.permute.xlu0 %2076
    %2078 = vrot.lane.b32.xlu0 %v1958, 17
    %v2079 = vpop.permute.xlu0 %2078
    %v2080 = vsel %vm829, %v2073, %v2077
    %v2081 = vsel %vm829, %v2075, %v2079
    %v2082 = vsel %vm829, %v2069, %v2073
    %v2083 = vsel %vm829, %v2071, %v2075
    %v2084 = vsel %vm829, %v2065, %v2069
    %v2085 = vsel %vm829, %v2067, %v2071
    %v2086 = vsel %vm829, %v2061, %v2065
    %v2087 = vsel %vm829, %v2063, %v2067
    %v2088 = vsel %vm829, %v2057, %v2061
    %v2089 = vsel %vm829, %v2059, %v2063
    %v2090 = vsel %vm829, %v2077, %v2057
    %v2091 = vsel %vm829, %v2079, %v2059
    %v2092 = vmul.f32 %v2090, %v846
    %v2093 = vmul.f32 %v2088, %v850
    %v2094 = vmul.f32 %v2086, %v854
    %v2095 = vmul.f32 %v2084, %v858
    %v2096 = vmul.f32 %v2082, %v862
    %v2097 = vmul.f32 %v2080, %v866
    %v2098 = vmul.f32 %v2091, %v846
    %v2099 = vmul.f32 %v2089, %v850
    %v2100 = vmul.f32 %v2087, %v854
    %v2101 = vmul.f32 %v2085, %v858
    %v2102 = vmul.f32 %v2083, %v862
    %v2103 = vmul.f32 %v2081, %v866
    %2104 = vrot.lane.b32.xlu0 %v1616, 16
    %v2105 = vpop.permute.xlu0 %2104
    %2106 = vrot.lane.b32.xlu0 %v1622, 16
    %v2107 = vpop.permute.xlu0 %2106
    %2108 = vrot.lane.b32.xlu0 %v1618, 16
    %v2109 = vpop.permute.xlu0 %2108
    %2110 = vrot.lane.b32.xlu0 %v1624, 16
    %v2111 = vpop.permute.xlu0 %2110
    %2112 = vrot.lane.b32.xlu0 %v1789, 16
    %v2113 = vpop.permute.xlu0 %2112
    %2114 = vrot.lane.b32.xlu0 %v1795, 16
    %v2115 = vpop.permute.xlu0 %2114
    %2116 = vrot.lane.b32.xlu0 %v1791, 16
    %v2117 = vpop.permute.xlu0 %2116
    %2118 = vrot.lane.b32.xlu0 %v1797, 16
    %v2119 = vpop.permute.xlu0 %2118
    %2120 = vrot.lane.b32.xlu0 %v1962, 16
    %v2121 = vpop.permute.xlu0 %2120
    %2122 = vrot.lane.b32.xlu0 %v1968, 16
    %v2123 = vpop.permute.xlu0 %2122
    %2124 = vrot.lane.b32.xlu0 %v1964, 16
    %v2125 = vpop.permute.xlu0 %2124
    %2126 = vrot.lane.b32.xlu0 %v1970, 16
    %v2127 = vpop.permute.xlu0 %2126
    %v2128 = vsel %vm909, %v2121, %v2125
    %v2129 = vsel %vm909, %v2123, %v2127
    %v2130 = vsel %vm909, %v2117, %v2121
    %v2131 = vsel %vm909, %v2119, %v2123
    %v2132 = vsel %vm909, %v2113, %v2117
    %v2133 = vsel %vm909, %v2115, %v2119
    %v2134 = vsel %vm909, %v2109, %v2113
    %v2135 = vsel %vm909, %v2111, %v2115
    %v2136 = vsel %vm909, %v2105, %v2109
    %v2137 = vsel %vm909, %v2107, %v2111
    %v2138 = vsel %vm909, %v2125, %v2105
    %v2139 = vsel %vm909, %v2127, %v2107
    %v2140 = vadd.f32 %v2092, %v2138
    %v2141 = vadd.f32 %v2093, %v2136
    %v2142 = vadd.f32 %v2094, %v2134
    %v2143 = vadd.f32 %v2095, %v2132
    %v2144 = vadd.f32 %v2096, %v2130
    %v2145 = vadd.f32 %v2097, %v2128
    %v2146 = vadd.f32 %v2098, %v2139
    %v2147 = vadd.f32 %v2099, %v2137
    %v2148 = vadd.f32 %v2100, %v2135
    %v2149 = vadd.f32 %v2101, %v2133
    %v2150 = vadd.f32 %v2102, %v2131
    %v2151 = vadd.f32 %v2103, %v2129
    %2152 = vrot.lane.b32.xlu0 %v1628, 15
    %v2153 = vpop.permute.xlu0 %2152
    %2154 = vrot.lane.b32.xlu0 %v1634, 15
    %v2155 = vpop.permute.xlu0 %2154
    %2156 = vrot.lane.b32.xlu0 %v1630, 15
    %v2157 = vpop.permute.xlu0 %2156
    %2158 = vrot.lane.b32.xlu0 %v1636, 15
    %v2159 = vpop.permute.xlu0 %2158
    %2160 = vrot.lane.b32.xlu0 %v1801, 15
    %v2161 = vpop.permute.xlu0 %2160
    %2162 = vrot.lane.b32.xlu0 %v1807, 15
    %v2163 = vpop.permute.xlu0 %2162
    %2164 = vrot.lane.b32.xlu0 %v1803, 15
    %v2165 = vpop.permute.xlu0 %2164
    %2166 = vrot.lane.b32.xlu0 %v1809, 15
    %v2167 = vpop.permute.xlu0 %2166
    %2168 = vrot.lane.b32.xlu0 %v1974, 15
    %v2169 = vpop.permute.xlu0 %2168
    %2170 = vrot.lane.b32.xlu0 %v1980, 15
    %v2171 = vpop.permute.xlu0 %2170
    %2172 = vrot.lane.b32.xlu0 %v1976, 15
    %v2173 = vpop.permute.xlu0 %2172
    %2174 = vrot.lane.b32.xlu0 %v1982, 15
    %v2175 = vpop.permute.xlu0 %2174
    %v2176 = vsel %vm958, %v2169, %v2173
    %v2177 = vsel %vm958, %v2171, %v2175
    %v2178 = vsel %vm958, %v2165, %v2169
    %v2179 = vsel %vm958, %v2167, %v2171
    %v2180 = vsel %vm958, %v2161, %v2165
    %v2181 = vsel %vm958, %v2163, %v2167
    %v2182 = vsel %vm958, %v2157, %v2161
    %v2183 = vsel %vm958, %v2159, %v2163
    %v2184 = vsel %vm958, %v2153, %v2157
    %v2185 = vsel %vm958, %v2155, %v2159
    %v2186 = vsel %vm958, %v2173, %v2153
    %v2187 = vsel %vm958, %v2175, %v2155
    %v2188 = vmul.f32 %v2186, %v975
    %v2189 = vmul.f32 %v2184, %v979
    %v2190 = vmul.f32 %v2182, %v983
    %v2191 = vmul.f32 %v2180, %v987
    %v2192 = vmul.f32 %v2178, %v991
    %v2193 = vmul.f32 %v2176, %v995
    %v2194 = vmul.f32 %v2187, %v975
    %v2195 = vmul.f32 %v2185, %v979
    %v2196 = vmul.f32 %v2183, %v983
    %v2197 = vmul.f32 %v2181, %v987
    %v2198 = vmul.f32 %v2179, %v991
    %v2199 = vmul.f32 %v2177, %v995
    %v2200 = vadd.f32 %v2140, %v2188
    %v2201 = vadd.f32 %v2141, %v2189
    %v2202 = vadd.f32 %v2142, %v2190
    %v2203 = vadd.f32 %v2143, %v2191
    %v2204 = vadd.f32 %v2144, %v2192
    %v2205 = vadd.f32 %v2145, %v2193
    %v2206 = vadd.f32 %v2146, %v2194
    %v2207 = vadd.f32 %v2147, %v2195
    %v2208 = vadd.f32 %v2148, %v2196
    %v2209 = vadd.f32 %v2149, %v2197
    %v2210 = vadd.f32 %v2150, %v2198
    %v2211 = vadd.f32 %v2151, %v2199
    %2212 = vrot.lane.b32.xlu0 %v1640, 1
    %v2213 = vpop.permute.xlu0 %2212
    %2214 = vrot.lane.b32.xlu0 %v1646, 1
    %v2215 = vpop.permute.xlu0 %2214
    %2216 = vrot.lane.b32.xlu0 %v1642, 1
    %v2217 = vpop.permute.xlu0 %2216
    %2218 = vrot.lane.b32.xlu0 %v1648, 1
    %v2219 = vpop.permute.xlu0 %2218
    %2220 = vrot.lane.b32.xlu0 %v1813, 1
    %v2221 = vpop.permute.xlu0 %2220
    %2222 = vrot.lane.b32.xlu0 %v1819, 1
    %v2223 = vpop.permute.xlu0 %2222
    %2224 = vrot.lane.b32.xlu0 %v1815, 1
    %v2225 = vpop.permute.xlu0 %2224
    %2226 = vrot.lane.b32.xlu0 %v1821, 1
    %v2227 = vpop.permute.xlu0 %2226
    %2228 = vrot.lane.b32.xlu0 %v1986, 1
    %v2229 = vpop.permute.xlu0 %2228
    %2230 = vrot.lane.b32.xlu0 %v1992, 1
    %v2231 = vpop.permute.xlu0 %2230
    %2232 = vrot.lane.b32.xlu0 %v1988, 1
    %v2233 = vpop.permute.xlu0 %2232
    %2234 = vrot.lane.b32.xlu0 %v1994, 1
    %v2235 = vpop.permute.xlu0 %2234
    %v2236 = vsel %vm1050, %v2229, %v2233
    %v2237 = vsel %vm1050, %v2231, %v2235
    %v2238 = vsel %vm1050, %v2225, %v2229
    %v2239 = vsel %vm1050, %v2227, %v2231
    %v2240 = vsel %vm1050, %v2221, %v2225
    %v2241 = vsel %vm1050, %v2223, %v2227
    %v2242 = vsel %vm1050, %v2217, %v2221
    %v2243 = vsel %vm1050, %v2219, %v2223
    %v2244 = vsel %vm1050, %v2213, %v2217
    %v2245 = vsel %vm1050, %v2215, %v2219
    %v2246 = vsel %vm1050, %v2233, %v2213
    %v2247 = vsel %vm1050, %v2235, %v2215
    %v2248 = vmul.f32 %v2246, %v846
    %v2249 = vmul.f32 %v2244, %v850
    %v2250 = vmul.f32 %v2242, %v854
    %v2251 = vmul.f32 %v2240, %v858
    %v2252 = vmul.f32 %v2238, %v862
    %v2253 = vmul.f32 %v2236, %v866
    %v2254 = vmul.f32 %v2247, %v846
    %v2255 = vmul.f32 %v2245, %v850
    %v2256 = vmul.f32 %v2243, %v854
    %v2257 = vmul.f32 %v2241, %v858
    %v2258 = vmul.f32 %v2239, %v862
    %v2259 = vmul.f32 %v2237, %v866
    %v2260 = vadd.f32 %v2200, %v2248
    %v2261 = vadd.f32 %v2201, %v2249
    %v2262 = vadd.f32 %v2202, %v2250
    %v2263 = vadd.f32 %v2203, %v2251
    %v2264 = vadd.f32 %v2204, %v2252
    %v2265 = vadd.f32 %v2205, %v2253
    %v2266 = vadd.f32 %v2206, %v2254
    %v2267 = vadd.f32 %v2207, %v2255
    %v2268 = vadd.f32 %v2208, %v2256
    %v2269 = vadd.f32 %v2209, %v2257
    %v2270 = vadd.f32 %v2210, %v2258
    %v2271 = vadd.f32 %v2211, %v2259
    %v2272 = vadd.f32 %v2260, %v1652
    %v2273 = vadd.f32 %v2261, %v1654
    %v2274 = vadd.f32 %v2262, %v1825
    %v2275 = vadd.f32 %v2263, %v1827
    %v2276 = vadd.f32 %v2264, %v1998
    %v2277 = vadd.f32 %v2265, %v2000
    %v2278 = vadd.f32 %v2266, %v1658
    %v2279 = vadd.f32 %v2267, %v1660
    %v2280 = vadd.f32 %v2268, %v1831
    %v2281 = vadd.f32 %v2269, %v1833
    %v2282 = vadd.f32 %v2270, %v2004
    %v2283 = vadd.f32 %v2271, %v2006
    %2284 = vrot.lane.b32.xlu0 %v1664, 127
    %v2285 = vpop.permute.xlu0 %2284
    %2286 = vrot.lane.b32.xlu0 %v1670, 127
    %v2287 = vpop.permute.xlu0 %2286
    %2288 = vrot.lane.b32.xlu0 %v1666, 127
    %v2289 = vpop.permute.xlu0 %2288
    %2290 = vrot.lane.b32.xlu0 %v1672, 127
    %v2291 = vpop.permute.xlu0 %2290
    %2292 = vrot.lane.b32.xlu0 %v1837, 127
    %v2293 = vpop.permute.xlu0 %2292
    %2294 = vrot.lane.b32.xlu0 %v1843, 127
    %v2295 = vpop.permute.xlu0 %2294
    %2296 = vrot.lane.b32.xlu0 %v1839, 127
    %v2297 = vpop.permute.xlu0 %2296
    %2298 = vrot.lane.b32.xlu0 %v1845, 127
    %v2299 = vpop.permute.xlu0 %2298
    %2300 = vrot.lane.b32.xlu0 %v2010, 127
    %v2301 = vpop.permute.xlu0 %2300
    %2302 = vrot.lane.b32.xlu0 %v2016, 127
    %v2303 = vpop.permute.xlu0 %2302
    %2304 = vrot.lane.b32.xlu0 %v2012, 127
    %v2305 = vpop.permute.xlu0 %2304
    %2306 = vrot.lane.b32.xlu0 %v2018, 127
    %v2307 = vpop.permute.xlu0 %2306
    %v2308 = vsel %vm1123, %v2301, %v2305
    %v2309 = vsel %vm1123, %v2303, %v2307
    %v2310 = vsel %vm1123, %v2297, %v2301
    %v2311 = vsel %vm1123, %v2299, %v2303
    %v2312 = vsel %vm1123, %v2293, %v2297
    %v2313 = vsel %vm1123, %v2295, %v2299
    %v2314 = vsel %vm1123, %v2289, %v2293
    %v2315 = vsel %vm1123, %v2291, %v2295
    %v2316 = vsel %vm1123, %v2285, %v2289
    %v2317 = vsel %vm1123, %v2287, %v2291
    %v2318 = vsel %vm1123, %v2305, %v2285
    %v2319 = vsel %vm1123, %v2307, %v2287
    %v2320 = vmul.f32 %v2316, %v975
    %v2321 = vmul.f32 %v2314, %v979
    %v2322 = vmul.f32 %v2312, %v983
    %v2323 = vmul.f32 %v2310, %v987
    %v2324 = vmul.f32 %v2308, %v991
    %v2325 = vmul.f32 %v2318, %v995
    %v2326 = vmul.f32 %v2317, %v975
    %v2327 = vmul.f32 %v2315, %v979
    %v2328 = vmul.f32 %v2313, %v983
    %v2329 = vmul.f32 %v2311, %v987
    %v2330 = vmul.f32 %v2309, %v991
    %v2331 = vmul.f32 %v2319, %v995
    %v2332 = vadd.f32 %v2272, %v2320
    %v2333 = vadd.f32 %v2273, %v2321
    %v2334 = vadd.f32 %v2274, %v2322
    %v2335 = vadd.f32 %v2275, %v2323
    %v2336 = vadd.f32 %v2276, %v2324
    %v2337 = vadd.f32 %v2277, %v2325
    %v2338 = vadd.f32 %v2278, %v2326
    %v2339 = vadd.f32 %v2279, %v2327
    %v2340 = vadd.f32 %v2280, %v2328
    %v2341 = vadd.f32 %v2281, %v2329
    %v2342 = vadd.f32 %v2282, %v2330
    %v2343 = vadd.f32 %v2283, %v2331
    %2344 = vrot.lane.b32.xlu0 %v1676, 113
    %v2345 = vpop.permute.xlu0 %2344
    %2346 = vrot.lane.b32.xlu0 %v1682, 113
    %v2347 = vpop.permute.xlu0 %2346
    %2348 = vrot.lane.b32.xlu0 %v1678, 113
    %v2349 = vpop.permute.xlu0 %2348
    %2350 = vrot.lane.b32.xlu0 %v1684, 113
    %v2351 = vpop.permute.xlu0 %2350
    %2352 = vrot.lane.b32.xlu0 %v1849, 113
    %v2353 = vpop.permute.xlu0 %2352
    %2354 = vrot.lane.b32.xlu0 %v1855, 113
    %v2355 = vpop.permute.xlu0 %2354
    %2356 = vrot.lane.b32.xlu0 %v1851, 113
    %v2357 = vpop.permute.xlu0 %2356
    %2358 = vrot.lane.b32.xlu0 %v1857, 113
    %v2359 = vpop.permute.xlu0 %2358
    %2360 = vrot.lane.b32.xlu0 %v2022, 113
    %v2361 = vpop.permute.xlu0 %2360
    %2362 = vrot.lane.b32.xlu0 %v2028, 113
    %v2363 = vpop.permute.xlu0 %2362
    %2364 = vrot.lane.b32.xlu0 %v2024, 113
    %v2365 = vpop.permute.xlu0 %2364
    %2366 = vrot.lane.b32.xlu0 %v2030, 113
    %v2367 = vpop.permute.xlu0 %2366
    %v2368 = vsel %vm1184, %v2361, %v2365
    %v2369 = vsel %vm1184, %v2363, %v2367
    %v2370 = vsel %vm1184, %v2357, %v2361
    %v2371 = vsel %vm1184, %v2359, %v2363
    %v2372 = vsel %vm1184, %v2353, %v2357
    %v2373 = vsel %vm1184, %v2355, %v2359
    %v2374 = vsel %vm1184, %v2349, %v2353
    %v2375 = vsel %vm1184, %v2351, %v2355
    %v2376 = vsel %vm1184, %v2345, %v2349
    %v2377 = vsel %vm1184, %v2347, %v2351
    %v2378 = vsel %vm1184, %v2365, %v2345
    %v2379 = vsel %vm1184, %v2367, %v2347
    %v2380 = vmul.f32 %v2376, %v846
    %v2381 = vmul.f32 %v2374, %v850
    %v2382 = vmul.f32 %v2372, %v854
    %v2383 = vmul.f32 %v2370, %v858
    %v2384 = vmul.f32 %v2368, %v862
    %v2385 = vmul.f32 %v2378, %v866
    %v2386 = vmul.f32 %v2377, %v846
    %v2387 = vmul.f32 %v2375, %v850
    %v2388 = vmul.f32 %v2373, %v854
    %v2389 = vmul.f32 %v2371, %v858
    %v2390 = vmul.f32 %v2369, %v862
    %v2391 = vmul.f32 %v2379, %v866
    %v2392 = vadd.f32 %v2332, %v2380
    %v2393 = vadd.f32 %v2333, %v2381
    %v2394 = vadd.f32 %v2334, %v2382
    %v2395 = vadd.f32 %v2335, %v2383
    %v2396 = vadd.f32 %v2336, %v2384
    %v2397 = vadd.f32 %v2337, %v2385
    %v2398 = vadd.f32 %v2338, %v2386
    %v2399 = vadd.f32 %v2339, %v2387
    %v2400 = vadd.f32 %v2340, %v2388
    %v2401 = vadd.f32 %v2341, %v2389
    %v2402 = vadd.f32 %v2342, %v2390
    %v2403 = vadd.f32 %v2343, %v2391
    %2404 = vrot.lane.b32.xlu0 %v1688, 112
    %v2405 = vpop.permute.xlu0 %2404
    %2406 = vrot.lane.b32.xlu0 %v1694, 112
    %v2407 = vpop.permute.xlu0 %2406
    %2408 = vrot.lane.b32.xlu0 %v1690, 112
    %v2409 = vpop.permute.xlu0 %2408
    %2410 = vrot.lane.b32.xlu0 %v1696, 112
    %v2411 = vpop.permute.xlu0 %2410
    %2412 = vrot.lane.b32.xlu0 %v1861, 112
    %v2413 = vpop.permute.xlu0 %2412
    %2414 = vrot.lane.b32.xlu0 %v1867, 112
    %v2415 = vpop.permute.xlu0 %2414
    %2416 = vrot.lane.b32.xlu0 %v1863, 112
    %v2417 = vpop.permute.xlu0 %2416
    %2418 = vrot.lane.b32.xlu0 %v1869, 112
    %v2419 = vpop.permute.xlu0 %2418
    %2420 = vrot.lane.b32.xlu0 %v2034, 112
    %v2421 = vpop.permute.xlu0 %2420
    %2422 = vrot.lane.b32.xlu0 %v2040, 112
    %v2423 = vpop.permute.xlu0 %2422
    %2424 = vrot.lane.b32.xlu0 %v2036, 112
    %v2425 = vpop.permute.xlu0 %2424
    %2426 = vrot.lane.b32.xlu0 %v2042, 112
    %v2427 = vpop.permute.xlu0 %2426
    %v2428 = vsel %vm1245, %v2421, %v2425
    %v2429 = vsel %vm1245, %v2423, %v2427
    %v2430 = vsel %vm1245, %v2417, %v2421
    %v2431 = vsel %vm1245, %v2419, %v2423
    %v2432 = vsel %vm1245, %v2413, %v2417
    %v2433 = vsel %vm1245, %v2415, %v2419
    %v2434 = vsel %vm1245, %v2409, %v2413
    %v2435 = vsel %vm1245, %v2411, %v2415
    %v2436 = vsel %vm1245, %v2405, %v2409
    %v2437 = vsel %vm1245, %v2407, %v2411
    %v2438 = vsel %vm1245, %v2425, %v2405
    %v2439 = vsel %vm1245, %v2427, %v2407
    %v2440 = vadd.f32 %v2392, %v2436
    %v2441 = vadd.f32 %v2393, %v2434
    %v2442 = vadd.f32 %v2394, %v2432
    %v2443 = vadd.f32 %v2395, %v2430
    %v2444 = vadd.f32 %v2396, %v2428
    %v2445 = vadd.f32 %v2397, %v2438
    %v2446 = vadd.f32 %v2398, %v2437
    %v2447 = vadd.f32 %v2399, %v2435
    %v2448 = vadd.f32 %v2400, %v2433
    %v2449 = vadd.f32 %v2401, %v2431
    %v2450 = vadd.f32 %v2402, %v2429
    %v2451 = vadd.f32 %v2403, %v2439
    %2452 = vrot.lane.b32.xlu0 %v1700, 111
    %v2453 = vpop.permute.xlu0 %2452
    %2454 = vrot.lane.b32.xlu0 %v1706, 111
    %v2455 = vpop.permute.xlu0 %2454
    %2456 = vrot.lane.b32.xlu0 %v1702, 111
    %v2457 = vpop.permute.xlu0 %2456
    %2458 = vrot.lane.b32.xlu0 %v1708, 111
    %v2459 = vpop.permute.xlu0 %2458
    %2460 = vrot.lane.b32.xlu0 %v1873, 111
    %v2461 = vpop.permute.xlu0 %2460
    %2462 = vrot.lane.b32.xlu0 %v1879, 111
    %v2463 = vpop.permute.xlu0 %2462
    %2464 = vrot.lane.b32.xlu0 %v1875, 111
    %v2465 = vpop.permute.xlu0 %2464
    %2466 = vrot.lane.b32.xlu0 %v1881, 111
    %v2467 = vpop.permute.xlu0 %2466
    %2468 = vrot.lane.b32.xlu0 %v2046, 111
    %v2469 = vpop.permute.xlu0 %2468
    %2470 = vrot.lane.b32.xlu0 %v2052, 111
    %v2471 = vpop.permute.xlu0 %2470
    %2472 = vrot.lane.b32.xlu0 %v2048, 111
    %v2473 = vpop.permute.xlu0 %2472
    %2474 = vrot.lane.b32.xlu0 %v2054, 111
    %v2475 = vpop.permute.xlu0 %2474
    %v2476 = vsel %vm1294, %v2469, %v2473
    %v2477 = vsel %vm1294, %v2471, %v2475
    %v2478 = vsel %vm1294, %v2465, %v2469
    %v2479 = vsel %vm1294, %v2467, %v2471
    %v2480 = vsel %vm1294, %v2461, %v2465
    %v2481 = vsel %vm1294, %v2463, %v2467
    %v2482 = vsel %vm1294, %v2457, %v2461
    %v2483 = vsel %vm1294, %v2459, %v2463
    %v2484 = vsel %vm1294, %v2453, %v2457
    %v2485 = vsel %vm1294, %v2455, %v2459
    %v2486 = vsel %vm1294, %v2473, %v2453
    %v2487 = vsel %vm1294, %v2475, %v2455
    %v2488 = vmul.f32 %v2484, %v975
    %v2489 = vmul.f32 %v2482, %v979
    %v2490 = vmul.f32 %v2480, %v983
    %v2491 = vmul.f32 %v2478, %v987
    %v2492 = vmul.f32 %v2476, %v991
    %v2493 = vmul.f32 %v2486, %v995
    %v2494 = vmul.f32 %v2485, %v975
    %v2495 = vmul.f32 %v2483, %v979
    %v2496 = vmul.f32 %v2481, %v983
    %v2497 = vmul.f32 %v2479, %v987
    %v2498 = vmul.f32 %v2477, %v991
    %v2499 = vmul.f32 %v2487, %v995
    %v2500 = vadd.f32 %v2440, %v2488
    %v2501 = vadd.f32 %v2441, %v2489
    %v2502 = vadd.f32 %v2442, %v2490
    %v2503 = vadd.f32 %v2443, %v2491
    %v2504 = vadd.f32 %v2444, %v2492
    %v2505 = vadd.f32 %v2445, %v2493
    %v2506 = vadd.f32 %v2446, %v2494
    %v2507 = vadd.f32 %v2447, %v2495
    %v2508 = vadd.f32 %v2448, %v2496
    %v2509 = vadd.f32 %v2449, %v2497
    %v2510 = vadd.f32 %v2450, %v2498
    %v2511 = vadd.f32 %v2451, %v2499
    %s2512 = scalar_lea.vmem %s2, 16
    %v2513 = vld [vmem:[%s2512] sm:$0xff]
    %v2514 = vld [vmem:[%s2512 + $0x8] sm:$0xff]
    %2516 = vset.pattern.permute.xlu0 0
    %2517 = vperm.xlu0 %2516, %v2513
    %v2518 = vpop.permute.xlu0 %2517
    %2521 = vset.pattern.permute.xlu0 0
    %2522 = vperm.xlu0 %2521, %v2514
    %v2523 = vpop.permute.xlu0 %2522
    %v2525 = vadd.f32 %v2500, %v2518
    %v2526 = vadd.f32 %v2501, %v2518
    %v2527 = vadd.f32 %v2502, %v2518
    %v2528 = vadd.f32 %v2503, %v2518
    %v2529 = vadd.f32 %v2504, %v2518
    %v2530 = vadd.f32 %v2505, %v2518
    %v2531 = vadd.f32 %v2506, %v2523
    %v2532 = vadd.f32 %v2507, %v2523
    %v2533 = vadd.f32 %v2508, %v2523
    %v2534 = vadd.f32 %v2509, %v2523
    %v2535 = vadd.f32 %v2510, %v2523
    %v2536 = vadd.f32 %v2511, %v2523
    %v2537 = vmax.f32 %v2525, 0.0
    %v2538 = vmax.f32 %v2526, 0.0
    %v2539 = vmax.f32 %v2527, 0.0
    %v2540 = vmax.f32 %v2528, 0.0
    %v2541 = vmax.f32 %v2529, 0.0
    %v2542 = vmax.f32 %v2530, 0.0
    %v2543 = vmax.f32 %v2531, 0.0
    %v2544 = vmax.f32 %v2532, 0.0
    %v2545 = vmax.f32 %v2533, 0.0
    %v2546 = vmax.f32 %v2534, 0.0
    %v2547 = vmax.f32 %v2535, 0.0
    %v2548 = vmax.f32 %v2536, 0.0
    %v2549 = vmul.f32 %v2537, %v1371
    %v2550 = vmul.f32 %v2538, %v1375
    %v2551 = vmul.f32 %v2539, %v1379
    %v2552 = vmul.f32 %v2540, %v1383
    %v2553 = vmul.f32 %v2541, %v1387
    %v2554 = vmul.f32 %v2542, %v1391
    %v2555 = vmul.f32 %v2543, %v1371
    %v2556 = vmul.f32 %v2544, %v1375
    %v2557 = vmul.f32 %v2545, %v1379
    %v2558 = vmul.f32 %v2546, %v1383
    %v2559 = vmul.f32 %v2547, %v1387
    %v2560 = vmul.f32 %v2548, %v1391
    %2561 = vst [vmem:[#allocation2 + $0x120] sm:$0xff] %v2549
    %2562 = vst [vmem:[#allocation2 + $0x128] sm:$0xff] %v2550
    %2563 = vst [vmem:[#allocation2 + $0x130] sm:$0xff] %v2551
    %2564 = vst [vmem:[#allocation2 + $0x138] sm:$0xff] %v2552
    %2565 = vst [vmem:[#allocation2 + $0x140] sm:$0xff] %v2553
    %2566 = vst [vmem:[#allocation2 + $0x148] sm:$0xff] %v2554
    %2567 = vst [vmem:[#allocation2 + $0x150] sm:$0xff] %v2555
    %2568 = vst [vmem:[#allocation2 + $0x158] sm:$0xff] %v2556
    %2569 = vst [vmem:[#allocation2 + $0x160] sm:$0xff] %v2557
    %2570 = vst [vmem:[#allocation2 + $0x168] sm:$0xff] %v2558
    %2571 = vst [vmem:[#allocation2 + $0x170] sm:$0xff] %v2559
    %2572 = vst [vmem:[#allocation2 + $0x178] sm:$0xff] %v2560
    %s2573 = scalar_lea.vmem [#allocation3], 288
    %v2574 = vld [vmem:[%s2573] sm:$0xff]
    %v2575 = vld [vmem:[%s2573 + $0x8] sm:$0xff]
    %v2576 = vld [vmem:[%s2573 + $0x10] sm:$0xff]
    %v2577 = vld [vmem:[%s2573 + $0x18] sm:$0xff]
    %v2578 = vld [vmem:[%s2573 + $0x20] sm:$0xff]
    %v2579 = vld [vmem:[%s2573 + $0x28] sm:$0xff]
    %v2580 = vld [vmem:[%s2573 + $0x30] sm:$0xff]
    %v2581 = vld [vmem:[%s2573 + $0x38] sm:$0xff]
    %v2582 = vld [vmem:[%s2573 + $0x40] sm:$0xff]
    %v2583 = vld [vmem:[%s2573 + $0x48] sm:$0xff]
    %v2584 = vld [vmem:[%s2573 + $0x50] sm:$0xff]
    %v2585 = vld [vmem:[%s2573 + $0x58] sm:$0xff]
    %v2586 = vld [vmem:[%s2573 + $0x60] sm:$0xff]
    %v2587 = vld [vmem:[%s2573 + $0x68] sm:$0xff]
    %v2588 = vld [vmem:[%s2573 + $0x70] sm:$0xff]
    %v2589 = vld [vmem:[%s2573 + $0x78] sm:$0xff]
    %v2590 = vld [vmem:[%s2573 + $0x80] sm:$0xff]
    %v2591 = vld [vmem:[%s2573 + $0x88] sm:$0xff]
    %v2592 = vld [vmem:[#allocation2] sm:$0xff]
    %v2593 = vld [vmem:[#allocation2 + $0x8] sm:$0xff]
    %v2594 = vld [vmem:[#allocation2 + $0x10] sm:$0xff]
    %v2595 = vld [vmem:[#allocation2 + $0x18] sm:$0xff]
    %v2596 = vld [vmem:[#allocation2 + $0x20] sm:$0xff]
    %v2597 = vld [vmem:[#allocation2 + $0x28] sm:$0xff]
    %v2598 = vld [vmem:[#allocation2 + $0x30] sm:$0xff]
    %v2599 = vld [vmem:[#allocation2 + $0x38] sm:$0xff]
    %v2600 = vld [vmem:[#allocation2 + $0x40] sm:$0xff]
    %v2601 = vld [vmem:[#allocation2 + $0x48] sm:$0xff]
    %v2602 = vld [vmem:[#allocation2 + $0x50] sm:$0xff]
    %v2603 = vld [vmem:[#allocation2 + $0x58] sm:$0xff]
    %v2604 = vld [vmem:[#allocation2 + $0x60] sm:$0xff]
    %v2605 = vld [vmem:[#allocation2 + $0x68] sm:$0xff]
    %v2606 = vld [vmem:[#allocation2 + $0x70] sm:$0xff]
    %v2607 = vld [vmem:[#allocation2 + $0x78] sm:$0xff]
    %v2608 = vld [vmem:[#allocation2 + $0x80] sm:$0xff]
    %v2609 = vld [vmem:[#allocation2 + $0x88] sm:$0xff]
    %v2610 = vld [vmem:[#allocation2 + $0x90] sm:$0xff]
    %v2611 = vld [vmem:[#allocation2 + $0x98] sm:$0xff]
    %v2612 = vld [vmem:[#allocation2 + $0xa0] sm:$0xff]
    %v2613 = vld [vmem:[#allocation2 + $0xa8] sm:$0xff]
    %v2614 = vld [vmem:[#allocation2 + $0xb0] sm:$0xff]
    %v2615 = vld [vmem:[#allocation2 + $0xb8] sm:$0xff]
    %v2616 = vld [vmem:[#allocation2 + $0xc0] sm:$0xff]
    %v2617 = vld [vmem:[#allocation2 + $0xc8] sm:$0xff]
    %v2618 = vld [vmem:[#allocation2 + $0xd0] sm:$0xff]
    %v2619 = vld [vmem:[#allocation2 + $0xd8] sm:$0xff]
    %v2620 = vld [vmem:[#allocation2 + $0xe0] sm:$0xff]
    %v2621 = vld [vmem:[#allocation2 + $0xe8] sm:$0xff]
    %v2622 = vld [vmem:[#allocation2 + $0xf0] sm:$0xff]
    %v2623 = vld [vmem:[#allocation2 + $0xf8] sm:$0xff]
    %v2624 = vld [vmem:[#allocation2 + $0x100] sm:$0xff]
    %v2625 = vld [vmem:[#allocation2 + $0x108] sm:$0xff]
    %v2626 = vld [vmem:[#allocation2 + $0x110] sm:$0xff]
    %v2627 = vld [vmem:[#allocation2 + $0x118] sm:$0xff]
    %v2628 = vld [vmem:[#allocation2 + $0x120] sm:$0xff]
    %v2629 = vld [vmem:[#allocation2 + $0x128] sm:$0xff]
    %v2630 = vld [vmem:[#allocation2 + $0x130] sm:$0xff]
    %v2631 = vld [vmem:[#allocation2 + $0x138] sm:$0xff]
    %v2632 = vld [vmem:[#allocation2 + $0x140] sm:$0xff]
    %v2633 = vld [vmem:[#allocation2 + $0x148] sm:$0xff]
    %v2634 = vld [vmem:[#allocation2 + $0x150] sm:$0xff]
    %v2635 = vld [vmem:[#allocation2 + $0x158] sm:$0xff]
    %v2636 = vld [vmem:[#allocation2 + $0x160] sm:$0xff]
    %v2637 = vld [vmem:[#allocation2 + $0x168] sm:$0xff]
    %v2638 = vld [vmem:[#allocation2 + $0x170] sm:$0xff]
    %v2639 = vld [vmem:[#allocation2 + $0x178] sm:$0xff]
    %v2640 = vld [vmem:[#allocation2 + $0x180] sm:$0xff]
    %v2641 = vld [vmem:[#allocation2 + $0x188] sm:$0xff]
    %v2642 = vld [vmem:[#allocation2 + $0x190] sm:$0xff]
    %v2643 = vld [vmem:[#allocation2 + $0x198] sm:$0xff]
    %v2644 = vld [vmem:[#allocation2 + $0x1a0] sm:$0xff]
    %v2645 = vld [vmem:[#allocation2 + $0x1a8] sm:$0xff]
    %v2646 = vld [vmem:[#allocation2 + $0x1b0] sm:$0xff]
    %v2647 = vld [vmem:[#allocation2 + $0x1b8] sm:$0xff]
    %v2648 = vld [vmem:[#allocation2 + $0x1c0] sm:$0xff]
    %v2649 = vld [vmem:[#allocation2 + $0x1c8] sm:$0xff]
    %v2650 = vld [vmem:[#allocation2 + $0x1d0] sm:$0xff]
    %v2651 = vld [vmem:[#allocation2 + $0x1d8] sm:$0xff]
    %v2652 = vld [vmem:[#allocation2 + $0x1e0] sm:$0xff]
    %v2653 = vld [vmem:[#allocation2 + $0x1e8] sm:$0xff]
    %v2654 = vld [vmem:[#allocation2 + $0x1f0] sm:$0xff]
    %v2655 = vld [vmem:[#allocation2 + $0x1f8] sm:$0xff]
    %v2656 = vld [vmem:[#allocation2 + $0x200] sm:$0xff]
    %v2657 = vld [vmem:[#allocation2 + $0x208] sm:$0xff]
    %v2658 = vld [vmem:[#allocation2 + $0x210] sm:$0xff]
    %v2659 = vld [vmem:[#allocation2 + $0x218] sm:$0xff]
    %v2660 = vld [vmem:[#allocation2 + $0x220] sm:$0xff]
    %v2661 = vld [vmem:[#allocation2 + $0x228] sm:$0xff]
    %v2662 = vld [vmem:[#allocation2 + $0x230] sm:$0xff]
    %v2663 = vld [vmem:[#allocation2 + $0x238] sm:$0xff]
    %v2664 = vld [vmem:[#allocation2 + $0x240] sm:$0xff]
    %v2665 = vld [vmem:[#allocation2 + $0x248] sm:$0xff]
    %v2666 = vld [vmem:[#allocation2 + $0x250] sm:$0xff]
    %v2667 = vld [vmem:[#allocation2 + $0x258] sm:$0xff]
    %v2668 = vld [vmem:[#allocation2 + $0x260] sm:$0xff]
    %v2669 = vld [vmem:[#allocation2 + $0x268] sm:$0xff]
    %v2670 = vld [vmem:[#allocation2 + $0x270] sm:$0xff]
    %v2671 = vld [vmem:[#allocation2 + $0x278] sm:$0xff]
    %v2672 = vld [vmem:[#allocation2 + $0x280] sm:$0xff]
    %v2673 = vld [vmem:[#allocation2 + $0x288] sm:$0xff]
    %v2674 = vld [vmem:[#allocation2 + $0x290] sm:$0xff]
    %v2675 = vld [vmem:[#allocation2 + $0x298] sm:$0xff]
    %v2676 = vld [vmem:[#allocation2 + $0x2a0] sm:$0xff]
    %v2677 = vld [vmem:[#allocation2 + $0x2a8] sm:$0xff]
    %v2678 = vld [vmem:[#allocation2 + $0x2b0] sm:$0xff]
    %v2679 = vld [vmem:[#allocation2 + $0x2b8] sm:$0xff]
    %v2680 = vld [vmem:[#allocation2 + $0x2c0] sm:$0xff]
    %v2681 = vld [vmem:[#allocation2 + $0x2c8] sm:$0xff]
    %v2682 = vld [vmem:[#allocation2 + $0x2d0] sm:$0xff]
    %v2683 = vld [vmem:[#allocation2 + $0x2d8] sm:$0xff]
    %v2684 = vld [vmem:[#allocation2 + $0x2e0] sm:$0xff]
    %v2685 = vld [vmem:[#allocation2 + $0x2e8] sm:$0xff]
    %v2686 = vld [vmem:[#allocation2 + $0x2f0] sm:$0xff]
    %v2687 = vld [vmem:[#allocation2 + $0x2f8] sm:$0xff]
    %2688 = vmatprep.subr.mxu0 %v2593
    %2689 = vmatpush1.msra.mxu0 %v2592
    %2690 = vmatprep.subr.mxu0 %v2599
    %2691 = vmatpush1.msra.mxu0 %v2598
    %2692 = vmatprep.subr.mxu0 %v2605
    %2693 = vmatpush1.msra.mxu0 %v2604
    %2694 = vmatprep.subr.mxu0 %v2611
    %2695 = vmatpush1.msra.mxu0 %v2610
    %2696 = vmatprep.subr.mxu0 %v2617
    %2697 = vmatpush1.msra.mxu0 %v2616
    %2698 = vmatprep.subr.mxu0 %v2623
    %2699 = vmatpush1.msra.mxu0 %v2622
    %2700 = vmatprep.subr.mxu0 %v2629
    %2701 = vmatpush1.msra.mxu0 %v2628
    %2702 = vmatprep.subr.mxu0 %v2635
    %2703 = vmatpush1.msra.mxu0 %v2634
    %2704 = vmatprep.subr.mxu0 %v2641
    %2705 = vmatpush1.msra.mxu0 %v2640
    %2706 = vmatprep.subr.mxu0 %v2647
    %2707 = vmatpush1.msra.mxu0 %v2646
    %2708 = vmatprep.subr.mxu0 %v2653
    %2709 = vmatpush1.msra.mxu0 %v2652
    %2710 = vmatprep.subr.mxu0 %v2659
    %2711 = vmatpush1.msra.mxu0 %v2658
    %2712 = vmatprep.subr.mxu0 %v2665
    %2713 = vmatpush1.msra.mxu0 %v2664
    %2714 = vmatprep.subr.mxu0 %v2671
    %2715 = vmatpush1.msra.mxu0 %v2670
    %2716 = vmatprep.subr.mxu0 %v2677
    %2717 = vmatpush1.msra.mxu0 %v2676
    %2718 = vmatprep.subr.mxu0 %v2683
    %2719 = vmatpush1.msra.mxu0 %v2682
    %2720 = vmatprep.subr.mxu0 0.0
    %2721 = vmatpush1.msra.mxu0 0.0
    %2722 = vmatprep.subr.mxu0 0.0
    %2723 = vmatpush1.msra.mxu0 0.0
    %2724 = vmatprep.subr.mxu0 0.0
    %2725 = vmatpush1.msra.mxu0 0.0
    %2726 = vmatprep.subr.mxu0 0.0
    %2727 = vmatpush1.msra.mxu0 0.0
    %2728 = vmatprep.subr.mxu0 0.0
    %2729 = vmatpush1.msra.mxu0 0.0
    %2730 = vmatprep.subr.mxu0 0.0
    %2731 = vmatpush1.msra.mxu0 0.0
    %2732 = vmatprep.subr.mxu0 0.0
    %2733 = vmatpush1.msra.mxu0 0.0
    %2734 = vmatprep.subr.mxu0 0.0
    %2735 = vmatpush1.msra.mxu0 0.0
    %2736 = vmatprep.subr.mxu0 0.0
    %2737 = vmatpush1.msra.mxu0 0.0
    %2738 = vmatprep.subr.mxu0 0.0
    %2739 = vmatpush1.msra.mxu0 0.0
    %2740 = vmatprep.subr.mxu0 0.0
    %2741 = vmatpush1.msra.mxu0 0.0
    %2742 = vmatprep.subr.mxu0 0.0
    %2743 = vmatpush1.msra.mxu0 0.0
    %2744 = vmatprep.subr.mxu0 0.0
    %2745 = vmatpush1.msra.mxu0 0.0
    %2746 = vmatprep.subr.mxu0 0.0
    %2747 = vmatpush1.msra.mxu0 0.0
    %2748 = vmatprep.subr.mxu0 0.0
    %2749 = vmatpush1.msra.mxu0 0.0
    %2750 = vmatprep.subr.mxu0 0.0
    %2751 = vmatpush1.msra.mxu0 0.0
    %2752 = vmatprep.mubr.f32.mxu0 0.0
    %2753 = vmatmul.mubr.f32.gmra.mrb[0].mxu0 %v2574
    %v2754 = vpop.f32.mrb[0].mxu0
    %v2755 = vadd.f32 0.0, %v2754
    %v2756 = vpop.f32.mrb[0].mxu0
    %v2757 = vadd.f32 0.0, %v2756
    %2758 = vmatprep.mubr.f32.mxu0 0.0
    %2759 = vmatmul.mubr.f32.gmra.mrb[0].mxu0 %v2575
    %v2760 = vpop.f32.mrb[0].mxu0
    %v2761 = vadd.f32 0.0, %v2760
    %v2762 = vpop.f32.mrb[0].mxu0
    %v2763 = vadd.f32 0.0, %v2762
    %2764 = vmatprep.mubr.f32.mxu0 0.0
    %2765 = vmatmul.mubr.f32.gmra.mrb[0].mxu0 %v2576
    %v2766 = vpop.f32.mrb[0].mxu0
    %v2767 = vadd.f32 0.0, %v2766
    %v2768 = vpop.f32.mrb[0].mxu0
    %v2769 = vadd.f32 0.0, %v2768
    %2770 = vmatprep.mubr.f32.mxu0 0.0
    %2771 = vmatmul.mubr.f32.gmra.mrb[0].mxu0 %v2577
    %v2772 = vpop.f32.mrb[0].mxu0
    %v2773 = vadd.f32 0.0, %v2772
    %v2774 = vpop.f32.mrb[0].mxu0
    %v2775 = vadd.f32 0.0, %v2774
    %2776 = vmatprep.mubr.f32.mxu0 0.0
    %2777 = vmatmul.mubr.f32.gmra.mrb[0].mxu0 %v2578
    %v2778 = vpop.f32.mrb[0].mxu0
    %v2779 = vadd.f32 0.0, %v2778
    %v2780 = vpop.f32.mrb[0].mxu0
    %v2781 = vadd.f32 0.0, %v2780
    %2782 = vmatprep.mubr.f32.mxu0 0.0
    %2783 = vmatmul.mubr.f32.gmra.mrb[0].mxu0 %v2579
    %v2784 = vpop.f32.mrb[0].mxu0
    %v2785 = vadd.f32 0.0, %v2784
    %v2786 = vpop.f32.mrb[0].mxu0
    %v2787 = vadd.f32 0.0, %v2786
    %2788 = vmatprep.mubr.f32.mxu0 0.0
    %2789 = vmatmul.mubr.f32.gmra.mrb[0].mxu0 %v2580
    %v2790 = vpop.f32.mrb[0].mxu0
    %v2791 = vadd.f32 0.0, %v2790
    %v2792 = vpop.f32.mrb[0].mxu0
    %v2793 = vadd.f32 0.0, %v2792
    %2794 = vmatprep.mubr.f32.mxu0 0.0
    %2795 = vmatmul.mubr.f32.gmra.mrb[0].mxu0 %v2581
    %v2796 = vpop.f32.mrb[0].mxu0
    %v2797 = vadd.f32 0.0, %v2796
    %v2798 = vpop.f32.mrb[0].mxu0
    %v2799 = vadd.f32 0.0, %v2798
    %2800 = vmatprep.mubr.f32.mxu0 0.0
    %2801 = vmatmul.mubr.f32.gmra.mrb[0].mxu0 %v2582
    %v2802 = vpop.f32.mrb[0].mxu0
    %v2803 = vadd.f32 0.0, %v2802
    %v2804 = vpop.f32.mrb[0].mxu0
    %v2805 = vadd.f32 0.0, %v2804
    %2806 = vmatprep.mubr.f32.mxu0 0.0
    %2807 = vmatmul.mubr.f32.gmra.mrb[0].mxu0 %v2583
    %v2808 = vpop.f32.mrb[0].mxu0
    %v2809 = vadd.f32 0.0, %v2808
    %v2810 = vpop.f32.mrb[0].mxu0
    %v2811 = vadd.f32 0.0, %v2810
    %2812 = vmatprep.mubr.f32.mxu0 0.0
    %2813 = vmatmul.mubr.f32.gmra.mrb[0].mxu0 %v2584
    %v2814 = vpop.f32.mrb[0].mxu0
    %v2815 = vadd.f32 0.0, %v2814
    %v2816 = vpop.f32.mrb[0].mxu0
    %v2817 = vadd.f32 0.0, %v2816
    %2818 = vmatprep.mubr.f32.mxu0 0.0
    %2819 = vmatmul.mubr.f32.gmra.mrb[0].mxu0 %v2585
    %v2820 = vpop.f32.mrb[0].mxu0
    %v2821 = vadd.f32 0.0, %v2820
    %v2822 = vpop.f32.mrb[0].mxu0
    %v2823 = vadd.f32 0.0, %v2822
    %2824 = vmatprep.mubr.f32.mxu0 0.0
    %2825 = vmatmul.mubr.f32.gmra.mrb[0].mxu0 %v2586
    %v2826 = vpop.f32.mrb[0].mxu0
    %v2827 = vadd.f32 0.0, %v2826
    %v2828 = vpop.f32.mrb[0].mxu0
    %v2829 = vadd.f32 0.0, %v2828
    %2830 = vmatprep.mubr.f32.mxu0 0.0
    %2831 = vmatmul.mubr.f32.gmra.mrb[0].mxu0 %v2587
    %v2832 = vpop.f32.mrb[0].mxu0
    %v2833 = vadd.f32 0.0, %v2832
    %v2834 = vpop.f32.mrb[0].mxu0
    %v2835 = vadd.f32 0.0, %v2834
    %2836 = vmatprep.mubr.f32.mxu0 0.0
    %2837 = vmatmul.mubr.f32.gmra.mrb[0].mxu0 %v2588
    %v2838 = vpop.f32.mrb[0].mxu0
    %v2839 = vadd.f32 0.0, %v2838
    %v2840 = vpop.f32.mrb[0].mxu0
    %v2841 = vadd.f32 0.0, %v2840
    %2842 = vmatprep.mubr.f32.mxu0 0.0
    %2843 = vmatmul.mubr.f32.gmra.mrb[0].mxu0 %v2589
    %v2844 = vpop.f32.mrb[0].mxu0
    %v2845 = vadd.f32 0.0, %v2844
    %v2846 = vpop.f32.mrb[0].mxu0
    %v2847 = vadd.f32 0.0, %v2846
    %2848 = vmatprep.mubr.f32.mxu0 0.0
    %2849 = vmatmul.mubr.f32.gmra.mrb[0].mxu0 %v2590
    %v2850 = vpop.f32.mrb[0].mxu0
    %v2851 = vadd.f32 0.0, %v2850
    %v2852 = vpop.f32.mrb[0].mxu0
    %v2853 = vadd.f32 0.0, %v2852
    %2854 = vmatprep.mubr.f32.mxu0 0.0
    %2855 = vmatmul.mubr.f32.gmra.mrb[0].mxu0 %v2591
    %v2856 = vpop.f32.mrb[0].mxu0
    %v2857 = vadd.f32 0.0, %v2856
    %v2858 = vpop.f32.mrb[0].mxu0
    %v2859 = vadd.f32 0.0, %v2858
    %2860 = vdwg.mxu0
    %2861 = vmatprep.subr.mxu0 %v2595
    %2862 = vmatpush1.msra.mxu0 %v2594
    %2863 = vmatprep.subr.mxu0 %v2601
    %2864 = vmatpush1.msra.mxu0 %v2600
    %2865 = vmatprep.subr.mxu0 %v2607
    %2866 = vmatpush1.msra.mxu0 %v2606
    %2867 = vmatprep.subr.mxu0 %v2613
    %2868 = vmatpush1.msra.mxu0 %v2612
    %2869 = vmatprep.subr.mxu0 %v2619
    %2870 = vmatpush1.msra.mxu0 %v2618
    %2871 = vmatprep.subr.mxu0 %v2625
    %2872 = vmatpush1.msra.mxu0 %v2624
    %2873 = vmatprep.subr.mxu0 %v2631
    %2874 = vmatpush1.msra.mxu0 %v2630
    %2875 = vmatprep.subr.mxu0 %v2637
    %2876 = vmatpush1.msra.mxu0 %v2636
    %2877 = vmatprep.subr.mxu0 %v2643
    %2878 = vmatpush1.msra.mxu0 %v2642
    %2879 = vmatprep.subr.mxu0 %v2649
    %2880 = vmatpush1.msra.mxu0 %v2648
    %2881 = vmatprep.subr.mxu0 %v2655
    %2882 = vmatpush1.msra.mxu0 %v2654
    %2883 = vmatprep.subr.mxu0 %v2661
    %2884 = vmatpush1.msra.mxu0 %v2660
    %2885 = vmatprep.subr.mxu0 %v2667
    %2886 = vmatpush1.msra.mxu0 %v2666
    %2887 = vmatprep.subr.mxu0 %v2673
    %2888 = vmatpush1.msra.mxu0 %v2672
    %2889 = vmatprep.subr.mxu0 %v2679
    %2890 = vmatpush1.msra.mxu0 %v2678
    %2891 = vmatprep.subr.mxu0 %v2685
    %2892 = vmatpush1.msra.mxu0 %v2684
    %2893 = vmatprep.subr.mxu0 0.0
    %2894 = vmatpush1.msra.mxu0 0.0
    %2895 = vmatprep.subr.mxu0 0.0
    %2896 = vmatpush1.msra.mxu0 0.0
    %2897 = vmatprep.subr.mxu0 0.0
    %2898 = vmatpush1.msra.mxu0 0.0
    %2899 = vmatprep.subr.mxu0 0.0
    %2900 = vmatpush1.msra.mxu0 0.0
    %2901 = vmatprep.subr.mxu0 0.0
    %2902 = vmatpush1.msra.mxu0 0.0
    %2903 = vmatprep.subr.mxu0 0.0
    %2904 = vmatpush1.msra.mxu0 0.0
    %2905 = vmatprep.subr.mxu0 0.0
    %2906 = vmatpush1.msra.mxu0 0.0
    %2907 = vmatprep.subr.mxu0 0.0
    %2908 = vmatpush1.msra.mxu0 0.0
    %2909 = vmatprep.subr.mxu0 0.0
    %2910 = vmatpush1.msra.mxu0 0.0
    %2911 = vmatprep.subr.mxu0 0.0
    %2912 = vmatpush1.msra.mxu0 0.0
    %2913 = vmatprep.subr.mxu0 0.0
    %2914 = vmatpush1.msra.mxu0 0.0
    %2915 = vmatprep.subr.mxu0 0.0
    %2916 = vmatpush1.msra.mxu0 0.0
    %2917 = vmatprep.subr.mxu0 0.0
    %2918 = vmatpush1.msra.mxu0 0.0
    %2919 = vmatprep.subr.mxu0 0.0
    %2920 = vmatpush1.msra.mxu0 0.0
    %2921 = vmatprep.subr.mxu0 0.0
    %2922 = vmatpush1.msra.mxu0 0.0
    %2923 = vmatprep.subr.mxu0 0.0
    %2924 = vmatpush1.msra.mxu0 0.0
    %2925 = vmatprep.mubr.f32.mxu0 0.0
    %2926 = vmatmul.mubr.f32.gmra.mrb[0].mxu0 %v2574
    %v2927 = vpop.f32.mrb[0].mxu0
    %v2928 = vadd.f32 0.0, %v2927
    %v2929 = vpop.f32.mrb[0].mxu0
    %v2930 = vadd.f32 0.0, %v2929
    %2931 = vmatprep.mubr.f32.mxu0 0.0
    %2932 = vmatmul.mubr.f32.gmra.mrb[0].mxu0 %v2575
    %v2933 = vpop.f32.mrb[0].mxu0
    %v2934 = vadd.f32 0.0, %v2933
    %v2935 = vpop.f32.mrb[0].mxu0
    %v2936 = vadd.f32 0.0, %v2935
    %2937 = vmatprep.mubr.f32.mxu0 0.0
    %2938 = vmatmul.mubr.f32.gmra.mrb[0].mxu0 %v2576
    %v2939 = vpop.f32.mrb[0].mxu0
    %v2940 = vadd.f32 0.0, %v2939
    %v2941 = vpop.f32.mrb[0].mxu0
    %v2942 = vadd.f32 0.0, %v2941
    %2943 = vmatprep.mubr.f32.mxu0 0.0
    %2944 = vmatmul.mubr.f32.gmra.mrb[0].mxu0 %v2577
    %v2945 = vpop.f32.mrb[0].mxu0
    %v2946 = vadd.f32 0.0, %v2945
    %v2947 = vpop.f32.mrb[0].mxu0
    %v2948 = vadd.f32 0.0, %v2947
    %2949 = vmatprep.mubr.f32.mxu0 0.0
    %2950 = vmatmul.mubr.f32.gmra.mrb[0].mxu0 %v2578
    %v2951 = vpop.f32.mrb[0].mxu0
    %v2952 = vadd.f32 0.0, %v2951
    %v2953 = vpop.f32.mrb[0].mxu0
    %v2954 = vadd.f32 0.0, %v2953
    %2955 = vmatprep.mubr.f32.mxu0 0.0
    %2956 = vmatmul.mubr.f32.gmra.mrb[0].mxu0 %v2579
    %v2957 = vpop.f32.mrb[0].mxu0
    %v2958 = vadd.f32 0.0, %v2957
    %v2959 = vpop.f32.mrb[0].mxu0
    %v2960 = vadd.f32 0.0, %v2959
    %2961 = vmatprep.mubr.f32.mxu0 0.0
    %2962 = vmatmul.mubr.f32.gmra.mrb[0].mxu0 %v2580
    %v2963 = vpop.f32.mrb[0].mxu0
    %v2964 = vadd.f32 0.0, %v2963
    %v2965 = vpop.f32.mrb[0].mxu0
    %v2966 = vadd.f32 0.0, %v2965
    %2967 = vmatprep.mubr.f32.mxu0 0.0
    %2968 = vmatmul.mubr.f32.gmra.mrb[0].mxu0 %v2581
    %v2969 = vpop.f32.mrb[0].mxu0
    %v2970 = vadd.f32 0.0, %v2969
    %v2971 = vpop.f32.mrb[0].mxu0
    %v2972 = vadd.f32 0.0, %v2971
    %2973 = vmatprep.mubr.f32.mxu0 0.0
    %2974 = vmatmul.mubr.f32.gmra.mrb[0].mxu0 %v2582
    %v2975 = vpop.f32.mrb[0].mxu0
    %v2976 = vadd.f32 0.0, %v2975
    %v2977 = vpop.f32.mrb[0].mxu0
    %v2978 = vadd.f32 0.0, %v2977
    %2979 = vmatprep.mubr.f32.mxu0 0.0
    %2980 = vmatmul.mubr.f32.gmra.mrb[0].mxu0 %v2583
    %v2981 = vpop.f32.mrb[0].mxu0
    %v2982 = vadd.f32 0.0, %v2981
    %v2983 = vpop.f32.mrb[0].mxu0
    %v2984 = vadd.f32 0.0, %v2983
    %2985 = vmatprep.mubr.f32.mxu0 0.0
    %2986 = vmatmul.mubr.f32.gmra.mrb[0].mxu0 %v2584
    %v2987 = vpop.f32.mrb[0].mxu0
    %v2988 = vadd.f32 0.0, %v2987
    %v2989 = vpop.f32.mrb[0].mxu0
    %v2990 = vadd.f32 0.0, %v2989
    %2991 = vmatprep.mubr.f32.mxu0 0.0
    %2992 = vmatmul.mubr.f32.gmra.mrb[0].mxu0 %v2585
    %v2993 = vpop.f32.mrb[0].mxu0
    %v2994 = vadd.f32 0.0, %v2993
    %v2995 = vpop.f32.mrb[0].mxu0
    %v2996 = vadd.f32 0.0, %v2995
    %2997 = vmatprep.mubr.f32.mxu0 0.0
    %2998 = vmatmul.mubr.f32.gmra.mrb[0].mxu0 %v2586
    %v2999 = vpop.f32.mrb[0].mxu0
    %v3000 = vadd.f32 0.0, %v2999
    %v3001 = vpop.f32.mrb[0].mxu0
    %v3002 = vadd.f32 0.0, %v3001
    %3003 = vmatprep.mubr.f32.mxu0 0.0
    %3004 = vmatmul.mubr.f32.gmra.mrb[0].mxu0 %v2587
    %v3005 = vpop.f32.mrb[0].mxu0
    %v3006 = vadd.f32 0.0, %v3005
    %v3007 = vpop.f32.mrb[0].mxu0
    %v3008 = vadd.f32 0.0, %v3007
    %3009 = vmatprep.mubr.f32.mxu0 0.0
    %3010 = vmatmul.mubr.f32.gmra.mrb[0].mxu0 %v2588
    %v3011 = vpop.f32.mrb[0].mxu0
    %v3012 = vadd.f32 0.0, %v3011
    %v3013 = vpop.f32.mrb[0].mxu0
    %v3014 = vadd.f32 0.0, %v3013
    %3015 = vmatprep.mubr.f32.mxu0 0.0
    %3016 = vmatmul.mubr.f32.gmra.mrb[0].mxu0 %v2589
    %v3017 = vpop.f32.mrb[0].mxu0
    %v3018 = vadd.f32 0.0, %v3017
    %v3019 = vpop.f32.mrb[0].mxu0
    %v3020 = vadd.f32 0.0, %v3019
    %3021 = vmatprep.mubr.f32.mxu0 0.0
    %3022 = vmatmul.mubr.f32.gmra.mrb[0].mxu0 %v2590
    %v3023 = vpop.f32.mrb[0].mxu0
    %v3024 = vadd.f32 0.0, %v3023
    %v3025 = vpop.f32.mrb[0].mxu0
    %v3026 = vadd.f32 0.0, %v3025
    %3027 = vmatprep.mubr.f32.mxu0 0.0
    %3028 = vmatmul.mubr.f32.gmra.mrb[0].mxu0 %v2591
    %v3029 = vpop.f32.mrb[0].mxu0
    %v3030 = vadd.f32 0.0, %v3029
    %v3031 = vpop.f32.mrb[0].mxu0
    %v3032 = vadd.f32 0.0, %v3031
    %3033 = vdwg.mxu0
    %3034 = vmatprep.subr.mxu0 %v2597
    %3035 = vmatpush1.msra.mxu0 %v2596
    %3036 = vmatprep.subr.mxu0 %v2603
    %3037 = vmatpush1.msra.mxu0 %v2602
    %3038 = vmatprep.subr.mxu0 %v2609
    %3039 = vmatpush1.msra.mxu0 %v2608
    %3040 = vmatprep.subr.mxu0 %v2615
    %3041 = vmatpush1.msra.mxu0 %v2614
    %3042 = vmatprep.subr.mxu0 %v2621
    %3043 = vmatpush1.msra.mxu0 %v2620
    %3044 = vmatprep.subr.mxu0 %v2627
    %3045 = vmatpush1.msra.mxu0 %v2626
    %3046 = vmatprep.subr.mxu0 %v2633
    %3047 = vmatpush1.msra.mxu0 %v2632
    %3048 = vmatprep.subr.mxu0 %v2639
    %3049 = vmatpush1.msra.mxu0 %v2638
    %3050 = vmatprep.subr.mxu0 %v2645
    %3051 = vmatpush1.msra.mxu0 %v2644
    %3052 = vmatprep.subr.mxu0 %v2651
    %3053 = vmatpush1.msra.mxu0 %v2650
    %3054 = vmatprep.subr.mxu0 %v2657
    %3055 = vmatpush1.msra.mxu0 %v2656
    %3056 = vmatprep.subr.mxu0 %v2663
    %3057 = vmatpush1.msra.mxu0 %v2662
    %3058 = vmatprep.subr.mxu0 %v2669
    %3059 = vmatpush1.msra.mxu0 %v2668
    %3060 = vmatprep.subr.mxu0 %v2675
    %3061 = vmatpush1.msra.mxu0 %v2674
    %3062 = vmatprep.subr.mxu0 %v2681
    %3063 = vmatpush1.msra.mxu0 %v2680
    %3064 = vmatprep.subr.mxu0 %v2687
    %3065 = vmatpush1.msra.mxu0 %v2686
    %3066 = vmatprep.subr.mxu0 0.0
    %3067 = vmatpush1.msra.mxu0 0.0
    %3068 = vmatprep.subr.mxu0 0.0
    %3069 = vmatpush1.msra.mxu0 0.0
    %3070 = vmatprep.subr.mxu0 0.0
    %3071 = vmatpush1.msra.mxu0 0.0
    %3072 = vmatprep.subr.mxu0 0.0
    %3073 = vmatpush1.msra.mxu0 0.0
    %3074 = vmatprep.subr.mxu0 0.0
    %3075 = vmatpush1.msra.mxu0 0.0
    %3076 = vmatprep.subr.mxu0 0.0
    %3077 = vmatpush1.msra.mxu0 0.0
    %3078 = vmatprep.subr.mxu0 0.0
    %3079 = vmatpush1.msra.mxu0 0.0
    %3080 = vmatprep.subr.mxu0 0.0
    %3081 = vmatpush1.msra.mxu0 0.0
    %3082 = vmatprep.subr.mxu0 0.0
    %3083 = vmatpush1.msra.mxu0 0.0
    %3084 = vmatprep.subr.mxu0 0.0
    %3085 = vmatpush1.msra.mxu0 0.0
    %3086 = vmatprep.subr.mxu0 0.0
    %3087 = vmatpush1.msra.mxu0 0.0
    %3088 = vmatprep.subr.mxu0 0.0
    %3089 = vmatpush1.msra.mxu0 0.0
    %3090 = vmatprep.subr.mxu0 0.0
    %3091 = vmatpush1.msra.mxu0 0.0
    %3092 = vmatprep.subr.mxu0 0.0
    %3093 = vmatpush1.msra.mxu0 0.0
    %3094 = vmatprep.subr.mxu0 0.0
    %3095 = vmatpush1.msra.mxu0 0.0
    %3096 = vmatprep.subr.mxu0 0.0
    %3097 = vmatpush1.msra.mxu0 0.0
    %3098 = vmatprep.mubr.f32.mxu0 0.0
    %3099 = vmatmul.mubr.f32.gmra.mrb[0].mxu0 %v2574
    %v3100 = vpop.f32.mrb[0].mxu0
    %v3101 = vadd.f32 0.0, %v3100
    %v3102 = vpop.f32.mrb[0].mxu0
    %v3103 = vadd.f32 0.0, %v3102
    %3104 = vmatprep.mubr.f32.mxu0 0.0
    %3105 = vmatmul.mubr.f32.gmra.mrb[0].mxu0 %v2575
    %v3106 = vpop.f32.mrb[0].mxu0
    %v3107 = vadd.f32 0.0, %v3106
    %v3108 = vpop.f32.mrb[0].mxu0
    %v3109 = vadd.f32 0.0, %v3108
    %3110 = vmatprep.mubr.f32.mxu0 0.0
    %3111 = vmatmul.mubr.f32.gmra.mrb[0].mxu0 %v2576
    %v3112 = vpop.f32.mrb[0].mxu0
    %v3113 = vadd.f32 0.0, %v3112
    %v3114 = vpop.f32.mrb[0].mxu0
    %v3115 = vadd.f32 0.0, %v3114
    %3116 = vmatprep.mubr.f32.mxu0 0.0
    %3117 = vmatmul.mubr.f32.gmra.mrb[0].mxu0 %v2577
    %v3118 = vpop.f32.mrb[0].mxu0
    %v3119 = vadd.f32 0.0, %v3118
    %v3120 = vpop.f32.mrb[0].mxu0
    %v3121 = vadd.f32 0.0, %v3120
    %3122 = vmatprep.mubr.f32.mxu0 0.0
    %3123 = vmatmul.mubr.f32.gmra.mrb[0].mxu0 %v2578
    %v3124 = vpop.f32.mrb[0].mxu0
    %v3125 = vadd.f32 0.0, %v3124
    %v3126 = vpop.f32.mrb[0].mxu0
    %v3127 = vadd.f32 0.0, %v3126
    %3128 = vmatprep.mubr.f32.mxu0 0.0
    %3129 = vmatmul.mubr.f32.gmra.mrb[0].mxu0 %v2579
    %v3130 = vpop.f32.mrb[0].mxu0
    %v3131 = vadd.f32 0.0, %v3130
    %v3132 = vpop.f32.mrb[0].mxu0
    %v3133 = vadd.f32 0.0, %v3132
    %3134 = vmatprep.mubr.f32.mxu0 0.0
    %3135 = vmatmul.mubr.f32.gmra.mrb[0].mxu0 %v2580
    %v3136 = vpop.f32.mrb[0].mxu0
    %v3137 = vadd.f32 0.0, %v3136
    %v3138 = vpop.f32.mrb[0].mxu0
    %v3139 = vadd.f32 0.0, %v3138
    %3140 = vmatprep.mubr.f32.mxu0 0.0
    %3141 = vmatmul.mubr.f32.gmra.mrb[0].mxu0 %v2581
    %v3142 = vpop.f32.mrb[0].mxu0
    %v3143 = vadd.f32 0.0, %v3142
    %v3144 = vpop.f32.mrb[0].mxu0
    %v3145 = vadd.f32 0.0, %v3144
    %3146 = vmatprep.mubr.f32.mxu0 0.0
    %3147 = vmatmul.mubr.f32.gmra.mrb[0].mxu0 %v2582
    %v3148 = vpop.f32.mrb[0].mxu0
    %v3149 = vadd.f32 0.0, %v3148
    %v3150 = vpop.f32.mrb[0].mxu0
    %v3151 = vadd.f32 0.0, %v3150
    %3152 = vmatprep.mubr.f32.mxu0 0.0
    %3153 = vmatmul.mubr.f32.gmra.mrb[0].mxu0 %v2583
    %v3154 = vpop.f32.mrb[0].mxu0
    %v3155 = vadd.f32 0.0, %v3154
    %v3156 = vpop.f32.mrb[0].mxu0
    %v3157 = vadd.f32 0.0, %v3156
    %3158 = vmatprep.mubr.f32.mxu0 0.0
    %3159 = vmatmul.mubr.f32.gmra.mrb[0].mxu0 %v2584
    %v3160 = vpop.f32.mrb[0].mxu0
    %v3161 = vadd.f32 0.0, %v3160
    %v3162 = vpop.f32.mrb[0].mxu0
    %v3163 = vadd.f32 0.0, %v3162
    %3164 = vmatprep.mubr.f32.mxu0 0.0
    %3165 = vmatmul.mubr.f32.gmra.mrb[0].mxu0 %v2585
    %v3166 = vpop.f32.mrb[0].mxu0
    %v3167 = vadd.f32 0.0, %v3166
    %v3168 = vpop.f32.mrb[0].mxu0
    %v3169 = vadd.f32 0.0, %v3168
    %3170 = vmatprep.mubr.f32.mxu0 0.0
    %3171 = vmatmul.mubr.f32.gmra.mrb[0].mxu0 %v2586
    %v3172 = vpop.f32.mrb[0].mxu0
    %v3173 = vadd.f32 0.0, %v3172
    %v3174 = vpop.f32.mrb[0].mxu0
    %v3175 = vadd.f32 0.0, %v3174
    %3176 = vmatprep.mubr.f32.mxu0 0.0
    %3177 = vmatmul.mubr.f32.gmra.mrb[0].mxu0 %v2587
    %v3178 = vpop.f32.mrb[0].mxu0
    %v3179 = vadd.f32 0.0, %v3178
    %v3180 = vpop.f32.mrb[0].mxu0
    %v3181 = vadd.f32 0.0, %v3180
    %3182 = vmatprep.mubr.f32.mxu0 0.0
    %3183 = vmatmul.mubr.f32.gmra.mrb[0].mxu0 %v2588
    %v3184 = vpop.f32.mrb[0].mxu0
    %v3185 = vadd.f32 0.0, %v3184
    %v3186 = vpop.f32.mrb[0].mxu0
    %v3187 = vadd.f32 0.0, %v3186
    %3188 = vmatprep.mubr.f32.mxu0 0.0
    %3189 = vmatmul.mubr.f32.gmra.mrb[0].mxu0 %v2589
    %v3190 = vpop.f32.mrb[0].mxu0
    %v3191 = vadd.f32 0.0, %v3190
    %v3192 = vpop.f32.mrb[0].mxu0
    %v3193 = vadd.f32 0.0, %v3192
    %3194 = vmatprep.mubr.f32.mxu0 0.0
    %3195 = vmatmul.mubr.f32.gmra.mrb[0].mxu0 %v2590
    %v3196 = vpop.f32.mrb[0].mxu0
    %v3197 = vadd.f32 0.0, %v3196
    %v3198 = vpop.f32.mrb[0].mxu0
    %v3199 = vadd.f32 0.0, %v3198
    %3200 = vmatprep.mubr.f32.mxu0 0.0
    %3201 = vmatmul.mubr.f32.gmra.mrb[0].mxu0 %v2591
    %v3202 = vpop.f32.mrb[0].mxu0
    %v3203 = vadd.f32 0.0, %v3202
    %v3204 = vpop.f32.mrb[0].mxu0
    %v3205 = vadd.f32 0.0, %v3204
    %3206 = vdwg.mxu0
    %3207 = vrot.lane.b32.xlu0 %v2755, 17
    %v3208 = vpop.permute.xlu0 %3207
    %3209 = vrot.lane.b32.xlu0 %v2761, 17
    %v3210 = vpop.permute.xlu0 %3209
    %3211 = vrot.lane.b32.xlu0 %v2757, 17
    %v3212 = vpop.permute.xlu0 %3211
    %3213 = vrot.lane.b32.xlu0 %v2763, 17
    %v3214 = vpop.permute.xlu0 %3213
    %3215 = vrot.lane.b32.xlu0 %v2928, 17
    %v3216 = vpop.permute.xlu0 %3215
    %3217 = vrot.lane.b32.xlu0 %v2934, 17
    %v3218 = vpop.permute.xlu0 %3217
    %3219 = vrot.lane.b32.xlu0 %v2930, 17
    %v3220 = vpop.permute.xlu0 %3219
    %3221 = vrot.lane.b32.xlu0 %v2936, 17
    %v3222 = vpop.permute.xlu0 %3221
    %3223 = vrot.lane.b32.xlu0 %v3101, 17
    %v3224 = vpop.permute.xlu0 %3223
    %3225 = vrot.lane.b32.xlu0 %v3107, 17
    %v3226 = vpop.permute.xlu0 %3225
    %3227 = vrot.lane.b32.xlu0 %v3103, 17
    %v3228 = vpop.permute.xlu0 %3227
    %3229 = vrot.lane.b32.xlu0 %v3109, 17
    %v3230 = vpop.permute.xlu0 %3229
    %v3231 = vsel %vm829, %v3224, %v3228
    %v3232 = vsel %vm829, %v3226, %v3230
    %v3233 = vsel %vm829, %v3220, %v3224
    %v3234 = vsel %vm829, %v3222, %v3226
    %v3235 = vsel %vm829, %v3216, %v3220
    %v3236 = vsel %vm829, %v3218, %v3222
    %v3237 = vsel %vm829, %v3212, %v3216
    %v3238 = vsel %vm829, %v3214, %v3218
    %v3239 = vsel %vm829, %v3208, %v3212
    %v3240 = vsel %vm829, %v3210, %v3214
    %v3241 = vsel %vm829, %v3228, %v3208
    %v3242 = vsel %vm829, %v3230, %v3210
    %v3243 = vmul.f32 %v3241, %v846
    %v3244 = vmul.f32 %v3239, %v850
    %v3245 = vmul.f32 %v3237, %v854
    %v3246 = vmul.f32 %v3235, %v858
    %v3247 = vmul.f32 %v3233, %v862
    %v3248 = vmul.f32 %v3231, %v866
    %v3249 = vmul.f32 %v3242, %v846
    %v3250 = vmul.f32 %v3240, %v850
    %v3251 = vmul.f32 %v3238, %v854
    %v3252 = vmul.f32 %v3236, %v858
    %v3253 = vmul.f32 %v3234, %v862
    %v3254 = vmul.f32 %v3232, %v866
    %3255 = vrot.lane.b32.xlu0 %v2767, 16
    %v3256 = vpop.permute.xlu0 %3255
    %3257 = vrot.lane.b32.xlu0 %v2773, 16
    %v3258 = vpop.permute.xlu0 %3257
    %3259 = vrot.lane.b32.xlu0 %v2769, 16
    %v3260 = vpop.permute.xlu0 %3259
    %3261 = vrot.lane.b32.xlu0 %v2775, 16
    %v3262 = vpop.permute.xlu0 %3261
    %3263 = vrot.lane.b32.xlu0 %v2940, 16
    %v3264 = vpop.permute.xlu0 %3263
    %3265 = vrot.lane.b32.xlu0 %v2946, 16
    %v3266 = vpop.permute.xlu0 %3265
    %3267 = vrot.lane.b32.xlu0 %v2942, 16
    %v3268 = vpop.permute.xlu0 %3267
    %3269 = vrot.lane.b32.xlu0 %v2948, 16
    %v3270 = vpop.permute.xlu0 %3269
    %3271 = vrot.lane.b32.xlu0 %v3113, 16
    %v3272 = vpop.permute.xlu0 %3271
    %3273 = vrot.lane.b32.xlu0 %v3119, 16
    %v3274 = vpop.permute.xlu0 %3273
    %3275 = vrot.lane.b32.xlu0 %v3115, 16
    %v3276 = vpop.permute.xlu0 %3275
    %3277 = vrot.lane.b32.xlu0 %v3121, 16
    %v3278 = vpop.permute.xlu0 %3277
    %v3279 = vsel %vm909, %v3272, %v3276
    %v3280 = vsel %vm909, %v3274, %v3278
    %v3281 = vsel %vm909, %v3268, %v3272
    %v3282 = vsel %vm909, %v3270, %v3274
    %v3283 = vsel %vm909, %v3264, %v3268
    %v3284 = vsel %vm909, %v3266, %v3270
    %v3285 = vsel %vm909, %v3260, %v3264
    %v3286 = vsel %vm909, %v3262, %v3266
    %v3287 = vsel %vm909, %v3256, %v3260
    %v3288 = vsel %vm909, %v3258, %v3262
    %v3289 = vsel %vm909, %v3276, %v3256
    %v3290 = vsel %vm909, %v3278, %v3258
    %v3291 = vadd.f32 %v3243, %v3289
    %v3292 = vadd.f32 %v3244, %v3287
    %v3293 = vadd.f32 %v3245, %v3285
    %v3294 = vadd.f32 %v3246, %v3283
    %v3295 = vadd.f32 %v3247, %v3281
    %v3296 = vadd.f32 %v3248, %v3279
    %v3297 = vadd.f32 %v3249, %v3290
    %v3298 = vadd.f32 %v3250, %v3288
    %v3299 = vadd.f32 %v3251, %v3286
    %v3300 = vadd.f32 %v3252, %v3284
    %v3301 = vadd.f32 %v3253, %v3282
    %v3302 = vadd.f32 %v3254, %v3280
    %3303 = vrot.lane.b32.xlu0 %v2779, 15
    %v3304 = vpop.permute.xlu0 %3303
    %3305 = vrot.lane.b32.xlu0 %v2785, 15
    %v3306 = vpop.permute.xlu0 %3305
    %3307 = vrot.lane.b32.xlu0 %v2781, 15
    %v3308 = vpop.permute.xlu0 %3307
    %3309 = vrot.lane.b32.xlu0 %v2787, 15
    %v3310 = vpop.permute.xlu0 %3309
    %3311 = vrot.lane.b32.xlu0 %v2952, 15
    %v3312 = vpop.permute.xlu0 %3311
    %3313 = vrot.lane.b32.xlu0 %v2958, 15
    %v3314 = vpop.permute.xlu0 %3313
    %3315 = vrot.lane.b32.xlu0 %v2954, 15
    %v3316 = vpop.permute.xlu0 %3315
    %3317 = vrot.lane.b32.xlu0 %v2960, 15
    %v3318 = vpop.permute.xlu0 %3317
    %3319 = vrot.lane.b32.xlu0 %v3125, 15
    %v3320 = vpop.permute.xlu0 %3319
    %3321 = vrot.lane.b32.xlu0 %v3131, 15
    %v3322 = vpop.permute.xlu0 %3321
    %3323 = vrot.lane.b32.xlu0 %v3127, 15
    %v3324 = vpop.permute.xlu0 %3323
    %3325 = vrot.lane.b32.xlu0 %v3133, 15
    %v3326 = vpop.permute.xlu0 %3325
    %v3327 = vsel %vm958, %v3320, %v3324
    %v3328 = vsel %vm958, %v3322, %v3326
    %v3329 = vsel %vm958, %v3316, %v3320
    %v3330 = vsel %vm958, %v3318, %v3322
    %v3331 = vsel %vm958, %v3312, %v3316
    %v3332 = vsel %vm958, %v3314, %v3318
    %v3333 = vsel %vm958, %v3308, %v3312
    %v3334 = vsel %vm958, %v3310, %v3314
    %v3335 = vsel %vm958, %v3304, %v3308
    %v3336 = vsel %vm958, %v3306, %v3310
    %v3337 = vsel %vm958, %v3324, %v3304
    %v3338 = vsel %vm958, %v3326, %v3306
    %v3339 = vmul.f32 %v3337, %v975
    %v3340 = vmul.f32 %v3335, %v979
    %v3341 = vmul.f32 %v3333, %v983
    %v3342 = vmul.f32 %v3331, %v987
    %v3343 = vmul.f32 %v3329, %v991
    %v3344 = vmul.f32 %v3327, %v995
    %v3345 = vmul.f32 %v3338, %v975
    %v3346 = vmul.f32 %v3336, %v979
    %v3347 = vmul.f32 %v3334, %v983
    %v3348 = vmul.f32 %v3332, %v987
    %v3349 = vmul.f32 %v3330, %v991
    %v3350 = vmul.f32 %v3328, %v995
    %v3351 = vadd.f32 %v3291, %v3339
    %v3352 = vadd.f32 %v3292, %v3340
    %v3353 = vadd.f32 %v3293, %v3341
    %v3354 = vadd.f32 %v3294, %v3342
    %v3355 = vadd.f32 %v3295, %v3343
    %v3356 = vadd.f32 %v3296, %v3344
    %v3357 = vadd.f32 %v3297, %v3345
    %v3358 = vadd.f32 %v3298, %v3346
    %v3359 = vadd.f32 %v3299, %v3347
    %v3360 = vadd.f32 %v3300, %v3348
    %v3361 = vadd.f32 %v3301, %v3349
    %v3362 = vadd.f32 %v3302, %v3350
    %3363 = vrot.lane.b32.xlu0 %v2791, 1
    %v3364 = vpop.permute.xlu0 %3363
    %3365 = vrot.lane.b32.xlu0 %v2797, 1
    %v3366 = vpop.permute.xlu0 %3365
    %3367 = vrot.lane.b32.xlu0 %v2793, 1
    %v3368 = vpop.permute.xlu0 %3367
    %3369 = vrot.lane.b32.xlu0 %v2799, 1
    %v3370 = vpop.permute.xlu0 %3369
    %3371 = vrot.lane.b32.xlu0 %v2964, 1
    %v3372 = vpop.permute.xlu0 %3371
    %3373 = vrot.lane.b32.xlu0 %v2970, 1
    %v3374 = vpop.permute.xlu0 %3373
    %3375 = vrot.lane.b32.xlu0 %v2966, 1
    %v3376 = vpop.permute.xlu0 %3375
    %3377 = vrot.lane.b32.xlu0 %v2972, 1
    %v3378 = vpop.permute.xlu0 %3377
    %3379 = vrot.lane.b32.xlu0 %v3137, 1
    %v3380 = vpop.permute.xlu0 %3379
    %3381 = vrot.lane.b32.xlu0 %v3143, 1
    %v3382 = vpop.permute.xlu0 %3381
    %3383 = vrot.lane.b32.xlu0 %v3139, 1
    %v3384 = vpop.permute.xlu0 %3383
    %3385 = vrot.lane.b32.xlu0 %v3145, 1
    %v3386 = vpop.permute.xlu0 %3385
    %v3387 = vsel %vm1050, %v3380, %v3384
    %v3388 = vsel %vm1050, %v3382, %v3386
    %v3389 = vsel %vm1050, %v3376, %v3380
    %v3390 = vsel %vm1050, %v3378, %v3382
    %v3391 = vsel %vm1050, %v3372, %v3376
    %v3392 = vsel %vm1050, %v3374, %v3378
    %v3393 = vsel %vm1050, %v3368, %v3372
    %v3394 = vsel %vm1050, %v3370, %v3374
    %v3395 = vsel %vm1050, %v3364, %v3368
    %v3396 = vsel %vm1050, %v3366, %v3370
    %v3397 = vsel %vm1050, %v3384, %v3364
    %v3398 = vsel %vm1050, %v3386, %v3366
    %v3399 = vmul.f32 %v3397, %v846
    %v3400 = vmul.f32 %v3395, %v850
    %v3401 = vmul.f32 %v3393, %v854
    %v3402 = vmul.f32 %v3391, %v858
    %v3403 = vmul.f32 %v3389, %v862
    %v3404 = vmul.f32 %v3387, %v866
    %v3405 = vmul.f32 %v3398, %v846
    %v3406 = vmul.f32 %v3396, %v850
    %v3407 = vmul.f32 %v3394, %v854
    %v3408 = vmul.f32 %v3392, %v858
    %v3409 = vmul.f32 %v3390, %v862
    %v3410 = vmul.f32 %v3388, %v866
    %v3411 = vadd.f32 %v3351, %v3399
    %v3412 = vadd.f32 %v3352, %v3400
    %v3413 = vadd.f32 %v3353, %v3401
    %v3414 = vadd.f32 %v3354, %v3402
    %v3415 = vadd.f32 %v3355, %v3403
    %v3416 = vadd.f32 %v3356, %v3404
    %v3417 = vadd.f32 %v3357, %v3405
    %v3418 = vadd.f32 %v3358, %v3406
    %v3419 = vadd.f32 %v3359, %v3407
    %v3420 = vadd.f32 %v3360, %v3408
    %v3421 = vadd.f32 %v3361, %v3409
    %v3422 = vadd.f32 %v3362, %v3410
    %v3423 = vadd.f32 %v3411, %v2803
    %v3424 = vadd.f32 %v3412, %v2805
    %v3425 = vadd.f32 %v3413, %v2976
    %v3426 = vadd.f32 %v3414, %v2978
    %v3427 = vadd.f32 %v3415, %v3149
    %v3428 = vadd.f32 %v3416, %v3151
    %v3429 = vadd.f32 %v3417, %v2809
    %v3430 = vadd.f32 %v3418, %v2811
    %v3431 = vadd.f32 %v3419, %v2982
    %v3432 = vadd.f32 %v3420, %v2984
    %v3433 = vadd.f32 %v3421, %v3155
    %v3434 = vadd.f32 %v3422, %v3157
    %3435 = vrot.lane.b32.xlu0 %v2815, 127
    %v3436 = vpop.permute.xlu0 %3435
    %3437 = vrot.lane.b32.xlu0 %v2821, 127
    %v3438 = vpop.permute.xlu0 %3437
    %3439 = vrot.lane.b32.xlu0 %v2817, 127
    %v3440 = vpop.permute.xlu0 %3439
    %3441 = vrot.lane.b32.xlu0 %v2823, 127
    %v3442 = vpop.permute.xlu0 %3441
    %3443 = vrot.lane.b32.xlu0 %v2988, 127
    %v3444 = vpop.permute.xlu0 %3443
    %3445 = vrot.lane.b32.xlu0 %v2994, 127
    %v3446 = vpop.permute.xlu0 %3445
    %3447 = vrot.lane.b32.xlu0 %v2990, 127
    %v3448 = vpop.permute.xlu0 %3447
    %3449 = vrot.lane.b32.xlu0 %v2996, 127
    %v3450 = vpop.permute.xlu0 %3449
    %3451 = vrot.lane.b32.xlu0 %v3161, 127
    %v3452 = vpop.permute.xlu0 %3451
    %3453 = vrot.lane.b32.xlu0 %v3167, 127
    %v3454 = vpop.permute.xlu0 %3453
    %3455 = vrot.lane.b32.xlu0 %v3163, 127
    %v3456 = vpop.permute.xlu0 %3455
    %3457 = vrot.lane.b32.xlu0 %v3169, 127
    %v3458 = vpop.permute.xlu0 %3457
    %v3459 = vsel %vm1123, %v3452, %v3456
    %v3460 = vsel %vm1123, %v3454, %v3458
    %v3461 = vsel %vm1123, %v3448, %v3452
    %v3462 = vsel %vm1123, %v3450, %v3454
    %v3463 = vsel %vm1123, %v3444, %v3448
    %v3464 = vsel %vm1123, %v3446, %v3450
    %v3465 = vsel %vm1123, %v3440, %v3444
    %v3466 = vsel %vm1123, %v3442, %v3446
    %v3467 = vsel %vm1123, %v3436, %v3440
    %v3468 = vsel %vm1123, %v3438, %v3442
    %v3469 = vsel %vm1123, %v3456, %v3436
    %v3470 = vsel %vm1123, %v3458, %v3438
    %v3471 = vmul.f32 %v3467, %v975
    %v3472 = vmul.f32 %v3465, %v979
    %v3473 = vmul.f32 %v3463, %v983
    %v3474 = vmul.f32 %v3461, %v987
    %v3475 = vmul.f32 %v3459, %v991
    %v3476 = vmul.f32 %v3469, %v995
    %v3477 = vmul.f32 %v3468, %v975
    %v3478 = vmul.f32 %v3466, %v979
    %v3479 = vmul.f32 %v3464, %v983
    %v3480 = vmul.f32 %v3462, %v987
    %v3481 = vmul.f32 %v3460, %v991
    %v3482 = vmul.f32 %v3470, %v995
    %v3483 = vadd.f32 %v3423, %v3471
    %v3484 = vadd.f32 %v3424, %v3472
    %v3485 = vadd.f32 %v3425, %v3473
    %v3486 = vadd.f32 %v3426, %v3474
    %v3487 = vadd.f32 %v3427, %v3475
    %v3488 = vadd.f32 %v3428, %v3476
    %v3489 = vadd.f32 %v3429, %v3477
    %v3490 = vadd.f32 %v3430, %v3478
    %v3491 = vadd.f32 %v3431, %v3479
    %v3492 = vadd.f32 %v3432, %v3480
    %v3493 = vadd.f32 %v3433, %v3481
    %v3494 = vadd.f32 %v3434, %v3482
    %3495 = vrot.lane.b32.xlu0 %v2827, 113
    %v3496 = vpop.permute.xlu0 %3495
    %3497 = vrot.lane.b32.xlu0 %v2833, 113
    %v3498 = vpop.permute.xlu0 %3497
    %3499 = vrot.lane.b32.xlu0 %v2829, 113
    %v3500 = vpop.permute.xlu0 %3499
    %3501 = vrot.lane.b32.xlu0 %v2835, 113
    %v3502 = vpop.permute.xlu0 %3501
    %3503 = vrot.lane.b32.xlu0 %v3000, 113
    %v3504 = vpop.permute.xlu0 %3503
    %3505 = vrot.lane.b32.xlu0 %v3006, 113
    %v3506 = vpop.permute.xlu0 %3505
    %3507 = vrot.lane.b32.xlu0 %v3002, 113
    %v3508 = vpop.permute.xlu0 %3507
    %3509 = vrot.lane.b32.xlu0 %v3008, 113
    %v3510 = vpop.permute.xlu0 %3509
    %3511 = vrot.lane.b32.xlu0 %v3173, 113
    %v3512 = vpop.permute.xlu0 %3511
    %3513 = vrot.lane.b32.xlu0 %v3179, 113
    %v3514 = vpop.permute.xlu0 %3513
    %3515 = vrot.lane.b32.xlu0 %v3175, 113
    %v3516 = vpop.permute.xlu0 %3515
    %3517 = vrot.lane.b32.xlu0 %v3181, 113
    %v3518 = vpop.permute.xlu0 %3517
    %v3519 = vsel %vm1184, %v3512, %v3516
    %v3520 = vsel %vm1184, %v3514, %v3518
    %v3521 = vsel %vm1184, %v3508, %v3512
    %v3522 = vsel %vm1184, %v3510, %v3514
    %v3523 = vsel %vm1184, %v3504, %v3508
    %v3524 = vsel %vm1184, %v3506, %v3510
    %v3525 = vsel %vm1184, %v3500, %v3504
    %v3526 = vsel %vm1184, %v3502, %v3506
    %v3527 = vsel %vm1184, %v3496, %v3500
    %v3528 = vsel %vm1184, %v3498, %v3502
    %v3529 = vsel %vm1184, %v3516, %v3496
    %v3530 = vsel %vm1184, %v3518, %v3498
    %v3531 = vmul.f32 %v3527, %v846
    %v3532 = vmul.f32 %v3525, %v850
    %v3533 = vmul.f32 %v3523, %v854
    %v3534 = vmul.f32 %v3521, %v858
    %v3535 = vmul.f32 %v3519, %v862
    %v3536 = vmul.f32 %v3529, %v866
    %v3537 = vmul.f32 %v3528, %v846
    %v3538 = vmul.f32 %v3526, %v850
    %v3539 = vmul.f32 %v3524, %v854
    %v3540 = vmul.f32 %v3522, %v858
    %v3541 = vmul.f32 %v3520, %v862
    %v3542 = vmul.f32 %v3530, %v866
    %v3543 = vadd.f32 %v3483, %v3531
    %v3544 = vadd.f32 %v3484, %v3532
    %v3545 = vadd.f32 %v3485, %v3533
    %v3546 = vadd.f32 %v3486, %v3534
    %v3547 = vadd.f32 %v3487, %v3535
    %v3548 = vadd.f32 %v3488, %v3536
    %v3549 = vadd.f32 %v3489, %v3537
    %v3550 = vadd.f32 %v3490, %v3538
    %v3551 = vadd.f32 %v3491, %v3539
    %v3552 = vadd.f32 %v3492, %v3540
    %v3553 = vadd.f32 %v3493, %v3541
    %v3554 = vadd.f32 %v3494, %v3542
    %3555 = vrot.lane.b32.xlu0 %v2839, 112
    %v3556 = vpop.permute.xlu0 %3555
    %3557 = vrot.lane.b32.xlu0 %v2845, 112
    %v3558 = vpop.permute.xlu0 %3557
    %3559 = vrot.lane.b32.xlu0 %v2841, 112
    %v3560 = vpop.permute.xlu0 %3559
    %3561 = vrot.lane.b32.xlu0 %v2847, 112
    %v3562 = vpop.permute.xlu0 %3561
    %3563 = vrot.lane.b32.xlu0 %v3012, 112
    %v3564 = vpop.permute.xlu0 %3563
    %3565 = vrot.lane.b32.xlu0 %v3018, 112
    %v3566 = vpop.permute.xlu0 %3565
    %3567 = vrot.lane.b32.xlu0 %v3014, 112
    %v3568 = vpop.permute.xlu0 %3567
    %3569 = vrot.lane.b32.xlu0 %v3020, 112
    %v3570 = vpop.permute.xlu0 %3569
    %3571 = vrot.lane.b32.xlu0 %v3185, 112
    %v3572 = vpop.permute.xlu0 %3571
    %3573 = vrot.lane.b32.xlu0 %v3191, 112
    %v3574 = vpop.permute.xlu0 %3573
    %3575 = vrot.lane.b32.xlu0 %v3187, 112
    %v3576 = vpop.permute.xlu0 %3575
    %3577 = vrot.lane.b32.xlu0 %v3193, 112
    %v3578 = vpop.permute.xlu0 %3577
    %v3579 = vsel %vm1245, %v3572, %v3576
    %v3580 = vsel %vm1245, %v3574, %v3578
    %v3581 = vsel %vm1245, %v3568, %v3572
    %v3582 = vsel %vm1245, %v3570, %v3574
    %v3583 = vsel %vm1245, %v3564, %v3568
    %v3584 = vsel %vm1245, %v3566, %v3570
    %v3585 = vsel %vm1245, %v3560, %v3564
    %v3586 = vsel %vm1245, %v3562, %v3566
    %v3587 = vsel %vm1245, %v3556, %v3560
    %v3588 = vsel %vm1245, %v3558, %v3562
    %v3589 = vsel %vm1245, %v3576, %v3556
    %v3590 = vsel %vm1245, %v3578, %v3558
    %v3591 = vadd.f32 %v3543, %v3587
    %v3592 = vadd.f32 %v3544, %v3585
    %v3593 = vadd.f32 %v3545, %v3583
    %v3594 = vadd.f32 %v3546, %v3581
    %v3595 = vadd.f32 %v3547, %v3579
    %v3596 = vadd.f32 %v3548, %v3589
    %v3597 = vadd.f32 %v3549, %v3588
    %v3598 = vadd.f32 %v3550, %v3586
    %v3599 = vadd.f32 %v3551, %v3584
    %v3600 = vadd.f32 %v3552, %v3582
    %v3601 = vadd.f32 %v3553, %v3580
    %v3602 = vadd.f32 %v3554, %v3590
    %3603 = vrot.lane.b32.xlu0 %v2851, 111
    %v3604 = vpop.permute.xlu0 %3603
    %3605 = vrot.lane.b32.xlu0 %v2857, 111
    %v3606 = vpop.permute.xlu0 %3605
    %3607 = vrot.lane.b32.xlu0 %v2853, 111
    %v3608 = vpop.permute.xlu0 %3607
    %3609 = vrot.lane.b32.xlu0 %v2859, 111
    %v3610 = vpop.permute.xlu0 %3609
    %3611 = vrot.lane.b32.xlu0 %v3024, 111
    %v3612 = vpop.permute.xlu0 %3611
    %3613 = vrot.lane.b32.xlu0 %v3030, 111
    %v3614 = vpop.permute.xlu0 %3613
    %3615 = vrot.lane.b32.xlu0 %v3026, 111
    %v3616 = vpop.permute.xlu0 %3615
    %3617 = vrot.lane.b32.xlu0 %v3032, 111
    %v3618 = vpop.permute.xlu0 %3617
    %3619 = vrot.lane.b32.xlu0 %v3197, 111
    %v3620 = vpop.permute.xlu0 %3619
    %3621 = vrot.lane.b32.xlu0 %v3203, 111
    %v3622 = vpop.permute.xlu0 %3621
    %3623 = vrot.lane.b32.xlu0 %v3199, 111
    %v3624 = vpop.permute.xlu0 %3623
    %3625 = vrot.lane.b32.xlu0 %v3205, 111
    %v3626 = vpop.permute.xlu0 %3625
    %v3627 = vsel %vm1294, %v3620, %v3624
    %v3628 = vsel %vm1294, %v3622, %v3626
    %v3629 = vsel %vm1294, %v3616, %v3620
    %v3630 = vsel %vm1294, %v3618, %v3622
    %v3631 = vsel %vm1294, %v3612, %v3616
    %v3632 = vsel %vm1294, %v3614, %v3618
    %v3633 = vsel %vm1294, %v3608, %v3612
    %v3634 = vsel %vm1294, %v3610, %v3614
    %v3635 = vsel %vm1294, %v3604, %v3608
    %v3636 = vsel %vm1294, %v3606, %v3610
    %v3637 = vsel %vm1294, %v3624, %v3604
    %v3638 = vsel %vm1294, %v3626, %v3606
    %v3639 = vmul.f32 %v3635, %v975
    %v3640 = vmul.f32 %v3633, %v979
    %v3641 = vmul.f32 %v3631, %v983
    %v3642 = vmul.f32 %v3629, %v987
    %v3643 = vmul.f32 %v3627, %v991
    %v3644 = vmul.f32 %v3637, %v995
    %v3645 = vmul.f32 %v3636, %v975
    %v3646 = vmul.f32 %v3634, %v979
    %v3647 = vmul.f32 %v3632, %v983
    %v3648 = vmul.f32 %v3630, %v987
    %v3649 = vmul.f32 %v3628, %v991
    %v3650 = vmul.f32 %v3638, %v995
    %v3651 = vadd.f32 %v3591, %v3639
    %v3652 = vadd.f32 %v3592, %v3640
    %v3653 = vadd.f32 %v3593, %v3641
    %v3654 = vadd.f32 %v3594, %v3642
    %v3655 = vadd.f32 %v3595, %v3643
    %v3656 = vadd.f32 %v3596, %v3644
    %v3657 = vadd.f32 %v3597, %v3645
    %v3658 = vadd.f32 %v3598, %v3646
    %v3659 = vadd.f32 %v3599, %v3647
    %v3660 = vadd.f32 %v3600, %v3648
    %v3661 = vadd.f32 %v3601, %v3649
    %v3662 = vadd.f32 %v3602, %v3650
    %s3663 = scalar_lea.vmem %s2, 32
    %v3664 = vld [vmem:[%s3663] sm:$0xff]
    %v3665 = vld [vmem:[%s3663 + $0x8] sm:$0xff]
    %3667 = vset.pattern.permute.xlu0 0
    %3668 = vperm.xlu0 %3667, %v3664
    %v3669 = vpop.permute.xlu0 %3668
    %3672 = vset.pattern.permute.xlu0 0
    %3673 = vperm.xlu0 %3672, %v3665
    %v3674 = vpop.permute.xlu0 %3673
    %v3676 = vadd.f32 %v3651, %v3669
    %v3677 = vadd.f32 %v3652, %v3669
    %v3678 = vadd.f32 %v3653, %v3669
    %v3679 = vadd.f32 %v3654, %v3669
    %v3680 = vadd.f32 %v3655, %v3669
    %v3681 = vadd.f32 %v3656, %v3669
    %v3682 = vadd.f32 %v3657, %v3674
    %v3683 = vadd.f32 %v3658, %v3674
    %v3684 = vadd.f32 %v3659, %v3674
    %v3685 = vadd.f32 %v3660, %v3674
    %v3686 = vadd.f32 %v3661, %v3674
    %v3687 = vadd.f32 %v3662, %v3674
    %v3688 = vmax.f32 %v3676, 0.0
    %v3689 = vmax.f32 %v3677, 0.0
    %v3690 = vmax.f32 %v3678, 0.0
    %v3691 = vmax.f32 %v3679, 0.0
    %v3692 = vmax.f32 %v3680, 0.0
    %v3693 = vmax.f32 %v3681, 0.0
    %v3694 = vmax.f32 %v3682, 0.0
    %v3695 = vmax.f32 %v3683, 0.0
    %v3696 = vmax.f32 %v3684, 0.0
    %v3697 = vmax.f32 %v3685, 0.0
    %v3698 = vmax.f32 %v3686, 0.0
    %v3699 = vmax.f32 %v3687, 0.0
    %v3700 = vmul.f32 %v3688, %v1371
    %v3701 = vmul.f32 %v3689, %v1375
    %v3702 = vmul.f32 %v3690, %v1379
    %v3703 = vmul.f32 %v3691, %v1383
    %v3704 = vmul.f32 %v3692, %v1387
    %v3705 = vmul.f32 %v3693, %v1391
    %v3706 = vmul.f32 %v3694, %v1371
    %v3707 = vmul.f32 %v3695, %v1375
    %v3708 = vmul.f32 %v3696, %v1379
    %v3709 = vmul.f32 %v3697, %v1383
    %v3710 = vmul.f32 %v3698, %v1387
    %v3711 = vmul.f32 %v3699, %v1391
    %3712 = vst [vmem:[#allocation2 + $0x180] sm:$0xff] %v3700
    %3713 = vst [vmem:[#allocation2 + $0x188] sm:$0xff] %v3701
    %3714 = vst [vmem:[#allocation2 + $0x190] sm:$0xff] %v3702
    %3715 = vst [vmem:[#allocation2 + $0x198] sm:$0xff] %v3703
    %3716 = vst [vmem:[#allocation2 + $0x1a0] sm:$0xff] %v3704
    %3717 = vst [vmem:[#allocation2 + $0x1a8] sm:$0xff] %v3705
    %3718 = vst [vmem:[#allocation2 + $0x1b0] sm:$0xff] %v3706
    %3719 = vst [vmem:[#allocation2 + $0x1b8] sm:$0xff] %v3707
    %3720 = vst [vmem:[#allocation2 + $0x1c0] sm:$0xff] %v3708
    %3721 = vst [vmem:[#allocation2 + $0x1c8] sm:$0xff] %v3709
    %3722 = vst [vmem:[#allocation2 + $0x1d0] sm:$0xff] %v3710
    %3723 = vst [vmem:[#allocation2 + $0x1d8] sm:$0xff] %v3711
    %s3724 = scalar_lea.vmem [#allocation3], 432
    %v3725 = vld [vmem:[%s3724] sm:$0xff]
    %v3726 = vld [vmem:[%s3724 + $0x8] sm:$0xff]
    %v3727 = vld [vmem:[%s3724 + $0x10] sm:$0xff]
    %v3728 = vld [vmem:[%s3724 + $0x18] sm:$0xff]
    %v3729 = vld [vmem:[%s3724 + $0x20] sm:$0xff]
    %v3730 = vld [vmem:[%s3724 + $0x28] sm:$0xff]
    %v3731 = vld [vmem:[%s3724 + $0x30] sm:$0xff]
    %v3732 = vld [vmem:[%s3724 + $0x38] sm:$0xff]
    %v3733 = vld [vmem:[%s3724 + $0x40] sm:$0xff]
    %v3734 = vld [vmem:[%s3724 + $0x48] sm:$0xff]
    %v3735 = vld [vmem:[%s3724 + $0x50] sm:$0xff]
    %v3736 = vld [vmem:[%s3724 + $0x58] sm:$0xff]
    %v3737 = vld [vmem:[%s3724 + $0x60] sm:$0xff]
    %v3738 = vld [vmem:[%s3724 + $0x68] sm:$0xff]
    %v3739 = vld [vmem:[%s3724 + $0x70] sm:$0xff]
    %v3740 = vld [vmem:[%s3724 + $0x78] sm:$0xff]
    %v3741 = vld [vmem:[%s3724 + $0x80] sm:$0xff]
    %v3742 = vld [vmem:[%s3724 + $0x88] sm:$0xff]
    %v3743 = vld [vmem:[#allocation2] sm:$0xff]
    %v3744 = vld [vmem:[#allocation2 + $0x8] sm:$0xff]
    %v3745 = vld [vmem:[#allocation2 + $0x10] sm:$0xff]
    %v3746 = vld [vmem:[#allocation2 + $0x18] sm:$0xff]
    %v3747 = vld [vmem:[#allocation2 + $0x20] sm:$0xff]
    %v3748 = vld [vmem:[#allocation2 + $0x28] sm:$0xff]
    %v3749 = vld [vmem:[#allocation2 + $0x30] sm:$0xff]
    %v3750 = vld [vmem:[#allocation2 + $0x38] sm:$0xff]
    %v3751 = vld [vmem:[#allocation2 + $0x40] sm:$0xff]
    %v3752 = vld [vmem:[#allocation2 + $0x48] sm:$0xff]
    %v3753 = vld [vmem:[#allocation2 + $0x50] sm:$0xff]
    %v3754 = vld [vmem:[#allocation2 + $0x58] sm:$0xff]
    %v3755 = vld [vmem:[#allocation2 + $0x60] sm:$0xff]
    %v3756 = vld [vmem:[#allocation2 + $0x68] sm:$0xff]
    %v3757 = vld [vmem:[#allocation2 + $0x70] sm:$0xff]
    %v3758 = vld [vmem:[#allocation2 + $0x78] sm:$0xff]
    %v3759 = vld [vmem:[#allocation2 + $0x80] sm:$0xff]
    %v3760 = vld [vmem:[#allocation2 + $0x88] sm:$0xff]
    %v3761 = vld [vmem:[#allocation2 + $0x90] sm:$0xff]
    %v3762 = vld [vmem:[#allocation2 + $0x98] sm:$0xff]
    %v3763 = vld [vmem:[#allocation2 + $0xa0] sm:$0xff]
    %v3764 = vld [vmem:[#allocation2 + $0xa8] sm:$0xff]
    %v3765 = vld [vmem:[#allocation2 + $0xb0] sm:$0xff]
    %v3766 = vld [vmem:[#allocation2 + $0xb8] sm:$0xff]
    %v3767 = vld [vmem:[#allocation2 + $0xc0] sm:$0xff]
    %v3768 = vld [vmem:[#allocation2 + $0xc8] sm:$0xff]
    %v3769 = vld [vmem:[#allocation2 + $0xd0] sm:$0xff]
    %v3770 = vld [vmem:[#allocation2 + $0xd8] sm:$0xff]
    %v3771 = vld [vmem:[#allocation2 + $0xe0] sm:$0xff]
    %v3772 = vld [vmem:[#allocation2 + $0xe8] sm:$0xff]
    %v3773 = vld [vmem:[#allocation2 + $0xf0] sm:$0xff]
    %v3774 = vld [vmem:[#allocation2 + $0xf8] sm:$0xff]
    %v3775 = vld [vmem:[#allocation2 + $0x100] sm:$0xff]
    %v3776 = vld [vmem:[#allocation2 + $0x108] sm:$0xff]
    %v3777 = vld [vmem:[#allocation2 + $0x110] sm:$0xff]
    %v3778 = vld [vmem:[#allocation2 + $0x118] sm:$0xff]
    %v3779 = vld [vmem:[#allocation2 + $0x120] sm:$0xff]
    %v3780 = vld [vmem:[#allocation2 + $0x128] sm:$0xff]
    %v3781 = vld [vmem:[#allocation2 + $0x130] sm:$0xff]
    %v3782 = vld [vmem:[#allocation2 + $0x138] sm:$0xff]
    %v3783 = vld [vmem:[#allocation2 + $0x140] sm:$0xff]
    %v3784 = vld [vmem:[#allocation2 + $0x148] sm:$0xff]
    %v3785 = vld [vmem:[#allocation2 + $0x150] sm:$0xff]
    %v3786 = vld [vmem:[#allocation2 + $0x158] sm:$0xff]
    %v3787 = vld [vmem:[#allocation2 + $0x160] sm:$0xff]
    %v3788 = vld [vmem:[#allocation2 + $0x168] sm:$0xff]
    %v3789 = vld [vmem:[#allocation2 + $0x170] sm:$0xff]
    %v3790 = vld [vmem:[#allocation2 + $0x178] sm:$0xff]
    %v3791 = vld [vmem:[#allocation2 + $0x180] sm:$0xff]
    %v3792 = vld [vmem:[#allocation2 + $0x188] sm:$0xff]
    %v3793 = vld [vmem:[#allocation2 + $0x190] sm:$0xff]
    %v3794 = vld [vmem:[#allocation2 + $0x198] sm:$0xff]
    %v3795 = vld [vmem:[#allocation2 + $0x1a0] sm:$0xff]
    %v3796 = vld [vmem:[#allocation2 + $0x1a8] sm:$0xff]
    %v3797 = vld [vmem:[#allocation2 + $0x1b0] sm:$0xff]
    %v3798 = vld [vmem:[#allocation2 + $0x1b8] sm:$0xff]
    %v3799 = vld [vmem:[#allocation2 + $0x1c0] sm:$0xff]
    %v3800 = vld [vmem:[#allocation2 + $0x1c8] sm:$0xff]
    %v3801 = vld [vmem:[#allocation2 + $0x1d0] sm:$0xff]
    %v3802 = vld [vmem:[#allocation2 + $0x1d8] sm:$0xff]
    %v3803 = vld [vmem:[#allocation2 + $0x1e0] sm:$0xff]
    %v3804 = vld [vmem:[#allocation2 + $0x1e8] sm:$0xff]
    %v3805 = vld [vmem:[#allocation2 + $0x1f0] sm:$0xff]
    %v3806 = vld [vmem:[#allocation2 + $0x1f8] sm:$0xff]
    %v3807 = vld [vmem:[#allocation2 + $0x200] sm:$0xff]
    %v3808 = vld [vmem:[#allocation2 + $0x208] sm:$0xff]
    %v3809 = vld [vmem:[#allocation2 + $0x210] sm:$0xff]
    %v3810 = vld [vmem:[#allocation2 + $0x218] sm:$0xff]
    %v3811 = vld [vmem:[#allocation2 + $0x220] sm:$0xff]
    %v3812 = vld [vmem:[#allocation2 + $0x228] sm:$0xff]
    %v3813 = vld [vmem:[#allocation2 + $0x230] sm:$0xff]
    %v3814 = vld [vmem:[#allocation2 + $0x238] sm:$0xff]
    %v3815 = vld [vmem:[#allocation2 + $0x240] sm:$0xff]
    %v3816 = vld [vmem:[#allocation2 + $0x248] sm:$0xff]
    %v3817 = vld [vmem:[#allocation2 + $0x250] sm:$0xff]
    %v3818 = vld [vmem:[#allocation2 + $0x258] sm:$0xff]
    %v3819 = vld [vmem:[#allocation2 + $0x260] sm:$0xff]
    %v3820 = vld [vmem:[#allocation2 + $0x268] sm:$0xff]
    %v3821 = vld [vmem:[#allocation2 + $0x270] sm:$0xff]
    %v3822 = vld [vmem:[#allocation2 + $0x278] sm:$0xff]
    %v3823 = vld [vmem:[#allocation2 + $0x280] sm:$0xff]
    %v3824 = vld [vmem:[#allocation2 + $0x288] sm:$0xff]
    %v3825 = vld [vmem:[#allocation2 + $0x290] sm:$0xff]
    %v3826 = vld [vmem:[#allocation2 + $0x298] sm:$0xff]
    %v3827 = vld [vmem:[#allocation2 + $0x2a0] sm:$0xff]
    %v3828 = vld [vmem:[#allocation2 + $0x2a8] sm:$0xff]
    %v3829 = vld [vmem:[#allocation2 + $0x2b0] sm:$0xff]
    %v3830 = vld [vmem:[#allocation2 + $0x2b8] sm:$0xff]
    %v3831 = vld [vmem:[#allocation2 + $0x2c0] sm:$0xff]
    %v3832 = vld [vmem:[#allocation2 + $0x2c8] sm:$0xff]
    %v3833 = vld [vmem:[#allocation2 + $0x2d0] sm:$0xff]
    %v3834 = vld [vmem:[#allocation2 + $0x2d8] sm:$0xff]
    %v3835 = vld [vmem:[#allocation2 + $0x2e0] sm:$0xff]
    %v3836 = vld [vmem:[#allocation2 + $0x2e8] sm:$0xff]
    %v3837 = vld [vmem:[#allocation2 + $0x2f0] sm:$0xff]
    %v3838 = vld [vmem:[#allocation2 + $0x2f8] sm:$0xff]
    %3839 = vmatprep.subr.mxu0 %v3744
    %3840 = vmatpush1.msra.mxu0 %v3743
    %3841 = vmatprep.subr.mxu0 %v3750
    %3842 = vmatpush1.msra.mxu0 %v3749
    %3843 = vmatprep.subr.mxu0 %v3756
    %3844 = vmatpush1.msra.mxu0 %v3755
    %3845 = vmatprep.subr.mxu0 %v3762
    %3846 = vmatpush1.msra.mxu0 %v3761
    %3847 = vmatprep.subr.mxu0 %v3768
    %3848 = vmatpush1.msra.mxu0 %v3767
    %3849 = vmatprep.subr.mxu0 %v3774
    %3850 = vmatpush1.msra.mxu0 %v3773
    %3851 = vmatprep.subr.mxu0 %v3780
    %3852 = vmatpush1.msra.mxu0 %v3779
    %3853 = vmatprep.subr.mxu0 %v3786
    %3854 = vmatpush1.msra.mxu0 %v3785
    %3855 = vmatprep.subr.mxu0 %v3792
    %3856 = vmatpush1.msra.mxu0 %v3791
    %3857 = vmatprep.subr.mxu0 %v3798
    %3858 = vmatpush1.msra.mxu0 %v3797
    %3859 = vmatprep.subr.mxu0 %v3804
    %3860 = vmatpush1.msra.mxu0 %v3803
    %3861 = vmatprep.subr.mxu0 %v3810
    %3862 = vmatpush1.msra.mxu0 %v3809
    %3863 = vmatprep.subr.mxu0 %v3816
    %3864 = vmatpush1.msra.mxu0 %v3815
    %3865 = vmatprep.subr.mxu0 %v3822
    %3866 = vmatpush1.msra.mxu0 %v3821
    %3867 = vmatprep.subr.mxu0 %v3828
    %3868 = vmatpush1.msra.mxu0 %v3827
    %3869 = vmatprep.subr.mxu0 %v3834
    %3870 = vmatpush1.msra.mxu0 %v3833
    %3871 = vmatprep.subr.mxu0 0.0
    %3872 = vmatpush1.msra.mxu0 0.0
    %3873 = vmatprep.subr.mxu0 0.0
    %3874 = vmatpush1.msra.mxu0 0.0
    %3875 = vmatprep.subr.mxu0 0.0
    %3876 = vmatpush1.msra.mxu0 0.0
    %3877 = vmatprep.subr.mxu0 0.0
    %3878 = vmatpush1.msra.mxu0 0.0
    %3879 = vmatprep.subr.mxu0 0.0
    %3880 = vmatpush1.msra.mxu0 0.0
    %3881 = vmatprep.subr.mxu0 0.0
    %3882 = vmatpush1.msra.mxu0 0.0
    %3883 = vmatprep.subr.mxu0 0.0
    %3884 = vmatpush1.msra.mxu0 0.0
    %3885 = vmatprep.subr.mxu0 0.0
    %3886 = vmatpush1.msra.mxu0 0.0
    %3887 = vmatprep.subr.mxu0 0.0
    %3888 = vmatpush1.msra.mxu0 0.0
    %3889 = vmatprep.subr.mxu0 0.0
    %3890 = vmatpush1.msra.mxu0 0.0
    %3891 = vmatprep.subr.mxu0 0.0
    %3892 = vmatpush1.msra.mxu0 0.0
    %3893 = vmatprep.subr.mxu0 0.0
    %3894 = vmatpush1.msra.mxu0 0.0
    %3895 = vmatprep.subr.mxu0 0.0
    %3896 = vmatpush1.msra.mxu0 0.0
    %3897 = vmatprep.subr.mxu0 0.0
    %3898 = vmatpush1.msra.mxu0 0.0
    %3899 = vmatprep.subr.mxu0 0.0
    %3900 = vmatpush1.msra.mxu0 0.0
    %3901 = vmatprep.subr.mxu0 0.0
    %3902 = vmatpush1.msra.mxu0 0.0
    %3903 = vmatprep.mubr.f32.mxu0 0.0
    %3904 = vmatmul.mubr.f32.gmra.mrb[0].mxu0 %v3725
    %v3905 = vpop.f32.mrb[0].mxu0
    %v3906 = vadd.f32 0.0, %v3905
    %v3907 = vpop.f32.mrb[0].mxu0
    %v3908 = vadd.f32 0.0, %v3907
    %3909 = vmatprep.mubr.f32.mxu0 0.0
    %3910 = vmatmul.mubr.f32.gmra.mrb[0].mxu0 %v3726
    %v3911 = vpop.f32.mrb[0].mxu0
    %v3912 = vadd.f32 0.0, %v3911
    %v3913 = vpop.f32.mrb[0].mxu0
    %v3914 = vadd.f32 0.0, %v3913
    %3915 = vmatprep.mubr.f32.mxu0 0.0
    %3916 = vmatmul.mubr.f32.gmra.mrb[0].mxu0 %v3727
    %v3917 = vpop.f32.mrb[0].mxu0
    %v3918 = vadd.f32 0.0, %v3917
    %v3919 = vpop.f32.mrb[0].mxu0
    %v3920 = vadd.f32 0.0, %v3919
    %3921 = vmatprep.mubr.f32.mxu0 0.0
    %3922 = vmatmul.mubr.f32.gmra.mrb[0].mxu0 %v3728
    %v3923 = vpop.f32.mrb[0].mxu0
    %v3924 = vadd.f32 0.0, %v3923
    %v3925 = vpop.f32.mrb[0].mxu0
    %v3926 = vadd.f32 0.0, %v3925
    %3927 = vmatprep.mubr.f32.mxu0 0.0
    %3928 = vmatmul.mubr.f32.gmra.mrb[0].mxu0 %v3729
    %v3929 = vpop.f32.mrb[0].mxu0
    %v3930 = vadd.f32 0.0, %v3929
    %v3931 = vpop.f32.mrb[0].mxu0
    %v3932 = vadd.f32 0.0, %v3931
    %3933 = vmatprep.mubr.f32.mxu0 0.0
    %3934 = vmatmul.mubr.f32.gmra.mrb[0].mxu0 %v3730
    %v3935 = vpop.f32.mrb[0].mxu0
    %v3936 = vadd.f32 0.0, %v3935
    %v3937 = vpop.f32.mrb[0].mxu0
    %v3938 = vadd.f32 0.0, %v3937
    %3939 = vmatprep.mubr.f32.mxu0 0.0
    %3940 = vmatmul.mubr.f32.gmra.mrb[0].mxu0 %v3731
    %v3941 = vpop.f32.mrb[0].mxu0
    %v3942 = vadd.f32 0.0, %v3941
    %v3943 = vpop.f32.mrb[0].mxu0
    %v3944 = vadd.f32 0.0, %v3943
    %3945 = vmatprep.mubr.f32.mxu0 0.0
    %3946 = vmatmul.mubr.f32.gmra.mrb[0].mxu0 %v3732
    %v3947 = vpop.f32.mrb[0].mxu0
    %v3948 = vadd.f32 0.0, %v3947
    %v3949 = vpop.f32.mrb[0].mxu0
    %v3950 = vadd.f32 0.0, %v3949
    %3951 = vmatprep.mubr.f32.mxu0 0.0
    %3952 = vmatmul.mubr.f32.gmra.mrb[0].mxu0 %v3733
    %v3953 = vpop.f32.mrb[0].mxu0
    %v3954 = vadd.f32 0.0, %v3953
    %v3955 = vpop.f32.mrb[0].mxu0
    %v3956 = vadd.f32 0.0, %v3955
    %3957 = vmatprep.mubr.f32.mxu0 0.0
    %3958 = vmatmul.mubr.f32.gmra.mrb[0].mxu0 %v3734
    %v3959 = vpop.f32.mrb[0].mxu0
    %v3960 = vadd.f32 0.0, %v3959
    %v3961 = vpop.f32.mrb[0].mxu0
    %v3962 = vadd.f32 0.0, %v3961
    %3963 = vmatprep.mubr.f32.mxu0 0.0
    %3964 = vmatmul.mubr.f32.gmra.mrb[0].mxu0 %v3735
    %v3965 = vpop.f32.mrb[0].mxu0
    %v3966 = vadd.f32 0.0, %v3965
    %v3967 = vpop.f32.mrb[0].mxu0
    %v3968 = vadd.f32 0.0, %v3967
    %3969 = vmatprep.mubr.f32.mxu0 0.0
    %3970 = vmatmul.mubr.f32.gmra.mrb[0].mxu0 %v3736
    %v3971 = vpop.f32.mrb[0].mxu0
    %v3972 = vadd.f32 0.0, %v3971
    %v3973 = vpop.f32.mrb[0].mxu0
    %v3974 = vadd.f32 0.0, %v3973
    %3975 = vmatprep.mubr.f32.mxu0 0.0
    %3976 = vmatmul.mubr.f32.gmra.mrb[0].mxu0 %v3737
    %v3977 = vpop.f32.mrb[0].mxu0
    %v3978 = vadd.f32 0.0, %v3977
    %v3979 = vpop.f32.mrb[0].mxu0
    %v3980 = vadd.f32 0.0, %v3979
    %3981 = vmatprep.mubr.f32.mxu0 0.0
    %3982 = vmatmul.mubr.f32.gmra.mrb[0].mxu0 %v3738
    %v3983 = vpop.f32.mrb[0].mxu0
    %v3984 = vadd.f32 0.0, %v3983
    %v3985 = vpop.f32.mrb[0].mxu0
    %v3986 = vadd.f32 0.0, %v3985
    %3987 = vmatprep.mubr.f32.mxu0 0.0
    %3988 = vmatmul.mubr.f32.gmra.mrb[0].mxu0 %v3739
    %v3989 = vpop.f32.mrb[0].mxu0
    %v3990 = vadd.f32 0.0, %v3989
    %v3991 = vpop.f32.mrb[0].mxu0
    %v3992 = vadd.f32 0.0, %v3991
    %3993 = vmatprep.mubr.f32.mxu0 0.0
    %3994 = vmatmul.mubr.f32.gmra.mrb[0].mxu0 %v3740
    %v3995 = vpop.f32.mrb[0].mxu0
    %v3996 = vadd.f32 0.0, %v3995
    %v3997 = vpop.f32.mrb[0].mxu0
    %v3998 = vadd.f32 0.0, %v3997
    %3999 = vmatprep.mubr.f32.mxu0 0.0
    %4000 = vmatmul.mubr.f32.gmra.mrb[0].mxu0 %v3741
    %v4001 = vpop.f32.mrb[0].mxu0
    %v4002 = vadd.f32 0.0, %v4001
    %v4003 = vpop.f32.mrb[0].mxu0
    %v4004 = vadd.f32 0.0, %v4003
    %4005 = vmatprep.mubr.f32.mxu0 0.0
    %4006 = vmatmul.mubr.f32.gmra.mrb[0].mxu0 %v3742
    %v4007 = vpop.f32.mrb[0].mxu0
    %v4008 = vadd.f32 0.0, %v4007
    %v4009 = vpop.f32.mrb[0].mxu0
    %v4010 = vadd.f32 0.0, %v4009
    %4011 = vdwg.mxu0
    %4012 = vmatprep.subr.mxu0 %v3746
    %4013 = vmatpush1.msra.mxu0 %v3745
    %4014 = vmatprep.subr.mxu0 %v3752
    %4015 = vmatpush1.msra.mxu0 %v3751
    %4016 = vmatprep.subr.mxu0 %v3758
    %4017 = vmatpush1.msra.mxu0 %v3757
    %4018 = vmatprep.subr.mxu0 %v3764
    %4019 = vmatpush1.msra.mxu0 %v3763
    %4020 = vmatprep.subr.mxu0 %v3770
    %4021 = vmatpush1.msra.mxu0 %v3769
    %4022 = vmatprep.subr.mxu0 %v3776
    %4023 = vmatpush1.msra.mxu0 %v3775
    %4024 = vmatprep.subr.mxu0 %v3782
    %4025 = vmatpush1.msra.mxu0 %v3781
    %4026 = vmatprep.subr.mxu0 %v3788
    %4027 = vmatpush1.msra.mxu0 %v3787
    %4028 = vmatprep.subr.mxu0 %v3794
    %4029 = vmatpush1.msra.mxu0 %v3793
    %4030 = vmatprep.subr.mxu0 %v3800
    %4031 = vmatpush1.msra.mxu0 %v3799
    %4032 = vmatprep.subr.mxu0 %v3806
    %4033 = vmatpush1.msra.mxu0 %v3805
    %4034 = vmatprep.subr.mxu0 %v3812
    %4035 = vmatpush1.msra.mxu0 %v3811
    %4036 = vmatprep.subr.mxu0 %v3818
    %4037 = vmatpush1.msra.mxu0 %v3817
    %4038 = vmatprep.subr.mxu0 %v3824
    %4039 = vmatpush1.msra.mxu0 %v3823
    %4040 = vmatprep.subr.mxu0 %v3830
    %4041 = vmatpush1.msra.mxu0 %v3829
    %4042 = vmatprep.subr.mxu0 %v3836
    %4043 = vmatpush1.msra.mxu0 %v3835
    %4044 = vmatprep.subr.mxu0 0.0
    %4045 = vmatpush1.msra.mxu0 0.0
    %4046 = vmatprep.subr.mxu0 0.0
    %4047 = vmatpush1.msra.mxu0 0.0
    %4048 = vmatprep.subr.mxu0 0.0
    %4049 = vmatpush1.msra.mxu0 0.0
    %4050 = vmatprep.subr.mxu0 0.0
    %4051 = vmatpush1.msra.mxu0 0.0
    %4052 = vmatprep.subr.mxu0 0.0
    %4053 = vmatpush1.msra.mxu0 0.0
    %4054 = vmatprep.subr.mxu0 0.0
    %4055 = vmatpush1.msra.mxu0 0.0
    %4056 = vmatprep.subr.mxu0 0.0
    %4057 = vmatpush1.msra.mxu0 0.0
    %4058 = vmatprep.subr.mxu0 0.0
    %4059 = vmatpush1.msra.mxu0 0.0
    %4060 = vmatprep.subr.mxu0 0.0
    %4061 = vmatpush1.msra.mxu0 0.0
    %4062 = vmatprep.subr.mxu0 0.0
    %4063 = vmatpush1.msra.mxu0 0.0
    %4064 = vmatprep.subr.mxu0 0.0
    %4065 = vmatpush1.msra.mxu0 0.0
    %4066 = vmatprep.subr.mxu0 0.0
    %4067 = vmatpush1.msra.mxu0 0.0
    %4068 = vmatprep.subr.mxu0 0.0
    %4069 = vmatpush1.msra.mxu0 0.0
    %4070 = vmatprep.subr.mxu0 0.0
    %4071 = vmatpush1.msra.mxu0 0.0
    %4072 = vmatprep.subr.mxu0 0.0
    %4073 = vmatpush1.msra.mxu0 0.0
    %4074 = vmatprep.subr.mxu0 0.0
    %4075 = vmatpush1.msra.mxu0 0.0
    %4076 = vmatprep.mubr.f32.mxu0 0.0
    %4077 = vmatmul.mubr.f32.gmra.mrb[0].mxu0 %v3725
    %v4078 = vpop.f32.mrb[0].mxu0
    %v4079 = vadd.f32 0.0, %v4078
    %v4080 = vpop.f32.mrb[0].mxu0
    %v4081 = vadd.f32 0.0, %v4080
    %4082 = vmatprep.mubr.f32.mxu0 0.0
    %4083 = vmatmul.mubr.f32.gmra.mrb[0].mxu0 %v3726
    %v4084 = vpop.f32.mrb[0].mxu0
    %v4085 = vadd.f32 0.0, %v4084
    %v4086 = vpop.f32.mrb[0].mxu0
    %v4087 = vadd.f32 0.0, %v4086
    %4088 = vmatprep.mubr.f32.mxu0 0.0
    %4089 = vmatmul.mubr.f32.gmra.mrb[0].mxu0 %v3727
    %v4090 = vpop.f32.mrb[0].mxu0
    %v4091 = vadd.f32 0.0, %v4090
    %v4092 = vpop.f32.mrb[0].mxu0
    %v4093 = vadd.f32 0.0, %v4092
    %4094 = vmatprep.mubr.f32.mxu0 0.0
    %4095 = vmatmul.mubr.f32.gmra.mrb[0].mxu0 %v3728
    %v4096 = vpop.f32.mrb[0].mxu0
    %v4097 = vadd.f32 0.0, %v4096
    %v4098 = vpop.f32.mrb[0].mxu0
    %v4099 = vadd.f32 0.0, %v4098
    %4100 = vmatprep.mubr.f32.mxu0 0.0
    %4101 = vmatmul.mubr.f32.gmra.mrb[0].mxu0 %v3729
    %v4102 = vpop.f32.mrb[0].mxu0
    %v4103 = vadd.f32 0.0, %v4102
    %v4104 = vpop.f32.mrb[0].mxu0
    %v4105 = vadd.f32 0.0, %v4104
    %4106 = vmatprep.mubr.f32.mxu0 0.0
    %4107 = vmatmul.mubr.f32.gmra.mrb[0].mxu0 %v3730
    %v4108 = vpop.f32.mrb[0].mxu0
    %v4109 = vadd.f32 0.0, %v4108
    %v4110 = vpop.f32.mrb[0].mxu0
    %v4111 = vadd.f32 0.0, %v4110
    %4112 = vmatprep.mubr.f32.mxu0 0.0
    %4113 = vmatmul.mubr.f32.gmra.mrb[0].mxu0 %v3731
    %v4114 = vpop.f32.mrb[0].mxu0
    %v4115 = vadd.f32 0.0, %v4114
    %v4116 = vpop.f32.mrb[0].mxu0
    %v4117 = vadd.f32 0.0, %v4116
    %4118 = vmatprep.mubr.f32.mxu0 0.0
    %4119 = vmatmul.mubr.f32.gmra.mrb[0].mxu0 %v3732
    %v4120 = vpop.f32.mrb[0].mxu0
    %v4121 = vadd.f32 0.0, %v4120
    %v4122 = vpop.f32.mrb[0].mxu0
    %v4123 = vadd.f32 0.0, %v4122
    %4124 = vmatprep.mubr.f32.mxu0 0.0
    %4125 = vmatmul.mubr.f32.gmra.mrb[0].mxu0 %v3733
    %v4126 = vpop.f32.mrb[0].mxu0
    %v4127 = vadd.f32 0.0, %v4126
    %v4128 = vpop.f32.mrb[0].mxu0
    %v4129 = vadd.f32 0.0, %v4128
    %4130 = vmatprep.mubr.f32.mxu0 0.0
    %4131 = vmatmul.mubr.f32.gmra.mrb[0].mxu0 %v3734
    %v4132 = vpop.f32.mrb[0].mxu0
    %v4133 = vadd.f32 0.0, %v4132
    %v4134 = vpop.f32.mrb[0].mxu0
    %v4135 = vadd.f32 0.0, %v4134
    %4136 = vmatprep.mubr.f32.mxu0 0.0
    %4137 = vmatmul.mubr.f32.gmra.mrb[0].mxu0 %v3735
    %v4138 = vpop.f32.mrb[0].mxu0
    %v4139 = vadd.f32 0.0, %v4138
    %v4140 = vpop.f32.mrb[0].mxu0
    %v4141 = vadd.f32 0.0, %v4140
    %4142 = vmatprep.mubr.f32.mxu0 0.0
    %4143 = vmatmul.mubr.f32.gmra.mrb[0].mxu0 %v3736
    %v4144 = vpop.f32.mrb[0].mxu0
    %v4145 = vadd.f32 0.0, %v4144
    %v4146 = vpop.f32.mrb[0].mxu0
    %v4147 = vadd.f32 0.0, %v4146
    %4148 = vmatprep.mubr.f32.mxu0 0.0
    %4149 = vmatmul.mubr.f32.gmra.mrb[0].mxu0 %v3737
    %v4150 = vpop.f32.mrb[0].mxu0
    %v4151 = vadd.f32 0.0, %v4150
    %v4152 = vpop.f32.mrb[0].mxu0
    %v4153 = vadd.f32 0.0, %v4152
    %4154 = vmatprep.mubr.f32.mxu0 0.0
    %4155 = vmatmul.mubr.f32.gmra.mrb[0].mxu0 %v3738
    %v4156 = vpop.f32.mrb[0].mxu0
    %v4157 = vadd.f32 0.0, %v4156
    %v4158 = vpop.f32.mrb[0].mxu0
    %v4159 = vadd.f32 0.0, %v4158
    %4160 = vmatprep.mubr.f32.mxu0 0.0
    %4161 = vmatmul.mubr.f32.gmra.mrb[0].mxu0 %v3739
    %v4162 = vpop.f32.mrb[0].mxu0
    %v4163 = vadd.f32 0.0, %v4162
    %v4164 = vpop.f32.mrb[0].mxu0
    %v4165 = vadd.f32 0.0, %v4164
    %4166 = vmatprep.mubr.f32.mxu0 0.0
    %4167 = vmatmul.mubr.f32.gmra.mrb[0].mxu0 %v3740
    %v4168 = vpop.f32.mrb[0].mxu0
    %v4169 = vadd.f32 0.0, %v4168
    %v4170 = vpop.f32.mrb[0].mxu0
    %v4171 = vadd.f32 0.0, %v4170
    %4172 = vmatprep.mubr.f32.mxu0 0.0
    %4173 = vmatmul.mubr.f32.gmra.mrb[0].mxu0 %v3741
    %v4174 = vpop.f32.mrb[0].mxu0
    %v4175 = vadd.f32 0.0, %v4174
    %v4176 = vpop.f32.mrb[0].mxu0
    %v4177 = vadd.f32 0.0, %v4176
    %4178 = vmatprep.mubr.f32.mxu0 0.0
    %4179 = vmatmul.mubr.f32.gmra.mrb[0].mxu0 %v3742
    %v4180 = vpop.f32.mrb[0].mxu0
    %v4181 = vadd.f32 0.0, %v4180
    %v4182 = vpop.f32.mrb[0].mxu0
    %v4183 = vadd.f32 0.0, %v4182
    %4184 = vdwg.mxu0
    %4185 = vmatprep.subr.mxu0 %v3748
    %4186 = vmatpush1.msra.mxu0 %v3747
    %4187 = vmatprep.subr.mxu0 %v3754
    %4188 = vmatpush1.msra.mxu0 %v3753
    %4189 = vmatprep.subr.mxu0 %v3760
    %4190 = vmatpush1.msra.mxu0 %v3759
    %4191 = vmatprep.subr.mxu0 %v3766
    %4192 = vmatpush1.msra.mxu0 %v3765
    %4193 = vmatprep.subr.mxu0 %v3772
    %4194 = vmatpush1.msra.mxu0 %v3771
    %4195 = vmatprep.subr.mxu0 %v3778
    %4196 = vmatpush1.msra.mxu0 %v3777
    %4197 = vmatprep.subr.mxu0 %v3784
    %4198 = vmatpush1.msra.mxu0 %v3783
    %4199 = vmatprep.subr.mxu0 %v3790
    %4200 = vmatpush1.msra.mxu0 %v3789
    %4201 = vmatprep.subr.mxu0 %v3796
    %4202 = vmatpush1.msra.mxu0 %v3795
    %4203 = vmatprep.subr.mxu0 %v3802
    %4204 = vmatpush1.msra.mxu0 %v3801
    %4205 = vmatprep.subr.mxu0 %v3808
    %4206 = vmatpush1.msra.mxu0 %v3807
    %4207 = vmatprep.subr.mxu0 %v3814
    %4208 = vmatpush1.msra.mxu0 %v3813
    %4209 = vmatprep.subr.mxu0 %v3820
    %4210 = vmatpush1.msra.mxu0 %v3819
    %4211 = vmatprep.subr.mxu0 %v3826
    %4212 = vmatpush1.msra.mxu0 %v3825
    %4213 = vmatprep.subr.mxu0 %v3832
    %4214 = vmatpush1.msra.mxu0 %v3831
    %4215 = vmatprep.subr.mxu0 %v3838
    %4216 = vmatpush1.msra.mxu0 %v3837
    %4217 = vmatprep.subr.mxu0 0.0
    %4218 = vmatpush1.msra.mxu0 0.0
    %4219 = vmatprep.subr.mxu0 0.0
    %4220 = vmatpush1.msra.mxu0 0.0
    %4221 = vmatprep.subr.mxu0 0.0
    %4222 = vmatpush1.msra.mxu0 0.0
    %4223 = vmatprep.subr.mxu0 0.0
    %4224 = vmatpush1.msra.mxu0 0.0
    %4225 = vmatprep.subr.mxu0 0.0
    %4226 = vmatpush1.msra.mxu0 0.0
    %4227 = vmatprep.subr.mxu0 0.0
    %4228 = vmatpush1.msra.mxu0 0.0
    %4229 = vmatprep.subr.mxu0 0.0
    %4230 = vmatpush1.msra.mxu0 0.0
    %4231 = vmatprep.subr.mxu0 0.0
    %4232 = vmatpush1.msra.mxu0 0.0
    %4233 = vmatprep.subr.mxu0 0.0
    %4234 = vmatpush1.msra.mxu0 0.0
    %4235 = vmatprep.subr.mxu0 0.0
    %4236 = vmatpush1.msra.mxu0 0.0
    %4237 = vmatprep.subr.mxu0 0.0
    %4238 = vmatpush1.msra.mxu0 0.0
    %4239 = vmatprep.subr.mxu0 0.0
    %4240 = vmatpush1.msra.mxu0 0.0
    %4241 = vmatprep.subr.mxu0 0.0
    %4242 = vmatpush1.msra.mxu0 0.0
    %4243 = vmatprep.subr.mxu0 0.0
    %4244 = vmatpush1.msra.mxu0 0.0
    %4245 = vmatprep.subr.mxu0 0.0
    %4246 = vmatpush1.msra.mxu0 0.0
    %4247 = vmatprep.subr.mxu0 0.0
    %4248 = vmatpush1.msra.mxu0 0.0
    %4249 = vmatprep.mubr.f32.mxu0 0.0
    %4250 = vmatmul.mubr.f32.gmra.mrb[0].mxu0 %v3725
    %v4251 = vpop.f32.mrb[0].mxu0
    %v4252 = vadd.f32 0.0, %v4251
    %v4253 = vpop.f32.mrb[0].mxu0
    %v4254 = vadd.f32 0.0, %v4253
    %4255 = vmatprep.mubr.f32.mxu0 0.0
    %4256 = vmatmul.mubr.f32.gmra.mrb[0].mxu0 %v3726
    %v4257 = vpop.f32.mrb[0].mxu0
    %v4258 = vadd.f32 0.0, %v4257
    %v4259 = vpop.f32.mrb[0].mxu0
    %v4260 = vadd.f32 0.0, %v4259
    %4261 = vmatprep.mubr.f32.mxu0 0.0
    %4262 = vmatmul.mubr.f32.gmra.mrb[0].mxu0 %v3727
    %v4263 = vpop.f32.mrb[0].mxu0
    %v4264 = vadd.f32 0.0, %v4263
    %v4265 = vpop.f32.mrb[0].mxu0
    %v4266 = vadd.f32 0.0, %v4265
    %4267 = vmatprep.mubr.f32.mxu0 0.0
    %4268 = vmatmul.mubr.f32.gmra.mrb[0].mxu0 %v3728
    %v4269 = vpop.f32.mrb[0].mxu0
    %v4270 = vadd.f32 0.0, %v4269
    %v4271 = vpop.f32.mrb[0].mxu0
    %v4272 = vadd.f32 0.0, %v4271
    %4273 = vmatprep.mubr.f32.mxu0 0.0
    %4274 = vmatmul.mubr.f32.gmra.mrb[0].mxu0 %v3729
    %v4275 = vpop.f32.mrb[0].mxu0
    %v4276 = vadd.f32 0.0, %v4275
    %v4277 = vpop.f32.mrb[0].mxu0
    %v4278 = vadd.f32 0.0, %v4277
    %4279 = vmatprep.mubr.f32.mxu0 0.0
    %4280 = vmatmul.mubr.f32.gmra.mrb[0].mxu0 %v3730
    %v4281 = vpop.f32.mrb[0].mxu0
    %v4282 = vadd.f32 0.0, %v4281
    %v4283 = vpop.f32.mrb[0].mxu0
    %v4284 = vadd.f32 0.0, %v4283
    %4285 = vmatprep.mubr.f32.mxu0 0.0
    %4286 = vmatmul.mubr.f32.gmra.mrb[0].mxu0 %v3731
    %v4287 = vpop.f32.mrb[0].mxu0
    %v4288 = vadd.f32 0.0, %v4287
    %v4289 = vpop.f32.mrb[0].mxu0
    %v4290 = vadd.f32 0.0, %v4289
    %4291 = vmatprep.mubr.f32.mxu0 0.0
    %4292 = vmatmul.mubr.f32.gmra.mrb[0].mxu0 %v3732
    %v4293 = vpop.f32.mrb[0].mxu0
    %v4294 = vadd.f32 0.0, %v4293
    %v4295 = vpop.f32.mrb[0].mxu0
    %v4296 = vadd.f32 0.0, %v4295
    %4297 = vmatprep.mubr.f32.mxu0 0.0
    %4298 = vmatmul.mubr.f32.gmra.mrb[0].mxu0 %v3733
    %v4299 = vpop.f32.mrb[0].mxu0
    %v4300 = vadd.f32 0.0, %v4299
    %v4301 = vpop.f32.mrb[0].mxu0
    %v4302 = vadd.f32 0.0, %v4301
    %4303 = vmatprep.mubr.f32.mxu0 0.0
    %4304 = vmatmul.mubr.f32.gmra.mrb[0].mxu0 %v3734
    %v4305 = vpop.f32.mrb[0].mxu0
    %v4306 = vadd.f32 0.0, %v4305
    %v4307 = vpop.f32.mrb[0].mxu0
    %v4308 = vadd.f32 0.0, %v4307
    %4309 = vmatprep.mubr.f32.mxu0 0.0
    %4310 = vmatmul.mubr.f32.gmra.mrb[0].mxu0 %v3735
    %v4311 = vpop.f32.mrb[0].mxu0
    %v4312 = vadd.f32 0.0, %v4311
    %v4313 = vpop.f32.mrb[0].mxu0
    %v4314 = vadd.f32 0.0, %v4313
    %4315 = vmatprep.mubr.f32.mxu0 0.0
    %4316 = vmatmul.mubr.f32.gmra.mrb[0].mxu0 %v3736
    %v4317 = vpop.f32.mrb[0].mxu0
    %v4318 = vadd.f32 0.0, %v4317
    %v4319 = vpop.f32.mrb[0].mxu0
    %v4320 = vadd.f32 0.0, %v4319
    %4321 = vmatprep.mubr.f32.mxu0 0.0
    %4322 = vmatmul.mubr.f32.gmra.mrb[0].mxu0 %v3737
    %v4323 = vpop.f32.mrb[0].mxu0
    %v4324 = vadd.f32 0.0, %v4323
    %v4325 = vpop.f32.mrb[0].mxu0
    %v4326 = vadd.f32 0.0, %v4325
    %4327 = vmatprep.mubr.f32.mxu0 0.0
    %4328 = vmatmul.mubr.f32.gmra.mrb[0].mxu0 %v3738
    %v4329 = vpop.f32.mrb[0].mxu0
    %v4330 = vadd.f32 0.0, %v4329
    %v4331 = vpop.f32.mrb[0].mxu0
    %v4332 = vadd.f32 0.0, %v4331
    %4333 = vmatprep.mubr.f32.mxu0 0.0
    %4334 = vmatmul.mubr.f32.gmra.mrb[0].mxu0 %v3739
    %v4335 = vpop.f32.mrb[0].mxu0
    %v4336 = vadd.f32 0.0, %v4335
    %v4337 = vpop.f32.mrb[0].mxu0
    %v4338 = vadd.f32 0.0, %v4337
    %4339 = vmatprep.mubr.f32.mxu0 0.0
    %4340 = vmatmul.mubr.f32.gmra.mrb[0].mxu0 %v3740
    %v4341 = vpop.f32.mrb[0].mxu0
    %v4342 = vadd.f32 0.0, %v4341
    %v4343 = vpop.f32.mrb[0].mxu0
    %v4344 = vadd.f32 0.0, %v4343
    %4345 = vmatprep.mubr.f32.mxu0 0.0
    %4346 = vmatmul.mubr.f32.gmra.mrb[0].mxu0 %v3741
    %v4347 = vpop.f32.mrb[0].mxu0
    %v4348 = vadd.f32 0.0, %v4347
    %v4349 = vpop.f32.mrb[0].mxu0
    %v4350 = vadd.f32 0.0, %v4349
    %4351 = vmatprep.mubr.f32.mxu0 0.0
    %4352 = vmatmul.mubr.f32.gmra.mrb[0].mxu0 %v3742
    %v4353 = vpop.f32.mrb[0].mxu0
    %v4354 = vadd.f32 0.0, %v4353
    %v4355 = vpop.f32.mrb[0].mxu0
    %v4356 = vadd.f32 0.0, %v4355
    %4357 = vdwg.mxu0
    %4358 = vrot.lane.b32.xlu0 %v3906, 17
    %v4359 = vpop.permute.xlu0 %4358
    %4360 = vrot.lane.b32.xlu0 %v3912, 17
    %v4361 = vpop.permute.xlu0 %4360
    %4362 = vrot.lane.b32.xlu0 %v3908, 17
    %v4363 = vpop.permute.xlu0 %4362
    %4364 = vrot.lane.b32.xlu0 %v3914, 17
    %v4365 = vpop.permute.xlu0 %4364
    %4366 = vrot.lane.b32.xlu0 %v4079, 17
    %v4367 = vpop.permute.xlu0 %4366
    %4368 = vrot.lane.b32.xlu0 %v4085, 17
    %v4369 = vpop.permute.xlu0 %4368
    %4370 = vrot.lane.b32.xlu0 %v4081, 17
    %v4371 = vpop.permute.xlu0 %4370
    %4372 = vrot.lane.b32.xlu0 %v4087, 17
    %v4373 = vpop.permute.xlu0 %4372
    %4374 = vrot.lane.b32.xlu0 %v4252, 17
    %v4375 = vpop.permute.xlu0 %4374
    %4376 = vrot.lane.b32.xlu0 %v4258, 17
    %v4377 = vpop.permute.xlu0 %4376
    %4378 = vrot.lane.b32.xlu0 %v4254, 17
    %v4379 = vpop.permute.xlu0 %4378
    %4380 = vrot.lane.b32.xlu0 %v4260, 17
    %v4381 = vpop.permute.xlu0 %4380
    %v4382 = vsel %vm829, %v4375, %v4379
    %v4383 = vsel %vm829, %v4377, %v4381
    %v4384 = vsel %vm829, %v4371, %v4375
    %v4385 = vsel %vm829, %v4373, %v4377
    %v4386 = vsel %vm829, %v4367, %v4371
    %v4387 = vsel %vm829, %v4369, %v4373
    %v4388 = vsel %vm829, %v4363, %v4367
    %v4389 = vsel %vm829, %v4365, %v4369
    %v4390 = vsel %vm829, %v4359, %v4363
    %v4391 = vsel %vm829, %v4361, %v4365
    %v4392 = vsel %vm829, %v4379, %v4359
    %v4393 = vsel %vm829, %v4381, %v4361
    %v4394 = vmul.f32 %v4392, %v846
    %v4395 = vmul.f32 %v4390, %v850
    %v4396 = vmul.f32 %v4388, %v854
    %v4397 = vmul.f32 %v4386, %v858
    %v4398 = vmul.f32 %v4384, %v862
    %v4399 = vmul.f32 %v4382, %v866
    %v4400 = vmul.f32 %v4393, %v846
    %v4401 = vmul.f32 %v4391, %v850
    %v4402 = vmul.f32 %v4389, %v854
    %v4403 = vmul.f32 %v4387, %v858
    %v4404 = vmul.f32 %v4385, %v862
    %v4405 = vmul.f32 %v4383, %v866
    %4406 = vrot.lane.b32.xlu0 %v3918, 16
    %v4407 = vpop.permute.xlu0 %4406
    %4408 = vrot.lane.b32.xlu0 %v3924, 16
    %v4409 = vpop.permute.xlu0 %4408
    %4410 = vrot.lane.b32.xlu0 %v3920, 16
    %v4411 = vpop.permute.xlu0 %4410
    %4412 = vrot.lane.b32.xlu0 %v3926, 16
    %v4413 = vpop.permute.xlu0 %4412
    %4414 = vrot.lane.b32.xlu0 %v4091, 16
    %v4415 = vpop.permute.xlu0 %4414
    %4416 = vrot.lane.b32.xlu0 %v4097, 16
    %v4417 = vpop.permute.xlu0 %4416
    %4418 = vrot.lane.b32.xlu0 %v4093, 16
    %v4419 = vpop.permute.xlu0 %4418
    %4420 = vrot.lane.b32.xlu0 %v4099, 16
    %v4421 = vpop.permute.xlu0 %4420
    %4422 = vrot.lane.b32.xlu0 %v4264, 16
    %v4423 = vpop.permute.xlu0 %4422
    %4424 = vrot.lane.b32.xlu0 %v4270, 16
    %v4425 = vpop.permute.xlu0 %4424
    %4426 = vrot.lane.b32.xlu0 %v4266, 16
    %v4427 = vpop.permute.xlu0 %4426
    %4428 = vrot.lane.b32.xlu0 %v4272, 16
    %v4429 = vpop.permute.xlu0 %4428
    %v4430 = vsel %vm909, %v4423, %v4427
    %v4431 = vsel %vm909, %v4425, %v4429
    %v4432 = vsel %vm909, %v4419, %v4423
    %v4433 = vsel %vm909, %v4421, %v4425
    %v4434 = vsel %vm909, %v4415, %v4419
    %v4435 = vsel %vm909, %v4417, %v4421
    %v4436 = vsel %vm909, %v4411, %v4415
    %v4437 = vsel %vm909, %v4413, %v4417
    %v4438 = vsel %vm909, %v4407, %v4411
    %v4439 = vsel %vm909, %v4409, %v4413
    %v4440 = vsel %vm909, %v4427, %v4407
    %v4441 = vsel %vm909, %v4429, %v4409
    %v4442 = vadd.f32 %v4394, %v4440
    %v4443 = vadd.f32 %v4395, %v4438
    %v4444 = vadd.f32 %v4396, %v4436
    %v4445 = vadd.f32 %v4397, %v4434
    %v4446 = vadd.f32 %v4398, %v4432
    %v4447 = vadd.f32 %v4399, %v4430
    %v4448 = vadd.f32 %v4400, %v4441
    %v4449 = vadd.f32 %v4401, %v4439
    %v4450 = vadd.f32 %v4402, %v4437
    %v4451 = vadd.f32 %v4403, %v4435
    %v4452 = vadd.f32 %v4404, %v4433
    %v4453 = vadd.f32 %v4405, %v4431
    %4454 = vrot.lane.b32.xlu0 %v3930, 15
    %v4455 = vpop.permute.xlu0 %4454
    %4456 = vrot.lane.b32.xlu0 %v3936, 15
    %v4457 = vpop.permute.xlu0 %4456
    %4458 = vrot.lane.b32.xlu0 %v3932, 15
    %v4459 = vpop.permute.xlu0 %4458
    %4460 = vrot.lane.b32.xlu0 %v3938, 15
    %v4461 = vpop.permute.xlu0 %4460
    %4462 = vrot.lane.b32.xlu0 %v4103, 15
    %v4463 = vpop.permute.xlu0 %4462
    %4464 = vrot.lane.b32.xlu0 %v4109, 15
    %v4465 = vpop.permute.xlu0 %4464
    %4466 = vrot.lane.b32.xlu0 %v4105, 15
    %v4467 = vpop.permute.xlu0 %4466
    %4468 = vrot.lane.b32.xlu0 %v4111, 15
    %v4469 = vpop.permute.xlu0 %4468
    %4470 = vrot.lane.b32.xlu0 %v4276, 15
    %v4471 = vpop.permute.xlu0 %4470
    %4472 = vrot.lane.b32.xlu0 %v4282, 15
    %v4473 = vpop.permute.xlu0 %4472
    %4474 = vrot.lane.b32.xlu0 %v4278, 15
    %v4475 = vpop.permute.xlu0 %4474
    %4476 = vrot.lane.b32.xlu0 %v4284, 15
    %v4477 = vpop.permute.xlu0 %4476
    %v4478 = vsel %vm958, %v4471, %v4475
    %v4479 = vsel %vm958, %v4473, %v4477
    %v4480 = vsel %vm958, %v4467, %v4471
    %v4481 = vsel %vm958, %v4469, %v4473
    %v4482 = vsel %vm958, %v4463, %v4467
    %v4483 = vsel %vm958, %v4465, %v4469
    %v4484 = vsel %vm958, %v4459, %v4463
    %v4485 = vsel %vm958, %v4461, %v4465
    %v4486 = vsel %vm958, %v4455, %v4459
    %v4487 = vsel %vm958, %v4457, %v4461
    %v4488 = vsel %vm958, %v4475, %v4455
    %v4489 = vsel %vm958, %v4477, %v4457
    %v4490 = vmul.f32 %v4488, %v975
    %v4491 = vmul.f32 %v4486, %v979
    %v4492 = vmul.f32 %v4484, %v983
    %v4493 = vmul.f32 %v4482, %v987
    %v4494 = vmul.f32 %v4480, %v991
    %v4495 = vmul.f32 %v4478, %v995
    %v4496 = vmul.f32 %v4489, %v975
    %v4497 = vmul.f32 %v4487, %v979
    %v4498 = vmul.f32 %v4485, %v983
    %v4499 = vmul.f32 %v4483, %v987
    %v4500 = vmul.f32 %v4481, %v991
    %v4501 = vmul.f32 %v4479, %v995
    %v4502 = vadd.f32 %v4442, %v4490
    %v4503 = vadd.f32 %v4443, %v4491
    %v4504 = vadd.f32 %v4444, %v4492
    %v4505 = vadd.f32 %v4445, %v4493
    %v4506 = vadd.f32 %v4446, %v4494
    %v4507 = vadd.f32 %v4447, %v4495
    %v4508 = vadd.f32 %v4448, %v4496
    %v4509 = vadd.f32 %v4449, %v4497
    %v4510 = vadd.f32 %v4450, %v4498
    %v4511 = vadd.f32 %v4451, %v4499
    %v4512 = vadd.f32 %v4452, %v4500
    %v4513 = vadd.f32 %v4453, %v4501
    %4514 = vrot.lane.b32.xlu0 %v3942, 1
    %v4515 = vpop.permute.xlu0 %4514
    %4516 = vrot.lane.b32.xlu0 %v3948, 1
    %v4517 = vpop.permute.xlu0 %4516
    %4518 = vrot.lane.b32.xlu0 %v3944, 1
    %v4519 = vpop.permute.xlu0 %4518
    %4520 = vrot.lane.b32.xlu0 %v3950, 1
    %v4521 = vpop.permute.xlu0 %4520
    %4522 = vrot.lane.b32.xlu0 %v4115, 1
    %v4523 = vpop.permute.xlu0 %4522
    %4524 = vrot.lane.b32.xlu0 %v4121, 1
    %v4525 = vpop.permute.xlu0 %4524
    %4526 = vrot.lane.b32.xlu0 %v4117, 1
    %v4527 = vpop.permute.xlu0 %4526
    %4528 = vrot.lane.b32.xlu0 %v4123, 1
    %v4529 = vpop.permute.xlu0 %4528
    %4530 = vrot.lane.b32.xlu0 %v4288, 1
    %v4531 = vpop.permute.xlu0 %4530
    %4532 = vrot.lane.b32.xlu0 %v4294, 1
    %v4533 = vpop.permute.xlu0 %4532
    %4534 = vrot.lane.b32.xlu0 %v4290, 1
    %v4535 = vpop.permute.xlu0 %4534
    %4536 = vrot.lane.b32.xlu0 %v4296, 1
    %v4537 = vpop.permute.xlu0 %4536
    %v4538 = vsel %vm1050, %v4531, %v4535
    %v4539 = vsel %vm1050, %v4533, %v4537
    %v4540 = vsel %vm1050, %v4527, %v4531
    %v4541 = vsel %vm1050, %v4529, %v4533
    %v4542 = vsel %vm1050, %v4523, %v4527
    %v4543 = vsel %vm1050, %v4525, %v4529
    %v4544 = vsel %vm1050, %v4519, %v4523
    %v4545 = vsel %vm1050, %v4521, %v4525
    %v4546 = vsel %vm1050, %v4515, %v4519
    %v4547 = vsel %vm1050, %v4517, %v4521
    %v4548 = vsel %vm1050, %v4535, %v4515
    %v4549 = vsel %vm1050, %v4537, %v4517
    %v4550 = vmul.f32 %v4548, %v846
    %v4551 = vmul.f32 %v4546, %v850
    %v4552 = vmul.f32 %v4544, %v854
    %v4553 = vmul.f32 %v4542, %v858
    %v4554 = vmul.f32 %v4540, %v862
    %v4555 = vmul.f32 %v4538, %v866
    %v4556 = vmul.f32 %v4549, %v846
    %v4557 = vmul.f32 %v4547, %v850
    %v4558 = vmul.f32 %v4545, %v854
    %v4559 = vmul.f32 %v4543, %v858
    %v4560 = vmul.f32 %v4541, %v862
    %v4561 = vmul.f32 %v4539, %v866
    %v4562 = vadd.f32 %v4502, %v4550
    %v4563 = vadd.f32 %v4503, %v4551
    %v4564 = vadd.f32 %v4504, %v4552
    %v4565 = vadd.f32 %v4505, %v4553
    %v4566 = vadd.f32 %v4506, %v4554
    %v4567 = vadd.f32 %v4507, %v4555
    %v4568 = vadd.f32 %v4508, %v4556
    %v4569 = vadd.f32 %v4509, %v4557
    %v4570 = vadd.f32 %v4510, %v4558
    %v4571 = vadd.f32 %v4511, %v4559
    %v4572 = vadd.f32 %v4512, %v4560
    %v4573 = vadd.f32 %v4513, %v4561
    %v4574 = vadd.f32 %v4562, %v3954
    %v4575 = vadd.f32 %v4563, %v3956
    %v4576 = vadd.f32 %v4564, %v4127
    %v4577 = vadd.f32 %v4565, %v4129
    %v4578 = vadd.f32 %v4566, %v4300
    %v4579 = vadd.f32 %v4567, %v4302
    %v4580 = vadd.f32 %v4568, %v3960
    %v4581 = vadd.f32 %v4569, %v3962
    %v4582 = vadd.f32 %v4570, %v4133
    %v4583 = vadd.f32 %v4571, %v4135
    %v4584 = vadd.f32 %v4572, %v4306
    %v4585 = vadd.f32 %v4573, %v4308
    %4586 = vrot.lane.b32.xlu0 %v3966, 127
    %v4587 = vpop.permute.xlu0 %4586
    %4588 = vrot.lane.b32.xlu0 %v3972, 127
    %v4589 = vpop.permute.xlu0 %4588
    %4590 = vrot.lane.b32.xlu0 %v3968, 127
    %v4591 = vpop.permute.xlu0 %4590
    %4592 = vrot.lane.b32.xlu0 %v3974, 127
    %v4593 = vpop.permute.xlu0 %4592
    %4594 = vrot.lane.b32.xlu0 %v4139, 127
    %v4595 = vpop.permute.xlu0 %4594
    %4596 = vrot.lane.b32.xlu0 %v4145, 127
    %v4597 = vpop.permute.xlu0 %4596
    %4598 = vrot.lane.b32.xlu0 %v4141, 127
    %v4599 = vpop.permute.xlu0 %4598
    %4600 = vrot.lane.b32.xlu0 %v4147, 127
    %v4601 = vpop.permute.xlu0 %4600
    %4602 = vrot.lane.b32.xlu0 %v4312, 127
    %v4603 = vpop.permute.xlu0 %4602
    %4604 = vrot.lane.b32.xlu0 %v4318, 127
    %v4605 = vpop.permute.xlu0 %4604
    %4606 = vrot.lane.b32.xlu0 %v4314, 127
    %v4607 = vpop.permute.xlu0 %4606
    %4608 = vrot.lane.b32.xlu0 %v4320, 127
    %v4609 = vpop.permute.xlu0 %4608
    %v4610 = vsel %vm1123, %v4603, %v4607
    %v4611 = vsel %vm1123, %v4605, %v4609
    %v4612 = vsel %vm1123, %v4599, %v4603
    %v4613 = vsel %vm1123, %v4601, %v4605
    %v4614 = vsel %vm1123, %v4595, %v4599
    %v4615 = vsel %vm1123, %v4597, %v4601
    %v4616 = vsel %vm1123, %v4591, %v4595
    %v4617 = vsel %vm1123, %v4593, %v4597
    %v4618 = vsel %vm1123, %v4587, %v4591
    %v4619 = vsel %vm1123, %v4589, %v4593
    %v4620 = vsel %vm1123, %v4607, %v4587
    %v4621 = vsel %vm1123, %v4609, %v4589
    %v4622 = vmul.f32 %v4618, %v975
    %v4623 = vmul.f32 %v4616, %v979
    %v4624 = vmul.f32 %v4614, %v983
    %v4625 = vmul.f32 %v4612, %v987
    %v4626 = vmul.f32 %v4610, %v991
    %v4627 = vmul.f32 %v4620, %v995
    %v4628 = vmul.f32 %v4619, %v975
    %v4629 = vmul.f32 %v4617, %v979
    %v4630 = vmul.f32 %v4615, %v983
    %v4631 = vmul.f32 %v4613, %v987
    %v4632 = vmul.f32 %v4611, %v991
    %v4633 = vmul.f32 %v4621, %v995
    %v4634 = vadd.f32 %v4574, %v4622
    %v4635 = vadd.f32 %v4575, %v4623
    %v4636 = vadd.f32 %v4576, %v4624
    %v4637 = vadd.f32 %v4577, %v4625
    %v4638 = vadd.f32 %v4578, %v4626
    %v4639 = vadd.f32 %v4579, %v4627
    %v4640 = vadd.f32 %v4580, %v4628
    %v4641 = vadd.f32 %v4581, %v4629
    %v4642 = vadd.f32 %v4582, %v4630
    %v4643 = vadd.f32 %v4583, %v4631
    %v4644 = vadd.f32 %v4584, %v4632
    %v4645 = vadd.f32 %v4585, %v4633
    %4646 = vrot.lane.b32.xlu0 %v3978, 113
    %v4647 = vpop.permute.xlu0 %4646
    %4648 = vrot.lane.b32.xlu0 %v3984, 113
    %v4649 = vpop.permute.xlu0 %4648
    %4650 = vrot.lane.b32.xlu0 %v3980, 113
    %v4651 = vpop.permute.xlu0 %4650
    %4652 = vrot.lane.b32.xlu0 %v3986, 113
    %v4653 = vpop.permute.xlu0 %4652
    %4654 = vrot.lane.b32.xlu0 %v4151, 113
    %v4655 = vpop.permute.xlu0 %4654
    %4656 = vrot.lane.b32.xlu0 %v4157, 113
    %v4657 = vpop.permute.xlu0 %4656
    %4658 = vrot.lane.b32.xlu0 %v4153, 113
    %v4659 = vpop.permute.xlu0 %4658
    %4660 = vrot.lane.b32.xlu0 %v4159, 113
    %v4661 = vpop.permute.xlu0 %4660
    %4662 = vrot.lane.b32.xlu0 %v4324, 113
    %v4663 = vpop.permute.xlu0 %4662
    %4664 = vrot.lane.b32.xlu0 %v4330, 113
    %v4665 = vpop.permute.xlu0 %4664
    %4666 = vrot.lane.b32.xlu0 %v4326, 113
    %v4667 = vpop.permute.xlu0 %4666
    %4668 = vrot.lane.b32.xlu0 %v4332, 113
    %v4669 = vpop.permute.xlu0 %4668
    %v4670 = vsel %vm1184, %v4663, %v4667
    %v4671 = vsel %vm1184, %v4665, %v4669
    %v4672 = vsel %vm1184, %v4659, %v4663
    %v4673 = vsel %vm1184, %v4661, %v4665
    %v4674 = vsel %vm1184, %v4655, %v4659
    %v4675 = vsel %vm1184, %v4657, %v4661
    %v4676 = vsel %vm1184, %v4651, %v4655
    %v4677 = vsel %vm1184, %v4653, %v4657
    %v4678 = vsel %vm1184, %v4647, %v4651
    %v4679 = vsel %vm1184, %v4649, %v4653
    %v4680 = vsel %vm1184, %v4667, %v4647
    %v4681 = vsel %vm1184, %v4669, %v4649
    %v4682 = vmul.f32 %v4678, %v846
    %v4683 = vmul.f32 %v4676, %v850
    %v4684 = vmul.f32 %v4674, %v854
    %v4685 = vmul.f32 %v4672, %v858
    %v4686 = vmul.f32 %v4670, %v862
    %v4687 = vmul.f32 %v4680, %v866
    %v4688 = vmul.f32 %v4679, %v846
    %v4689 = vmul.f32 %v4677, %v850
    %v4690 = vmul.f32 %v4675, %v854
    %v4691 = vmul.f32 %v4673, %v858
    %v4692 = vmul.f32 %v4671, %v862
    %v4693 = vmul.f32 %v4681, %v866
    %v4694 = vadd.f32 %v4634, %v4682
    %v4695 = vadd.f32 %v4635, %v4683
    %v4696 = vadd.f32 %v4636, %v4684
    %v4697 = vadd.f32 %v4637, %v4685
    %v4698 = vadd.f32 %v4638, %v4686
    %v4699 = vadd.f32 %v4639, %v4687
    %v4700 = vadd.f32 %v4640, %v4688
    %v4701 = vadd.f32 %v4641, %v4689
    %v4702 = vadd.f32 %v4642, %v4690
    %v4703 = vadd.f32 %v4643, %v4691
    %v4704 = vadd.f32 %v4644, %v4692
    %v4705 = vadd.f32 %v4645, %v4693
    %4706 = vrot.lane.b32.xlu0 %v3990, 112
    %v4707 = vpop.permute.xlu0 %4706
    %4708 = vrot.lane.b32.xlu0 %v3996, 112
    %v4709 = vpop.permute.xlu0 %4708
    %4710 = vrot.lane.b32.xlu0 %v3992, 112
    %v4711 = vpop.permute.xlu0 %4710
    %4712 = vrot.lane.b32.xlu0 %v3998, 112
    %v4713 = vpop.permute.xlu0 %4712
    %4714 = vrot.lane.b32.xlu0 %v4163, 112
    %v4715 = vpop.permute.xlu0 %4714
    %4716 = vrot.lane.b32.xlu0 %v4169, 112
    %v4717 = vpop.permute.xlu0 %4716
    %4718 = vrot.lane.b32.xlu0 %v4165, 112
    %v4719 = vpop.permute.xlu0 %4718
    %4720 = vrot.lane.b32.xlu0 %v4171, 112
    %v4721 = vpop.permute.xlu0 %4720
    %4722 = vrot.lane.b32.xlu0 %v4336, 112
    %v4723 = vpop.permute.xlu0 %4722
    %4724 = vrot.lane.b32.xlu0 %v4342, 112
    %v4725 = vpop.permute.xlu0 %4724
    %4726 = vrot.lane.b32.xlu0 %v4338, 112
    %v4727 = vpop.permute.xlu0 %4726
    %4728 = vrot.lane.b32.xlu0 %v4344, 112
    %v4729 = vpop.permute.xlu0 %4728
    %v4730 = vsel %vm1245, %v4723, %v4727
    %v4731 = vsel %vm1245, %v4725, %v4729
    %v4732 = vsel %vm1245, %v4719, %v4723
    %v4733 = vsel %vm1245, %v4721, %v4725
    %v4734 = vsel %vm1245, %v4715, %v4719
    %v4735 = vsel %vm1245, %v4717, %v4721
    %v4736 = vsel %vm1245, %v4711, %v4715
    %v4737 = vsel %vm1245, %v4713, %v4717
    %v4738 = vsel %vm1245, %v4707, %v4711
    %v4739 = vsel %vm1245, %v4709, %v4713
    %v4740 = vsel %vm1245, %v4727, %v4707
    %v4741 = vsel %vm1245, %v4729, %v4709
    %v4742 = vadd.f32 %v4694, %v4738
    %v4743 = vadd.f32 %v4695, %v4736
    %v4744 = vadd.f32 %v4696, %v4734
    %v4745 = vadd.f32 %v4697, %v4732
    %v4746 = vadd.f32 %v4698, %v4730
    %v4747 = vadd.f32 %v4699, %v4740
    %v4748 = vadd.f32 %v4700, %v4739
    %v4749 = vadd.f32 %v4701, %v4737
    %v4750 = vadd.f32 %v4702, %v4735
    %v4751 = vadd.f32 %v4703, %v4733
    %v4752 = vadd.f32 %v4704, %v4731
    %v4753 = vadd.f32 %v4705, %v4741
    %4754 = vrot.lane.b32.xlu0 %v4002, 111
    %v4755 = vpop.permute.xlu0 %4754
    %4756 = vrot.lane.b32.xlu0 %v4008, 111
    %v4757 = vpop.permute.xlu0 %4756
    %4758 = vrot.lane.b32.xlu0 %v4004, 111
    %v4759 = vpop.permute.xlu0 %4758
    %4760 = vrot.lane.b32.xlu0 %v4010, 111
    %v4761 = vpop.permute.xlu0 %4760
    %4762 = vrot.lane.b32.xlu0 %v4175, 111
    %v4763 = vpop.permute.xlu0 %4762
    %4764 = vrot.lane.b32.xlu0 %v4181, 111
    %v4765 = vpop.permute.xlu0 %4764
    %4766 = vrot.lane.b32.xlu0 %v4177, 111
    %v4767 = vpop.permute.xlu0 %4766
    %4768 = vrot.lane.b32.xlu0 %v4183, 111
    %v4769 = vpop.permute.xlu0 %4768
    %4770 = vrot.lane.b32.xlu0 %v4348, 111
    %v4771 = vpop.permute.xlu0 %4770
    %4772 = vrot.lane.b32.xlu0 %v4354, 111
    %v4773 = vpop.permute.xlu0 %4772
    %4774 = vrot.lane.b32.xlu0 %v4350, 111
    %v4775 = vpop.permute.xlu0 %4774
    %4776 = vrot.lane.b32.xlu0 %v4356, 111
    %v4777 = vpop.permute.xlu0 %4776
    %v4778 = vsel %vm1294, %v4771, %v4775
    %v4779 = vsel %vm1294, %v4773, %v4777
    %v4780 = vsel %vm1294, %v4767, %v4771
    %v4781 = vsel %vm1294, %v4769, %v4773
    %v4782 = vsel %vm1294, %v4763, %v4767
    %v4783 = vsel %vm1294, %v4765, %v4769
    %v4784 = vsel %vm1294, %v4759, %v4763
    %v4785 = vsel %vm1294, %v4761, %v4765
    %v4786 = vsel %vm1294, %v4755, %v4759
    %v4787 = vsel %vm1294, %v4757, %v4761
    %v4788 = vsel %vm1294, %v4775, %v4755
    %v4789 = vsel %vm1294, %v4777, %v4757
    %v4790 = vmul.f32 %v4786, %v975
    %v4791 = vmul.f32 %v4784, %v979
    %v4792 = vmul.f32 %v4782, %v983
    %v4793 = vmul.f32 %v4780, %v987
    %v4794 = vmul.f32 %v4778, %v991
    %v4795 = vmul.f32 %v4788, %v995
    %v4796 = vmul.f32 %v4787, %v975
    %v4797 = vmul.f32 %v4785, %v979
    %v4798 = vmul.f32 %v4783, %v983
    %v4799 = vmul.f32 %v4781, %v987
    %v4800 = vmul.f32 %v4779, %v991
    %v4801 = vmul.f32 %v4789, %v995
    %v4802 = vadd.f32 %v4742, %v4790
    %v4803 = vadd.f32 %v4743, %v4791
    %v4804 = vadd.f32 %v4744, %v4792
    %v4805 = vadd.f32 %v4745, %v4793
    %v4806 = vadd.f32 %v4746, %v4794
    %v4807 = vadd.f32 %v4747, %v4795
    %v4808 = vadd.f32 %v4748, %v4796
    %v4809 = vadd.f32 %v4749, %v4797
    %v4810 = vadd.f32 %v4750, %v4798
    %v4811 = vadd.f32 %v4751, %v4799
    %v4812 = vadd.f32 %v4752, %v4800
    %v4813 = vadd.f32 %v4753, %v4801
    %s4814 = scalar_lea.vmem %s2, 48
    %v4815 = vld [vmem:[%s4814] sm:$0xff]
    %v4816 = vld [vmem:[%s4814 + $0x8] sm:$0xff]
    %4818 = vset.pattern.permute.xlu0 0
    %4819 = vperm.xlu0 %4818, %v4815
    %v4820 = vpop.permute.xlu0 %4819
    %4823 = vset.pattern.permute.xlu0 0
    %4824 = vperm.xlu0 %4823, %v4816
    %v4825 = vpop.permute.xlu0 %4824
    %v4827 = vadd.f32 %v4802, %v4820
    %v4828 = vadd.f32 %v4803, %v4820
    %v4829 = vadd.f32 %v4804, %v4820
    %v4830 = vadd.f32 %v4805, %v4820
    %v4831 = vadd.f32 %v4806, %v4820
    %v4832 = vadd.f32 %v4807, %v4820
    %v4833 = vadd.f32 %v4808, %v4825
    %v4834 = vadd.f32 %v4809, %v4825
    %v4835 = vadd.f32 %v4810, %v4825
    %v4836 = vadd.f32 %v4811, %v4825
    %v4837 = vadd.f32 %v4812, %v4825
    %v4838 = vadd.f32 %v4813, %v4825
    %v4839 = vmax.f32 %v4827, 0.0
    %v4840 = vmax.f32 %v4828, 0.0
    %v4841 = vmax.f32 %v4829, 0.0
    %v4842 = vmax.f32 %v4830, 0.0
    %v4843 = vmax.f32 %v4831, 0.0
    %v4844 = vmax.f32 %v4832, 0.0
    %v4845 = vmax.f32 %v4833, 0.0
    %v4846 = vmax.f32 %v4834, 0.0
    %v4847 = vmax.f32 %v4835, 0.0
    %v4848 = vmax.f32 %v4836, 0.0
    %v4849 = vmax.f32 %v4837, 0.0
    %v4850 = vmax.f32 %v4838, 0.0
    %v4851 = vmul.f32 %v4839, %v1371
    %v4852 = vmul.f32 %v4840, %v1375
    %v4853 = vmul.f32 %v4841, %v1379
    %v4854 = vmul.f32 %v4842, %v1383
    %v4855 = vmul.f32 %v4843, %v1387
    %v4856 = vmul.f32 %v4844, %v1391
    %v4857 = vmul.f32 %v4845, %v1371
    %v4858 = vmul.f32 %v4846, %v1375
    %v4859 = vmul.f32 %v4847, %v1379
    %v4860 = vmul.f32 %v4848, %v1383
    %v4861 = vmul.f32 %v4849, %v1387
    %v4862 = vmul.f32 %v4850, %v1391
    %4863 = vst [vmem:[#allocation2 + $0x1e0] sm:$0xff] %v4851
    %4864 = vst [vmem:[#allocation2 + $0x1e8] sm:$0xff] %v4852
    %4865 = vst [vmem:[#allocation2 + $0x1f0] sm:$0xff] %v4853
    %4866 = vst [vmem:[#allocation2 + $0x1f8] sm:$0xff] %v4854
    %4867 = vst [vmem:[#allocation2 + $0x200] sm:$0xff] %v4855
    %4868 = vst [vmem:[#allocation2 + $0x208] sm:$0xff] %v4856
    %4869 = vst [vmem:[#allocation2 + $0x210] sm:$0xff] %v4857
    %4870 = vst [vmem:[#allocation2 + $0x218] sm:$0xff] %v4858
    %4871 = vst [vmem:[#allocation2 + $0x220] sm:$0xff] %v4859
    %4872 = vst [vmem:[#allocation2 + $0x228] sm:$0xff] %v4860
    %4873 = vst [vmem:[#allocation2 + $0x230] sm:$0xff] %v4861
    %4874 = vst [vmem:[#allocation2 + $0x238] sm:$0xff] %v4862
    %s4875 = scalar_lea.vmem [#allocation3], 576
    %v4876 = vld [vmem:[%s4875] sm:$0xff]
    %v4877 = vld [vmem:[%s4875 + $0x8] sm:$0xff]
    %v4878 = vld [vmem:[%s4875 + $0x10] sm:$0xff]
    %v4879 = vld [vmem:[%s4875 + $0x18] sm:$0xff]
    %v4880 = vld [vmem:[%s4875 + $0x20] sm:$0xff]
    %v4881 = vld [vmem:[%s4875 + $0x28] sm:$0xff]
    %v4882 = vld [vmem:[%s4875 + $0x30] sm:$0xff]
    %v4883 = vld [vmem:[%s4875 + $0x38] sm:$0xff]
    %v4884 = vld [vmem:[%s4875 + $0x40] sm:$0xff]
    %v4885 = vld [vmem:[%s4875 + $0x48] sm:$0xff]
    %v4886 = vld [vmem:[%s4875 + $0x50] sm:$0xff]
    %v4887 = vld [vmem:[%s4875 + $0x58] sm:$0xff]
    %v4888 = vld [vmem:[%s4875 + $0x60] sm:$0xff]
    %v4889 = vld [vmem:[%s4875 + $0x68] sm:$0xff]
    %v4890 = vld [vmem:[%s4875 + $0x70] sm:$0xff]
    %v4891 = vld [vmem:[%s4875 + $0x78] sm:$0xff]
    %v4892 = vld [vmem:[%s4875 + $0x80] sm:$0xff]
    %v4893 = vld [vmem:[%s4875 + $0x88] sm:$0xff]
    %v4894 = vld [vmem:[#allocation2] sm:$0xff]
    %v4895 = vld [vmem:[#allocation2 + $0x8] sm:$0xff]
    %v4896 = vld [vmem:[#allocation2 + $0x10] sm:$0xff]
    %v4897 = vld [vmem:[#allocation2 + $0x18] sm:$0xff]
    %v4898 = vld [vmem:[#allocation2 + $0x20] sm:$0xff]
    %v4899 = vld [vmem:[#allocation2 + $0x28] sm:$0xff]
    %v4900 = vld [vmem:[#allocation2 + $0x30] sm:$0xff]
    %v4901 = vld [vmem:[#allocation2 + $0x38] sm:$0xff]
    %v4902 = vld [vmem:[#allocation2 + $0x40] sm:$0xff]
    %v4903 = vld [vmem:[#allocation2 + $0x48] sm:$0xff]
    %v4904 = vld [vmem:[#allocation2 + $0x50] sm:$0xff]
    %v4905 = vld [vmem:[#allocation2 + $0x58] sm:$0xff]
    %v4906 = vld [vmem:[#allocation2 + $0x60] sm:$0xff]
    %v4907 = vld [vmem:[#allocation2 + $0x68] sm:$0xff]
    %v4908 = vld [vmem:[#allocation2 + $0x70] sm:$0xff]
    %v4909 = vld [vmem:[#allocation2 + $0x78] sm:$0xff]
    %v4910 = vld [vmem:[#allocation2 + $0x80] sm:$0xff]
    %v4911 = vld [vmem:[#allocation2 + $0x88] sm:$0xff]
    %v4912 = vld [vmem:[#allocation2 + $0x90] sm:$0xff]
    %v4913 = vld [vmem:[#allocation2 + $0x98] sm:$0xff]
    %v4914 = vld [vmem:[#allocation2 + $0xa0] sm:$0xff]
    %v4915 = vld [vmem:[#allocation2 + $0xa8] sm:$0xff]
    %v4916 = vld [vmem:[#allocation2 + $0xb0] sm:$0xff]
    %v4917 = vld [vmem:[#allocation2 + $0xb8] sm:$0xff]
    %v4918 = vld [vmem:[#allocation2 + $0xc0] sm:$0xff]
    %v4919 = vld [vmem:[#allocation2 + $0xc8] sm:$0xff]
    %v4920 = vld [vmem:[#allocation2 + $0xd0] sm:$0xff]
    %v4921 = vld [vmem:[#allocation2 + $0xd8] sm:$0xff]
    %v4922 = vld [vmem:[#allocation2 + $0xe0] sm:$0xff]
    %v4923 = vld [vmem:[#allocation2 + $0xe8] sm:$0xff]
    %v4924 = vld [vmem:[#allocation2 + $0xf0] sm:$0xff]
    %v4925 = vld [vmem:[#allocation2 + $0xf8] sm:$0xff]
    %v4926 = vld [vmem:[#allocation2 + $0x100] sm:$0xff]
    %v4927 = vld [vmem:[#allocation2 + $0x108] sm:$0xff]
    %v4928 = vld [vmem:[#allocation2 + $0x110] sm:$0xff]
    %v4929 = vld [vmem:[#allocation2 + $0x118] sm:$0xff]
    %v4930 = vld [vmem:[#allocation2 + $0x120] sm:$0xff]
    %v4931 = vld [vmem:[#allocation2 + $0x128] sm:$0xff]
    %v4932 = vld [vmem:[#allocation2 + $0x130] sm:$0xff]
    %v4933 = vld [vmem:[#allocation2 + $0x138] sm:$0xff]
    %v4934 = vld [vmem:[#allocation2 + $0x140] sm:$0xff]
    %v4935 = vld [vmem:[#allocation2 + $0x148] sm:$0xff]
    %v4936 = vld [vmem:[#allocation2 + $0x150] sm:$0xff]
    %v4937 = vld [vmem:[#allocation2 + $0x158] sm:$0xff]
    %v4938 = vld [vmem:[#allocation2 + $0x160] sm:$0xff]
    %v4939 = vld [vmem:[#allocation2 + $0x168] sm:$0xff]
    %v4940 = vld [vmem:[#allocation2 + $0x170] sm:$0xff]
    %v4941 = vld [vmem:[#allocation2 + $0x178] sm:$0xff]
    %v4942 = vld [vmem:[#allocation2 + $0x180] sm:$0xff]
    %v4943 = vld [vmem:[#allocation2 + $0x188] sm:$0xff]
    %v4944 = vld [vmem:[#allocation2 + $0x190] sm:$0xff]
    %v4945 = vld [vmem:[#allocation2 + $0x198] sm:$0xff]
    %v4946 = vld [vmem:[#allocation2 + $0x1a0] sm:$0xff]
    %v4947 = vld [vmem:[#allocation2 + $0x1a8] sm:$0xff]
    %v4948 = vld [vmem:[#allocation2 + $0x1b0] sm:$0xff]
    %v4949 = vld [vmem:[#allocation2 + $0x1b8] sm:$0xff]
    %v4950 = vld [vmem:[#allocation2 + $0x1c0] sm:$0xff]
    %v4951 = vld [vmem:[#allocation2 + $0x1c8] sm:$0xff]
    %v4952 = vld [vmem:[#allocation2 + $0x1d0] sm:$0xff]
    %v4953 = vld [vmem:[#allocation2 + $0x1d8] sm:$0xff]
    %v4954 = vld [vmem:[#allocation2 + $0x1e0] sm:$0xff]
    %v4955 = vld [vmem:[#allocation2 + $0x1e8] sm:$0xff]
    %v4956 = vld [vmem:[#allocation2 + $0x1f0] sm:$0xff]
    %v4957 = vld [vmem:[#allocation2 + $0x1f8] sm:$0xff]
    %v4958 = vld [vmem:[#allocation2 + $0x200] sm:$0xff]
    %v4959 = vld [vmem:[#allocation2 + $0x208] sm:$0xff]
    %v4960 = vld [vmem:[#allocation2 + $0x210] sm:$0xff]
    %v4961 = vld [vmem:[#allocation2 + $0x218] sm:$0xff]
    %v4962 = vld [vmem:[#allocation2 + $0x220] sm:$0xff]
    %v4963 = vld [vmem:[#allocation2 + $0x228] sm:$0xff]
    %v4964 = vld [vmem:[#allocation2 + $0x230] sm:$0xff]
    %v4965 = vld [vmem:[#allocation2 + $0x238] sm:$0xff]
    %v4966 = vld [vmem:[#allocation2 + $0x240] sm:$0xff]
    %v4967 = vld [vmem:[#allocation2 + $0x248] sm:$0xff]
    %v4968 = vld [vmem:[#allocation2 + $0x250] sm:$0xff]
    %v4969 = vld [vmem:[#allocation2 + $0x258] sm:$0xff]
    %v4970 = vld [vmem:[#allocation2 + $0x260] sm:$0xff]
    %v4971 = vld [vmem:[#allocation2 + $0x268] sm:$0xff]
    %v4972 = vld [vmem:[#allocation2 + $0x270] sm:$0xff]
    %v4973 = vld [vmem:[#allocation2 + $0x278] sm:$0xff]
    %v4974 = vld [vmem:[#allocation2 + $0x280] sm:$0xff]
    %v4975 = vld [vmem:[#allocation2 + $0x288] sm:$0xff]
    %v4976 = vld [vmem:[#allocation2 + $0x290] sm:$0xff]
    %v4977 = vld [vmem:[#allocation2 + $0x298] sm:$0xff]
    %v4978 = vld [vmem:[#allocation2 + $0x2a0] sm:$0xff]
    %v4979 = vld [vmem:[#allocation2 + $0x2a8] sm:$0xff]
    %v4980 = vld [vmem:[#allocation2 + $0x2b0] sm:$0xff]
    %v4981 = vld [vmem:[#allocation2 + $0x2b8] sm:$0xff]
    %v4982 = vld [vmem:[#allocation2 + $0x2c0] sm:$0xff]
    %v4983 = vld [vmem:[#allocation2 + $0x2c8] sm:$0xff]
    %v4984 = vld [vmem:[#allocation2 + $0x2d0] sm:$0xff]
    %v4985 = vld [vmem:[#allocation2 + $0x2d8] sm:$0xff]
    %v4986 = vld [vmem:[#allocation2 + $0x2e0] sm:$0xff]
    %v4987 = vld [vmem:[#allocation2 + $0x2e8] sm:$0xff]
    %v4988 = vld [vmem:[#allocation2 + $0x2f0] sm:$0xff]
    %v4989 = vld [vmem:[#allocation2 + $0x2f8] sm:$0xff]
    %4990 = vmatprep.subr.mxu0 %v4895
    %4991 = vmatpush1.msra.mxu0 %v4894
    %4992 = vmatprep.subr.mxu0 %v4901
    %4993 = vmatpush1.msra.mxu0 %v4900
    %4994 = vmatprep.subr.mxu0 %v4907
    %4995 = vmatpush1.msra.mxu0 %v4906
    %4996 = vmatprep.subr.mxu0 %v4913
    %4997 = vmatpush1.msra.mxu0 %v4912
    %4998 = vmatprep.subr.mxu0 %v4919
    %4999 = vmatpush1.msra.mxu0 %v4918
    %5000 = vmatprep.subr.mxu0 %v4925
    %5001 = vmatpush1.msra.mxu0 %v4924
    %5002 = vmatprep.subr.mxu0 %v4931
    %5003 = vmatpush1.msra.mxu0 %v4930
    %5004 = vmatprep.subr.mxu0 %v4937
    %5005 = vmatpush1.msra.mxu0 %v4936
    %5006 = vmatprep.subr.mxu0 %v4943
    %5007 = vmatpush1.msra.mxu0 %v4942
    %5008 = vmatprep.subr.mxu0 %v4949
    %5009 = vmatpush1.msra.mxu0 %v4948
    %5010 = vmatprep.subr.mxu0 %v4955
    %5011 = vmatpush1.msra.mxu0 %v4954
    %5012 = vmatprep.subr.mxu0 %v4961
    %5013 = vmatpush1.msra.mxu0 %v4960
    %5014 = vmatprep.subr.mxu0 %v4967
    %5015 = vmatpush1.msra.mxu0 %v4966
    %5016 = vmatprep.subr.mxu0 %v4973
    %5017 = vmatpush1.msra.mxu0 %v4972
    %5018 = vmatprep.subr.mxu0 %v4979
    %5019 = vmatpush1.msra.mxu0 %v4978
    %5020 = vmatprep.subr.mxu0 %v4985
    %5021 = vmatpush1.msra.mxu0 %v4984
    %5022 = vmatprep.subr.mxu0 0.0
    %5023 = vmatpush1.msra.mxu0 0.0
    %5024 = vmatprep.subr.mxu0 0.0
    %5025 = vmatpush1.msra.mxu0 0.0
    %5026 = vmatprep.subr.mxu0 0.0
    %5027 = vmatpush1.msra.mxu0 0.0
    %5028 = vmatprep.subr.mxu0 0.0
    %5029 = vmatpush1.msra.mxu0 0.0
    %5030 = vmatprep.subr.mxu0 0.0
    %5031 = vmatpush1.msra.mxu0 0.0
    %5032 = vmatprep.subr.mxu0 0.0
    %5033 = vmatpush1.msra.mxu0 0.0
    %5034 = vmatprep.subr.mxu0 0.0
    %5035 = vmatpush1.msra.mxu0 0.0
    %5036 = vmatprep.subr.mxu0 0.0
    %5037 = vmatpush1.msra.mxu0 0.0
    %5038 = vmatprep.subr.mxu0 0.0
    %5039 = vmatpush1.msra.mxu0 0.0
    %5040 = vmatprep.subr.mxu0 0.0
    %5041 = vmatpush1.msra.mxu0 0.0
    %5042 = vmatprep.subr.mxu0 0.0
    %5043 = vmatpush1.msra.mxu0 0.0
    %5044 = vmatprep.subr.mxu0 0.0
    %5045 = vmatpush1.msra.mxu0 0.0
    %5046 = vmatprep.subr.mxu0 0.0
    %5047 = vmatpush1.msra.mxu0 0.0
    %5048 = vmatprep.subr.mxu0 0.0
    %5049 = vmatpush1.msra.mxu0 0.0
    %5050 = vmatprep.subr.mxu0 0.0
    %5051 = vmatpush1.msra.mxu0 0.0
    %5052 = vmatprep.subr.mxu0 0.0
    %5053 = vmatpush1.msra.mxu0 0.0
    %5054 = vmatprep.mubr.f32.mxu0 0.0
    %5055 = vmatmul.mubr.f32.gmra.mrb[0].mxu0 %v4876
    %v5056 = vpop.f32.mrb[0].mxu0
    %v5057 = vadd.f32 0.0, %v5056
    %v5058 = vpop.f32.mrb[0].mxu0
    %v5059 = vadd.f32 0.0, %v5058
    %5060 = vmatprep.mubr.f32.mxu0 0.0
    %5061 = vmatmul.mubr.f32.gmra.mrb[0].mxu0 %v4877
    %v5062 = vpop.f32.mrb[0].mxu0
    %v5063 = vadd.f32 0.0, %v5062
    %v5064 = vpop.f32.mrb[0].mxu0
    %v5065 = vadd.f32 0.0, %v5064
    %5066 = vmatprep.mubr.f32.mxu0 0.0
    %5067 = vmatmul.mubr.f32.gmra.mrb[0].mxu0 %v4878
    %v5068 = vpop.f32.mrb[0].mxu0
    %v5069 = vadd.f32 0.0, %v5068
    %v5070 = vpop.f32.mrb[0].mxu0
    %v5071 = vadd.f32 0.0, %v5070
    %5072 = vmatprep.mubr.f32.mxu0 0.0
    %5073 = vmatmul.mubr.f32.gmra.mrb[0].mxu0 %v4879
    %v5074 = vpop.f32.mrb[0].mxu0
    %v5075 = vadd.f32 0.0, %v5074
    %v5076 = vpop.f32.mrb[0].mxu0
    %v5077 = vadd.f32 0.0, %v5076
    %5078 = vmatprep.mubr.f32.mxu0 0.0
    %5079 = vmatmul.mubr.f32.gmra.mrb[0].mxu0 %v4880
    %v5080 = vpop.f32.mrb[0].mxu0
    %v5081 = vadd.f32 0.0, %v5080
    %v5082 = vpop.f32.mrb[0].mxu0
    %v5083 = vadd.f32 0.0, %v5082
    %5084 = vmatprep.mubr.f32.mxu0 0.0
    %5085 = vmatmul.mubr.f32.gmra.mrb[0].mxu0 %v4881
    %v5086 = vpop.f32.mrb[0].mxu0
    %v5087 = vadd.f32 0.0, %v5086
    %v5088 = vpop.f32.mrb[0].mxu0
    %v5089 = vadd.f32 0.0, %v5088
    %5090 = vmatprep.mubr.f32.mxu0 0.0
    %5091 = vmatmul.mubr.f32.gmra.mrb[0].mxu0 %v4882
    %v5092 = vpop.f32.mrb[0].mxu0
    %v5093 = vadd.f32 0.0, %v5092
    %v5094 = vpop.f32.mrb[0].mxu0
    %v5095 = vadd.f32 0.0, %v5094
    %5096 = vmatprep.mubr.f32.mxu0 0.0
    %5097 = vmatmul.mubr.f32.gmra.mrb[0].mxu0 %v4883
    %v5098 = vpop.f32.mrb[0].mxu0
    %v5099 = vadd.f32 0.0, %v5098
    %v5100 = vpop.f32.mrb[0].mxu0
    %v5101 = vadd.f32 0.0, %v5100
    %5102 = vmatprep.mubr.f32.mxu0 0.0
    %5103 = vmatmul.mubr.f32.gmra.mrb[0].mxu0 %v4884
    %v5104 = vpop.f32.mrb[0].mxu0
    %v5105 = vadd.f32 0.0, %v5104
    %v5106 = vpop.f32.mrb[0].mxu0
    %v5107 = vadd.f32 0.0, %v5106
    %5108 = vmatprep.mubr.f32.mxu0 0.0
    %5109 = vmatmul.mubr.f32.gmra.mrb[0].mxu0 %v4885
    %v5110 = vpop.f32.mrb[0].mxu0
    %v5111 = vadd.f32 0.0, %v5110
    %v5112 = vpop.f32.mrb[0].mxu0
    %v5113 = vadd.f32 0.0, %v5112
    %5114 = vmatprep.mubr.f32.mxu0 0.0
    %5115 = vmatmul.mubr.f32.gmra.mrb[0].mxu0 %v4886
    %v5116 = vpop.f32.mrb[0].mxu0
    %v5117 = vadd.f32 0.0, %v5116
    %v5118 = vpop.f32.mrb[0].mxu0
    %v5119 = vadd.f32 0.0, %v5118
    %5120 = vmatprep.mubr.f32.mxu0 0.0
    %5121 = vmatmul.mubr.f32.gmra.mrb[0].mxu0 %v4887
    %v5122 = vpop.f32.mrb[0].mxu0
    %v5123 = vadd.f32 0.0, %v5122
    %v5124 = vpop.f32.mrb[0].mxu0
    %v5125 = vadd.f32 0.0, %v5124
    %5126 = vmatprep.mubr.f32.mxu0 0.0
    %5127 = vmatmul.mubr.f32.gmra.mrb[0].mxu0 %v4888
    %v5128 = vpop.f32.mrb[0].mxu0
    %v5129 = vadd.f32 0.0, %v5128
    %v5130 = vpop.f32.mrb[0].mxu0
    %v5131 = vadd.f32 0.0, %v5130
    %5132 = vmatprep.mubr.f32.mxu0 0.0
    %5133 = vmatmul.mubr.f32.gmra.mrb[0].mxu0 %v4889
    %v5134 = vpop.f32.mrb[0].mxu0
    %v5135 = vadd.f32 0.0, %v5134
    %v5136 = vpop.f32.mrb[0].mxu0
    %v5137 = vadd.f32 0.0, %v5136
    %5138 = vmatprep.mubr.f32.mxu0 0.0
    %5139 = vmatmul.mubr.f32.gmra.mrb[0].mxu0 %v4890
    %v5140 = vpop.f32.mrb[0].mxu0
    %v5141 = vadd.f32 0.0, %v5140
    %v5142 = vpop.f32.mrb[0].mxu0
    %v5143 = vadd.f32 0.0, %v5142
    %5144 = vmatprep.mubr.f32.mxu0 0.0
    %5145 = vmatmul.mubr.f32.gmra.mrb[0].mxu0 %v4891
    %v5146 = vpop.f32.mrb[0].mxu0
    %v5147 = vadd.f32 0.0, %v5146
    %v5148 = vpop.f32.mrb[0].mxu0
    %v5149 = vadd.f32 0.0, %v5148
    %5150 = vmatprep.mubr.f32.mxu0 0.0
    %5151 = vmatmul.mubr.f32.gmra.mrb[0].mxu0 %v4892
    %v5152 = vpop.f32.mrb[0].mxu0
    %v5153 = vadd.f32 0.0, %v5152
    %v5154 = vpop.f32.mrb[0].mxu0
    %v5155 = vadd.f32 0.0, %v5154
    %5156 = vmatprep.mubr.f32.mxu0 0.0
    %5157 = vmatmul.mubr.f32.gmra.mrb[0].mxu0 %v4893
    %v5158 = vpop.f32.mrb[0].mxu0
    %v5159 = vadd.f32 0.0, %v5158
    %v5160 = vpop.f32.mrb[0].mxu0
    %v5161 = vadd.f32 0.0, %v5160
    %5162 = vdwg.mxu0
    %5163 = vmatprep.subr.mxu0 %v4897
    %5164 = vmatpush1.msra.mxu0 %v4896
    %5165 = vmatprep.subr.mxu0 %v4903
    %5166 = vmatpush1.msra.mxu0 %v4902
    %5167 = vmatprep.subr.mxu0 %v4909
    %5168 = vmatpush1.msra.mxu0 %v4908
    %5169 = vmatprep.subr.mxu0 %v4915
    %5170 = vmatpush1.msra.mxu0 %v4914
    %5171 = vmatprep.subr.mxu0 %v4921
    %5172 = vmatpush1.msra.mxu0 %v4920
    %5173 = vmatprep.subr.mxu0 %v4927
    %5174 = vmatpush1.msra.mxu0 %v4926
    %5175 = vmatprep.subr.mxu0 %v4933
    %5176 = vmatpush1.msra.mxu0 %v4932
    %5177 = vmatprep.subr.mxu0 %v4939
    %5178 = vmatpush1.msra.mxu0 %v4938
    %5179 = vmatprep.subr.mxu0 %v4945
    %5180 = vmatpush1.msra.mxu0 %v4944
    %5181 = vmatprep.subr.mxu0 %v4951
    %5182 = vmatpush1.msra.mxu0 %v4950
    %5183 = vmatprep.subr.mxu0 %v4957
    %5184 = vmatpush1.msra.mxu0 %v4956
    %5185 = vmatprep.subr.mxu0 %v4963
    %5186 = vmatpush1.msra.mxu0 %v4962
    %5187 = vmatprep.subr.mxu0 %v4969
    %5188 = vmatpush1.msra.mxu0 %v4968
    %5189 = vmatprep.subr.mxu0 %v4975
    %5190 = vmatpush1.msra.mxu0 %v4974
    %5191 = vmatprep.subr.mxu0 %v4981
    %5192 = vmatpush1.msra.mxu0 %v4980
    %5193 = vmatprep.subr.mxu0 %v4987
    %5194 = vmatpush1.msra.mxu0 %v4986
    %5195 = vmatprep.subr.mxu0 0.0
    %5196 = vmatpush1.msra.mxu0 0.0
    %5197 = vmatprep.subr.mxu0 0.0
    %5198 = vmatpush1.msra.mxu0 0.0
    %5199 = vmatprep.subr.mxu0 0.0
    %5200 = vmatpush1.msra.mxu0 0.0
    %5201 = vmatprep.subr.mxu0 0.0
    %5202 = vmatpush1.msra.mxu0 0.0
    %5203 = vmatprep.subr.mxu0 0.0
    %5204 = vmatpush1.msra.mxu0 0.0
    %5205 = vmatprep.subr.mxu0 0.0
    %5206 = vmatpush1.msra.mxu0 0.0
    %5207 = vmatprep.subr.mxu0 0.0
    %5208 = vmatpush1.msra.mxu0 0.0
    %5209 = vmatprep.subr.mxu0 0.0
    %5210 = vmatpush1.msra.mxu0 0.0
    %5211 = vmatprep.subr.mxu0 0.0
    %5212 = vmatpush1.msra.mxu0 0.0
    %5213 = vmatprep.subr.mxu0 0.0
    %5214 = vmatpush1.msra.mxu0 0.0
    %5215 = vmatprep.subr.mxu0 0.0
    %5216 = vmatpush1.msra.mxu0 0.0
    %5217 = vmatprep.subr.mxu0 0.0
    %5218 = vmatpush1.msra.mxu0 0.0
    %5219 = vmatprep.subr.mxu0 0.0
    %5220 = vmatpush1.msra.mxu0 0.0
    %5221 = vmatprep.subr.mxu0 0.0
    %5222 = vmatpush1.msra.mxu0 0.0
    %5223 = vmatprep.subr.mxu0 0.0
    %5224 = vmatpush1.msra.mxu0 0.0
    %5225 = vmatprep.subr.mxu0 0.0
    %5226 = vmatpush1.msra.mxu0 0.0
    %5227 = vmatprep.mubr.f32.mxu0 0.0
    %5228 = vmatmul.mubr.f32.gmra.mrb[0].mxu0 %v4876
    %v5229 = vpop.f32.mrb[0].mxu0
    %v5230 = vadd.f32 0.0, %v5229
    %v5231 = vpop.f32.mrb[0].mxu0
    %v5232 = vadd.f32 0.0, %v5231
    %5233 = vmatprep.mubr.f32.mxu0 0.0
    %5234 = vmatmul.mubr.f32.gmra.mrb[0].mxu0 %v4877
    %v5235 = vpop.f32.mrb[0].mxu0
    %v5236 = vadd.f32 0.0, %v5235
    %v5237 = vpop.f32.mrb[0].mxu0
    %v5238 = vadd.f32 0.0, %v5237
    %5239 = vmatprep.mubr.f32.mxu0 0.0
    %5240 = vmatmul.mubr.f32.gmra.mrb[0].mxu0 %v4878
    %v5241 = vpop.f32.mrb[0].mxu0
    %v5242 = vadd.f32 0.0, %v5241
    %v5243 = vpop.f32.mrb[0].mxu0
    %v5244 = vadd.f32 0.0, %v5243
    %5245 = vmatprep.mubr.f32.mxu0 0.0
    %5246 = vmatmul.mubr.f32.gmra.mrb[0].mxu0 %v4879
    %v5247 = vpop.f32.mrb[0].mxu0
    %v5248 = vadd.f32 0.0, %v5247
    %v5249 = vpop.f32.mrb[0].mxu0
    %v5250 = vadd.f32 0.0, %v5249
    %5251 = vmatprep.mubr.f32.mxu0 0.0
    %5252 = vmatmul.mubr.f32.gmra.mrb[0].mxu0 %v4880
    %v5253 = vpop.f32.mrb[0].mxu0
    %v5254 = vadd.f32 0.0, %v5253
    %v5255 = vpop.f32.mrb[0].mxu0
    %v5256 = vadd.f32 0.0, %v5255
    %5257 = vmatprep.mubr.f32.mxu0 0.0
    %5258 = vmatmul.mubr.f32.gmra.mrb[0].mxu0 %v4881
    %v5259 = vpop.f32.mrb[0].mxu0
    %v5260 = vadd.f32 0.0, %v5259
    %v5261 = vpop.f32.mrb[0].mxu0
    %v5262 = vadd.f32 0.0, %v5261
    %5263 = vmatprep.mubr.f32.mxu0 0.0
    %5264 = vmatmul.mubr.f32.gmra.mrb[0].mxu0 %v4882
    %v5265 = vpop.f32.mrb[0].mxu0
    %v5266 = vadd.f32 0.0, %v5265
    %v5267 = vpop.f32.mrb[0].mxu0
    %v5268 = vadd.f32 0.0, %v5267
    %5269 = vmatprep.mubr.f32.mxu0 0.0
    %5270 = vmatmul.mubr.f32.gmra.mrb[0].mxu0 %v4883
    %v5271 = vpop.f32.mrb[0].mxu0
    %v5272 = vadd.f32 0.0, %v5271
    %v5273 = vpop.f32.mrb[0].mxu0
    %v5274 = vadd.f32 0.0, %v5273
    %5275 = vmatprep.mubr.f32.mxu0 0.0
    %5276 = vmatmul.mubr.f32.gmra.mrb[0].mxu0 %v4884
    %v5277 = vpop.f32.mrb[0].mxu0
    %v5278 = vadd.f32 0.0, %v5277
    %v5279 = vpop.f32.mrb[0].mxu0
    %v5280 = vadd.f32 0.0, %v5279
    %5281 = vmatprep.mubr.f32.mxu0 0.0
    %5282 = vmatmul.mubr.f32.gmra.mrb[0].mxu0 %v4885
    %v5283 = vpop.f32.mrb[0].mxu0
    %v5284 = vadd.f32 0.0, %v5283
    %v5285 = vpop.f32.mrb[0].mxu0
    %v5286 = vadd.f32 0.0, %v5285
    %5287 = vmatprep.mubr.f32.mxu0 0.0
    %5288 = vmatmul.mubr.f32.gmra.mrb[0].mxu0 %v4886
    %v5289 = vpop.f32.mrb[0].mxu0
    %v5290 = vadd.f32 0.0, %v5289
    %v5291 = vpop.f32.mrb[0].mxu0
    %v5292 = vadd.f32 0.0, %v5291
    %5293 = vmatprep.mubr.f32.mxu0 0.0
    %5294 = vmatmul.mubr.f32.gmra.mrb[0].mxu0 %v4887
    %v5295 = vpop.f32.mrb[0].mxu0
    %v5296 = vadd.f32 0.0, %v5295
    %v5297 = vpop.f32.mrb[0].mxu0
    %v5298 = vadd.f32 0.0, %v5297
    %5299 = vmatprep.mubr.f32.mxu0 0.0
    %5300 = vmatmul.mubr.f32.gmra.mrb[0].mxu0 %v4888
    %v5301 = vpop.f32.mrb[0].mxu0
    %v5302 = vadd.f32 0.0, %v5301
    %v5303 = vpop.f32.mrb[0].mxu0
    %v5304 = vadd.f32 0.0, %v5303
    %5305 = vmatprep.mubr.f32.mxu0 0.0
    %5306 = vmatmul.mubr.f32.gmra.mrb[0].mxu0 %v4889
    %v5307 = vpop.f32.mrb[0].mxu0
    %v5308 = vadd.f32 0.0, %v5307
    %v5309 = vpop.f32.mrb[0].mxu0
    %v5310 = vadd.f32 0.0, %v5309
    %5311 = vmatprep.mubr.f32.mxu0 0.0
    %5312 = vmatmul.mubr.f32.gmra.mrb[0].mxu0 %v4890
    %v5313 = vpop.f32.mrb[0].mxu0
    %v5314 = vadd.f32 0.0, %v5313
    %v5315 = vpop.f32.mrb[0].mxu0
    %v5316 = vadd.f32 0.0, %v5315
    %5317 = vmatprep.mubr.f32.mxu0 0.0
    %5318 = vmatmul.mubr.f32.gmra.mrb[0].mxu0 %v4891
    %v5319 = vpop.f32.mrb[0].mxu0
    %v5320 = vadd.f32 0.0, %v5319
    %v5321 = vpop.f32.mrb[0].mxu0
    %v5322 = vadd.f32 0.0, %v5321
    %5323 = vmatprep.mubr.f32.mxu0 0.0
    %5324 = vmatmul.mubr.f32.gmra.mrb[0].mxu0 %v4892
    %v5325 = vpop.f32.mrb[0].mxu0
    %v5326 = vadd.f32 0.0, %v5325
    %v5327 = vpop.f32.mrb[0].mxu0
    %v5328 = vadd.f32 0.0, %v5327
    %5329 = vmatprep.mubr.f32.mxu0 0.0
    %5330 = vmatmul.mubr.f32.gmra.mrb[0].mxu0 %v4893
    %v5331 = vpop.f32.mrb[0].mxu0
    %v5332 = vadd.f32 0.0, %v5331
    %v5333 = vpop.f32.mrb[0].mxu0
    %v5334 = vadd.f32 0.0, %v5333
    %5335 = vdwg.mxu0
    %5336 = vmatprep.subr.mxu0 %v4899
    %5337 = vmatpush1.msra.mxu0 %v4898
    %5338 = vmatprep.subr.mxu0 %v4905
    %5339 = vmatpush1.msra.mxu0 %v4904
    %5340 = vmatprep.subr.mxu0 %v4911
    %5341 = vmatpush1.msra.mxu0 %v4910
    %5342 = vmatprep.subr.mxu0 %v4917
    %5343 = vmatpush1.msra.mxu0 %v4916
    %5344 = vmatprep.subr.mxu0 %v4923
    %5345 = vmatpush1.msra.mxu0 %v4922
    %5346 = vmatprep.subr.mxu0 %v4929
    %5347 = vmatpush1.msra.mxu0 %v4928
    %5348 = vmatprep.subr.mxu0 %v4935
    %5349 = vmatpush1.msra.mxu0 %v4934
    %5350 = vmatprep.subr.mxu0 %v4941
    %5351 = vmatpush1.msra.mxu0 %v4940
    %5352 = vmatprep.subr.mxu0 %v4947
    %5353 = vmatpush1.msra.mxu0 %v4946
    %5354 = vmatprep.subr.mxu0 %v4953
    %5355 = vmatpush1.msra.mxu0 %v4952
    %5356 = vmatprep.subr.mxu0 %v4959
    %5357 = vmatpush1.msra.mxu0 %v4958
    %5358 = vmatprep.subr.mxu0 %v4965
    %5359 = vmatpush1.msra.mxu0 %v4964
    %5360 = vmatprep.subr.mxu0 %v4971
    %5361 = vmatpush1.msra.mxu0 %v4970
    %5362 = vmatprep.subr.mxu0 %v4977
    %5363 = vmatpush1.msra.mxu0 %v4976
    %5364 = vmatprep.subr.mxu0 %v4983
    %5365 = vmatpush1.msra.mxu0 %v4982
    %5366 = vmatprep.subr.mxu0 %v4989
    %5367 = vmatpush1.msra.mxu0 %v4988
    %5368 = vmatprep.subr.mxu0 0.0
    %5369 = vmatpush1.msra.mxu0 0.0
    %5370 = vmatprep.subr.mxu0 0.0
    %5371 = vmatpush1.msra.mxu0 0.0
    %5372 = vmatprep.subr.mxu0 0.0
    %5373 = vmatpush1.msra.mxu0 0.0
    %5374 = vmatprep.subr.mxu0 0.0
    %5375 = vmatpush1.msra.mxu0 0.0
    %5376 = vmatprep.subr.mxu0 0.0
    %5377 = vmatpush1.msra.mxu0 0.0
    %5378 = vmatprep.subr.mxu0 0.0
    %5379 = vmatpush1.msra.mxu0 0.0
    %5380 = vmatprep.subr.mxu0 0.0
    %5381 = vmatpush1.msra.mxu0 0.0
    %5382 = vmatprep.subr.mxu0 0.0
    %5383 = vmatpush1.msra.mxu0 0.0
    %5384 = vmatprep.subr.mxu0 0.0
    %5385 = vmatpush1.msra.mxu0 0.0
    %5386 = vmatprep.subr.mxu0 0.0
    %5387 = vmatpush1.msra.mxu0 0.0
    %5388 = vmatprep.subr.mxu0 0.0
    %5389 = vmatpush1.msra.mxu0 0.0
    %5390 = vmatprep.subr.mxu0 0.0
    %5391 = vmatpush1.msra.mxu0 0.0
    %5392 = vmatprep.subr.mxu0 0.0
    %5393 = vmatpush1.msra.mxu0 0.0
    %5394 = vmatprep.subr.mxu0 0.0
    %5395 = vmatpush1.msra.mxu0 0.0
    %5396 = vmatprep.subr.mxu0 0.0
    %5397 = vmatpush1.msra.mxu0 0.0
    %5398 = vmatprep.subr.mxu0 0.0
    %5399 = vmatpush1.msra.mxu0 0.0
    %5400 = vmatprep.mubr.f32.mxu0 0.0
    %5401 = vmatmul.mubr.f32.gmra.mrb[0].mxu0 %v4876
    %v5402 = vpop.f32.mrb[0].mxu0
    %v5403 = vadd.f32 0.0, %v5402
    %v5404 = vpop.f32.mrb[0].mxu0
    %v5405 = vadd.f32 0.0, %v5404
    %5406 = vmatprep.mubr.f32.mxu0 0.0
    %5407 = vmatmul.mubr.f32.gmra.mrb[0].mxu0 %v4877
    %v5408 = vpop.f32.mrb[0].mxu0
    %v5409 = vadd.f32 0.0, %v5408
    %v5410 = vpop.f32.mrb[0].mxu0
    %v5411 = vadd.f32 0.0, %v5410
    %5412 = vmatprep.mubr.f32.mxu0 0.0
    %5413 = vmatmul.mubr.f32.gmra.mrb[0].mxu0 %v4878
    %v5414 = vpop.f32.mrb[0].mxu0
    %v5415 = vadd.f32 0.0, %v5414
    %v5416 = vpop.f32.mrb[0].mxu0
    %v5417 = vadd.f32 0.0, %v5416
    %5418 = vmatprep.mubr.f32.mxu0 0.0
    %5419 = vmatmul.mubr.f32.gmra.mrb[0].mxu0 %v4879
    %v5420 = vpop.f32.mrb[0].mxu0
    %v5421 = vadd.f32 0.0, %v5420
    %v5422 = vpop.f32.mrb[0].mxu0
    %v5423 = vadd.f32 0.0, %v5422
    %5424 = vmatprep.mubr.f32.mxu0 0.0
    %5425 = vmatmul.mubr.f32.gmra.mrb[0].mxu0 %v4880
    %v5426 = vpop.f32.mrb[0].mxu0
    %v5427 = vadd.f32 0.0, %v5426
    %v5428 = vpop.f32.mrb[0].mxu0
    %v5429 = vadd.f32 0.0, %v5428
    %5430 = vmatprep.mubr.f32.mxu0 0.0
    %5431 = vmatmul.mubr.f32.gmra.mrb[0].mxu0 %v4881
    %v5432 = vpop.f32.mrb[0].mxu0
    %v5433 = vadd.f32 0.0, %v5432
    %v5434 = vpop.f32.mrb[0].mxu0
    %v5435 = vadd.f32 0.0, %v5434
    %5436 = vmatprep.mubr.f32.mxu0 0.0
    %5437 = vmatmul.mubr.f32.gmra.mrb[0].mxu0 %v4882
    %v5438 = vpop.f32.mrb[0].mxu0
    %v5439 = vadd.f32 0.0, %v5438
    %v5440 = vpop.f32.mrb[0].mxu0
    %v5441 = vadd.f32 0.0, %v5440
    %5442 = vmatprep.mubr.f32.mxu0 0.0
    %5443 = vmatmul.mubr.f32.gmra.mrb[0].mxu0 %v4883
    %v5444 = vpop.f32.mrb[0].mxu0
    %v5445 = vadd.f32 0.0, %v5444
    %v5446 = vpop.f32.mrb[0].mxu0
    %v5447 = vadd.f32 0.0, %v5446
    %5448 = vmatprep.mubr.f32.mxu0 0.0
    %5449 = vmatmul.mubr.f32.gmra.mrb[0].mxu0 %v4884
    %v5450 = vpop.f32.mrb[0].mxu0
    %v5451 = vadd.f32 0.0, %v5450
    %v5452 = vpop.f32.mrb[0].mxu0
    %v5453 = vadd.f32 0.0, %v5452
    %5454 = vmatprep.mubr.f32.mxu0 0.0
    %5455 = vmatmul.mubr.f32.gmra.mrb[0].mxu0 %v4885
    %v5456 = vpop.f32.mrb[0].mxu0
    %v5457 = vadd.f32 0.0, %v5456
    %v5458 = vpop.f32.mrb[0].mxu0
    %v5459 = vadd.f32 0.0, %v5458
    %5460 = vmatprep.mubr.f32.mxu0 0.0
    %5461 = vmatmul.mubr.f32.gmra.mrb[0].mxu0 %v4886
    %v5462 = vpop.f32.mrb[0].mxu0
    %v5463 = vadd.f32 0.0, %v5462
    %v5464 = vpop.f32.mrb[0].mxu0
    %v5465 = vadd.f32 0.0, %v5464
    %5466 = vmatprep.mubr.f32.mxu0 0.0
    %5467 = vmatmul.mubr.f32.gmra.mrb[0].mxu0 %v4887
    %v5468 = vpop.f32.mrb[0].mxu0
    %v5469 = vadd.f32 0.0, %v5468
    %v5470 = vpop.f32.mrb[0].mxu0
    %v5471 = vadd.f32 0.0, %v5470
    %5472 = vmatprep.mubr.f32.mxu0 0.0
    %5473 = vmatmul.mubr.f32.gmra.mrb[0].mxu0 %v4888
    %v5474 = vpop.f32.mrb[0].mxu0
    %v5475 = vadd.f32 0.0, %v5474
    %v5476 = vpop.f32.mrb[0].mxu0
    %v5477 = vadd.f32 0.0, %v5476
    %5478 = vmatprep.mubr.f32.mxu0 0.0
    %5479 = vmatmul.mubr.f32.gmra.mrb[0].mxu0 %v4889
    %v5480 = vpop.f32.mrb[0].mxu0
    %v5481 = vadd.f32 0.0, %v5480
    %v5482 = vpop.f32.mrb[0].mxu0
    %v5483 = vadd.f32 0.0, %v5482
    %5484 = vmatprep.mubr.f32.mxu0 0.0
    %5485 = vmatmul.mubr.f32.gmra.mrb[0].mxu0 %v4890
    %v5486 = vpop.f32.mrb[0].mxu0
    %v5487 = vadd.f32 0.0, %v5486
    %v5488 = vpop.f32.mrb[0].mxu0
    %v5489 = vadd.f32 0.0, %v5488
    %5490 = vmatprep.mubr.f32.mxu0 0.0
    %5491 = vmatmul.mubr.f32.gmra.mrb[0].mxu0 %v4891
    %v5492 = vpop.f32.mrb[0].mxu0
    %v5493 = vadd.f32 0.0, %v5492
    %v5494 = vpop.f32.mrb[0].mxu0
    %v5495 = vadd.f32 0.0, %v5494
    %5496 = vmatprep.mubr.f32.mxu0 0.0
    %5497 = vmatmul.mubr.f32.gmra.mrb[0].mxu0 %v4892
    %v5498 = vpop.f32.mrb[0].mxu0
    %v5499 = vadd.f32 0.0, %v5498
    %v5500 = vpop.f32.mrb[0].mxu0
    %v5501 = vadd.f32 0.0, %v5500
    %5502 = vmatprep.mubr.f32.mxu0 0.0
    %5503 = vmatmul.mubr.f32.gmra.mrb[0].mxu0 %v4893
    %v5504 = vpop.f32.mrb[0].mxu0
    %v5505 = vadd.f32 0.0, %v5504
    %v5506 = vpop.f32.mrb[0].mxu0
    %v5507 = vadd.f32 0.0, %v5506
    %5508 = vdwg.mxu0
    %5509 = vrot.lane.b32.xlu0 %v5057, 17
    %v5510 = vpop.permute.xlu0 %5509
    %5511 = vrot.lane.b32.xlu0 %v5063, 17
    %v5512 = vpop.permute.xlu0 %5511
    %5513 = vrot.lane.b32.xlu0 %v5059, 17
    %v5514 = vpop.permute.xlu0 %5513
    %5515 = vrot.lane.b32.xlu0 %v5065, 17
    %v5516 = vpop.permute.xlu0 %5515
    %5517 = vrot.lane.b32.xlu0 %v5230, 17
    %v5518 = vpop.permute.xlu0 %5517
    %5519 = vrot.lane.b32.xlu0 %v5236, 17
    %v5520 = vpop.permute.xlu0 %5519
    %5521 = vrot.lane.b32.xlu0 %v5232, 17
    %v5522 = vpop.permute.xlu0 %5521
    %5523 = vrot.lane.b32.xlu0 %v5238, 17
    %v5524 = vpop.permute.xlu0 %5523
    %5525 = vrot.lane.b32.xlu0 %v5403, 17
    %v5526 = vpop.permute.xlu0 %5525
    %5527 = vrot.lane.b32.xlu0 %v5409, 17
    %v5528 = vpop.permute.xlu0 %5527
    %5529 = vrot.lane.b32.xlu0 %v5405, 17
    %v5530 = vpop.permute.xlu0 %5529
    %5531 = vrot.lane.b32.xlu0 %v5411, 17
    %v5532 = vpop.permute.xlu0 %5531
    %v5533 = vsel %vm829, %v5526, %v5530
    %v5534 = vsel %vm829, %v5528, %v5532
    %v5535 = vsel %vm829, %v5522, %v5526
    %v5536 = vsel %vm829, %v5524, %v5528
    %v5537 = vsel %vm829, %v5518, %v5522
    %v5538 = vsel %vm829, %v5520, %v5524
    %v5539 = vsel %vm829, %v5514, %v5518
    %v5540 = vsel %vm829, %v5516, %v5520
    %v5541 = vsel %vm829, %v5510, %v5514
    %v5542 = vsel %vm829, %v5512, %v5516
    %v5543 = vsel %vm829, %v5530, %v5510
    %v5544 = vsel %vm829, %v5532, %v5512
    %v5545 = vmul.f32 %v5543, %v846
    %v5546 = vmul.f32 %v5541, %v850
    %v5547 = vmul.f32 %v5539, %v854
    %v5548 = vmul.f32 %v5537, %v858
    %v5549 = vmul.f32 %v5535, %v862
    %v5550 = vmul.f32 %v5533, %v866
    %v5551 = vmul.f32 %v5544, %v846
    %v5552 = vmul.f32 %v5542, %v850
    %v5553 = vmul.f32 %v5540, %v854
    %v5554 = vmul.f32 %v5538, %v858
    %v5555 = vmul.f32 %v5536, %v862
    %v5556 = vmul.f32 %v5534, %v866
    %5557 = vrot.lane.b32.xlu0 %v5069, 16
    %v5558 = vpop.permute.xlu0 %5557
    %5559 = vrot.lane.b32.xlu0 %v5075, 16
    %v5560 = vpop.permute.xlu0 %5559
    %5561 = vrot.lane.b32.xlu0 %v5071, 16
    %v5562 = vpop.permute.xlu0 %5561
    %5563 = vrot.lane.b32.xlu0 %v5077, 16
    %v5564 = vpop.permute.xlu0 %5563
    %5565 = vrot.lane.b32.xlu0 %v5242, 16
    %v5566 = vpop.permute.xlu0 %5565
    %5567 = vrot.lane.b32.xlu0 %v5248, 16
    %v5568 = vpop.permute.xlu0 %5567
    %5569 = vrot.lane.b32.xlu0 %v5244, 16
    %v5570 = vpop.permute.xlu0 %5569
    %5571 = vrot.lane.b32.xlu0 %v5250, 16
    %v5572 = vpop.permute.xlu0 %5571
    %5573 = vrot.lane.b32.xlu0 %v5415, 16
    %v5574 = vpop.permute.xlu0 %5573
    %5575 = vrot.lane.b32.xlu0 %v5421, 16
    %v5576 = vpop.permute.xlu0 %5575
    %5577 = vrot.lane.b32.xlu0 %v5417, 16
    %v5578 = vpop.permute.xlu0 %5577
    %5579 = vrot.lane.b32.xlu0 %v5423, 16
    %v5580 = vpop.permute.xlu0 %5579
    %v5581 = vsel %vm909, %v5574, %v5578
    %v5582 = vsel %vm909, %v5576, %v5580
    %v5583 = vsel %vm909, %v5570, %v5574
    %v5584 = vsel %vm909, %v5572, %v5576
    %v5585 = vsel %vm909, %v5566, %v5570
    %v5586 = vsel %vm909, %v5568, %v5572
    %v5587 = vsel %vm909, %v5562, %v5566
    %v5588 = vsel %vm909, %v5564, %v5568
    %v5589 = vsel %vm909, %v5558, %v5562
    %v5590 = vsel %vm909, %v5560, %v5564
    %v5591 = vsel %vm909, %v5578, %v5558
    %v5592 = vsel %vm909, %v5580, %v5560
    %v5593 = vadd.f32 %v5545, %v5591
    %v5594 = vadd.f32 %v5546, %v5589
    %v5595 = vadd.f32 %v5547, %v5587
    %v5596 = vadd.f32 %v5548, %v5585
    %v5597 = vadd.f32 %v5549, %v5583
    %v5598 = vadd.f32 %v5550, %v5581
    %v5599 = vadd.f32 %v5551, %v5592
    %v5600 = vadd.f32 %v5552, %v5590
    %v5601 = vadd.f32 %v5553, %v5588
    %v5602 = vadd.f32 %v5554, %v5586
    %v5603 = vadd.f32 %v5555, %v5584
    %v5604 = vadd.f32 %v5556, %v5582
    %5605 = vrot.lane.b32.xlu0 %v5081, 15
    %v5606 = vpop.permute.xlu0 %5605
    %5607 = vrot.lane.b32.xlu0 %v5087, 15
    %v5608 = vpop.permute.xlu0 %5607
    %5609 = vrot.lane.b32.xlu0 %v5083, 15
    %v5610 = vpop.permute.xlu0 %5609
    %5611 = vrot.lane.b32.xlu0 %v5089, 15
    %v5612 = vpop.permute.xlu0 %5611
    %5613 = vrot.lane.b32.xlu0 %v5254, 15
    %v5614 = vpop.permute.xlu0 %5613
    %5615 = vrot.lane.b32.xlu0 %v5260, 15
    %v5616 = vpop.permute.xlu0 %5615
    %5617 = vrot.lane.b32.xlu0 %v5256, 15
    %v5618 = vpop.permute.xlu0 %5617
    %5619 = vrot.lane.b32.xlu0 %v5262, 15
    %v5620 = vpop.permute.xlu0 %5619
    %5621 = vrot.lane.b32.xlu0 %v5427, 15
    %v5622 = vpop.permute.xlu0 %5621
    %5623 = vrot.lane.b32.xlu0 %v5433, 15
    %v5624 = vpop.permute.xlu0 %5623
    %5625 = vrot.lane.b32.xlu0 %v5429, 15
    %v5626 = vpop.permute.xlu0 %5625
    %5627 = vrot.lane.b32.xlu0 %v5435, 15
    %v5628 = vpop.permute.xlu0 %5627
    %v5629 = vsel %vm958, %v5622, %v5626
    %v5630 = vsel %vm958, %v5624, %v5628
    %v5631 = vsel %vm958, %v5618, %v5622
    %v5632 = vsel %vm958, %v5620, %v5624
    %v5633 = vsel %vm958, %v5614, %v5618
    %v5634 = vsel %vm958, %v5616, %v5620
    %v5635 = vsel %vm958, %v5610, %v5614
    %v5636 = vsel %vm958, %v5612, %v5616
    %v5637 = vsel %vm958, %v5606, %v5610
    %v5638 = vsel %vm958, %v5608, %v5612
    %v5639 = vsel %vm958, %v5626, %v5606
    %v5640 = vsel %vm958, %v5628, %v5608
    %v5641 = vmul.f32 %v5639, %v975
    %v5642 = vmul.f32 %v5637, %v979
    %v5643 = vmul.f32 %v5635, %v983
    %v5644 = vmul.f32 %v5633, %v987
    %v5645 = vmul.f32 %v5631, %v991
    %v5646 = vmul.f32 %v5629, %v995
    %v5647 = vmul.f32 %v5640, %v975
    %v5648 = vmul.f32 %v5638, %v979
    %v5649 = vmul.f32 %v5636, %v983
    %v5650 = vmul.f32 %v5634, %v987
    %v5651 = vmul.f32 %v5632, %v991
    %v5652 = vmul.f32 %v5630, %v995
    %v5653 = vadd.f32 %v5593, %v5641
    %v5654 = vadd.f32 %v5594, %v5642
    %v5655 = vadd.f32 %v5595, %v5643
    %v5656 = vadd.f32 %v5596, %v5644
    %v5657 = vadd.f32 %v5597, %v5645
    %v5658 = vadd.f32 %v5598, %v5646
    %v5659 = vadd.f32 %v5599, %v5647
    %v5660 = vadd.f32 %v5600, %v5648
    %v5661 = vadd.f32 %v5601, %v5649
    %v5662 = vadd.f32 %v5602, %v5650
    %v5663 = vadd.f32 %v5603, %v5651
    %v5664 = vadd.f32 %v5604, %v5652
    %5665 = vrot.lane.b32.xlu0 %v5093, 1
    %v5666 = vpop.permute.xlu0 %5665
    %5667 = vrot.lane.b32.xlu0 %v5099, 1
    %v5668 = vpop.permute.xlu0 %5667
    %5669 = vrot.lane.b32.xlu0 %v5095, 1
    %v5670 = vpop.permute.xlu0 %5669
    %5671 = vrot.lane.b32.xlu0 %v5101, 1
    %v5672 = vpop.permute.xlu0 %5671
    %5673 = vrot.lane.b32.xlu0 %v5266, 1
    %v5674 = vpop.permute.xlu0 %5673
    %5675 = vrot.lane.b32.xlu0 %v5272, 1
    %v5676 = vpop.permute.xlu0 %5675
    %5677 = vrot.lane.b32.xlu0 %v5268, 1
    %v5678 = vpop.permute.xlu0 %5677
    %5679 = vrot.lane.b32.xlu0 %v5274, 1
    %v5680 = vpop.permute.xlu0 %5679
    %5681 = vrot.lane.b32.xlu0 %v5439, 1
    %v5682 = vpop.permute.xlu0 %5681
    %5683 = vrot.lane.b32.xlu0 %v5445, 1
    %v5684 = vpop.permute.xlu0 %5683
    %5685 = vrot.lane.b32.xlu0 %v5441, 1
    %v5686 = vpop.permute.xlu0 %5685
    %5687 = vrot.lane.b32.xlu0 %v5447, 1
    %v5688 = vpop.permute.xlu0 %5687
    %v5689 = vsel %vm1050, %v5682, %v5686
    %v5690 = vsel %vm1050, %v5684, %v5688
    %v5691 = vsel %vm1050, %v5678, %v5682
    %v5692 = vsel %vm1050, %v5680, %v5684
    %v5693 = vsel %vm1050, %v5674, %v5678
    %v5694 = vsel %vm1050, %v5676, %v5680
    %v5695 = vsel %vm1050, %v5670, %v5674
    %v5696 = vsel %vm1050, %v5672, %v5676
    %v5697 = vsel %vm1050, %v5666, %v5670
    %v5698 = vsel %vm1050, %v5668, %v5672
    %v5699 = vsel %vm1050, %v5686, %v5666
    %v5700 = vsel %vm1050, %v5688, %v5668
    %v5701 = vmul.f32 %v5699, %v846
    %v5702 = vmul.f32 %v5697, %v850
    %v5703 = vmul.f32 %v5695, %v854
    %v5704 = vmul.f32 %v5693, %v858
    %v5705 = vmul.f32 %v5691, %v862
    %v5706 = vmul.f32 %v5689, %v866
    %v5707 = vmul.f32 %v5700, %v846
    %v5708 = vmul.f32 %v5698, %v850
    %v5709 = vmul.f32 %v5696, %v854
    %v5710 = vmul.f32 %v5694, %v858
    %v5711 = vmul.f32 %v5692, %v862
    %v5712 = vmul.f32 %v5690, %v866
    %v5713 = vadd.f32 %v5653, %v5701
    %v5714 = vadd.f32 %v5654, %v5702
    %v5715 = vadd.f32 %v5655, %v5703
    %v5716 = vadd.f32 %v5656, %v5704
    %v5717 = vadd.f32 %v5657, %v5705
    %v5718 = vadd.f32 %v5658, %v5706
    %v5719 = vadd.f32 %v5659, %v5707
    %v5720 = vadd.f32 %v5660, %v5708
    %v5721 = vadd.f32 %v5661, %v5709
    %v5722 = vadd.f32 %v5662, %v5710
    %v5723 = vadd.f32 %v5663, %v5711
    %v5724 = vadd.f32 %v5664, %v5712
    %v5725 = vadd.f32 %v5713, %v5105
    %v5726 = vadd.f32 %v5714, %v5107
    %v5727 = vadd.f32 %v5715, %v5278
    %v5728 = vadd.f32 %v5716, %v5280
    %v5729 = vadd.f32 %v5717, %v5451
    %v5730 = vadd.f32 %v5718, %v5453
    %v5731 = vadd.f32 %v5719, %v5111
    %v5732 = vadd.f32 %v5720, %v5113
    %v5733 = vadd.f32 %v5721, %v5284
    %v5734 = vadd.f32 %v5722, %v5286
    %v5735 = vadd.f32 %v5723, %v5457
    %v5736 = vadd.f32 %v5724, %v5459
    %5737 = vrot.lane.b32.xlu0 %v5117, 127
    %v5738 = vpop.permute.xlu0 %5737
    %5739 = vrot.lane.b32.xlu0 %v5123, 127
    %v5740 = vpop.permute.xlu0 %5739
    %5741 = vrot.lane.b32.xlu0 %v5119, 127
    %v5742 = vpop.permute.xlu0 %5741
    %5743 = vrot.lane.b32.xlu0 %v5125, 127
    %v5744 = vpop.permute.xlu0 %5743
    %5745 = vrot.lane.b32.xlu0 %v5290, 127
    %v5746 = vpop.permute.xlu0 %5745
    %5747 = vrot.lane.b32.xlu0 %v5296, 127
    %v5748 = vpop.permute.xlu0 %5747
    %5749 = vrot.lane.b32.xlu0 %v5292, 127
    %v5750 = vpop.permute.xlu0 %5749
    %5751 = vrot.lane.b32.xlu0 %v5298, 127
    %v5752 = vpop.permute.xlu0 %5751
    %5753 = vrot.lane.b32.xlu0 %v5463, 127
    %v5754 = vpop.permute.xlu0 %5753
    %5755 = vrot.lane.b32.xlu0 %v5469, 127
    %v5756 = vpop.permute.xlu0 %5755
    %5757 = vrot.lane.b32.xlu0 %v5465, 127
    %v5758 = vpop.permute.xlu0 %5757
    %5759 = vrot.lane.b32.xlu0 %v5471, 127
    %v5760 = vpop.permute.xlu0 %5759
    %v5761 = vsel %vm1123, %v5754, %v5758
    %v5762 = vsel %vm1123, %v5756, %v5760
    %v5763 = vsel %vm1123, %v5750, %v5754
    %v5764 = vsel %vm1123, %v5752, %v5756
    %v5765 = vsel %vm1123, %v5746, %v5750
    %v5766 = vsel %vm1123, %v5748, %v5752
    %v5767 = vsel %vm1123, %v5742, %v5746
    %v5768 = vsel %vm1123, %v5744, %v5748
    %v5769 = vsel %vm1123, %v5738, %v5742
    %v5770 = vsel %vm1123, %v5740, %v5744
    %v5771 = vsel %vm1123, %v5758, %v5738
    %v5772 = vsel %vm1123, %v5760, %v5740
    %v5773 = vmul.f32 %v5769, %v975
    %v5774 = vmul.f32 %v5767, %v979
    %v5775 = vmul.f32 %v5765, %v983
    %v5776 = vmul.f32 %v5763, %v987
    %v5777 = vmul.f32 %v5761, %v991
    %v5778 = vmul.f32 %v5771, %v995
    %v5779 = vmul.f32 %v5770, %v975
    %v5780 = vmul.f32 %v5768, %v979
    %v5781 = vmul.f32 %v5766, %v983
    %v5782 = vmul.f32 %v5764, %v987
    %v5783 = vmul.f32 %v5762, %v991
    %v5784 = vmul.f32 %v5772, %v995
    %v5785 = vadd.f32 %v5725, %v5773
    %v5786 = vadd.f32 %v5726, %v5774
    %v5787 = vadd.f32 %v5727, %v5775
    %v5788 = vadd.f32 %v5728, %v5776
    %v5789 = vadd.f32 %v5729, %v5777
    %v5790 = vadd.f32 %v5730, %v5778
    %v5791 = vadd.f32 %v5731, %v5779
    %v5792 = vadd.f32 %v5732, %v5780
    %v5793 = vadd.f32 %v5733, %v5781
    %v5794 = vadd.f32 %v5734, %v5782
    %v5795 = vadd.f32 %v5735, %v5783
    %v5796 = vadd.f32 %v5736, %v5784
    %5797 = vrot.lane.b32.xlu0 %v5129, 113
    %v5798 = vpop.permute.xlu0 %5797
    %5799 = vrot.lane.b32.xlu0 %v5135, 113
    %v5800 = vpop.permute.xlu0 %5799
    %5801 = vrot.lane.b32.xlu0 %v5131, 113
    %v5802 = vpop.permute.xlu0 %5801
    %5803 = vrot.lane.b32.xlu0 %v5137, 113
    %v5804 = vpop.permute.xlu0 %5803
    %5805 = vrot.lane.b32.xlu0 %v5302, 113
    %v5806 = vpop.permute.xlu0 %5805
    %5807 = vrot.lane.b32.xlu0 %v5308, 113
    %v5808 = vpop.permute.xlu0 %5807
    %5809 = vrot.lane.b32.xlu0 %v5304, 113
    %v5810 = vpop.permute.xlu0 %5809
    %5811 = vrot.lane.b32.xlu0 %v5310, 113
    %v5812 = vpop.permute.xlu0 %5811
    %5813 = vrot.lane.b32.xlu0 %v5475, 113
    %v5814 = vpop.permute.xlu0 %5813
    %5815 = vrot.lane.b32.xlu0 %v5481, 113
    %v5816 = vpop.permute.xlu0 %5815
    %5817 = vrot.lane.b32.xlu0 %v5477, 113
    %v5818 = vpop.permute.xlu0 %5817
    %5819 = vrot.lane.b32.xlu0 %v5483, 113
    %v5820 = vpop.permute.xlu0 %5819
    %v5821 = vsel %vm1184, %v5814, %v5818
    %v5822 = vsel %vm1184, %v5816, %v5820
    %v5823 = vsel %vm1184, %v5810, %v5814
    %v5824 = vsel %vm1184, %v5812, %v5816
    %v5825 = vsel %vm1184, %v5806, %v5810
    %v5826 = vsel %vm1184, %v5808, %v5812
    %v5827 = vsel %vm1184, %v5802, %v5806
    %v5828 = vsel %vm1184, %v5804, %v5808
    %v5829 = vsel %vm1184, %v5798, %v5802
    %v5830 = vsel %vm1184, %v5800, %v5804
    %v5831 = vsel %vm1184, %v5818, %v5798
    %v5832 = vsel %vm1184, %v5820, %v5800
    %v5833 = vmul.f32 %v5829, %v846
    %v5834 = vmul.f32 %v5827, %v850
    %v5835 = vmul.f32 %v5825, %v854
    %v5836 = vmul.f32 %v5823, %v858
    %v5837 = vmul.f32 %v5821, %v862
    %v5838 = vmul.f32 %v5831, %v866
    %v5839 = vmul.f32 %v5830, %v846
    %v5840 = vmul.f32 %v5828, %v850
    %v5841 = vmul.f32 %v5826, %v854
    %v5842 = vmul.f32 %v5824, %v858
    %v5843 = vmul.f32 %v5822, %v862
    %v5844 = vmul.f32 %v5832, %v866
    %v5845 = vadd.f32 %v5785, %v5833
    %v5846 = vadd.f32 %v5786, %v5834
    %v5847 = vadd.f32 %v5787, %v5835
    %v5848 = vadd.f32 %v5788, %v5836
    %v5849 = vadd.f32 %v5789, %v5837
    %v5850 = vadd.f32 %v5790, %v5838
    %v5851 = vadd.f32 %v5791, %v5839
    %v5852 = vadd.f32 %v5792, %v5840
    %v5853 = vadd.f32 %v5793, %v5841
    %v5854 = vadd.f32 %v5794, %v5842
    %v5855 = vadd.f32 %v5795, %v5843
    %v5856 = vadd.f32 %v5796, %v5844
    %5857 = vrot.lane.b32.xlu0 %v5141, 112
    %v5858 = vpop.permute.xlu0 %5857
    %5859 = vrot.lane.b32.xlu0 %v5147, 112
    %v5860 = vpop.permute.xlu0 %5859
    %5861 = vrot.lane.b32.xlu0 %v5143, 112
    %v5862 = vpop.permute.xlu0 %5861
    %5863 = vrot.lane.b32.xlu0 %v5149, 112
    %v5864 = vpop.permute.xlu0 %5863
    %5865 = vrot.lane.b32.xlu0 %v5314, 112
    %v5866 = vpop.permute.xlu0 %5865
    %5867 = vrot.lane.b32.xlu0 %v5320, 112
    %v5868 = vpop.permute.xlu0 %5867
    %5869 = vrot.lane.b32.xlu0 %v5316, 112
    %v5870 = vpop.permute.xlu0 %5869
    %5871 = vrot.lane.b32.xlu0 %v5322, 112
    %v5872 = vpop.permute.xlu0 %5871
    %5873 = vrot.lane.b32.xlu0 %v5487, 112
    %v5874 = vpop.permute.xlu0 %5873
    %5875 = vrot.lane.b32.xlu0 %v5493, 112
    %v5876 = vpop.permute.xlu0 %5875
    %5877 = vrot.lane.b32.xlu0 %v5489, 112
    %v5878 = vpop.permute.xlu0 %5877
    %5879 = vrot.lane.b32.xlu0 %v5495, 112
    %v5880 = vpop.permute.xlu0 %5879
    %v5881 = vsel %vm1245, %v5874, %v5878
    %v5882 = vsel %vm1245, %v5876, %v5880
    %v5883 = vsel %vm1245, %v5870, %v5874
    %v5884 = vsel %vm1245, %v5872, %v5876
    %v5885 = vsel %vm1245, %v5866, %v5870
    %v5886 = vsel %vm1245, %v5868, %v5872
    %v5887 = vsel %vm1245, %v5862, %v5866
    %v5888 = vsel %vm1245, %v5864, %v5868
    %v5889 = vsel %vm1245, %v5858, %v5862
    %v5890 = vsel %vm1245, %v5860, %v5864
    %v5891 = vsel %vm1245, %v5878, %v5858
    %v5892 = vsel %vm1245, %v5880, %v5860
    %v5893 = vadd.f32 %v5845, %v5889
    %v5894 = vadd.f32 %v5846, %v5887
    %v5895 = vadd.f32 %v5847, %v5885
    %v5896 = vadd.f32 %v5848, %v5883
    %v5897 = vadd.f32 %v5849, %v5881
    %v5898 = vadd.f32 %v5850, %v5891
    %v5899 = vadd.f32 %v5851, %v5890
    %v5900 = vadd.f32 %v5852, %v5888
    %v5901 = vadd.f32 %v5853, %v5886
    %v5902 = vadd.f32 %v5854, %v5884
    %v5903 = vadd.f32 %v5855, %v5882
    %v5904 = vadd.f32 %v5856, %v5892
    %5905 = vrot.lane.b32.xlu0 %v5153, 111
    %v5906 = vpop.permute.xlu0 %5905
    %5907 = vrot.lane.b32.xlu0 %v5159, 111
    %v5908 = vpop.permute.xlu0 %5907
    %5909 = vrot.lane.b32.xlu0 %v5155, 111
    %v5910 = vpop.permute.xlu0 %5909
    %5911 = vrot.lane.b32.xlu0 %v5161, 111
    %v5912 = vpop.permute.xlu0 %5911
    %5913 = vrot.lane.b32.xlu0 %v5326, 111
    %v5914 = vpop.permute.xlu0 %5913
    %5915 = vrot.lane.b32.xlu0 %v5332, 111
    %v5916 = vpop.permute.xlu0 %5915
    %5917 = vrot.lane.b32.xlu0 %v5328, 111
    %v5918 = vpop.permute.xlu0 %5917
    %5919 = vrot.lane.b32.xlu0 %v5334, 111
    %v5920 = vpop.permute.xlu0 %5919
    %5921 = vrot.lane.b32.xlu0 %v5499, 111
    %v5922 = vpop.permute.xlu0 %5921
    %5923 = vrot.lane.b32.xlu0 %v5505, 111
    %v5924 = vpop.permute.xlu0 %5923
    %5925 = vrot.lane.b32.xlu0 %v5501, 111
    %v5926 = vpop.permute.xlu0 %5925
    %5927 = vrot.lane.b32.xlu0 %v5507, 111
    %v5928 = vpop.permute.xlu0 %5927
    %v5929 = vsel %vm1294, %v5922, %v5926
    %v5930 = vsel %vm1294, %v5924, %v5928
    %v5931 = vsel %vm1294, %v5918, %v5922
    %v5932 = vsel %vm1294, %v5920, %v5924
    %v5933 = vsel %vm1294, %v5914, %v5918
    %v5934 = vsel %vm1294, %v5916, %v5920
    %v5935 = vsel %vm1294, %v5910, %v5914
    %v5936 = vsel %vm1294, %v5912, %v5916
    %v5937 = vsel %vm1294, %v5906, %v5910
    %v5938 = vsel %vm1294, %v5908, %v5912
    %v5939 = vsel %vm1294, %v5926, %v5906
    %v5940 = vsel %vm1294, %v5928, %v5908
    %v5941 = vmul.f32 %v5937, %v975
    %v5942 = vmul.f32 %v5935, %v979
    %v5943 = vmul.f32 %v5933, %v983
    %v5944 = vmul.f32 %v5931, %v987
    %v5945 = vmul.f32 %v5929, %v991
    %v5946 = vmul.f32 %v5939, %v995
    %v5947 = vmul.f32 %v5938, %v975
    %v5948 = vmul.f32 %v5936, %v979
    %v5949 = vmul.f32 %v5934, %v983
    %v5950 = vmul.f32 %v5932, %v987
    %v5951 = vmul.f32 %v5930, %v991
    %v5952 = vmul.f32 %v5940, %v995
    %v5953 = vadd.f32 %v5893, %v5941
    %v5954 = vadd.f32 %v5894, %v5942
    %v5955 = vadd.f32 %v5895, %v5943
    %v5956 = vadd.f32 %v5896, %v5944
    %v5957 = vadd.f32 %v5897, %v5945
    %v5958 = vadd.f32 %v5898, %v5946
    %v5959 = vadd.f32 %v5899, %v5947
    %v5960 = vadd.f32 %v5900, %v5948
    %v5961 = vadd.f32 %v5901, %v5949
    %v5962 = vadd.f32 %v5902, %v5950
    %v5963 = vadd.f32 %v5903, %v5951
    %v5964 = vadd.f32 %v5904, %v5952
    %s5965 = scalar_lea.vmem %s2, 64
    %v5966 = vld [vmem:[%s5965] sm:$0xff]
    %v5967 = vld [vmem:[%s5965 + $0x8] sm:$0xff]
    %5969 = vset.pattern.permute.xlu0 0
    %5970 = vperm.xlu0 %5969, %v5966
    %v5971 = vpop.permute.xlu0 %5970
    %5974 = vset.pattern.permute.xlu0 0
    %5975 = vperm.xlu0 %5974, %v5967
    %v5976 = vpop.permute.xlu0 %5975
    %v5978 = vadd.f32 %v5953, %v5971
    %v5979 = vadd.f32 %v5954, %v5971
    %v5980 = vadd.f32 %v5955, %v5971
    %v5981 = vadd.f32 %v5956, %v5971
    %v5982 = vadd.f32 %v5957, %v5971
    %v5983 = vadd.f32 %v5958, %v5971
    %v5984 = vadd.f32 %v5959, %v5976
    %v5985 = vadd.f32 %v5960, %v5976
    %v5986 = vadd.f32 %v5961, %v5976
    %v5987 = vadd.f32 %v5962, %v5976
    %v5988 = vadd.f32 %v5963, %v5976
    %v5989 = vadd.f32 %v5964, %v5976
    %v5990 = vmax.f32 %v5978, 0.0
    %v5991 = vmax.f32 %v5979, 0.0
    %v5992 = vmax.f32 %v5980, 0.0
    %v5993 = vmax.f32 %v5981, 0.0
    %v5994 = vmax.f32 %v5982, 0.0
    %v5995 = vmax.f32 %v5983, 0.0
    %v5996 = vmax.f32 %v5984, 0.0
    %v5997 = vmax.f32 %v5985, 0.0
    %v5998 = vmax.f32 %v5986, 0.0
    %v5999 = vmax.f32 %v5987, 0.0
    %v6000 = vmax.f32 %v5988, 0.0
    %v6001 = vmax.f32 %v5989, 0.0
    %v6002 = vmul.f32 %v5990, %v1371
    %v6003 = vmul.f32 %v5991, %v1375
    %v6004 = vmul.f32 %v5992, %v1379
    %v6005 = vmul.f32 %v5993, %v1383
    %v6006 = vmul.f32 %v5994, %v1387
    %v6007 = vmul.f32 %v5995, %v1391
    %v6008 = vmul.f32 %v5996, %v1371
    %v6009 = vmul.f32 %v5997, %v1375
    %v6010 = vmul.f32 %v5998, %v1379
    %v6011 = vmul.f32 %v5999, %v1383
    %v6012 = vmul.f32 %v6000, %v1387
    %v6013 = vmul.f32 %v6001, %v1391
    %6014 = vst [vmem:[#allocation2 + $0x240] sm:$0xff] %v6002
    %6015 = vst [vmem:[#allocation2 + $0x248] sm:$0xff] %v6003
    %6016 = vst [vmem:[#allocation2 + $0x250] sm:$0xff] %v6004
    %6017 = vst [vmem:[#allocation2 + $0x258] sm:$0xff] %v6005
    %6018 = vst [vmem:[#allocation2 + $0x260] sm:$0xff] %v6006
    %6019 = vst [vmem:[#allocation2 + $0x268] sm:$0xff] %v6007
    %6020 = vst [vmem:[#allocation2 + $0x270] sm:$0xff] %v6008
    %6021 = vst [vmem:[#allocation2 + $0x278] sm:$0xff] %v6009
    %6022 = vst [vmem:[#allocation2 + $0x280] sm:$0xff] %v6010
    %6023 = vst [vmem:[#allocation2 + $0x288] sm:$0xff] %v6011
    %6024 = vst [vmem:[#allocation2 + $0x290] sm:$0xff] %v6012
    %6025 = vst [vmem:[#allocation2 + $0x298] sm:$0xff] %v6013
    %s6026 = scalar_lea.vmem [#allocation3], 720
    %v6027 = vld [vmem:[%s6026] sm:$0xff]
    %v6028 = vld [vmem:[%s6026 + $0x8] sm:$0xff]
    %v6029 = vld [vmem:[%s6026 + $0x10] sm:$0xff]
    %v6030 = vld [vmem:[%s6026 + $0x18] sm:$0xff]
    %v6031 = vld [vmem:[%s6026 + $0x20] sm:$0xff]
    %v6032 = vld [vmem:[%s6026 + $0x28] sm:$0xff]
    %v6033 = vld [vmem:[%s6026 + $0x30] sm:$0xff]
    %v6034 = vld [vmem:[%s6026 + $0x38] sm:$0xff]
    %v6035 = vld [vmem:[%s6026 + $0x40] sm:$0xff]
    %v6036 = vld [vmem:[%s6026 + $0x48] sm:$0xff]
    %v6037 = vld [vmem:[%s6026 + $0x50] sm:$0xff]
    %v6038 = vld [vmem:[%s6026 + $0x58] sm:$0xff]
    %v6039 = vld [vmem:[%s6026 + $0x60] sm:$0xff]
    %v6040 = vld [vmem:[%s6026 + $0x68] sm:$0xff]
    %v6041 = vld [vmem:[%s6026 + $0x70] sm:$0xff]
    %v6042 = vld [vmem:[%s6026 + $0x78] sm:$0xff]
    %v6043 = vld [vmem:[%s6026 + $0x80] sm:$0xff]
    %v6044 = vld [vmem:[%s6026 + $0x88] sm:$0xff]
    %v6045 = vld [vmem:[#allocation2] sm:$0xff]
    %v6046 = vld [vmem:[#allocation2 + $0x8] sm:$0xff]
    %v6047 = vld [vmem:[#allocation2 + $0x10] sm:$0xff]
    %v6048 = vld [vmem:[#allocation2 + $0x18] sm:$0xff]
    %v6049 = vld [vmem:[#allocation2 + $0x20] sm:$0xff]
    %v6050 = vld [vmem:[#allocation2 + $0x28] sm:$0xff]
    %v6051 = vld [vmem:[#allocation2 + $0x30] sm:$0xff]
    %v6052 = vld [vmem:[#allocation2 + $0x38] sm:$0xff]
    %v6053 = vld [vmem:[#allocation2 + $0x40] sm:$0xff]
    %v6054 = vld [vmem:[#allocation2 + $0x48] sm:$0xff]
    %v6055 = vld [vmem:[#allocation2 + $0x50] sm:$0xff]
    %v6056 = vld [vmem:[#allocation2 + $0x58] sm:$0xff]
    %v6057 = vld [vmem:[#allocation2 + $0x60] sm:$0xff]
    %v6058 = vld [vmem:[#allocation2 + $0x68] sm:$0xff]
    %v6059 = vld [vmem:[#allocation2 + $0x70] sm:$0xff]
    %v6060 = vld [vmem:[#allocation2 + $0x78] sm:$0xff]
    %v6061 = vld [vmem:[#allocation2 + $0x80] sm:$0xff]
    %v6062 = vld [vmem:[#allocation2 + $0x88] sm:$0xff]
    %v6063 = vld [vmem:[#allocation2 + $0x90] sm:$0xff]
    %v6064 = vld [vmem:[#allocation2 + $0x98] sm:$0xff]
    %v6065 = vld [vmem:[#allocation2 + $0xa0] sm:$0xff]
    %v6066 = vld [vmem:[#allocation2 + $0xa8] sm:$0xff]
    %v6067 = vld [vmem:[#allocation2 + $0xb0] sm:$0xff]
    %v6068 = vld [vmem:[#allocation2 + $0xb8] sm:$0xff]
    %v6069 = vld [vmem:[#allocation2 + $0xc0] sm:$0xff]
    %v6070 = vld [vmem:[#allocation2 + $0xc8] sm:$0xff]
    %v6071 = vld [vmem:[#allocation2 + $0xd0] sm:$0xff]
    %v6072 = vld [vmem:[#allocation2 + $0xd8] sm:$0xff]
    %v6073 = vld [vmem:[#allocation2 + $0xe0] sm:$0xff]
    %v6074 = vld [vmem:[#allocation2 + $0xe8] sm:$0xff]
    %v6075 = vld [vmem:[#allocation2 + $0xf0] sm:$0xff]
    %v6076 = vld [vmem:[#allocation2 + $0xf8] sm:$0xff]
    %v6077 = vld [vmem:[#allocation2 + $0x100] sm:$0xff]
    %v6078 = vld [vmem:[#allocation2 + $0x108] sm:$0xff]
    %v6079 = vld [vmem:[#allocation2 + $0x110] sm:$0xff]
    %v6080 = vld [vmem:[#allocation2 + $0x118] sm:$0xff]
    %v6081 = vld [vmem:[#allocation2 + $0x120] sm:$0xff]
    %v6082 = vld [vmem:[#allocation2 + $0x128] sm:$0xff]
    %v6083 = vld [vmem:[#allocation2 + $0x130] sm:$0xff]
    %v6084 = vld [vmem:[#allocation2 + $0x138] sm:$0xff]
    %v6085 = vld [vmem:[#allocation2 + $0x140] sm:$0xff]
    %v6086 = vld [vmem:[#allocation2 + $0x148] sm:$0xff]
    %v6087 = vld [vmem:[#allocation2 + $0x150] sm:$0xff]
    %v6088 = vld [vmem:[#allocation2 + $0x158] sm:$0xff]
    %v6089 = vld [vmem:[#allocation2 + $0x160] sm:$0xff]
    %v6090 = vld [vmem:[#allocation2 + $0x168] sm:$0xff]
    %v6091 = vld [vmem:[#allocation2 + $0x170] sm:$0xff]
    %v6092 = vld [vmem:[#allocation2 + $0x178] sm:$0xff]
    %v6093 = vld [vmem:[#allocation2 + $0x180] sm:$0xff]
    %v6094 = vld [vmem:[#allocation2 + $0x188] sm:$0xff]
    %v6095 = vld [vmem:[#allocation2 + $0x190] sm:$0xff]
    %v6096 = vld [vmem:[#allocation2 + $0x198] sm:$0xff]
    %v6097 = vld [vmem:[#allocation2 + $0x1a0] sm:$0xff]
    %v6098 = vld [vmem:[#allocation2 + $0x1a8] sm:$0xff]
    %v6099 = vld [vmem:[#allocation2 + $0x1b0] sm:$0xff]
    %v6100 = vld [vmem:[#allocation2 + $0x1b8] sm:$0xff]
    %v6101 = vld [vmem:[#allocation2 + $0x1c0] sm:$0xff]
    %v6102 = vld [vmem:[#allocation2 + $0x1c8] sm:$0xff]
    %v6103 = vld [vmem:[#allocation2 + $0x1d0] sm:$0xff]
    %v6104 = vld [vmem:[#allocation2 + $0x1d8] sm:$0xff]
    %v6105 = vld [vmem:[#allocation2 + $0x1e0] sm:$0xff]
    %v6106 = vld [vmem:[#allocation2 + $0x1e8] sm:$0xff]
    %v6107 = vld [vmem:[#allocation2 + $0x1f0] sm:$0xff]
    %v6108 = vld [vmem:[#allocation2 + $0x1f8] sm:$0xff]
    %v6109 = vld [vmem:[#allocation2 + $0x200] sm:$0xff]
    %v6110 = vld [vmem:[#allocation2 + $0x208] sm:$0xff]
    %v6111 = vld [vmem:[#allocation2 + $0x210] sm:$0xff]
    %v6112 = vld [vmem:[#allocation2 + $0x218] sm:$0xff]
    %v6113 = vld [vmem:[#allocation2 + $0x220] sm:$0xff]
    %v6114 = vld [vmem:[#allocation2 + $0x228] sm:$0xff]
    %v6115 = vld [vmem:[#allocation2 + $0x230] sm:$0xff]
    %v6116 = vld [vmem:[#allocation2 + $0x238] sm:$0xff]
    %v6117 = vld [vmem:[#allocation2 + $0x240] sm:$0xff]
    %v6118 = vld [vmem:[#allocation2 + $0x248] sm:$0xff]
    %v6119 = vld [vmem:[#allocation2 + $0x250] sm:$0xff]
    %v6120 = vld [vmem:[#allocation2 + $0x258] sm:$0xff]
    %v6121 = vld [vmem:[#allocation2 + $0x260] sm:$0xff]
    %v6122 = vld [vmem:[#allocation2 + $0x268] sm:$0xff]
    %v6123 = vld [vmem:[#allocation2 + $0x270] sm:$0xff]
    %v6124 = vld [vmem:[#allocation2 + $0x278] sm:$0xff]
    %v6125 = vld [vmem:[#allocation2 + $0x280] sm:$0xff]
    %v6126 = vld [vmem:[#allocation2 + $0x288] sm:$0xff]
    %v6127 = vld [vmem:[#allocation2 + $0x290] sm:$0xff]
    %v6128 = vld [vmem:[#allocation2 + $0x298] sm:$0xff]
    %v6129 = vld [vmem:[#allocation2 + $0x2a0] sm:$0xff]
    %v6130 = vld [vmem:[#allocation2 + $0x2a8] sm:$0xff]
    %v6131 = vld [vmem:[#allocation2 + $0x2b0] sm:$0xff]
    %v6132 = vld [vmem:[#allocation2 + $0x2b8] sm:$0xff]
    %v6133 = vld [vmem:[#allocation2 + $0x2c0] sm:$0xff]
    %v6134 = vld [vmem:[#allocation2 + $0x2c8] sm:$0xff]
    %v6135 = vld [vmem:[#allocation2 + $0x2d0] sm:$0xff]
    %v6136 = vld [vmem:[#allocation2 + $0x2d8] sm:$0xff]
    %v6137 = vld [vmem:[#allocation2 + $0x2e0] sm:$0xff]
    %v6138 = vld [vmem:[#allocation2 + $0x2e8] sm:$0xff]
    %v6139 = vld [vmem:[#allocation2 + $0x2f0] sm:$0xff]
    %v6140 = vld [vmem:[#allocation2 + $0x2f8] sm:$0xff]
    %6141 = vmatprep.subr.mxu0 %v6046
    %6142 = vmatpush1.msra.mxu0 %v6045
    %6143 = vmatprep.subr.mxu0 %v6052
    %6144 = vmatpush1.msra.mxu0 %v6051
    %6145 = vmatprep.subr.mxu0 %v6058
    %6146 = vmatpush1.msra.mxu0 %v6057
    %6147 = vmatprep.subr.mxu0 %v6064
    %6148 = vmatpush1.msra.mxu0 %v6063
    %6149 = vmatprep.subr.mxu0 %v6070
    %6150 = vmatpush1.msra.mxu0 %v6069
    %6151 = vmatprep.subr.mxu0 %v6076
    %6152 = vmatpush1.msra.mxu0 %v6075
    %6153 = vmatprep.subr.mxu0 %v6082
    %6154 = vmatpush1.msra.mxu0 %v6081
    %6155 = vmatprep.subr.mxu0 %v6088
    %6156 = vmatpush1.msra.mxu0 %v6087
    %6157 = vmatprep.subr.mxu0 %v6094
    %6158 = vmatpush1.msra.mxu0 %v6093
    %6159 = vmatprep.subr.mxu0 %v6100
    %6160 = vmatpush1.msra.mxu0 %v6099
    %6161 = vmatprep.subr.mxu0 %v6106
    %6162 = vmatpush1.msra.mxu0 %v6105
    %6163 = vmatprep.subr.mxu0 %v6112
    %6164 = vmatpush1.msra.mxu0 %v6111
    %6165 = vmatprep.subr.mxu0 %v6118
    %6166 = vmatpush1.msra.mxu0 %v6117
    %6167 = vmatprep.subr.mxu0 %v6124
    %6168 = vmatpush1.msra.mxu0 %v6123
    %6169 = vmatprep.subr.mxu0 %v6130
    %6170 = vmatpush1.msra.mxu0 %v6129
    %6171 = vmatprep.subr.mxu0 %v6136
    %6172 = vmatpush1.msra.mxu0 %v6135
    %6173 = vmatprep.subr.mxu0 0.0
    %6174 = vmatpush1.msra.mxu0 0.0
    %6175 = vmatprep.subr.mxu0 0.0
    %6176 = vmatpush1.msra.mxu0 0.0
    %6177 = vmatprep.subr.mxu0 0.0
    %6178 = vmatpush1.msra.mxu0 0.0
    %6179 = vmatprep.subr.mxu0 0.0
    %6180 = vmatpush1.msra.mxu0 0.0
    %6181 = vmatprep.subr.mxu0 0.0
    %6182 = vmatpush1.msra.mxu0 0.0
    %6183 = vmatprep.subr.mxu0 0.0
    %6184 = vmatpush1.msra.mxu0 0.0
    %6185 = vmatprep.subr.mxu0 0.0
    %6186 = vmatpush1.msra.mxu0 0.0
    %6187 = vmatprep.subr.mxu0 0.0
    %6188 = vmatpush1.msra.mxu0 0.0
    %6189 = vmatprep.subr.mxu0 0.0
    %6190 = vmatpush1.msra.mxu0 0.0
    %6191 = vmatprep.subr.mxu0 0.0
    %6192 = vmatpush1.msra.mxu0 0.0
    %6193 = vmatprep.subr.mxu0 0.0
    %6194 = vmatpush1.msra.mxu0 0.0
    %6195 = vmatprep.subr.mxu0 0.0
    %6196 = vmatpush1.msra.mxu0 0.0
    %6197 = vmatprep.subr.mxu0 0.0
    %6198 = vmatpush1.msra.mxu0 0.0
    %6199 = vmatprep.subr.mxu0 0.0
    %6200 = vmatpush1.msra.mxu0 0.0
    %6201 = vmatprep.subr.mxu0 0.0
    %6202 = vmatpush1.msra.mxu0 0.0
    %6203 = vmatprep.subr.mxu0 0.0
    %6204 = vmatpush1.msra.mxu0 0.0
    %6205 = vmatprep.mubr.f32.mxu0 0.0
    %6206 = vmatmul.mubr.f32.gmra.mrb[0].mxu0 %v6027
    %v6207 = vpop.f32.mrb[0].mxu0
    %v6208 = vadd.f32 0.0, %v6207
    %v6209 = vpop.f32.mrb[0].mxu0
    %v6210 = vadd.f32 0.0, %v6209
    %6211 = vmatprep.mubr.f32.mxu0 0.0
    %6212 = vmatmul.mubr.f32.gmra.mrb[0].mxu0 %v6028
    %v6213 = vpop.f32.mrb[0].mxu0
    %v6214 = vadd.f32 0.0, %v6213
    %v6215 = vpop.f32.mrb[0].mxu0
    %v6216 = vadd.f32 0.0, %v6215
    %6217 = vmatprep.mubr.f32.mxu0 0.0
    %6218 = vmatmul.mubr.f32.gmra.mrb[0].mxu0 %v6029
    %v6219 = vpop.f32.mrb[0].mxu0
    %v6220 = vadd.f32 0.0, %v6219
    %v6221 = vpop.f32.mrb[0].mxu0
    %v6222 = vadd.f32 0.0, %v6221
    %6223 = vmatprep.mubr.f32.mxu0 0.0
    %6224 = vmatmul.mubr.f32.gmra.mrb[0].mxu0 %v6030
    %v6225 = vpop.f32.mrb[0].mxu0
    %v6226 = vadd.f32 0.0, %v6225
    %v6227 = vpop.f32.mrb[0].mxu0
    %v6228 = vadd.f32 0.0, %v6227
    %6229 = vmatprep.mubr.f32.mxu0 0.0
    %6230 = vmatmul.mubr.f32.gmra.mrb[0].mxu0 %v6031
    %v6231 = vpop.f32.mrb[0].mxu0
    %v6232 = vadd.f32 0.0, %v6231
    %v6233 = vpop.f32.mrb[0].mxu0
    %v6234 = vadd.f32 0.0, %v6233
    %6235 = vmatprep.mubr.f32.mxu0 0.0
    %6236 = vmatmul.mubr.f32.gmra.mrb[0].mxu0 %v6032
    %v6237 = vpop.f32.mrb[0].mxu0
    %v6238 = vadd.f32 0.0, %v6237
    %v6239 = vpop.f32.mrb[0].mxu0
    %v6240 = vadd.f32 0.0, %v6239
    %6241 = vmatprep.mubr.f32.mxu0 0.0
    %6242 = vmatmul.mubr.f32.gmra.mrb[0].mxu0 %v6033
    %v6243 = vpop.f32.mrb[0].mxu0
    %v6244 = vadd.f32 0.0, %v6243
    %v6245 = vpop.f32.mrb[0].mxu0
    %v6246 = vadd.f32 0.0, %v6245
    %6247 = vmatprep.mubr.f32.mxu0 0.0
    %6248 = vmatmul.mubr.f32.gmra.mrb[0].mxu0 %v6034
    %v6249 = vpop.f32.mrb[0].mxu0
    %v6250 = vadd.f32 0.0, %v6249
    %v6251 = vpop.f32.mrb[0].mxu0
    %v6252 = vadd.f32 0.0, %v6251
    %6253 = vmatprep.mubr.f32.mxu0 0.0
    %6254 = vmatmul.mubr.f32.gmra.mrb[0].mxu0 %v6035
    %v6255 = vpop.f32.mrb[0].mxu0
    %v6256 = vadd.f32 0.0, %v6255
    %v6257 = vpop.f32.mrb[0].mxu0
    %v6258 = vadd.f32 0.0, %v6257
    %6259 = vmatprep.mubr.f32.mxu0 0.0
    %6260 = vmatmul.mubr.f32.gmra.mrb[0].mxu0 %v6036
    %v6261 = vpop.f32.mrb[0].mxu0
    %v6262 = vadd.f32 0.0, %v6261
    %v6263 = vpop.f32.mrb[0].mxu0
    %v6264 = vadd.f32 0.0, %v6263
    %6265 = vmatprep.mubr.f32.mxu0 0.0
    %6266 = vmatmul.mubr.f32.gmra.mrb[0].mxu0 %v6037
    %v6267 = vpop.f32.mrb[0].mxu0
    %v6268 = vadd.f32 0.0, %v6267
    %v6269 = vpop.f32.mrb[0].mxu0
    %v6270 = vadd.f32 0.0, %v6269
    %6271 = vmatprep.mubr.f32.mxu0 0.0
    %6272 = vmatmul.mubr.f32.gmra.mrb[0].mxu0 %v6038
    %v6273 = vpop.f32.mrb[0].mxu0
    %v6274 = vadd.f32 0.0, %v6273
    %v6275 = vpop.f32.mrb[0].mxu0
    %v6276 = vadd.f32 0.0, %v6275
    %6277 = vmatprep.mubr.f32.mxu0 0.0
    %6278 = vmatmul.mubr.f32.gmra.mrb[0].mxu0 %v6039
    %v6279 = vpop.f32.mrb[0].mxu0
    %v6280 = vadd.f32 0.0, %v6279
    %v6281 = vpop.f32.mrb[0].mxu0
    %v6282 = vadd.f32 0.0, %v6281
    %6283 = vmatprep.mubr.f32.mxu0 0.0
    %6284 = vmatmul.mubr.f32.gmra.mrb[0].mxu0 %v6040
    %v6285 = vpop.f32.mrb[0].mxu0
    %v6286 = vadd.f32 0.0, %v6285
    %v6287 = vpop.f32.mrb[0].mxu0
    %v6288 = vadd.f32 0.0, %v6287
    %6289 = vmatprep.mubr.f32.mxu0 0.0
    %6290 = vmatmul.mubr.f32.gmra.mrb[0].mxu0 %v6041
    %v6291 = vpop.f32.mrb[0].mxu0
    %v6292 = vadd.f32 0.0, %v6291
    %v6293 = vpop.f32.mrb[0].mxu0
    %v6294 = vadd.f32 0.0, %v6293
    %6295 = vmatprep.mubr.f32.mxu0 0.0
    %6296 = vmatmul.mubr.f32.gmra.mrb[0].mxu0 %v6042
    %v6297 = vpop.f32.mrb[0].mxu0
    %v6298 = vadd.f32 0.0, %v6297
    %v6299 = vpop.f32.mrb[0].mxu0
    %v6300 = vadd.f32 0.0, %v6299
    %6301 = vmatprep.mubr.f32.mxu0 0.0
    %6302 = vmatmul.mubr.f32.gmra.mrb[0].mxu0 %v6043
    %v6303 = vpop.f32.mrb[0].mxu0
    %v6304 = vadd.f32 0.0, %v6303
    %v6305 = vpop.f32.mrb[0].mxu0
    %v6306 = vadd.f32 0.0, %v6305
    %6307 = vmatprep.mubr.f32.mxu0 0.0
    %6308 = vmatmul.mubr.f32.gmra.mrb[0].mxu0 %v6044
    %v6309 = vpop.f32.mrb[0].mxu0
    %v6310 = vadd.f32 0.0, %v6309
    %v6311 = vpop.f32.mrb[0].mxu0
    %v6312 = vadd.f32 0.0, %v6311
    %6313 = vdwg.mxu0
    %6314 = vmatprep.subr.mxu0 %v6048
    %6315 = vmatpush1.msra.mxu0 %v6047
    %6316 = vmatprep.subr.mxu0 %v6054
    %6317 = vmatpush1.msra.mxu0 %v6053
    %6318 = vmatprep.subr.mxu0 %v6060
    %6319 = vmatpush1.msra.mxu0 %v6059
    %6320 = vmatprep.subr.mxu0 %v6066
    %6321 = vmatpush1.msra.mxu0 %v6065
    %6322 = vmatprep.subr.mxu0 %v6072
    %6323 = vmatpush1.msra.mxu0 %v6071
    %6324 = vmatprep.subr.mxu0 %v6078
    %6325 = vmatpush1.msra.mxu0 %v6077
    %6326 = vmatprep.subr.mxu0 %v6084
    %6327 = vmatpush1.msra.mxu0 %v6083
    %6328 = vmatprep.subr.mxu0 %v6090
    %6329 = vmatpush1.msra.mxu0 %v6089
    %6330 = vmatprep.subr.mxu0 %v6096
    %6331 = vmatpush1.msra.mxu0 %v6095
    %6332 = vmatprep.subr.mxu0 %v6102
    %6333 = vmatpush1.msra.mxu0 %v6101
    %6334 = vmatprep.subr.mxu0 %v6108
    %6335 = vmatpush1.msra.mxu0 %v6107
    %6336 = vmatprep.subr.mxu0 %v6114
    %6337 = vmatpush1.msra.mxu0 %v6113
    %6338 = vmatprep.subr.mxu0 %v6120
    %6339 = vmatpush1.msra.mxu0 %v6119
    %6340 = vmatprep.subr.mxu0 %v6126
    %6341 = vmatpush1.msra.mxu0 %v6125
    %6342 = vmatprep.subr.mxu0 %v6132
    %6343 = vmatpush1.msra.mxu0 %v6131
    %6344 = vmatprep.subr.mxu0 %v6138
    %6345 = vmatpush1.msra.mxu0 %v6137
    %6346 = vmatprep.subr.mxu0 0.0
    %6347 = vmatpush1.msra.mxu0 0.0
    %6348 = vmatprep.subr.mxu0 0.0
    %6349 = vmatpush1.msra.mxu0 0.0
    %6350 = vmatprep.subr.mxu0 0.0
    %6351 = vmatpush1.msra.mxu0 0.0
    %6352 = vmatprep.subr.mxu0 0.0
    %6353 = vmatpush1.msra.mxu0 0.0
    %6354 = vmatprep.subr.mxu0 0.0
    %6355 = vmatpush1.msra.mxu0 0.0
    %6356 = vmatprep.subr.mxu0 0.0
    %6357 = vmatpush1.msra.mxu0 0.0
    %6358 = vmatprep.subr.mxu0 0.0
    %6359 = vmatpush1.msra.mxu0 0.0
    %6360 = vmatprep.subr.mxu0 0.0
    %6361 = vmatpush1.msra.mxu0 0.0
    %6362 = vmatprep.subr.mxu0 0.0
    %6363 = vmatpush1.msra.mxu0 0.0
    %6364 = vmatprep.subr.mxu0 0.0
    %6365 = vmatpush1.msra.mxu0 0.0
    %6366 = vmatprep.subr.mxu0 0.0
    %6367 = vmatpush1.msra.mxu0 0.0
    %6368 = vmatprep.subr.mxu0 0.0
    %6369 = vmatpush1.msra.mxu0 0.0
    %6370 = vmatprep.subr.mxu0 0.0
    %6371 = vmatpush1.msra.mxu0 0.0
    %6372 = vmatprep.subr.mxu0 0.0
    %6373 = vmatpush1.msra.mxu0 0.0
    %6374 = vmatprep.subr.mxu0 0.0
    %6375 = vmatpush1.msra.mxu0 0.0
    %6376 = vmatprep.subr.mxu0 0.0
    %6377 = vmatpush1.msra.mxu0 0.0
    %6378 = vmatprep.mubr.f32.mxu0 0.0
    %6379 = vmatmul.mubr.f32.gmra.mrb[0].mxu0 %v6027
    %v6380 = vpop.f32.mrb[0].mxu0
    %v6381 = vadd.f32 0.0, %v6380
    %v6382 = vpop.f32.mrb[0].mxu0
    %v6383 = vadd.f32 0.0, %v6382
    %6384 = vmatprep.mubr.f32.mxu0 0.0
    %6385 = vmatmul.mubr.f32.gmra.mrb[0].mxu0 %v6028
    %v6386 = vpop.f32.mrb[0].mxu0
    %v6387 = vadd.f32 0.0, %v6386
    %v6388 = vpop.f32.mrb[0].mxu0
    %v6389 = vadd.f32 0.0, %v6388
    %6390 = vmatprep.mubr.f32.mxu0 0.0
    %6391 = vmatmul.mubr.f32.gmra.mrb[0].mxu0 %v6029
    %v6392 = vpop.f32.mrb[0].mxu0
    %v6393 = vadd.f32 0.0, %v6392
    %v6394 = vpop.f32.mrb[0].mxu0
    %v6395 = vadd.f32 0.0, %v6394
    %6396 = vmatprep.mubr.f32.mxu0 0.0
    %6397 = vmatmul.mubr.f32.gmra.mrb[0].mxu0 %v6030
    %v6398 = vpop.f32.mrb[0].mxu0
    %v6399 = vadd.f32 0.0, %v6398
    %v6400 = vpop.f32.mrb[0].mxu0
    %v6401 = vadd.f32 0.0, %v6400
    %6402 = vmatprep.mubr.f32.mxu0 0.0
    %6403 = vmatmul.mubr.f32.gmra.mrb[0].mxu0 %v6031
    %v6404 = vpop.f32.mrb[0].mxu0
    %v6405 = vadd.f32 0.0, %v6404
    %v6406 = vpop.f32.mrb[0].mxu0
    %v6407 = vadd.f32 0.0, %v6406
    %6408 = vmatprep.mubr.f32.mxu0 0.0
    %6409 = vmatmul.mubr.f32.gmra.mrb[0].mxu0 %v6032
    %v6410 = vpop.f32.mrb[0].mxu0
    %v6411 = vadd.f32 0.0, %v6410
    %v6412 = vpop.f32.mrb[0].mxu0
    %v6413 = vadd.f32 0.0, %v6412
    %6414 = vmatprep.mubr.f32.mxu0 0.0
    %6415 = vmatmul.mubr.f32.gmra.mrb[0].mxu0 %v6033
    %v6416 = vpop.f32.mrb[0].mxu0
    %v6417 = vadd.f32 0.0, %v6416
    %v6418 = vpop.f32.mrb[0].mxu0
    %v6419 = vadd.f32 0.0, %v6418
    %6420 = vmatprep.mubr.f32.mxu0 0.0
    %6421 = vmatmul.mubr.f32.gmra.mrb[0].mxu0 %v6034
    %v6422 = vpop.f32.mrb[0].mxu0
    %v6423 = vadd.f32 0.0, %v6422
    %v6424 = vpop.f32.mrb[0].mxu0
    %v6425 = vadd.f32 0.0, %v6424
    %6426 = vmatprep.mubr.f32.mxu0 0.0
    %6427 = vmatmul.mubr.f32.gmra.mrb[0].mxu0 %v6035
    %v6428 = vpop.f32.mrb[0].mxu0
    %v6429 = vadd.f32 0.0, %v6428
    %v6430 = vpop.f32.mrb[0].mxu0
    %v6431 = vadd.f32 0.0, %v6430
    %6432 = vmatprep.mubr.f32.mxu0 0.0
    %6433 = vmatmul.mubr.f32.gmra.mrb[0].mxu0 %v6036
    %v6434 = vpop.f32.mrb[0].mxu0
    %v6435 = vadd.f32 0.0, %v6434
    %v6436 = vpop.f32.mrb[0].mxu0
    %v6437 = vadd.f32 0.0, %v6436
    %6438 = vmatprep.mubr.f32.mxu0 0.0
    %6439 = vmatmul.mubr.f32.gmra.mrb[0].mxu0 %v6037
    %v6440 = vpop.f32.mrb[0].mxu0
    %v6441 = vadd.f32 0.0, %v6440
    %v6442 = vpop.f32.mrb[0].mxu0
    %v6443 = vadd.f32 0.0, %v6442
    %6444 = vmatprep.mubr.f32.mxu0 0.0
    %6445 = vmatmul.mubr.f32.gmra.mrb[0].mxu0 %v6038
    %v6446 = vpop.f32.mrb[0].mxu0
    %v6447 = vadd.f32 0.0, %v6446
    %v6448 = vpop.f32.mrb[0].mxu0
    %v6449 = vadd.f32 0.0, %v6448
    %6450 = vmatprep.mubr.f32.mxu0 0.0
    %6451 = vmatmul.mubr.f32.gmra.mrb[0].mxu0 %v6039
    %v6452 = vpop.f32.mrb[0].mxu0
    %v6453 = vadd.f32 0.0, %v6452
    %v6454 = vpop.f32.mrb[0].mxu0
    %v6455 = vadd.f32 0.0, %v6454
    %6456 = vmatprep.mubr.f32.mxu0 0.0
    %6457 = vmatmul.mubr.f32.gmra.mrb[0].mxu0 %v6040
    %v6458 = vpop.f32.mrb[0].mxu0
    %v6459 = vadd.f32 0.0, %v6458
    %v6460 = vpop.f32.mrb[0].mxu0
    %v6461 = vadd.f32 0.0, %v6460
    %6462 = vmatprep.mubr.f32.mxu0 0.0
    %6463 = vmatmul.mubr.f32.gmra.mrb[0].mxu0 %v6041
    %v6464 = vpop.f32.mrb[0].mxu0
    %v6465 = vadd.f32 0.0, %v6464
    %v6466 = vpop.f32.mrb[0].mxu0
    %v6467 = vadd.f32 0.0, %v6466
    %6468 = vmatprep.mubr.f32.mxu0 0.0
    %6469 = vmatmul.mubr.f32.gmra.mrb[0].mxu0 %v6042
    %v6470 = vpop.f32.mrb[0].mxu0
    %v6471 = vadd.f32 0.0, %v6470
    %v6472 = vpop.f32.mrb[0].mxu0
    %v6473 = vadd.f32 0.0, %v6472
    %6474 = vmatprep.mubr.f32.mxu0 0.0
    %6475 = vmatmul.mubr.f32.gmra.mrb[0].mxu0 %v6043
    %v6476 = vpop.f32.mrb[0].mxu0
    %v6477 = vadd.f32 0.0, %v6476
    %v6478 = vpop.f32.mrb[0].mxu0
    %v6479 = vadd.f32 0.0, %v6478
    %6480 = vmatprep.mubr.f32.mxu0 0.0
    %6481 = vmatmul.mubr.f32.gmra.mrb[0].mxu0 %v6044
    %v6482 = vpop.f32.mrb[0].mxu0
    %v6483 = vadd.f32 0.0, %v6482
    %v6484 = vpop.f32.mrb[0].mxu0
    %v6485 = vadd.f32 0.0, %v6484
    %6486 = vdwg.mxu0
    %6487 = vmatprep.subr.mxu0 %v6050
    %6488 = vmatpush1.msra.mxu0 %v6049
    %6489 = vmatprep.subr.mxu0 %v6056
    %6490 = vmatpush1.msra.mxu0 %v6055
    %6491 = vmatprep.subr.mxu0 %v6062
    %6492 = vmatpush1.msra.mxu0 %v6061
    %6493 = vmatprep.subr.mxu0 %v6068
    %6494 = vmatpush1.msra.mxu0 %v6067
    %6495 = vmatprep.subr.mxu0 %v6074
    %6496 = vmatpush1.msra.mxu0 %v6073
    %6497 = vmatprep.subr.mxu0 %v6080
    %6498 = vmatpush1.msra.mxu0 %v6079
    %6499 = vmatprep.subr.mxu0 %v6086
    %6500 = vmatpush1.msra.mxu0 %v6085
    %6501 = vmatprep.subr.mxu0 %v6092
    %6502 = vmatpush1.msra.mxu0 %v6091
    %6503 = vmatprep.subr.mxu0 %v6098
    %6504 = vmatpush1.msra.mxu0 %v6097
    %6505 = vmatprep.subr.mxu0 %v6104
    %6506 = vmatpush1.msra.mxu0 %v6103
    %6507 = vmatprep.subr.mxu0 %v6110
    %6508 = vmatpush1.msra.mxu0 %v6109
    %6509 = vmatprep.subr.mxu0 %v6116
    %6510 = vmatpush1.msra.mxu0 %v6115
    %6511 = vmatprep.subr.mxu0 %v6122
    %6512 = vmatpush1.msra.mxu0 %v6121
    %6513 = vmatprep.subr.mxu0 %v6128
    %6514 = vmatpush1.msra.mxu0 %v6127
    %6515 = vmatprep.subr.mxu0 %v6134
    %6516 = vmatpush1.msra.mxu0 %v6133
    %6517 = vmatprep.subr.mxu0 %v6140
    %6518 = vmatpush1.msra.mxu0 %v6139
    %6519 = vmatprep.subr.mxu0 0.0
    %6520 = vmatpush1.msra.mxu0 0.0
    %6521 = vmatprep.subr.mxu0 0.0
    %6522 = vmatpush1.msra.mxu0 0.0
    %6523 = vmatprep.subr.mxu0 0.0
    %6524 = vmatpush1.msra.mxu0 0.0
    %6525 = vmatprep.subr.mxu0 0.0
    %6526 = vmatpush1.msra.mxu0 0.0
    %6527 = vmatprep.subr.mxu0 0.0
    %6528 = vmatpush1.msra.mxu0 0.0
    %6529 = vmatprep.subr.mxu0 0.0
    %6530 = vmatpush1.msra.mxu0 0.0
    %6531 = vmatprep.subr.mxu0 0.0
    %6532 = vmatpush1.msra.mxu0 0.0
    %6533 = vmatprep.subr.mxu0 0.0
    %6534 = vmatpush1.msra.mxu0 0.0
    %6535 = vmatprep.subr.mxu0 0.0
    %6536 = vmatpush1.msra.mxu0 0.0
    %6537 = vmatprep.subr.mxu0 0.0
    %6538 = vmatpush1.msra.mxu0 0.0
    %6539 = vmatprep.subr.mxu0 0.0
    %6540 = vmatpush1.msra.mxu0 0.0
    %6541 = vmatprep.subr.mxu0 0.0
    %6542 = vmatpush1.msra.mxu0 0.0
    %6543 = vmatprep.subr.mxu0 0.0
    %6544 = vmatpush1.msra.mxu0 0.0
    %6545 = vmatprep.subr.mxu0 0.0
    %6546 = vmatpush1.msra.mxu0 0.0
    %6547 = vmatprep.subr.mxu0 0.0
    %6548 = vmatpush1.msra.mxu0 0.0
    %6549 = vmatprep.subr.mxu0 0.0
    %6550 = vmatpush1.msra.mxu0 0.0
    %6551 = vmatprep.mubr.f32.mxu0 0.0
    %6552 = vmatmul.mubr.f32.gmra.mrb[0].mxu0 %v6027
    %v6553 = vpop.f32.mrb[0].mxu0
    %v6554 = vadd.f32 0.0, %v6553
    %v6555 = vpop.f32.mrb[0].mxu0
    %v6556 = vadd.f32 0.0, %v6555
    %6557 = vmatprep.mubr.f32.mxu0 0.0
    %6558 = vmatmul.mubr.f32.gmra.mrb[0].mxu0 %v6028
    %v6559 = vpop.f32.mrb[0].mxu0
    %v6560 = vadd.f32 0.0, %v6559
    %v6561 = vpop.f32.mrb[0].mxu0
    %v6562 = vadd.f32 0.0, %v6561
    %6563 = vmatprep.mubr.f32.mxu0 0.0
    %6564 = vmatmul.mubr.f32.gmra.mrb[0].mxu0 %v6029
    %v6565 = vpop.f32.mrb[0].mxu0
    %v6566 = vadd.f32 0.0, %v6565
    %v6567 = vpop.f32.mrb[0].mxu0
    %v6568 = vadd.f32 0.0, %v6567
    %6569 = vmatprep.mubr.f32.mxu0 0.0
    %6570 = vmatmul.mubr.f32.gmra.mrb[0].mxu0 %v6030
    %v6571 = vpop.f32.mrb[0].mxu0
    %v6572 = vadd.f32 0.0, %v6571
    %v6573 = vpop.f32.mrb[0].mxu0
    %v6574 = vadd.f32 0.0, %v6573
    %6575 = vmatprep.mubr.f32.mxu0 0.0
    %6576 = vmatmul.mubr.f32.gmra.mrb[0].mxu0 %v6031
    %v6577 = vpop.f32.mrb[0].mxu0
    %v6578 = vadd.f32 0.0, %v6577
    %v6579 = vpop.f32.mrb[0].mxu0
    %v6580 = vadd.f32 0.0, %v6579
    %6581 = vmatprep.mubr.f32.mxu0 0.0
    %6582 = vmatmul.mubr.f32.gmra.mrb[0].mxu0 %v6032
    %v6583 = vpop.f32.mrb[0].mxu0
    %v6584 = vadd.f32 0.0, %v6583
    %v6585 = vpop.f32.mrb[0].mxu0
    %v6586 = vadd.f32 0.0, %v6585
    %6587 = vmatprep.mubr.f32.mxu0 0.0
    %6588 = vmatmul.mubr.f32.gmra.mrb[0].mxu0 %v6033
    %v6589 = vpop.f32.mrb[0].mxu0
    %v6590 = vadd.f32 0.0, %v6589
    %v6591 = vpop.f32.mrb[0].mxu0
    %v6592 = vadd.f32 0.0, %v6591
    %6593 = vmatprep.mubr.f32.mxu0 0.0
    %6594 = vmatmul.mubr.f32.gmra.mrb[0].mxu0 %v6034
    %v6595 = vpop.f32.mrb[0].mxu0
    %v6596 = vadd.f32 0.0, %v6595
    %v6597 = vpop.f32.mrb[0].mxu0
    %v6598 = vadd.f32 0.0, %v6597
    %6599 = vmatprep.mubr.f32.mxu0 0.0
    %6600 = vmatmul.mubr.f32.gmra.mrb[0].mxu0 %v6035
    %v6601 = vpop.f32.mrb[0].mxu0
    %v6602 = vadd.f32 0.0, %v6601
    %v6603 = vpop.f32.mrb[0].mxu0
    %v6604 = vadd.f32 0.0, %v6603
    %6605 = vmatprep.mubr.f32.mxu0 0.0
    %6606 = vmatmul.mubr.f32.gmra.mrb[0].mxu0 %v6036
    %v6607 = vpop.f32.mrb[0].mxu0
    %v6608 = vadd.f32 0.0, %v6607
    %v6609 = vpop.f32.mrb[0].mxu0
    %v6610 = vadd.f32 0.0, %v6609
    %6611 = vmatprep.mubr.f32.mxu0 0.0
    %6612 = vmatmul.mubr.f32.gmra.mrb[0].mxu0 %v6037
    %v6613 = vpop.f32.mrb[0].mxu0
    %v6614 = vadd.f32 0.0, %v6613
    %v6615 = vpop.f32.mrb[0].mxu0
    %v6616 = vadd.f32 0.0, %v6615
    %6617 = vmatprep.mubr.f32.mxu0 0.0
    %6618 = vmatmul.mubr.f32.gmra.mrb[0].mxu0 %v6038
    %v6619 = vpop.f32.mrb[0].mxu0
    %v6620 = vadd.f32 0.0, %v6619
    %v6621 = vpop.f32.mrb[0].mxu0
    %v6622 = vadd.f32 0.0, %v6621
    %6623 = vmatprep.mubr.f32.mxu0 0.0
    %6624 = vmatmul.mubr.f32.gmra.mrb[0].mxu0 %v6039
    %v6625 = vpop.f32.mrb[0].mxu0
    %v6626 = vadd.f32 0.0, %v6625
    %v6627 = vpop.f32.mrb[0].mxu0
    %v6628 = vadd.f32 0.0, %v6627
    %6629 = vmatprep.mubr.f32.mxu0 0.0
    %6630 = vmatmul.mubr.f32.gmra.mrb[0].mxu0 %v6040
    %v6631 = vpop.f32.mrb[0].mxu0
    %v6632 = vadd.f32 0.0, %v6631
    %v6633 = vpop.f32.mrb[0].mxu0
    %v6634 = vadd.f32 0.0, %v6633
    %6635 = vmatprep.mubr.f32.mxu0 0.0
    %6636 = vmatmul.mubr.f32.gmra.mrb[0].mxu0 %v6041
    %v6637 = vpop.f32.mrb[0].mxu0
    %v6638 = vadd.f32 0.0, %v6637
    %v6639 = vpop.f32.mrb[0].mxu0
    %v6640 = vadd.f32 0.0, %v6639
    %6641 = vmatprep.mubr.f32.mxu0 0.0
    %6642 = vmatmul.mubr.f32.gmra.mrb[0].mxu0 %v6042
    %v6643 = vpop.f32.mrb[0].mxu0
    %v6644 = vadd.f32 0.0, %v6643
    %v6645 = vpop.f32.mrb[0].mxu0
    %v6646 = vadd.f32 0.0, %v6645
    %6647 = vmatprep.mubr.f32.mxu0 0.0
    %6648 = vmatmul.mubr.f32.gmra.mrb[0].mxu0 %v6043
    %v6649 = vpop.f32.mrb[0].mxu0
    %v6650 = vadd.f32 0.0, %v6649
    %v6651 = vpop.f32.mrb[0].mxu0
    %v6652 = vadd.f32 0.0, %v6651
    %6653 = vmatprep.mubr.f32.mxu0 0.0
    %6654 = vmatmul.mubr.f32.gmra.mrb[0].mxu0 %v6044
    %v6655 = vpop.f32.mrb[0].mxu0
    %v6656 = vadd.f32 0.0, %v6655
    %v6657 = vpop.f32.mrb[0].mxu0
    %v6658 = vadd.f32 0.0, %v6657
    %6659 = vdwg.mxu0
    %6660 = vrot.lane.b32.xlu0 %v6208, 17
    %v6661 = vpop.permute.xlu0 %6660
    %6662 = vrot.lane.b32.xlu0 %v6214, 17
    %v6663 = vpop.permute.xlu0 %6662
    %6664 = vrot.lane.b32.xlu0 %v6210, 17
    %v6665 = vpop.permute.xlu0 %6664
    %6666 = vrot.lane.b32.xlu0 %v6216, 17
    %v6667 = vpop.permute.xlu0 %6666
    %6668 = vrot.lane.b32.xlu0 %v6381, 17
    %v6669 = vpop.permute.xlu0 %6668
    %6670 = vrot.lane.b32.xlu0 %v6387, 17
    %v6671 = vpop.permute.xlu0 %6670
    %6672 = vrot.lane.b32.xlu0 %v6383, 17
    %v6673 = vpop.permute.xlu0 %6672
    %6674 = vrot.lane.b32.xlu0 %v6389, 17
    %v6675 = vpop.permute.xlu0 %6674
    %6676 = vrot.lane.b32.xlu0 %v6554, 17
    %v6677 = vpop.permute.xlu0 %6676
    %6678 = vrot.lane.b32.xlu0 %v6560, 17
    %v6679 = vpop.permute.xlu0 %6678
    %6680 = vrot.lane.b32.xlu0 %v6556, 17
    %v6681 = vpop.permute.xlu0 %6680
    %6682 = vrot.lane.b32.xlu0 %v6562, 17
    %v6683 = vpop.permute.xlu0 %6682
    %v6684 = vsel %vm829, %v6677, %v6681
    %v6685 = vsel %vm829, %v6679, %v6683
    %v6686 = vsel %vm829, %v6673, %v6677
    %v6687 = vsel %vm829, %v6675, %v6679
    %v6688 = vsel %vm829, %v6669, %v6673
    %v6689 = vsel %vm829, %v6671, %v6675
    %v6690 = vsel %vm829, %v6665, %v6669
    %v6691 = vsel %vm829, %v6667, %v6671
    %v6692 = vsel %vm829, %v6661, %v6665
    %v6693 = vsel %vm829, %v6663, %v6667
    %v6694 = vsel %vm829, %v6681, %v6661
    %v6695 = vsel %vm829, %v6683, %v6663
    %v6696 = vmul.f32 %v6694, %v846
    %v6697 = vmul.f32 %v6692, %v850
    %v6698 = vmul.f32 %v6690, %v854
    %v6699 = vmul.f32 %v6688, %v858
    %v6700 = vmul.f32 %v6686, %v862
    %v6701 = vmul.f32 %v6684, %v866
    %v6702 = vmul.f32 %v6695, %v846
    %v6703 = vmul.f32 %v6693, %v850
    %v6704 = vmul.f32 %v6691, %v854
    %v6705 = vmul.f32 %v6689, %v858
    %v6706 = vmul.f32 %v6687, %v862
    %v6707 = vmul.f32 %v6685, %v866
    %6708 = vrot.lane.b32.xlu0 %v6220, 16
    %v6709 = vpop.permute.xlu0 %6708
    %6710 = vrot.lane.b32.xlu0 %v6226, 16
    %v6711 = vpop.permute.xlu0 %6710
    %6712 = vrot.lane.b32.xlu0 %v6222, 16
    %v6713 = vpop.permute.xlu0 %6712
    %6714 = vrot.lane.b32.xlu0 %v6228, 16
    %v6715 = vpop.permute.xlu0 %6714
    %6716 = vrot.lane.b32.xlu0 %v6393, 16
    %v6717 = vpop.permute.xlu0 %6716
    %6718 = vrot.lane.b32.xlu0 %v6399, 16
    %v6719 = vpop.permute.xlu0 %6718
    %6720 = vrot.lane.b32.xlu0 %v6395, 16
    %v6721 = vpop.permute.xlu0 %6720
    %6722 = vrot.lane.b32.xlu0 %v6401, 16
    %v6723 = vpop.permute.xlu0 %6722
    %6724 = vrot.lane.b32.xlu0 %v6566, 16
    %v6725 = vpop.permute.xlu0 %6724
    %6726 = vrot.lane.b32.xlu0 %v6572, 16
    %v6727 = vpop.permute.xlu0 %6726
    %6728 = vrot.lane.b32.xlu0 %v6568, 16
    %v6729 = vpop.permute.xlu0 %6728
    %6730 = vrot.lane.b32.xlu0 %v6574, 16
    %v6731 = vpop.permute.xlu0 %6730
    %v6732 = vsel %vm909, %v6725, %v6729
    %v6733 = vsel %vm909, %v6727, %v6731
    %v6734 = vsel %vm909, %v6721, %v6725
    %v6735 = vsel %vm909, %v6723, %v6727
    %v6736 = vsel %vm909, %v6717, %v6721
    %v6737 = vsel %vm909, %v6719, %v6723
    %v6738 = vsel %vm909, %v6713, %v6717
    %v6739 = vsel %vm909, %v6715, %v6719
    %v6740 = vsel %vm909, %v6709, %v6713
    %v6741 = vsel %vm909, %v6711, %v6715
    %v6742 = vsel %vm909, %v6729, %v6709
    %v6743 = vsel %vm909, %v6731, %v6711
    %v6744 = vadd.f32 %v6696, %v6742
    %v6745 = vadd.f32 %v6697, %v6740
    %v6746 = vadd.f32 %v6698, %v6738
    %v6747 = vadd.f32 %v6699, %v6736
    %v6748 = vadd.f32 %v6700, %v6734
    %v6749 = vadd.f32 %v6701, %v6732
    %v6750 = vadd.f32 %v6702, %v6743
    %v6751 = vadd.f32 %v6703, %v6741
    %v6752 = vadd.f32 %v6704, %v6739
    %v6753 = vadd.f32 %v6705, %v6737
    %v6754 = vadd.f32 %v6706, %v6735
    %v6755 = vadd.f32 %v6707, %v6733
    %6756 = vrot.lane.b32.xlu0 %v6232, 15
    %v6757 = vpop.permute.xlu0 %6756
    %6758 = vrot.lane.b32.xlu0 %v6238, 15
    %v6759 = vpop.permute.xlu0 %6758
    %6760 = vrot.lane.b32.xlu0 %v6234, 15
    %v6761 = vpop.permute.xlu0 %6760
    %6762 = vrot.lane.b32.xlu0 %v6240, 15
    %v6763 = vpop.permute.xlu0 %6762
    %6764 = vrot.lane.b32.xlu0 %v6405, 15
    %v6765 = vpop.permute.xlu0 %6764
    %6766 = vrot.lane.b32.xlu0 %v6411, 15
    %v6767 = vpop.permute.xlu0 %6766
    %6768 = vrot.lane.b32.xlu0 %v6407, 15
    %v6769 = vpop.permute.xlu0 %6768
    %6770 = vrot.lane.b32.xlu0 %v6413, 15
    %v6771 = vpop.permute.xlu0 %6770
    %6772 = vrot.lane.b32.xlu0 %v6578, 15
    %v6773 = vpop.permute.xlu0 %6772
    %6774 = vrot.lane.b32.xlu0 %v6584, 15
    %v6775 = vpop.permute.xlu0 %6774
    %6776 = vrot.lane.b32.xlu0 %v6580, 15
    %v6777 = vpop.permute.xlu0 %6776
    %6778 = vrot.lane.b32.xlu0 %v6586, 15
    %v6779 = vpop.permute.xlu0 %6778
    %v6780 = vsel %vm958, %v6773, %v6777
    %v6781 = vsel %vm958, %v6775, %v6779
    %v6782 = vsel %vm958, %v6769, %v6773
    %v6783 = vsel %vm958, %v6771, %v6775
    %v6784 = vsel %vm958, %v6765, %v6769
    %v6785 = vsel %vm958, %v6767, %v6771
    %v6786 = vsel %vm958, %v6761, %v6765
    %v6787 = vsel %vm958, %v6763, %v6767
    %v6788 = vsel %vm958, %v6757, %v6761
    %v6789 = vsel %vm958, %v6759, %v6763
    %v6790 = vsel %vm958, %v6777, %v6757
    %v6791 = vsel %vm958, %v6779, %v6759
    %v6792 = vmul.f32 %v6790, %v975
    %v6793 = vmul.f32 %v6788, %v979
    %v6794 = vmul.f32 %v6786, %v983
    %v6795 = vmul.f32 %v6784, %v987
    %v6796 = vmul.f32 %v6782, %v991
    %v6797 = vmul.f32 %v6780, %v995
    %v6798 = vmul.f32 %v6791, %v975
    %v6799 = vmul.f32 %v6789, %v979
    %v6800 = vmul.f32 %v6787, %v983
    %v6801 = vmul.f32 %v6785, %v987
    %v6802 = vmul.f32 %v6783, %v991
    %v6803 = vmul.f32 %v6781, %v995
    %v6804 = vadd.f32 %v6744, %v6792
    %v6805 = vadd.f32 %v6745, %v6793
    %v6806 = vadd.f32 %v6746, %v6794
    %v6807 = vadd.f32 %v6747, %v6795
    %v6808 = vadd.f32 %v6748, %v6796
    %v6809 = vadd.f32 %v6749, %v6797
    %v6810 = vadd.f32 %v6750, %v6798
    %v6811 = vadd.f32 %v6751, %v6799
    %v6812 = vadd.f32 %v6752, %v6800
    %v6813 = vadd.f32 %v6753, %v6801
    %v6814 = vadd.f32 %v6754, %v6802
    %v6815 = vadd.f32 %v6755, %v6803
    %6816 = vrot.lane.b32.xlu0 %v6244, 1
    %v6817 = vpop.permute.xlu0 %6816
    %6818 = vrot.lane.b32.xlu0 %v6250, 1
    %v6819 = vpop.permute.xlu0 %6818
    %6820 = vrot.lane.b32.xlu0 %v6246, 1
    %v6821 = vpop.permute.xlu0 %6820
    %6822 = vrot.lane.b32.xlu0 %v6252, 1
    %v6823 = vpop.permute.xlu0 %6822
    %6824 = vrot.lane.b32.xlu0 %v6417, 1
    %v6825 = vpop.permute.xlu0 %6824
    %6826 = vrot.lane.b32.xlu0 %v6423, 1
    %v6827 = vpop.permute.xlu0 %6826
    %6828 = vrot.lane.b32.xlu0 %v6419, 1
    %v6829 = vpop.permute.xlu0 %6828
    %6830 = vrot.lane.b32.xlu0 %v6425, 1
    %v6831 = vpop.permute.xlu0 %6830
    %6832 = vrot.lane.b32.xlu0 %v6590, 1
    %v6833 = vpop.permute.xlu0 %6832
    %6834 = vrot.lane.b32.xlu0 %v6596, 1
    %v6835 = vpop.permute.xlu0 %6834
    %6836 = vrot.lane.b32.xlu0 %v6592, 1
    %v6837 = vpop.permute.xlu0 %6836
    %6838 = vrot.lane.b32.xlu0 %v6598, 1
    %v6839 = vpop.permute.xlu0 %6838
    %v6840 = vsel %vm1050, %v6833, %v6837
    %v6841 = vsel %vm1050, %v6835, %v6839
    %v6842 = vsel %vm1050, %v6829, %v6833
    %v6843 = vsel %vm1050, %v6831, %v6835
    %v6844 = vsel %vm1050, %v6825, %v6829
    %v6845 = vsel %vm1050, %v6827, %v6831
    %v6846 = vsel %vm1050, %v6821, %v6825
    %v6847 = vsel %vm1050, %v6823, %v6827
    %v6848 = vsel %vm1050, %v6817, %v6821
    %v6849 = vsel %vm1050, %v6819, %v6823
    %v6850 = vsel %vm1050, %v6837, %v6817
    %v6851 = vsel %vm1050, %v6839, %v6819
    %v6852 = vmul.f32 %v6850, %v846
    %v6853 = vmul.f32 %v6848, %v850
    %v6854 = vmul.f32 %v6846, %v854
    %v6855 = vmul.f32 %v6844, %v858
    %v6856 = vmul.f32 %v6842, %v862
    %v6857 = vmul.f32 %v6840, %v866
    %v6858 = vmul.f32 %v6851, %v846
    %v6859 = vmul.f32 %v6849, %v850
    %v6860 = vmul.f32 %v6847, %v854
    %v6861 = vmul.f32 %v6845, %v858
    %v6862 = vmul.f32 %v6843, %v862
    %v6863 = vmul.f32 %v6841, %v866
    %v6864 = vadd.f32 %v6804, %v6852
    %v6865 = vadd.f32 %v6805, %v6853
    %v6866 = vadd.f32 %v6806, %v6854
    %v6867 = vadd.f32 %v6807, %v6855
    %v6868 = vadd.f32 %v6808, %v6856
    %v6869 = vadd.f32 %v6809, %v6857
    %v6870 = vadd.f32 %v6810, %v6858
    %v6871 = vadd.f32 %v6811, %v6859
    %v6872 = vadd.f32 %v6812, %v6860
    %v6873 = vadd.f32 %v6813, %v6861
    %v6874 = vadd.f32 %v6814, %v6862
    %v6875 = vadd.f32 %v6815, %v6863
    %v6876 = vadd.f32 %v6864, %v6256
    %v6877 = vadd.f32 %v6865, %v6258
    %v6878 = vadd.f32 %v6866, %v6429
    %v6879 = vadd.f32 %v6867, %v6431
    %v6880 = vadd.f32 %v6868, %v6602
    %v6881 = vadd.f32 %v6869, %v6604
    %v6882 = vadd.f32 %v6870, %v6262
    %v6883 = vadd.f32 %v6871, %v6264
    %v6884 = vadd.f32 %v6872, %v6435
    %v6885 = vadd.f32 %v6873, %v6437
    %v6886 = vadd.f32 %v6874, %v6608
    %v6887 = vadd.f32 %v6875, %v6610
    %6888 = vrot.lane.b32.xlu0 %v6268, 127
    %v6889 = vpop.permute.xlu0 %6888
    %6890 = vrot.lane.b32.xlu0 %v6274, 127
    %v6891 = vpop.permute.xlu0 %6890
    %6892 = vrot.lane.b32.xlu0 %v6270, 127
    %v6893 = vpop.permute.xlu0 %6892
    %6894 = vrot.lane.b32.xlu0 %v6276, 127
    %v6895 = vpop.permute.xlu0 %6894
    %6896 = vrot.lane.b32.xlu0 %v6441, 127
    %v6897 = vpop.permute.xlu0 %6896
    %6898 = vrot.lane.b32.xlu0 %v6447, 127
    %v6899 = vpop.permute.xlu0 %6898
    %6900 = vrot.lane.b32.xlu0 %v6443, 127
    %v6901 = vpop.permute.xlu0 %6900
    %6902 = vrot.lane.b32.xlu0 %v6449, 127
    %v6903 = vpop.permute.xlu0 %6902
    %6904 = vrot.lane.b32.xlu0 %v6614, 127
    %v6905 = vpop.permute.xlu0 %6904
    %6906 = vrot.lane.b32.xlu0 %v6620, 127
    %v6907 = vpop.permute.xlu0 %6906
    %6908 = vrot.lane.b32.xlu0 %v6616, 127
    %v6909 = vpop.permute.xlu0 %6908
    %6910 = vrot.lane.b32.xlu0 %v6622, 127
    %v6911 = vpop.permute.xlu0 %6910
    %v6912 = vsel %vm1123, %v6905, %v6909
    %v6913 = vsel %vm1123, %v6907, %v6911
    %v6914 = vsel %vm1123, %v6901, %v6905
    %v6915 = vsel %vm1123, %v6903, %v6907
    %v6916 = vsel %vm1123, %v6897, %v6901
    %v6917 = vsel %vm1123, %v6899, %v6903
    %v6918 = vsel %vm1123, %v6893, %v6897
    %v6919 = vsel %vm1123, %v6895, %v6899
    %v6920 = vsel %vm1123, %v6889, %v6893
    %v6921 = vsel %vm1123, %v6891, %v6895
    %v6922 = vsel %vm1123, %v6909, %v6889
    %v6923 = vsel %vm1123, %v6911, %v6891
    %v6924 = vmul.f32 %v6920, %v975
    %v6925 = vmul.f32 %v6918, %v979
    %v6926 = vmul.f32 %v6916, %v983
    %v6927 = vmul.f32 %v6914, %v987
    %v6928 = vmul.f32 %v6912, %v991
    %v6929 = vmul.f32 %v6922, %v995
    %v6930 = vmul.f32 %v6921, %v975
    %v6931 = vmul.f32 %v6919, %v979
    %v6932 = vmul.f32 %v6917, %v983
    %v6933 = vmul.f32 %v6915, %v987
    %v6934 = vmul.f32 %v6913, %v991
    %v6935 = vmul.f32 %v6923, %v995
    %v6936 = vadd.f32 %v6876, %v6924
    %v6937 = vadd.f32 %v6877, %v6925
    %v6938 = vadd.f32 %v6878, %v6926
    %v6939 = vadd.f32 %v6879, %v6927
    %v6940 = vadd.f32 %v6880, %v6928
    %v6941 = vadd.f32 %v6881, %v6929
    %v6942 = vadd.f32 %v6882, %v6930
    %v6943 = vadd.f32 %v6883, %v6931
    %v6944 = vadd.f32 %v6884, %v6932
    %v6945 = vadd.f32 %v6885, %v6933
    %v6946 = vadd.f32 %v6886, %v6934
    %v6947 = vadd.f32 %v6887, %v6935
    %6948 = vrot.lane.b32.xlu0 %v6280, 113
    %v6949 = vpop.permute.xlu0 %6948
    %6950 = vrot.lane.b32.xlu0 %v6286, 113
    %v6951 = vpop.permute.xlu0 %6950
    %6952 = vrot.lane.b32.xlu0 %v6282, 113
    %v6953 = vpop.permute.xlu0 %6952
    %6954 = vrot.lane.b32.xlu0 %v6288, 113
    %v6955 = vpop.permute.xlu0 %6954
    %6956 = vrot.lane.b32.xlu0 %v6453, 113
    %v6957 = vpop.permute.xlu0 %6956
    %6958 = vrot.lane.b32.xlu0 %v6459, 113
    %v6959 = vpop.permute.xlu0 %6958
    %6960 = vrot.lane.b32.xlu0 %v6455, 113
    %v6961 = vpop.permute.xlu0 %6960
    %6962 = vrot.lane.b32.xlu0 %v6461, 113
    %v6963 = vpop.permute.xlu0 %6962
    %6964 = vrot.lane.b32.xlu0 %v6626, 113
    %v6965 = vpop.permute.xlu0 %6964
    %6966 = vrot.lane.b32.xlu0 %v6632, 113
    %v6967 = vpop.permute.xlu0 %6966
    %6968 = vrot.lane.b32.xlu0 %v6628, 113
    %v6969 = vpop.permute.xlu0 %6968
    %6970 = vrot.lane.b32.xlu0 %v6634, 113
    %v6971 = vpop.permute.xlu0 %6970
    %v6972 = vsel %vm1184, %v6965, %v6969
    %v6973 = vsel %vm1184, %v6967, %v6971
    %v6974 = vsel %vm1184, %v6961, %v6965
    %v6975 = vsel %vm1184, %v6963, %v6967
    %v6976 = vsel %vm1184, %v6957, %v6961
    %v6977 = vsel %vm1184, %v6959, %v6963
    %v6978 = vsel %vm1184, %v6953, %v6957
    %v6979 = vsel %vm1184, %v6955, %v6959
    %v6980 = vsel %vm1184, %v6949, %v6953
    %v6981 = vsel %vm1184, %v6951, %v6955
    %v6982 = vsel %vm1184, %v6969, %v6949
    %v6983 = vsel %vm1184, %v6971, %v6951
    %v6984 = vmul.f32 %v6980, %v846
    %v6985 = vmul.f32 %v6978, %v850
    %v6986 = vmul.f32 %v6976, %v854
    %v6987 = vmul.f32 %v6974, %v858
    %v6988 = vmul.f32 %v6972, %v862
    %v6989 = vmul.f32 %v6982, %v866
    %v6990 = vmul.f32 %v6981, %v846
    %v6991 = vmul.f32 %v6979, %v850
    %v6992 = vmul.f32 %v6977, %v854
    %v6993 = vmul.f32 %v6975, %v858
    %v6994 = vmul.f32 %v6973, %v862
    %v6995 = vmul.f32 %v6983, %v866
    %v6996 = vadd.f32 %v6936, %v6984
    %v6997 = vadd.f32 %v6937, %v6985
    %v6998 = vadd.f32 %v6938, %v6986
    %v6999 = vadd.f32 %v6939, %v6987
    %v7000 = vadd.f32 %v6940, %v6988
    %v7001 = vadd.f32 %v6941, %v6989
    %v7002 = vadd.f32 %v6942, %v6990
    %v7003 = vadd.f32 %v6943, %v6991
    %v7004 = vadd.f32 %v6944, %v6992
    %v7005 = vadd.f32 %v6945, %v6993
    %v7006 = vadd.f32 %v6946, %v6994
    %v7007 = vadd.f32 %v6947, %v6995
    %7008 = vrot.lane.b32.xlu0 %v6292, 112
    %v7009 = vpop.permute.xlu0 %7008
    %7010 = vrot.lane.b32.xlu0 %v6298, 112
    %v7011 = vpop.permute.xlu0 %7010
    %7012 = vrot.lane.b32.xlu0 %v6294, 112
    %v7013 = vpop.permute.xlu0 %7012
    %7014 = vrot.lane.b32.xlu0 %v6300, 112
    %v7015 = vpop.permute.xlu0 %7014
    %7016 = vrot.lane.b32.xlu0 %v6465, 112
    %v7017 = vpop.permute.xlu0 %7016
    %7018 = vrot.lane.b32.xlu0 %v6471, 112
    %v7019 = vpop.permute.xlu0 %7018
    %7020 = vrot.lane.b32.xlu0 %v6467, 112
    %v7021 = vpop.permute.xlu0 %7020
    %7022 = vrot.lane.b32.xlu0 %v6473, 112
    %v7023 = vpop.permute.xlu0 %7022
    %7024 = vrot.lane.b32.xlu0 %v6638, 112
    %v7025 = vpop.permute.xlu0 %7024
    %7026 = vrot.lane.b32.xlu0 %v6644, 112
    %v7027 = vpop.permute.xlu0 %7026
    %7028 = vrot.lane.b32.xlu0 %v6640, 112
    %v7029 = vpop.permute.xlu0 %7028
    %7030 = vrot.lane.b32.xlu0 %v6646, 112
    %v7031 = vpop.permute.xlu0 %7030
    %v7032 = vsel %vm1245, %v7025, %v7029
    %v7033 = vsel %vm1245, %v7027, %v7031
    %v7034 = vsel %vm1245, %v7021, %v7025
    %v7035 = vsel %vm1245, %v7023, %v7027
    %v7036 = vsel %vm1245, %v7017, %v7021
    %v7037 = vsel %vm1245, %v7019, %v7023
    %v7038 = vsel %vm1245, %v7013, %v7017
    %v7039 = vsel %vm1245, %v7015, %v7019
    %v7040 = vsel %vm1245, %v7009, %v7013
    %v7041 = vsel %vm1245, %v7011, %v7015
    %v7042 = vsel %vm1245, %v7029, %v7009
    %v7043 = vsel %vm1245, %v7031, %v7011
    %v7044 = vadd.f32 %v6996, %v7040
    %v7045 = vadd.f32 %v6997, %v7038
    %v7046 = vadd.f32 %v6998, %v7036
    %v7047 = vadd.f32 %v6999, %v7034
    %v7048 = vadd.f32 %v7000, %v7032
    %v7049 = vadd.f32 %v7001, %v7042
    %v7050 = vadd.f32 %v7002, %v7041
    %v7051 = vadd.f32 %v7003, %v7039
    %v7052 = vadd.f32 %v7004, %v7037
    %v7053 = vadd.f32 %v7005, %v7035
    %v7054 = vadd.f32 %v7006, %v7033
    %v7055 = vadd.f32 %v7007, %v7043
    %7056 = vrot.lane.b32.xlu0 %v6304, 111
    %v7057 = vpop.permute.xlu0 %7056
    %7058 = vrot.lane.b32.xlu0 %v6310, 111
    %v7059 = vpop.permute.xlu0 %7058
    %7060 = vrot.lane.b32.xlu0 %v6306, 111
    %v7061 = vpop.permute.xlu0 %7060
    %7062 = vrot.lane.b32.xlu0 %v6312, 111
    %v7063 = vpop.permute.xlu0 %7062
    %7064 = vrot.lane.b32.xlu0 %v6477, 111
    %v7065 = vpop.permute.xlu0 %7064
    %7066 = vrot.lane.b32.xlu0 %v6483, 111
    %v7067 = vpop.permute.xlu0 %7066
    %7068 = vrot.lane.b32.xlu0 %v6479, 111
    %v7069 = vpop.permute.xlu0 %7068
    %7070 = vrot.lane.b32.xlu0 %v6485, 111
    %v7071 = vpop.permute.xlu0 %7070
    %7072 = vrot.lane.b32.xlu0 %v6650, 111
    %v7073 = vpop.permute.xlu0 %7072
    %7074 = vrot.lane.b32.xlu0 %v6656, 111
    %v7075 = vpop.permute.xlu0 %7074
    %7076 = vrot.lane.b32.xlu0 %v6652, 111
    %v7077 = vpop.permute.xlu0 %7076
    %7078 = vrot.lane.b32.xlu0 %v6658, 111
    %v7079 = vpop.permute.xlu0 %7078
    %v7080 = vsel %vm1294, %v7073, %v7077
    %v7081 = vsel %vm1294, %v7075, %v7079
    %v7082 = vsel %vm1294, %v7069, %v7073
    %v7083 = vsel %vm1294, %v7071, %v7075
    %v7084 = vsel %vm1294, %v7065, %v7069
    %v7085 = vsel %vm1294, %v7067, %v7071
    %v7086 = vsel %vm1294, %v7061, %v7065
    %v7087 = vsel %vm1294, %v7063, %v7067
    %v7088 = vsel %vm1294, %v7057, %v7061
    %v7089 = vsel %vm1294, %v7059, %v7063
    %v7090 = vsel %vm1294, %v7077, %v7057
    %v7091 = vsel %vm1294, %v7079, %v7059
    %v7092 = vmul.f32 %v7088, %v975
    %v7093 = vmul.f32 %v7086, %v979
    %v7094 = vmul.f32 %v7084, %v983
    %v7095 = vmul.f32 %v7082, %v987
    %v7096 = vmul.f32 %v7080, %v991
    %v7097 = vmul.f32 %v7090, %v995
    %v7098 = vmul.f32 %v7089, %v975
    %v7099 = vmul.f32 %v7087, %v979
    %v7100 = vmul.f32 %v7085, %v983
    %v7101 = vmul.f32 %v7083, %v987
    %v7102 = vmul.f32 %v7081, %v991
    %v7103 = vmul.f32 %v7091, %v995
    %v7104 = vadd.f32 %v7044, %v7092
    %v7105 = vadd.f32 %v7045, %v7093
    %v7106 = vadd.f32 %v7046, %v7094
    %v7107 = vadd.f32 %v7047, %v7095
    %v7108 = vadd.f32 %v7048, %v7096
    %v7109 = vadd.f32 %v7049, %v7097
    %v7110 = vadd.f32 %v7050, %v7098
    %v7111 = vadd.f32 %v7051, %v7099
    %v7112 = vadd.f32 %v7052, %v7100
    %v7113 = vadd.f32 %v7053, %v7101
    %v7114 = vadd.f32 %v7054, %v7102
    %v7115 = vadd.f32 %v7055, %v7103
    %s7116 = scalar_lea.vmem %s2, 80
    %v7117 = vld [vmem:[%s7116] sm:$0xff]
    %v7118 = vld [vmem:[%s7116 + $0x8] sm:$0xff]
    %7120 = vset.pattern.permute.xlu0 0
    %7121 = vperm.xlu0 %7120, %v7117
    %v7122 = vpop.permute.xlu0 %7121
    %7125 = vset.pattern.permute.xlu0 0
    %7126 = vperm.xlu0 %7125, %v7118
    %v7127 = vpop.permute.xlu0 %7126
    %v7129 = vadd.f32 %v7104, %v7122
    %v7130 = vadd.f32 %v7105, %v7122
    %v7131 = vadd.f32 %v7106, %v7122
    %v7132 = vadd.f32 %v7107, %v7122
    %v7133 = vadd.f32 %v7108, %v7122
    %v7134 = vadd.f32 %v7109, %v7122
    %v7135 = vadd.f32 %v7110, %v7127
    %v7136 = vadd.f32 %v7111, %v7127
    %v7137 = vadd.f32 %v7112, %v7127
    %v7138 = vadd.f32 %v7113, %v7127
    %v7139 = vadd.f32 %v7114, %v7127
    %v7140 = vadd.f32 %v7115, %v7127
    %v7141 = vmax.f32 %v7129, 0.0
    %v7142 = vmax.f32 %v7130, 0.0
    %v7143 = vmax.f32 %v7131, 0.0
    %v7144 = vmax.f32 %v7132, 0.0
    %v7145 = vmax.f32 %v7133, 0.0
    %v7146 = vmax.f32 %v7134, 0.0
    %v7147 = vmax.f32 %v7135, 0.0
    %v7148 = vmax.f32 %v7136, 0.0
    %v7149 = vmax.f32 %v7137, 0.0
    %v7150 = vmax.f32 %v7138, 0.0
    %v7151 = vmax.f32 %v7139, 0.0
    %v7152 = vmax.f32 %v7140, 0.0
    %v7153 = vmul.f32 %v7141, %v1371
    %v7154 = vmul.f32 %v7142, %v1375
    %v7155 = vmul.f32 %v7143, %v1379
    %v7156 = vmul.f32 %v7144, %v1383
    %v7157 = vmul.f32 %v7145, %v1387
    %v7158 = vmul.f32 %v7146, %v1391
    %v7159 = vmul.f32 %v7147, %v1371
    %v7160 = vmul.f32 %v7148, %v1375
    %v7161 = vmul.f32 %v7149, %v1379
    %v7162 = vmul.f32 %v7150, %v1383
    %v7163 = vmul.f32 %v7151, %v1387
    %v7164 = vmul.f32 %v7152, %v1391
    %7165 = vst [vmem:[#allocation2 + $0x2a0] sm:$0xff] %v7153
    %7166 = vst [vmem:[#allocation2 + $0x2a8] sm:$0xff] %v7154
    %7167 = vst [vmem:[#allocation2 + $0x2b0] sm:$0xff] %v7155
    %7168 = vst [vmem:[#allocation2 + $0x2b8] sm:$0xff] %v7156
    %7169 = vst [vmem:[#allocation2 + $0x2c0] sm:$0xff] %v7157
    %7170 = vst [vmem:[#allocation2 + $0x2c8] sm:$0xff] %v7158
    %7171 = vst [vmem:[#allocation2 + $0x2d0] sm:$0xff] %v7159
    %7172 = vst [vmem:[#allocation2 + $0x2d8] sm:$0xff] %v7160
    %7173 = vst [vmem:[#allocation2 + $0x2e0] sm:$0xff] %v7161
    %7174 = vst [vmem:[#allocation2 + $0x2e8] sm:$0xff] %v7162
    %7175 = vst [vmem:[#allocation2 + $0x2f0] sm:$0xff] %v7163
    %7176 = vst [vmem:[#allocation2 + $0x2f8] sm:$0xff] %v7164
    %v7177 = vld [vmem:[#allocation6] sm:$0xff]
    %v7178 = vld [vmem:[#allocation6 + $0x8] sm:$0xff]
    %v7179 = vld [vmem:[#allocation6 + $0x10] sm:$0xff]
    %v7180 = vld [vmem:[#allocation6 + $0x18] sm:$0xff]
    %v7181 = vld [vmem:[#allocation2] sm:$0xff]
    %v7182 = vld [vmem:[#allocation2 + $0x8] sm:$0xff]
    %v7183 = vld [vmem:[#allocation2 + $0x10] sm:$0xff]
    %v7184 = vld [vmem:[#allocation2 + $0x18] sm:$0xff]
    %v7185 = vld [vmem:[#allocation2 + $0x20] sm:$0xff]
    %v7186 = vld [vmem:[#allocation2 + $0x28] sm:$0xff]
    %v7187 = vld [vmem:[#allocation2 + $0x30] sm:$0xff]
    %v7188 = vld [vmem:[#allocation2 + $0x38] sm:$0xff]
    %v7189 = vld [vmem:[#allocation2 + $0x40] sm:$0xff]
    %v7190 = vld [vmem:[#allocation2 + $0x48] sm:$0xff]
    %v7191 = vld [vmem:[#allocation2 + $0x50] sm:$0xff]
    %v7192 = vld [vmem:[#allocation2 + $0x58] sm:$0xff]
    %v7193 = vld [vmem:[#allocation2 + $0x60] sm:$0xff]
    %v7194 = vld [vmem:[#allocation2 + $0x68] sm:$0xff]
    %v7195 = vld [vmem:[#allocation2 + $0x70] sm:$0xff]
    %v7196 = vld [vmem:[#allocation2 + $0x78] sm:$0xff]
    %v7197 = vld [vmem:[#allocation2 + $0x80] sm:$0xff]
    %v7198 = vld [vmem:[#allocation2 + $0x88] sm:$0xff]
    %v7199 = vld [vmem:[#allocation2 + $0x90] sm:$0xff]
    %v7200 = vld [vmem:[#allocation2 + $0x98] sm:$0xff]
    %v7201 = vld [vmem:[#allocation2 + $0xa0] sm:$0xff]
    %v7202 = vld [vmem:[#allocation2 + $0xa8] sm:$0xff]
    %v7203 = vld [vmem:[#allocation2 + $0xb0] sm:$0xff]
    %v7204 = vld [vmem:[#allocation2 + $0xb8] sm:$0xff]
    %v7205 = vld [vmem:[#allocation2 + $0xc0] sm:$0xff]
    %v7206 = vld [vmem:[#allocation2 + $0xc8] sm:$0xff]
    %v7207 = vld [vmem:[#allocation2 + $0xd0] sm:$0xff]
    %v7208 = vld [vmem:[#allocation2 + $0xd8] sm:$0xff]
    %v7209 = vld [vmem:[#allocation2 + $0xe0] sm:$0xff]
    %v7210 = vld [vmem:[#allocation2 + $0xe8] sm:$0xff]
    %v7211 = vld [vmem:[#allocation2 + $0xf0] sm:$0xff]
    %v7212 = vld [vmem:[#allocation2 + $0xf8] sm:$0xff]
    %v7213 = vld [vmem:[#allocation2 + $0x100] sm:$0xff]
    %v7214 = vld [vmem:[#allocation2 + $0x108] sm:$0xff]
    %v7215 = vld [vmem:[#allocation2 + $0x110] sm:$0xff]
    %v7216 = vld [vmem:[#allocation2 + $0x118] sm:$0xff]
    %v7217 = vld [vmem:[#allocation2 + $0x120] sm:$0xff]
    %v7218 = vld [vmem:[#allocation2 + $0x128] sm:$0xff]
    %v7219 = vld [vmem:[#allocation2 + $0x130] sm:$0xff]
    %v7220 = vld [vmem:[#allocation2 + $0x138] sm:$0xff]
    %v7221 = vld [vmem:[#allocation2 + $0x140] sm:$0xff]
    %v7222 = vld [vmem:[#allocation2 + $0x148] sm:$0xff]
    %v7223 = vld [vmem:[#allocation2 + $0x150] sm:$0xff]
    %v7224 = vld [vmem:[#allocation2 + $0x158] sm:$0xff]
    %v7225 = vld [vmem:[#allocation2 + $0x160] sm:$0xff]
    %v7226 = vld [vmem:[#allocation2 + $0x168] sm:$0xff]
    %v7227 = vld [vmem:[#allocation2 + $0x170] sm:$0xff]
    %v7228 = vld [vmem:[#allocation2 + $0x178] sm:$0xff]
    %v7229 = vld [vmem:[#allocation2 + $0x180] sm:$0xff]
    %v7230 = vld [vmem:[#allocation2 + $0x188] sm:$0xff]
    %v7231 = vld [vmem:[#allocation2 + $0x190] sm:$0xff]
    %v7232 = vld [vmem:[#allocation2 + $0x198] sm:$0xff]
    %v7233 = vld [vmem:[#allocation2 + $0x1a0] sm:$0xff]
    %v7234 = vld [vmem:[#allocation2 + $0x1a8] sm:$0xff]
    %v7235 = vld [vmem:[#allocation2 + $0x1b0] sm:$0xff]
    %v7236 = vld [vmem:[#allocation2 + $0x1b8] sm:$0xff]
    %v7237 = vld [vmem:[#allocation2 + $0x1c0] sm:$0xff]
    %v7238 = vld [vmem:[#allocation2 + $0x1c8] sm:$0xff]
    %v7239 = vld [vmem:[#allocation2 + $0x1d0] sm:$0xff]
    %v7240 = vld [vmem:[#allocation2 + $0x1d8] sm:$0xff]
    %v7241 = vld [vmem:[#allocation2 + $0x1e0] sm:$0xff]
    %v7242 = vld [vmem:[#allocation2 + $0x1e8] sm:$0xff]
    %v7243 = vld [vmem:[#allocation2 + $0x1f0] sm:$0xff]
    %v7244 = vld [vmem:[#allocation2 + $0x1f8] sm:$0xff]
    %v7245 = vld [vmem:[#allocation2 + $0x200] sm:$0xff]
    %v7246 = vld [vmem:[#allocation2 + $0x208] sm:$0xff]
    %v7247 = vld [vmem:[#allocation2 + $0x210] sm:$0xff]
    %v7248 = vld [vmem:[#allocation2 + $0x218] sm:$0xff]
    %v7249 = vld [vmem:[#allocation2 + $0x220] sm:$0xff]
    %v7250 = vld [vmem:[#allocation2 + $0x228] sm:$0xff]
    %v7251 = vld [vmem:[#allocation2 + $0x230] sm:$0xff]
    %v7252 = vld [vmem:[#allocation2 + $0x238] sm:$0xff]
    %v7253 = vld [vmem:[#allocation2 + $0x240] sm:$0xff]
    %v7254 = vld [vmem:[#allocation2 + $0x248] sm:$0xff]
    %v7255 = vld [vmem:[#allocation2 + $0x250] sm:$0xff]
    %v7256 = vld [vmem:[#allocation2 + $0x258] sm:$0xff]
    %v7257 = vld [vmem:[#allocation2 + $0x260] sm:$0xff]
    %v7258 = vld [vmem:[#allocation2 + $0x268] sm:$0xff]
    %v7259 = vld [vmem:[#allocation2 + $0x270] sm:$0xff]
    %v7260 = vld [vmem:[#allocation2 + $0x278] sm:$0xff]
    %v7261 = vld [vmem:[#allocation2 + $0x280] sm:$0xff]
    %v7262 = vld [vmem:[#allocation2 + $0x288] sm:$0xff]
    %v7263 = vld [vmem:[#allocation2 + $0x290] sm:$0xff]
    %v7264 = vld [vmem:[#allocation2 + $0x298] sm:$0xff]
    %v7265 = vld [vmem:[#allocation2 + $0x2a0] sm:$0xff]
    %v7266 = vld [vmem:[#allocation2 + $0x2a8] sm:$0xff]
    %v7267 = vld [vmem:[#allocation2 + $0x2b0] sm:$0xff]
    %v7268 = vld [vmem:[#allocation2 + $0x2b8] sm:$0xff]
    %v7269 = vld [vmem:[#allocation2 + $0x2c0] sm:$0xff]
    %v7270 = vld [vmem:[#allocation2 + $0x2c8] sm:$0xff]
    %v7271 = vld [vmem:[#allocation2 + $0x2d0] sm:$0xff]
    %v7272 = vld [vmem:[#allocation2 + $0x2d8] sm:$0xff]
    %v7273 = vld [vmem:[#allocation2 + $0x2e0] sm:$0xff]
    %v7274 = vld [vmem:[#allocation2 + $0x2e8] sm:$0xff]
    %v7275 = vld [vmem:[#allocation2 + $0x2f0] sm:$0xff]
    %v7276 = vld [vmem:[#allocation2 + $0x2f8] sm:$0xff]
    %v7277 = vld [vmem:[%s4] sm:$0xff]
    %v7278 = vld [vmem:[%s4 + $0x8] sm:$0xff]
    %v7279 = vld [vmem:[%s4 + $0x10] sm:$0xff]
    %v7280 = vld [vmem:[%s4 + $0x18] sm:$0xff]
    %7282 = vset.pattern.permute.xlu0 0
    %7283 = vperm.xlu0 %7282, %v7277
    %v7284 = vpop.permute.xlu0 %7283
    %7287 = vset.pattern.permute.xlu0 0
    %7288 = vperm.xlu0 %7287, %v7278
    %v7289 = vpop.permute.xlu0 %7288
    %7292 = vset.pattern.permute.xlu0 0
    %7293 = vperm.xlu0 %7292, %v7279
    %v7294 = vpop.permute.xlu0 %7293
    %7297 = vset.pattern.permute.xlu0 0
    %7298 = vperm.xlu0 %7297, %v7280
    %v7299 = vpop.permute.xlu0 %7298
    %7301 = vmatprep.subr.mxu0 %v7182
    %7302 = vmatpush1.msra.mxu0 %v7181
    %7303 = vmatprep.subr.mxu0 %v7188
    %7304 = vmatpush1.msra.mxu0 %v7187
    %7305 = vmatprep.subr.mxu0 %v7194
    %7306 = vmatpush1.msra.mxu0 %v7193
    %7307 = vmatprep.subr.mxu0 %v7200
    %7308 = vmatpush1.msra.mxu0 %v7199
    %7309 = vmatprep.subr.mxu0 %v7206
    %7310 = vmatpush1.msra.mxu0 %v7205
    %7311 = vmatprep.subr.mxu0 %v7212
    %7312 = vmatpush1.msra.mxu0 %v7211
    %7313 = vmatprep.subr.mxu0 %v7218
    %7314 = vmatpush1.msra.mxu0 %v7217
    %7315 = vmatprep.subr.mxu0 %v7224
    %7316 = vmatpush1.msra.mxu0 %v7223
    %7317 = vmatprep.subr.mxu0 %v7230
    %7318 = vmatpush1.msra.mxu0 %v7229
    %7319 = vmatprep.subr.mxu0 %v7236
    %7320 = vmatpush1.msra.mxu0 %v7235
    %7321 = vmatprep.subr.mxu0 %v7242
    %7322 = vmatpush1.msra.mxu0 %v7241
    %7323 = vmatprep.subr.mxu0 %v7248
    %7324 = vmatpush1.msra.mxu0 %v7247
    %7325 = vmatprep.subr.mxu0 %v7254
    %7326 = vmatpush1.msra.mxu0 %v7253
    %7327 = vmatprep.subr.mxu0 %v7260
    %7328 = vmatpush1.msra.mxu0 %v7259
    %7329 = vmatprep.subr.mxu0 %v7266
    %7330 = vmatpush1.msra.mxu0 %v7265
    %7331 = vmatprep.subr.mxu0 %v7272
    %7332 = vmatpush1.msra.mxu0 %v7271
    %7333 = vmatprep.subr.mxu0 0.0
    %7334 = vmatpush1.msra.mxu0 0.0
    %7335 = vmatprep.subr.mxu0 0.0
    %7336 = vmatpush1.msra.mxu0 0.0
    %7337 = vmatprep.subr.mxu0 0.0
    %7338 = vmatpush1.msra.mxu0 0.0
    %7339 = vmatprep.subr.mxu0 0.0
    %7340 = vmatpush1.msra.mxu0 0.0
    %7341 = vmatprep.subr.mxu0 0.0
    %7342 = vmatpush1.msra.mxu0 0.0
    %7343 = vmatprep.subr.mxu0 0.0
    %7344 = vmatpush1.msra.mxu0 0.0
    %7345 = vmatprep.subr.mxu0 0.0
    %7346 = vmatpush1.msra.mxu0 0.0
    %7347 = vmatprep.subr.mxu0 0.0
    %7348 = vmatpush1.msra.mxu0 0.0
    %7349 = vmatprep.subr.mxu0 0.0
    %7350 = vmatpush1.msra.mxu0 0.0
    %7351 = vmatprep.subr.mxu0 0.0
    %7352 = vmatpush1.msra.mxu0 0.0
    %7353 = vmatprep.subr.mxu0 0.0
    %7354 = vmatpush1.msra.mxu0 0.0
    %7355 = vmatprep.subr.mxu0 0.0
    %7356 = vmatpush1.msra.mxu0 0.0
    %7357 = vmatprep.subr.mxu0 0.0
    %7358 = vmatpush1.msra.mxu0 0.0
    %7359 = vmatprep.subr.mxu0 0.0
    %7360 = vmatpush1.msra.mxu0 0.0
    %7361 = vmatprep.subr.mxu0 0.0
    %7362 = vmatpush1.msra.mxu0 0.0
    %7363 = vmatprep.subr.mxu0 0.0
    %7364 = vmatpush1.msra.mxu0 0.0
    %7365 = vmatprep.mubr.f32.mxu0 0.0
    %7366 = vmatmul.mubr.f32.gmra.mrb[0].mxu0 %v7177
    %v7367 = vpop.f32.mrb[0].mxu0
    %v7368 = vadd.f32 %v7284, %v7367
    %v7369 = vpop.f32.mrb[0].mxu0
    %v7370 = vadd.f32 %v7284, %v7369
    %7371 = vmatprep.mubr.f32.mxu0 0.0
    %7372 = vmatmul.mubr.f32.gmra.mrb[0].mxu0 %v7178
    %v7373 = vpop.f32.mrb[0].mxu0
    %v7374 = vadd.f32 %v7289, %v7373
    %v7375 = vpop.f32.mrb[0].mxu0
    %v7376 = vadd.f32 %v7289, %v7375
    %7377 = vmatprep.mubr.f32.mxu0 0.0
    %7378 = vmatmul.mubr.f32.gmra.mrb[0].mxu0 %v7179
    %v7379 = vpop.f32.mrb[0].mxu0
    %v7380 = vadd.f32 %v7294, %v7379
    %v7381 = vpop.f32.mrb[0].mxu0
    %v7382 = vadd.f32 %v7294, %v7381
    %7383 = vmatprep.mubr.f32.mxu0 0.0
    %7384 = vmatmul.mubr.f32.gmra.mrb[0].mxu0 %v7180
    %v7385 = vpop.f32.mrb[0].mxu0
    %v7386 = vadd.f32 %v7299, %v7385
    %v7387 = vpop.f32.mrb[0].mxu0
    %v7388 = vadd.f32 %v7299, %v7387
    %7389 = vdwg.mxu0
    %7390 = vmatprep.subr.mxu0 %v7184
    %7391 = vmatpush1.msra.mxu0 %v7183
    %7392 = vmatprep.subr.mxu0 %v7190
    %7393 = vmatpush1.msra.mxu0 %v7189
    %7394 = vmatprep.subr.mxu0 %v7196
    %7395 = vmatpush1.msra.mxu0 %v7195
    %7396 = vmatprep.subr.mxu0 %v7202
    %7397 = vmatpush1.msra.mxu0 %v7201
    %7398 = vmatprep.subr.mxu0 %v7208
    %7399 = vmatpush1.msra.mxu0 %v7207
    %7400 = vmatprep.subr.mxu0 %v7214
    %7401 = vmatpush1.msra.mxu0 %v7213
    %7402 = vmatprep.subr.mxu0 %v7220
    %7403 = vmatpush1.msra.mxu0 %v7219
    %7404 = vmatprep.subr.mxu0 %v7226
    %7405 = vmatpush1.msra.mxu0 %v7225
    %7406 = vmatprep.subr.mxu0 %v7232
    %7407 = vmatpush1.msra.mxu0 %v7231
    %7408 = vmatprep.subr.mxu0 %v7238
    %7409 = vmatpush1.msra.mxu0 %v7237
    %7410 = vmatprep.subr.mxu0 %v7244
    %7411 = vmatpush1.msra.mxu0 %v7243
    %7412 = vmatprep.subr.mxu0 %v7250
    %7413 = vmatpush1.msra.mxu0 %v7249
    %7414 = vmatprep.subr.mxu0 %v7256
    %7415 = vmatpush1.msra.mxu0 %v7255
    %7416 = vmatprep.subr.mxu0 %v7262
    %7417 = vmatpush1.msra.mxu0 %v7261
    %7418 = vmatprep.subr.mxu0 %v7268
    %7419 = vmatpush1.msra.mxu0 %v7267
    %7420 = vmatprep.subr.mxu0 %v7274
    %7421 = vmatpush1.msra.mxu0 %v7273
    %7422 = vmatprep.subr.mxu0 0.0
    %7423 = vmatpush1.msra.mxu0 0.0
    %7424 = vmatprep.subr.mxu0 0.0
    %7425 = vmatpush1.msra.mxu0 0.0
    %7426 = vmatprep.subr.mxu0 0.0
    %7427 = vmatpush1.msra.mxu0 0.0
    %7428 = vmatprep.subr.mxu0 0.0
    %7429 = vmatpush1.msra.mxu0 0.0
    %7430 = vmatprep.subr.mxu0 0.0
    %7431 = vmatpush1.msra.mxu0 0.0
    %7432 = vmatprep.subr.mxu0 0.0
    %7433 = vmatpush1.msra.mxu0 0.0
    %7434 = vmatprep.subr.mxu0 0.0
    %7435 = vmatpush1.msra.mxu0 0.0
    %7436 = vmatprep.subr.mxu0 0.0
    %7437 = vmatpush1.msra.mxu0 0.0
    %7438 = vmatprep.subr.mxu0 0.0
    %7439 = vmatpush1.msra.mxu0 0.0
    %7440 = vmatprep.subr.mxu0 0.0
    %7441 = vmatpush1.msra.mxu0 0.0
    %7442 = vmatprep.subr.mxu0 0.0
    %7443 = vmatpush1.msra.mxu0 0.0
    %7444 = vmatprep.subr.mxu0 0.0
    %7445 = vmatpush1.msra.mxu0 0.0
    %7446 = vmatprep.subr.mxu0 0.0
    %7447 = vmatpush1.msra.mxu0 0.0
    %7448 = vmatprep.subr.mxu0 0.0
    %7449 = vmatpush1.msra.mxu0 0.0
    %7450 = vmatprep.subr.mxu0 0.0
    %7451 = vmatpush1.msra.mxu0 0.0
    %7452 = vmatprep.subr.mxu0 0.0
    %7453 = vmatpush1.msra.mxu0 0.0
    %7454 = vmatprep.mubr.f32.mxu0 0.0
    %7455 = vmatmul.mubr.f32.gmra.mrb[0].mxu0 %v7177
    %v7456 = vpop.f32.mrb[0].mxu0
    %v7457 = vpop.f32.mrb[0].mxu0
    %v7458 = vadd.f32 %v7284, %v7457
    %7459 = vmatprep.mubr.f32.mxu0 0.0
    %7460 = vmatmul.mubr.f32.gmra.mrb[0].mxu0 %v7178
    %v7461 = vpop.f32.mrb[0].mxu0
    %v7462 = vpop.f32.mrb[0].mxu0
    %v7463 = vadd.f32 %v7289, %v7462
    %7464 = vmatprep.mubr.f32.mxu0 0.0
    %7465 = vmatmul.mubr.f32.gmra.mrb[0].mxu0 %v7179
    %v7466 = vpop.f32.mrb[0].mxu0
    %v7467 = vpop.f32.mrb[0].mxu0
    %v7468 = vadd.f32 %v7294, %v7467
    %7469 = vmatprep.mubr.f32.mxu0 0.0
    %7470 = vmatmul.mubr.f32.gmra.mrb[0].mxu0 %v7180
    %v7471 = vpop.f32.mrb[0].mxu0
    %v7472 = vpop.f32.mrb[0].mxu0
    %v7473 = vadd.f32 %v7299, %v7472
    %7474 = vdwg.mxu0
    %7475 = vmatprep.subr.mxu0 %v7186
    %7476 = vmatpush1.msra.mxu0 %v7185
    %7477 = vmatprep.subr.mxu0 %v7192
    %7478 = vmatpush1.msra.mxu0 %v7191
    %7479 = vmatprep.subr.mxu0 %v7198
    %7480 = vmatpush1.msra.mxu0 %v7197
    %7481 = vmatprep.subr.mxu0 %v7204
    %7482 = vmatpush1.msra.mxu0 %v7203
    %7483 = vmatprep.subr.mxu0 %v7210
    %7484 = vmatpush1.msra.mxu0 %v7209
    %7485 = vmatprep.subr.mxu0 %v7216
    %7486 = vmatpush1.msra.mxu0 %v7215
    %7487 = vmatprep.subr.mxu0 %v7222
    %7488 = vmatpush1.msra.mxu0 %v7221
    %7489 = vmatprep.subr.mxu0 %v7228
    %7490 = vmatpush1.msra.mxu0 %v7227
    %7491 = vmatprep.subr.mxu0 %v7234
    %7492 = vmatpush1.msra.mxu0 %v7233
    %7493 = vmatprep.subr.mxu0 %v7240
    %7494 = vmatpush1.msra.mxu0 %v7239
    %7495 = vmatprep.subr.mxu0 %v7246
    %7496 = vmatpush1.msra.mxu0 %v7245
    %7497 = vmatprep.subr.mxu0 %v7252
    %7498 = vmatpush1.msra.mxu0 %v7251
    %7499 = vmatprep.subr.mxu0 %v7258
    %7500 = vmatpush1.msra.mxu0 %v7257
    %7501 = vmatprep.subr.mxu0 %v7264
    %7502 = vmatpush1.msra.mxu0 %v7263
    %7503 = vmatprep.subr.mxu0 %v7270
    %7504 = vmatpush1.msra.mxu0 %v7269
    %7505 = vmatprep.subr.mxu0 %v7276
    %7506 = vmatpush1.msra.mxu0 %v7275
    %7507 = vmatprep.subr.mxu0 0.0
    %7508 = vmatpush1.msra.mxu0 0.0
    %7509 = vmatprep.subr.mxu0 0.0
    %7510 = vmatpush1.msra.mxu0 0.0
    %7511 = vmatprep.subr.mxu0 0.0
    %7512 = vmatpush1.msra.mxu0 0.0
    %7513 = vmatprep.subr.mxu0 0.0
    %7514 = vmatpush1.msra.mxu0 0.0
    %7515 = vmatprep.subr.mxu0 0.0
    %7516 = vmatpush1.msra.mxu0 0.0
    %7517 = vmatprep.subr.mxu0 0.0
    %7518 = vmatpush1.msra.mxu0 0.0
    %7519 = vmatprep.subr.mxu0 0.0
    %7520 = vmatpush1.msra.mxu0 0.0
    %7521 = vmatprep.subr.mxu0 0.0
    %7522 = vmatpush1.msra.mxu0 0.0
    %7523 = vmatprep.subr.mxu0 0.0
    %7524 = vmatpush1.msra.mxu0 0.0
    %7525 = vmatprep.subr.mxu0 0.0
    %7526 = vmatpush1.msra.mxu0 0.0
    %7527 = vmatprep.subr.mxu0 0.0
    %7528 = vmatpush1.msra.mxu0 0.0
    %7529 = vmatprep.subr.mxu0 0.0
    %7530 = vmatpush1.msra.mxu0 0.0
    %7531 = vmatprep.subr.mxu0 0.0
    %7532 = vmatpush1.msra.mxu0 0.0
    %7533 = vmatprep.subr.mxu0 0.0
    %7534 = vmatpush1.msra.mxu0 0.0
    %7535 = vmatprep.subr.mxu0 0.0
    %7536 = vmatpush1.msra.mxu0 0.0
    %7537 = vmatprep.subr.mxu0 0.0
    %7538 = vmatpush1.msra.mxu0 0.0
    %7539 = vmatprep.mubr.f32.mxu0 0.0
    %7540 = vmatmul.mubr.f32.gmra.mrb[0].mxu0 %v7177
    %v7541 = vpop.f32.mrb[0].mxu0
    %v7542 = vadd.f32 %v7284, %v7541
    %v7543 = vpop.f32.mrb[0].mxu0
    %7544 = vmatprep.mubr.f32.mxu0 0.0
    %7545 = vmatmul.mubr.f32.gmra.mrb[0].mxu0 %v7178
    %v7546 = vpop.f32.mrb[0].mxu0
    %v7547 = vadd.f32 %v7289, %v7546
    %v7548 = vpop.f32.mrb[0].mxu0
    %7549 = vmatprep.mubr.f32.mxu0 0.0
    %7550 = vmatmul.mubr.f32.gmra.mrb[0].mxu0 %v7179
    %v7551 = vpop.f32.mrb[0].mxu0
    %v7552 = vadd.f32 %v7294, %v7551
    %v7553 = vpop.f32.mrb[0].mxu0
    %7554 = vmatprep.mubr.f32.mxu0 0.0
    %7555 = vmatmul.mubr.f32.gmra.mrb[0].mxu0 %v7180
    %v7556 = vpop.f32.mrb[0].mxu0
    %v7557 = vadd.f32 %v7299, %v7556
    %v7558 = vpop.f32.mrb[0].mxu0
    %7559 = vdwg.mxu0
    %v7560 = vld [vmem:[%s0] sm:$0xff]
    %v7561 = vld [vmem:[%s0 + $0x8] sm:$0xff]
    %v7562 = vld [vmem:[%s0 + $0x10] sm:$0xff]
    %v7563 = vld [vmem:[%s0 + $0x18] sm:$0xff]
    %v7564 = vld [vmem:[%s0 + $0x20] sm:$0xff]
    %v7565 = vld [vmem:[%s0 + $0x28] sm:$0xff]
    %v7566 = vld [vmem:[%s0 + $0x30] sm:$0xff]
    %v7567 = vld [vmem:[%s0 + $0x38] sm:$0xff]
    %v7568 = vadd.f32 %v7368, %v7560
    %v7569 = vadd.f32 %v7370, %v7561
    %v7570 = vadd.f32 %v7374, %v7562
    %v7571 = vadd.f32 %v7376, %v7563
    %v7572 = vadd.f32 %v7380, %v7564
    %v7573 = vadd.f32 %v7382, %v7565
    %v7574 = vadd.f32 %v7386, %v7566
    %v7575 = vadd.f32 %v7388, %v7567
    %7576 = vst [vmem:[#allocation8] sm:$0xff] %v7568
    %7577 = vst [vmem:[#allocation8 + $0x8] sm:$0xff] %v7569
    %7578 = vst [vmem:[#allocation8 + $0x10] sm:$0xff] %v7570
    %7579 = vst [vmem:[#allocation8 + $0x18] sm:$0xff] %v7571
    %7580 = vst [vmem:[#allocation8 + $0x20] sm:$0xff] %v7572
    %7581 = vst [vmem:[#allocation8 + $0x28] sm:$0xff] %v7573
    %7582 = vst [vmem:[#allocation8 + $0x30] sm:$0xff] %v7574
    %7583 = vst [vmem:[#allocation8 + $0x38] sm:$0xff] %v7575
    %v7584 = vld [vmem:[%s148] sm:$0xff]
    %v7585 = vld [vmem:[%s148 + $0x8] sm:$0xff]
    %v7586 = vld [vmem:[%s148 + $0x10] sm:$0xff]
    %v7587 = vld [vmem:[%s148 + $0x18] sm:$0xff]
    %v7588 = vld [vmem:[%s148 + $0x20] sm:$0xff]
    %v7589 = vld [vmem:[%s148 + $0x28] sm:$0xff]
    %v7590 = vld [vmem:[%s148 + $0x30] sm:$0xff]
    %v7591 = vld [vmem:[%s148 + $0x38] sm:$0xff]
    %v7592 = vadd.f32 %v7458, %v7584
    %v7593 = vadd.f32 %v7542, %v7585
    %v7594 = vadd.f32 %v7463, %v7586
    %v7595 = vadd.f32 %v7547, %v7587
    %v7596 = vadd.f32 %v7468, %v7588
    %v7597 = vadd.f32 %v7552, %v7589
    %v7598 = vadd.f32 %v7473, %v7590
    %v7599 = vadd.f32 %v7557, %v7591
    %s7600 = scalar_lea.vmem [#allocation8], 64
    %7601 = vst [vmem:[%s7600] sm:$0xff] %v7592
    %7602 = vst [vmem:[%s7600 + $0x8] sm:$0xff] %v7593
    %7603 = vst [vmem:[%s7600 + $0x10] sm:$0xff] %v7594
    %7604 = vst [vmem:[%s7600 + $0x18] sm:$0xff] %v7595
    %7605 = vst [vmem:[%s7600 + $0x20] sm:$0xff] %v7596
    %7606 = vst [vmem:[%s7600 + $0x28] sm:$0xff] %v7597
    %7607 = vst [vmem:[%s7600 + $0x30] sm:$0xff] %v7598
    %7608 = vst [vmem:[%s7600 + $0x38] sm:$0xff] %v7599
    // Predicated region
    $region34: #{tpu_custom_call.1} parent=1 // pred_check
      _
    $region35: #{tpu_custom_call.1} parent=1 // pred_check_branch
      %7610 = sbr.rel (0) target = $region37
    $region36: #{tpu_custom_call.1} parent=1 // pred_region
      %s7612 = ssub.s32 2048, 2048
      %7613 = vsyncadd [#allocation5], %s7612
      %s7614 = sshll.u32 [#allocation8], 4
      %s7615 = int_to_ptr.vmem [resolvable:$true] %s7614
      %7620 = dma.vmem_to_hbm [thread:$0]  %s7615, 2048, %s6, [#allocation5], 256, 256, 16
    $region37: #{tpu_custom_call.1} parent=1 // pred_fallthru
      _
    // Predicated region
    $region38: #{tpu_custom_call.1} parent=1 // pred_check
      _
    $region39: #{tpu_custom_call.1} parent=1 // pred_check_branch
      %7622 = sbr.rel (0) target = $region41
    $region40: #{tpu_custom_call.1} parent=1 // pred_region
      %7623 = dma.done [#allocation5], 2048
    $region41: #{tpu_custom_call.1} parent=1 // pred_fallthru
      _
    %7624 = vsyncpa [#allocation4], 1
    %7625 = vsyncpa [#allocation7], 1
    %7626 = vsyncpa [#allocation5], 1

</llo_original>
